<compile_context>
chip_gen: v6e
topology: v6e:2x2x1
jax: 0.10.0
libtpu: 0.0.40
codegen_flags: <defaults>
</compile_context>

<pallas_src>
import functools

import jax
import jax.numpy as jnp
from jax import lax
from jax.experimental import pallas as pl
from jax.experimental.pallas import tpu as pltpu

EPS = 1e-5
CP = 128   # lane-padded channel width (all activations / weights lane-dense)
KP = 128   # lane-padded conv1 im2col contraction width (9*Cin <= 128)

# Natural (dy-major) relative tap order, used for conv2.
_TAPS_REL = [(dy - 1, dx - 1) for dy in range(3) for dx in range(3)]
# conv1 im2col column order: centre tap first, so lanes [0, Cin) of the patch
# matrix are exactly x (the residual reads straight out of lanes [0, C2)).
_TAPS_C1 = [(0, 0)] + [t for t in _TAPS_REL if t != (0, 0)]


def _round_up(x, m):
    return (x + m - 1) // m * m


def resnet_block_kernel(sel_r_ref, sel_c_ref, patches_ref, w1_ref, w2_ref,
                        prow_ref, o_ref, scr_ref, *, wp, pad, pmm, inv_p, c2):
    # sel_r_ref:   (8, pmm)   row 0 = 1.0 at real pixels, 0.0 at pad rows
    # sel_c_ref:   (pmm, 1)   same selector as a per-row column (lane bcast)
    # patches_ref: (pmm, KP)  conv1 im2col in padded-grid layout, centre first
    # w1_ref:      (KP, CP)   conv1 weight matrix (zero padded)
    # w2_ref:      (9, CP, CP) conv2 per-tap weight matrices (zero padded)
    # prow_ref:    (8, CP)    rows: b1, g1, be1, b2, g2, be2, 0, 0
    # o_ref:       (pmm, CP)  lane-dense output (real channels in lanes [0,c2))
    # scr_ref:     (mrows, CP) halo scratch; y1 lives at rows [pad, pad+pmm)
    f32 = jnp.float32
    patches = patches_ref[...]
    sel_r = sel_r_ref[...]
    sel_c = sel_c_ref[...]

    b1, g1, be1 = prow_ref[0:1, :], prow_ref[1:2, :], prow_ref[2:3, :]
    b2, g2, be2 = prow_ref[3:4, :], prow_ref[4:5, :], prow_ref[5:6, :]

    def batchnorm(acc, gamma, beta):
        # Training-mode BN over the real pixels only.  Both reductions run on
        # the MXU (selector-row matmuls), not as cross-sublane jnp.sum; the
        # variance is the two-pass (subtract-mean) form.  Padded lanes stay
        # exactly zero because gamma/beta are zero-padded.
        m = jnp.dot(sel_r, acc, preferred_element_type=f32)[0:1, :] * inv_p
        d = acc - m
        v = jnp.dot(sel_r, d * d, preferred_element_type=f32)[0:1, :] * inv_p
        return d * (lax.rsqrt(v + EPS) * gamma) + beta

    # ---- conv1 + bias + ReLU: one aligned (pmm,128)@(128,128) MXU call ----
    acc1 = jnp.dot(patches, w1_ref[...], preferred_element_type=f32)
    y1 = batchnorm(jnp.maximum(acc1 + b1, 0.0), g1, be1)
    # Zero every halo/pad row so the scratch provides exact SAME zero padding.
    y1 = y1 * sel_c

    # ---- halo scratch: zero the margins once, write y1 once (aligned) ----
    nbot = scr_ref.shape[0] - (pad + pmm)
    scr_ref[0:pad, :] = jnp.zeros((pad, CP), f32)
    scr_ref[pad + pmm:, :] = jnp.zeros((nbot, CP), f32)
    scr_ref[pad:pad + pmm, :] = y1

    # ---- conv2: 9 aligned matmuls; LHS = plain shifted slice reads ----
    acc2 = None
    for t, (di, dj) in enumerate(_TAPS_REL):
        s = di * wp + dj                       # static flat row offset
        lhs = scr_ref[pad + s:pad + s + pmm, :]
        part = jnp.dot(lhs, w2_ref[t], preferred_element_type=f32)
        acc2 = part if acc2 is None else acc2 + part
    y2 = batchnorm(acc2 + b2, g2, be2)

    # ---- residual: x's first c2 channels sit in the centre-tap lanes ----
    lane = lax.broadcasted_iota(jnp.int32, (1, CP), 1)
    resid = jnp.where(lane < c2, patches, 0.0)
    o_ref[...] = y2 + resid


def resnet_block(x_nchw, params):
    """Forward pass. x_nchw: (N, Cin, H, W) float32, NCHW like PyTorch."""
    w1, b1, g1, be1, w2, b2, g2, be2 = params          # PyTorch layouts
    N, Cin, H, W = x_nchw.shape
    C1, C2 = w1.shape[0], w2.shape[0]
    assert 9 * Cin <= KP and max(Cin, C1, C2) <= CP

    f32 = jnp.float32
    # Padded-grid layout: real pixel (n,i,j) at (row_p, col_p) =
    # (n*(H+1)+1+i, 1+j); one shared zero row between/around images, one zero
    # column each side.  Flat row index R = row_p*Wp + col_p, so a conv tap
    # (di,dj) is a constant flat-row shift of di*Wp + dj.
    Hp = N * (H + 1) + 1
    Wp = W + 2
    Ptot = Hp * Wp
    Pmm = _round_up(Ptot, 128)        # aligned matmul row count
    PAD = _round_up(Wp + 1, 8)        # sublane-aligned scratch top margin
    Mrows = _round_up(PAD + Pmm + Wp + 1, 8)
    P = N * H * W
    inv_p = 1.0 / P

    x_nhwc = jnp.transpose(x_nchw, (0, 2, 3, 1)).astype(f32)
    big = jnp.zeros((Hp, Wp, Cin), f32)
    big = big.at[1:1 + N * (H + 1)].set(
        jnp.pad(x_nhwc, ((0, 0), (0, 1), (1, 1), (0, 0))).reshape(
            N * (H + 1), Wp, Cin))

    # conv1 im2col in padded-grid layout (centre tap first), zero-padded lanes.
    big2 = jnp.pad(big, ((1, 1), (1, 1), (0, 0)))
    cols = [big2[1 + di:1 + di + Hp, 1 + dj:1 + dj + Wp, :]
            for di, dj in _TAPS_C1]
    patches = jnp.concatenate(cols, axis=-1).reshape(Ptot, 9 * Cin)
    patches_p = jnp.zeros((Pmm, KP), f32).at[:Ptot, :9 * Cin].set(patches)

    # Real-pixel selector (1.0 at real rows, 0.0 at every pad row).
    idx = jnp.arange(Ptot)
    rp, cpos = idx // Wp, idx % Wp
    real = ((cpos >= 1) & (cpos <= W) & (rp % (H + 1) != 0)).astype(f32)
    sel = jnp.zeros((Pmm,), f32).at[:Ptot].set(real)
    sel_rows = jnp.zeros((8, Pmm), f32).at[0].set(sel)   # MXU reduction LHS
    sel_col = sel.reshape(Pmm, 1)                        # per-row zeroing mask

    # conv1 weight: PyTorch (O,I,kH,kW) -> (KP,CP), rows in centre-first order.
    w1k = jnp.transpose(w1, (2, 3, 1, 0)).astype(f32)                # (3,3,I,O)
    w1_rows = jnp.concatenate([w1k[1 + di, 1 + dj] for di, dj in _TAPS_C1], 0)
    w1m = jnp.zeros((KP, CP), f32).at[:9 * Cin, :C1].set(w1_rows)

    # conv2 weight: (O,I,kH,kW) -> (9,CP,CP), natural (dy-major) tap order.
    w2k = jnp.transpose(w2, (2, 3, 1, 0)).astype(f32).reshape(9, C1, C2)
    w2m = jnp.zeros((9, CP, CP), f32).at[:, :C1, :C2].set(w2k)

    # bias / gamma / beta packed into a single (8, CP) parameter block.
    def row(v):
        return jnp.pad(v.astype(f32).reshape(1, -1),
                       ((0, 0), (0, CP - v.shape[0])))
    prow = jnp.concatenate([row(b1), row(g1), row(be1),
                            row(b2), row(g2), row(be2),
                            jnp.zeros((2, CP), f32)], axis=0)

    kernel = functools.partial(resnet_block_kernel, wp=Wp, pad=PAD, pmm=Pmm,
                               inv_p=inv_p, c2=C2)
    vmem = pl.BlockSpec(memory_space=pltpu.MemorySpace.VMEM)
    out = pl.pallas_call(
        kernel,
        out_shape=jax.ShapeDtypeStruct((Pmm, CP), f32),
        in_specs=[vmem] * 6,
        out_specs=vmem,
        scratch_shapes=[pltpu.VMEM((Mrows, CP), f32)],
    )(sel_rows, sel_col, patches_p, w1m, w2m, prow)

    # Extract the real pixels from the padded-grid layout.
    out = out[:Ptot].reshape(Hp, Wp, CP)
    out = out[1:1 + N * (H + 1)].reshape(N, H + 1, Wp, CP)[:, :H, 1:1 + W, :C2]
    return jnp.transpose(out, (0, 3, 1, 2))               # back to NCHW


def ref_forward(x, params):
    """Pure-JAX reference mirroring the (fixed-up) PyTorch forward."""
    w1, b1, g1, be1, w2, b2, g2, be2 = params
    dn = ("NCHW", "OIHW", "NCHW")

    def bn(y, g, be):
        m = y.mean(axis=(0, 2, 3), keepdims=True)
        v = ((y - m) ** 2).mean(axis=(0, 2, 3), keepdims=True)
        return (y - m) / jnp.sqrt(v + EPS) * g.reshape(1, -1, 1, 1) \
               + be.reshape(1, -1, 1, 1)

    y = lax.conv_general_dilated(x, w1, (1, 1), "SAME", dimension_numbers=dn)
    y = jnp.maximum(y + b1.reshape(1, -1, 1, 1), 0.0)
    y = bn(y, g1, be1)
    y = lax.conv_general_dilated(y, w2, (1, 1), "SAME", dimension_numbers=dn)
    y = y + b2.reshape(1, -1, 1, 1)
    y = bn(y, g2, be2)
    return x[:, : y.shape[1]] + y


if __name__ == "__main__":
    key = jax.random.PRNGKey(0)
    kx, k1, kb1, k2, kb2 = jax.random.split(key, 5)

    N, Cin, H, W = 2, 4, 16, 16
    C1 = C2 = 3

    x = jax.random.normal(kx, (N, Cin, H, W), jnp.float32)
    w1 = jax.random.normal(k1, (C1, Cin, 3, 3), jnp.float32) * 0.2
    b1 = jax.random.normal(kb1, (C1,), jnp.float32) * 0.1
    w2 = jax.random.normal(k2, (C2, C1, 3, 3), jnp.float32) * 0.2
    b2 = jax.random.normal(kb2, (C2,), jnp.float32) * 0.1
    g1 = jnp.ones((C1,), jnp.float32)
    be1 = jnp.zeros((C1,), jnp.float32)
    g2 = jnp.ones((C2,), jnp.float32)
    be2 = jnp.zeros((C2,), jnp.float32)
    params = (w1, b1, g1, be1, w2, b2, g2, be2)

    out = jax.block_until_ready(resnet_block(x, params))
    ref = ref_forward(x, params)

    assert out.shape == (N, C2, H, W), out.shape
    max_err = float(jnp.abs(out - ref).max())
    assert jnp.allclose(out, ref, atol=1e-3, rtol=1e-3), max_err
    print("KERNEL_OK")
</pallas_src>

<mosaic_0001>
module attributes {stable_mosaic.version = 11 : i64} {
  func.func @resnet_block_kernel(%arg0: memref<8x640xf32, #tpu.memory_space<vmem>>, %arg1: memref<640x1xf32, #tpu.memory_space<vmem>>, %arg2: memref<640x128xf32, #tpu.memory_space<vmem>>, %arg3: memref<128x128xf32, #tpu.memory_space<vmem>>, %arg4: memref<9x128x128xf32, #tpu.memory_space<vmem>>, %arg5: memref<8x128xf32, #tpu.memory_space<vmem>>, %arg6: memref<640x128xf32, #tpu.memory_space<vmem>>, %arg7: memref<688x128xf32, #tpu.memory_space<vmem>>) attributes {dimension_semantics = [], scalar_prefetch = 0 : i64, scratch_operands = 1 : i64, tpu.core_type = #tpu.core_type<tc>} {
    %c0 = arith.constant 0 : index
    %c0_0 = arith.constant 0 : index
    %0 = vector.load %arg2[%c0, %c0_0] : memref<640x128xf32, #tpu.memory_space<vmem>>, vector<640x128xf32>
    %c0_1 = arith.constant 0 : index
    %c0_2 = arith.constant 0 : index
    %1 = vector.load %arg0[%c0_1, %c0_2] : memref<8x640xf32, #tpu.memory_space<vmem>>, vector<8x640xf32>
    %c0_3 = arith.constant 0 : index
    %c0_4 = arith.constant 0 : index
    %2 = vector.load %arg1[%c0_3, %c0_4] : memref<640x1xf32, #tpu.memory_space<vmem>>, vector<640x1xf32>
    %c0_5 = arith.constant 0 : index
    %c0_6 = arith.constant 0 : index
    %3 = vector.load %arg5[%c0_5, %c0_6] : memref<8x128xf32, #tpu.memory_space<vmem>>, vector<1x128xf32>
    %c1 = arith.constant 1 : index
    %c0_7 = arith.constant 0 : index
    %4 = vector.load %arg5[%c1, %c0_7] : memref<8x128xf32, #tpu.memory_space<vmem>>, vector<1x128xf32>
    %c2 = arith.constant 2 : index
    %c0_8 = arith.constant 0 : index
    %5 = vector.load %arg5[%c2, %c0_8] : memref<8x128xf32, #tpu.memory_space<vmem>>, vector<1x128xf32>
    %c3 = arith.constant 3 : index
    %c0_9 = arith.constant 0 : index
    %6 = vector.load %arg5[%c3, %c0_9] : memref<8x128xf32, #tpu.memory_space<vmem>>, vector<1x128xf32>
    %c4 = arith.constant 4 : index
    %c0_10 = arith.constant 0 : index
    %7 = vector.load %arg5[%c4, %c0_10] : memref<8x128xf32, #tpu.memory_space<vmem>>, vector<1x128xf32>
    %c5 = arith.constant 5 : index
    %c0_11 = arith.constant 0 : index
    %8 = vector.load %arg5[%c5, %c0_11] : memref<8x128xf32, #tpu.memory_space<vmem>>, vector<1x128xf32>
    %c0_12 = arith.constant 0 : index
    %c0_13 = arith.constant 0 : index
    %9 = vector.load %arg3[%c0_12, %c0_13] : memref<128x128xf32, #tpu.memory_space<vmem>>, vector<128x128xf32>
    %cst = arith.constant dense<0.000000e+00> : vector<640x128xf32>
    %10 = tpu.matmul %0, %9, %cst {dimension_numbers = #tpu.dot_dimension_numbers<[1], [0], [0], [1], [0, 0, 1, 1], [], []>} : vector<640x128xf32>, vector<128x128xf32>, vector<640x128xf32> -> vector<640x128xf32>
    %11 = vector.broadcast %3 : vector<1x128xf32> to vector<640x128xf32>
    %12 = arith.addf %10, %11 : vector<640x128xf32>
    %cst_14 = arith.constant 0.000000e+00 : f32
    %13 = vector.broadcast %cst_14 : f32 to vector<640x128xf32>
    %14 = arith.maximumf %12, %13 : vector<640x128xf32>
    %cst_15 = arith.constant dense<0.000000e+00> : vector<8x128xf32>
    %15 = tpu.matmul %1, %14, %cst_15 {dimension_numbers = #tpu.dot_dimension_numbers<[1], [0], [0], [1], [0, 0, 1, 1], [], []>} : vector<8x640xf32>, vector<640x128xf32>, vector<8x128xf32> -> vector<8x128xf32>
    %16 = vector.extract_strided_slice %15 {offsets = [0, 0], sizes = [1, 128], strides = [1, 1]} : vector<8x128xf32> to vector<1x128xf32>
    %cst_16 = arith.constant 0.001953125 : f32
    %17 = vector.broadcast %cst_16 : f32 to vector<1x128xf32>
    %18 = arith.mulf %16, %17 : vector<1x128xf32>
    %19 = vector.broadcast %18 : vector<1x128xf32> to vector<640x128xf32>
    %20 = arith.subf %14, %19 : vector<640x128xf32>
    %21 = arith.mulf %20, %20 : vector<640x128xf32>
    %cst_17 = arith.constant dense<0.000000e+00> : vector<8x128xf32>
    %22 = tpu.matmul %1, %21, %cst_17 {dimension_numbers = #tpu.dot_dimension_numbers<[1], [0], [0], [1], [0, 0, 1, 1], [], []>} : vector<8x640xf32>, vector<640x128xf32>, vector<8x128xf32> -> vector<8x128xf32>
    %23 = vector.extract_strided_slice %22 {offsets = [0, 0], sizes = [1, 128], strides = [1, 1]} : vector<8x128xf32> to vector<1x128xf32>
    %cst_18 = arith.constant 0.001953125 : f32
    %24 = vector.broadcast %cst_18 : f32 to vector<1x128xf32>
    %25 = arith.mulf %23, %24 : vector<1x128xf32>
    %cst_19 = arith.constant 9.99999974E-6 : f32
    %26 = vector.broadcast %cst_19 : f32 to vector<1x128xf32>
    %27 = arith.addf %25, %26 : vector<1x128xf32>
    %28 = math.rsqrt %27 : vector<1x128xf32>
    %29 = arith.mulf %28, %4 : vector<1x128xf32>
    %30 = vector.broadcast %29 : vector<1x128xf32> to vector<640x128xf32>
    %31 = arith.mulf %20, %30 : vector<640x128xf32>
    %32 = vector.broadcast %5 : vector<1x128xf32> to vector<640x128xf32>
    %33 = arith.addf %31, %32 : vector<640x128xf32>
    %34 = vector.broadcast %2 : vector<640x1xf32> to vector<640x128xf32>
    %35 = arith.mulf %33, %34 : vector<640x128xf32>
    %cst_20 = arith.constant 0.000000e+00 : f32
    %36 = vector.broadcast %cst_20 : f32 to vector<24x128xf32>
    %c0_21 = arith.constant 0 : index
    %c0_22 = arith.constant 0 : index
    %37 = vector.load %arg7[%c0_21, %c0_22] : memref<688x128xf32, #tpu.memory_space<vmem>>, vector<24x128xf32>
    tpu.vector_store %arg7[%c0_21, %c0_22], %36 {strides = array<i32>} : memref<688x128xf32, #tpu.memory_space<vmem>>, vector<24x128xf32>,
    %cst_23 = arith.constant 0.000000e+00 : f32
    %38 = vector.broadcast %cst_23 : f32 to vector<24x128xf32>
    %c664 = arith.constant 664 : index
    %c0_24 = arith.constant 0 : index
    %39 = vector.load %arg7[%c664, %c0_24] : memref<688x128xf32, #tpu.memory_space<vmem>>, vector<24x128xf32>
    tpu.vector_store %arg7[%c664, %c0_24], %38 {strides = array<i32>} : memref<688x128xf32, #tpu.memory_space<vmem>>, vector<24x128xf32>,
    %c24 = arith.constant 24 : index
    %c0_25 = arith.constant 0 : index
    %40 = vector.load %arg7[%c24, %c0_25] : memref<688x128xf32, #tpu.memory_space<vmem>>, vector<640x128xf32>
    tpu.vector_store %arg7[%c24, %c0_25], %35 {strides = array<i32>} : memref<688x128xf32, #tpu.memory_space<vmem>>, vector<640x128xf32>,
    %c5_26 = arith.constant 5 : index
    %c0_27 = arith.constant 0 : index
    %41 = vector.load %arg7[%c5_26, %c0_27] : memref<688x128xf32, #tpu.memory_space<vmem>>, vector<640x128xf32>
    %c0_28 = arith.constant 0 : index
    %c0_29 = arith.constant 0 : index
    %c0_30 = arith.constant 0 : index
    %42 = vector.load %arg4[%c0_28, %c0_29, %c0_30] : memref<9x128x128xf32, #tpu.memory_space<vmem>>, vector<1x128x128xf32>
    %43 = vector.shape_cast %42 : vector<1x128x128xf32> to vector<128x128xf32>
    %cst_31 = arith.constant dense<0.000000e+00> : vector<640x128xf32>
    %44 = tpu.matmul %41, %43, %cst_31 {dimension_numbers = #tpu.dot_dimension_numbers<[1], [0], [0], [1], [0, 0, 1, 1], [], []>} : vector<640x128xf32>, vector<128x128xf32>, vector<640x128xf32> -> vector<640x128xf32>
    %c6 = arith.constant 6 : index
    %c0_32 = arith.constant 0 : index
    %45 = vector.load %arg7[%c6, %c0_32] : memref<688x128xf32, #tpu.memory_space<vmem>>, vector<640x128xf32>
    %c1_33 = arith.constant 1 : index
    %c0_34 = arith.constant 0 : index
    %c0_35 = arith.constant 0 : index
    %46 = vector.load %arg4[%c1_33, %c0_34, %c0_35] : memref<9x128x128xf32, #tpu.memory_space<vmem>>, vector<1x128x128xf32>
    %47 = vector.shape_cast %46 : vector<1x128x128xf32> to vector<128x128xf32>
    %cst_36 = arith.constant dense<0.000000e+00> : vector<640x128xf32>
    %48 = tpu.matmul %45, %47, %cst_36 {dimension_numbers = #tpu.dot_dimension_numbers<[1], [0], [0], [1], [0, 0, 1, 1], [], []>} : vector<640x128xf32>, vector<128x128xf32>, vector<640x128xf32> -> vector<640x128xf32>
    %49 = arith.addf %44, %48 : vector<640x128xf32>
    %c7 = arith.constant 7 : index
    %c0_37 = arith.constant 0 : index
    %50 = vector.load %arg7[%c7, %c0_37] : memref<688x128xf32, #tpu.memory_space<vmem>>, vector<640x128xf32>
    %c2_38 = arith.constant 2 : index
    %c0_39 = arith.constant 0 : index
    %c0_40 = arith.constant 0 : index
    %51 = vector.load %arg4[%c2_38, %c0_39, %c0_40] : memref<9x128x128xf32, #tpu.memory_space<vmem>>, vector<1x128x128xf32>
    %52 = vector.shape_cast %51 : vector<1x128x128xf32> to vector<128x128xf32>
    %cst_41 = arith.constant dense<0.000000e+00> : vector<640x128xf32>
    %53 = tpu.matmul %50, %52, %cst_41 {dimension_numbers = #tpu.dot_dimension_numbers<[1], [0], [0], [1], [0, 0, 1, 1], [], []>} : vector<640x128xf32>, vector<128x128xf32>, vector<640x128xf32> -> vector<640x128xf32>
    %54 = arith.addf %49, %53 : vector<640x128xf32>
    %c23 = arith.constant 23 : index
    %c0_42 = arith.constant 0 : index
    %55 = vector.load %arg7[%c23, %c0_42] : memref<688x128xf32, #tpu.memory_space<vmem>>, vector<640x128xf32>
    %c3_43 = arith.constant 3 : index
    %c0_44 = arith.constant 0 : index
    %c0_45 = arith.constant 0 : index
    %56 = vector.load %arg4[%c3_43, %c0_44, %c0_45] : memref<9x128x128xf32, #tpu.memory_space<vmem>>, vector<1x128x128xf32>
    %57 = vector.shape_cast %56 : vector<1x128x128xf32> to vector<128x128xf32>
    %cst_46 = arith.constant dense<0.000000e+00> : vector<640x128xf32>
    %58 = tpu.matmul %55, %57, %cst_46 {dimension_numbers = #tpu.dot_dimension_numbers<[1], [0], [0], [1], [0, 0, 1, 1], [], []>} : vector<640x128xf32>, vector<128x128xf32>, vector<640x128xf32> -> vector<640x128xf32>
    %59 = arith.addf %54, %58 : vector<640x128xf32>
    %c24_47 = arith.constant 24 : index
    %c0_48 = arith.constant 0 : index
    %60 = vector.load %arg7[%c24_47, %c0_48] : memref<688x128xf32, #tpu.memory_space<vmem>>, vector<640x128xf32>
    %c4_49 = arith.constant 4 : index
    %c0_50 = arith.constant 0 : index
    %c0_51 = arith.constant 0 : index
    %61 = vector.load %arg4[%c4_49, %c0_50, %c0_51] : memref<9x128x128xf32, #tpu.memory_space<vmem>>, vector<1x128x128xf32>
    %62 = vector.shape_cast %61 : vector<1x128x128xf32> to vector<128x128xf32>
    %cst_52 = arith.constant dense<0.000000e+00> : vector<640x128xf32>
    %63 = tpu.matmul %60, %62, %cst_52 {dimension_numbers = #tpu.dot_dimension_numbers<[1], [0], [0], [1], [0, 0, 1, 1], [], []>} : vector<640x128xf32>, vector<128x128xf32>, vector<640x128xf32> -> vector<640x128xf32>
    %64 = arith.addf %59, %63 : vector<640x128xf32>
    %c25 = arith.constant 25 : index
    %c0_53 = arith.constant 0 : index
    %65 = vector.load %arg7[%c25, %c0_53] : memref<688x128xf32, #tpu.memory_space<vmem>>, vector<640x128xf32>
    %c5_54 = arith.constant 5 : index
    %c0_55 = arith.constant 0 : index
    %c0_56 = arith.constant 0 : index
    %66 = vector.load %arg4[%c5_54, %c0_55, %c0_56] : memref<9x128x128xf32, #tpu.memory_space<vmem>>, vector<1x128x128xf32>
    %67 = vector.shape_cast %66 : vector<1x128x128xf32> to vector<128x128xf32>
    %cst_57 = arith.constant dense<0.000000e+00> : vector<640x128xf32>
    %68 = tpu.matmul %65, %67, %cst_57 {dimension_numbers = #tpu.dot_dimension_numbers<[1], [0], [0], [1], [0, 0, 1, 1], [], []>} : vector<640x128xf32>, vector<128x128xf32>, vector<640x128xf32> -> vector<640x128xf32>
    %69 = arith.addf %64, %68 : vector<640x128xf32>
    %c41 = arith.constant 41 : index
    %c0_58 = arith.constant 0 : index
    %70 = vector.load %arg7[%c41, %c0_58] : memref<688x128xf32, #tpu.memory_space<vmem>>, vector<640x128xf32>
    %c6_59 = arith.constant 6 : index
    %c0_60 = arith.constant 0 : index
    %c0_61 = arith.constant 0 : index
    %71 = vector.load %arg4[%c6_59, %c0_60, %c0_61] : memref<9x128x128xf32, #tpu.memory_space<vmem>>, vector<1x128x128xf32>
    %72 = vector.shape_cast %71 : vector<1x128x128xf32> to vector<128x128xf32>
    %cst_62 = arith.constant dense<0.000000e+00> : vector<640x128xf32>
    %73 = tpu.matmul %70, %72, %cst_62 {dimension_numbers = #tpu.dot_dimension_numbers<[1], [0], [0], [1], [0, 0, 1, 1], [], []>} : vector<640x128xf32>, vector<128x128xf32>, vector<640x128xf32> -> vector<640x128xf32>
    %74 = arith.addf %69, %73 : vector<640x128xf32>
    %c42 = arith.constant 42 : index
    %c0_63 = arith.constant 0 : index
    %75 = vector.load %arg7[%c42, %c0_63] : memref<688x128xf32, #tpu.memory_space<vmem>>, vector<640x128xf32>
    %c7_64 = arith.constant 7 : index
    %c0_65 = arith.constant 0 : index
    %c0_66 = arith.constant 0 : index
    %76 = vector.load %arg4[%c7_64, %c0_65, %c0_66] : memref<9x128x128xf32, #tpu.memory_space<vmem>>, vector<1x128x128xf32>
    %77 = vector.shape_cast %76 : vector<1x128x128xf32> to vector<128x128xf32>
    %cst_67 = arith.constant dense<0.000000e+00> : vector<640x128xf32>
    %78 = tpu.matmul %75, %77, %cst_67 {dimension_numbers = #tpu.dot_dimension_numbers<[1], [0], [0], [1], [0, 0, 1, 1], [], []>} : vector<640x128xf32>, vector<128x128xf32>, vector<640x128xf32> -> vector<640x128xf32>
    %79 = arith.addf %74, %78 : vector<640x128xf32>
    %c43 = arith.constant 43 : index
    %c0_68 = arith.constant 0 : index
    %80 = vector.load %arg7[%c43, %c0_68] : memref<688x128xf32, #tpu.memory_space<vmem>>, vector<640x128xf32>
    %c8 = arith.constant 8 : index
    %c0_69 = arith.constant 0 : index
    %c0_70 = arith.constant 0 : index
    %81 = vector.load %arg4[%c8, %c0_69, %c0_70] : memref<9x128x128xf32, #tpu.memory_space<vmem>>, vector<1x128x128xf32>
    %82 = vector.shape_cast %81 : vector<1x128x128xf32> to vector<128x128xf32>
    %cst_71 = arith.constant dense<0.000000e+00> : vector<640x128xf32>
    %83 = tpu.matmul %80, %82, %cst_71 {dimension_numbers = #tpu.dot_dimension_numbers<[1], [0], [0], [1], [0, 0, 1, 1], [], []>} : vector<640x128xf32>, vector<128x128xf32>, vector<640x128xf32> -> vector<640x128xf32>
    %84 = arith.addf %79, %83 : vector<640x128xf32>
    %85 = vector.broadcast %6 : vector<1x128xf32> to vector<640x128xf32>
    %86 = arith.addf %84, %85 : vector<640x128xf32>
    %cst_72 = arith.constant dense<0.000000e+00> : vector<8x128xf32>
    %87 = tpu.matmul %1, %86, %cst_72 {dimension_numbers = #tpu.dot_dimension_numbers<[1], [0], [0], [1], [0, 0, 1, 1], [], []>} : vector<8x640xf32>, vector<640x128xf32>, vector<8x128xf32> -> vector<8x128xf32>
    %88 = vector.extract_strided_slice %87 {offsets = [0, 0], sizes = [1, 128], strides = [1, 1]} : vector<8x128xf32> to vector<1x128xf32>
    %cst_73 = arith.constant 0.001953125 : f32
    %89 = vector.broadcast %cst_73 : f32 to vector<1x128xf32>
    %90 = arith.mulf %88, %89 : vector<1x128xf32>
    %91 = vector.broadcast %90 : vector<1x128xf32> to vector<640x128xf32>
    %92 = arith.subf %86, %91 : vector<640x128xf32>
    %93 = arith.mulf %92, %92 : vector<640x128xf32>
    %cst_74 = arith.constant dense<0.000000e+00> : vector<8x128xf32>
    %94 = tpu.matmul %1, %93, %cst_74 {dimension_numbers = #tpu.dot_dimension_numbers<[1], [0], [0], [1], [0, 0, 1, 1], [], []>} : vector<8x640xf32>, vector<640x128xf32>, vector<8x128xf32> -> vector<8x128xf32>
    %95 = vector.extract_strided_slice %94 {offsets = [0, 0], sizes = [1, 128], strides = [1, 1]} : vector<8x128xf32> to vector<1x128xf32>
    %cst_75 = arith.constant 0.001953125 : f32
    %96 = vector.broadcast %cst_75 : f32 to vector<1x128xf32>
    %97 = arith.mulf %95, %96 : vector<1x128xf32>
    %cst_76 = arith.constant 9.99999974E-6 : f32
    %98 = vector.broadcast %cst_76 : f32 to vector<1x128xf32>
    %99 = arith.addf %97, %98 : vector<1x128xf32>
    %100 = math.rsqrt %99 : vector<1x128xf32>
    %101 = arith.mulf %100, %7 : vector<1x128xf32>
    %102 = vector.broadcast %101 : vector<1x128xf32> to vector<640x128xf32>
    %103 = arith.mulf %92, %102 : vector<640x128xf32>
    %104 = vector.broadcast %8 : vector<1x128xf32> to vector<640x128xf32>
    %105 = arith.addf %103, %104 : vector<640x128xf32>
    %106 = tpu.iota {dimensions = array<i32: 1>} : vector<1x128xi32>
    %c3_i32 = arith.constant 3 : i32
    %107 = vector.broadcast %c3_i32 : i32 to vector<1x128xi32>
    %108 = arith.cmpi slt, %106, %107 : vector<1x128xi32>
    %cst_77 = arith.constant 0.000000e+00 : f32
    %109 = vector.shape_cast %108 : vector<1x128xi1> to vector<1x128xi1>
    %110 = vector.broadcast %109 : vector<1x128xi1> to vector<640x128xi1>
    %111 = vector.broadcast %cst_77 : f32 to vector<640x128xf32>
    %112 = arith.select %110, %0, %111 : vector<640x128xi1>, vector<640x128xf32>
    %113 = arith.addf %105, %112 : vector<640x128xf32>
    %c0_78 = arith.constant 0 : index
    %c0_79 = arith.constant 0 : index
    %114 = vector.load %arg6[%c0_78, %c0_79] : memref<640x128xf32, #tpu.memory_space<vmem>>, vector<640x128xf32>
    tpu.vector_store %arg6[%c0_78, %c0_79], %113 {strides = array<i32>} : memref<640x128xf32, #tpu.memory_space<vmem>>, vector<640x128xf32>,
    return
  }
}

</mosaic_0001>

<llo_original>
// kernel: tpu_custom_call.1
$region0: #{tpu_custom_call.1}
  #allocation0 [shape = 'u32[]', space=smem, size = 0x4, offset = 0x4, fixed_abs, tag = 'smem constant byte address 0x4 - core index']
  #allocation1 [shape = 'u32[144,128]{1,0:T(1,128)}', space=vmem, size = 0x12000, scoped, tag = 'internal scratch']
  #allocation2 [shape = 'f32[688,128]{1,0:T(8,128)}', space=vmem, size = 0x56000, scoped, tag = 'scratch operand']
  %s0 = inlined_call_operand.hbm [shape: f32[8,640], index: 0, kind: input, shape index: {}]
  %s1 = inlined_call_operand.vmem [shape: f32[640,1], index: 1, kind: input, shape index: {}]
  %s2 = inlined_call_operand.vmem [shape: f32[640,128], index: 2, kind: input, shape index: {}]
  %s3 = inlined_call_operand.hbm [shape: f32[128,128], index: 3, kind: input, shape index: {}]
  %s4 = inlined_call_operand.hbm [shape: f32[9,128,128], index: 4, kind: input, shape index: {}]
  %s5 = inlined_call_operand.vmem [shape: f32[8,128], index: 5, kind: input, shape index: {}]
  %s6 = inlined_call_operand.hbm [shape: f32[640,128], index: 6, kind: output, shape index: {}]
  %s7 = sld [smem:[#allocation0]]
  $region46: #{tpu_custom_call.1} parent=0
    _
  %s9 = ssub.s32 1, %s7
  %s10 = scalar_select 0, %s9, %s7
  $region1: #{tpu_custom_call.1} parent=0
    #allocation3 [shape = 'u8[20480]{0}', space=vmem, size = 0x5000, scoped, tag = 'input window, operand 0, single buffered']
    #allocation4 [shape = 's32[1]{0}', space=sflag, size = 0x4, scoped, tag = 'scoped memory for tpu_custom_call.1']
    #allocation5 [shape = 's32[1]{0}', space=sflag, size = 0x4, scoped, tag = 'scoped memory for tpu_custom_call.1']
    #allocation6 [shape = 'u8[65536]{0}', space=vmem, size = 0x10000, scoped, tag = 'input window, operand 3, single buffered']
    #allocation7 [shape = 's32[1]{0}', space=sflag, size = 0x4, scoped, tag = 'scoped memory for tpu_custom_call.1']
    #allocation8 [shape = 'u8[589824]{0}', space=vmem, size = 0x90000, scoped, tag = 'input window, operand 4, single buffered']
    #allocation9 [shape = 'u8[327680]{0}', space=vmem, size = 0x50000, scoped, tag = 'output window, operand 0, single buffered']
    %11 = vsyncpa [#allocation4], 0
    %12 = vsyncpa [#allocation7], 0
    %13 = vsyncpa [#allocation5], 0
    // Predicated region
    $region2: #{tpu_custom_call.1} parent=1 // pred_check
      _
    $region3: #{tpu_custom_call.1} parent=1 // pred_check_branch
      %15 = sbr.rel (0) target = $region5
    $region4: #{tpu_custom_call.1} parent=1 // pred_region
      %s17 = ssub.s32 640, 640
      %18 = vsyncadd [#allocation4], %s17
      %s20 = sshll.u32 [#allocation3], 4
      %s21 = int_to_ptr.vmem [resolvable:$true] %s20
      %23 = dma.hbm_to_vmem [thread:$0]  %s0, 640, %s21, [#allocation4]
    $region5: #{tpu_custom_call.1} parent=1 // pred_fallthru
      _
    // Predicated region
    $region6: #{tpu_custom_call.1} parent=1 // pred_check
      _
    $region7: #{tpu_custom_call.1} parent=1 // pred_check_branch
      %25 = sbr.rel (0) target = $region9
    $region8: #{tpu_custom_call.1} parent=1 // pred_region
      _
    $region9: #{tpu_custom_call.1} parent=1 // pred_fallthru
      _
    // Predicated region
    $region10: #{tpu_custom_call.1} parent=1 // pred_check
      _
    $region11: #{tpu_custom_call.1} parent=1 // pred_check_branch
      %27 = sbr.rel (0) target = $region13
    $region12: #{tpu_custom_call.1} parent=1 // pred_region
      _
    $region13: #{tpu_custom_call.1} parent=1 // pred_fallthru
      _
    // Predicated region
    $region14: #{tpu_custom_call.1} parent=1 // pred_check
      _
    $region15: #{tpu_custom_call.1} parent=1 // pred_check_branch
      %29 = sbr.rel (0) target = $region17
    $region16: #{tpu_custom_call.1} parent=1 // pred_region
      %s31 = ssub.s32 2048, 2048
      %32 = vsyncadd [#allocation7], %s31
      %s33 = sshll.u32 [#allocation6], 4
      %s34 = int_to_ptr.vmem [resolvable:$true] %s33
      %39 = dma.hbm_to_vmem [thread:$0]  %s3, 2048, %s34, [#allocation7], 128, 128, 8
    $region17: #{tpu_custom_call.1} parent=1 // pred_fallthru
      _
    // Predicated region
    $region18: #{tpu_custom_call.1} parent=1 // pred_check
      _
    $region19: #{tpu_custom_call.1} parent=1 // pred_check_branch
      %41 = sbr.rel (0) target = $region21
    $region20: #{tpu_custom_call.1} parent=1 // pred_region
      %s43 = ssub.s32 18432, 18432
      %44 = vsyncadd [#allocation7], %s43
      %s45 = sshll.u32 [#allocation8], 4
      %s46 = int_to_ptr.vmem [resolvable:$true] %s45
      %51 = dma.hbm_to_vmem [thread:$0]  %s4, 18432, %s46, [#allocation7], 128, 128, 8
    $region21: #{tpu_custom_call.1} parent=1 // pred_fallthru
      _
    // Predicated region
    $region22: #{tpu_custom_call.1} parent=1 // pred_check
      _
    $region23: #{tpu_custom_call.1} parent=1 // pred_check_branch
      %53 = sbr.rel (0) target = $region25
    $region24: #{tpu_custom_call.1} parent=1 // pred_region
      _
    $region25: #{tpu_custom_call.1} parent=1 // pred_fallthru
      _
    // Predicated region
    $region26: #{tpu_custom_call.1} parent=1 // pred_check
      _
    $region27: #{tpu_custom_call.1} parent=1 // pred_check_branch
      %55 = sbr.rel (0) target = $region29
    $region28: #{tpu_custom_call.1} parent=1 // pred_region
      %56 = dma.done [#allocation4], 640
    $region29: #{tpu_custom_call.1} parent=1 // pred_fallthru
      _
    // Predicated region
    $region30: #{tpu_custom_call.1} parent=1 // pred_check
      _
    $region31: #{tpu_custom_call.1} parent=1 // pred_check_branch
      %58 = sbr.rel (0) target = $region33
    $region32: #{tpu_custom_call.1} parent=1 // pred_region
      %59 = dma.done [#allocation7], 2048
    $region33: #{tpu_custom_call.1} parent=1 // pred_fallthru
      _
    // Predicated region
    $region34: #{tpu_custom_call.1} parent=1 // pred_check
      _
    $region35: #{tpu_custom_call.1} parent=1 // pred_check_branch
      %61 = sbr.rel (0) target = $region37
    $region36: #{tpu_custom_call.1} parent=1 // pred_region
      %62 = dma.done [#allocation7], 18432
    $region37: #{tpu_custom_call.1} parent=1 // pred_fallthru
      _
    %v63 = vld [vmem:[%s2] sm:$0xff]
    %v64 = vld [vmem:[%s2 + $0x8] sm:$0xff]
    %v65 = vld [vmem:[%s2 + $0x10] sm:$0xff]
    %v66 = vld [vmem:[%s2 + $0x18] sm:$0xff]
    %v67 = vld [vmem:[%s2 + $0x20] sm:$0xff]
    %v68 = vld [vmem:[%s2 + $0x28] sm:$0xff]
    %v69 = vld [vmem:[%s2 + $0x30] sm:$0xff]
    %v70 = vld [vmem:[%s2 + $0x38] sm:$0xff]
    %v71 = vld [vmem:[%s2 + $0x40] sm:$0xff]
    %v72 = vld [vmem:[%s2 + $0x48] sm:$0xff]
    %v73 = vld [vmem:[%s2 + $0x50] sm:$0xff]
    %v74 = vld [vmem:[%s2 + $0x58] sm:$0xff]
    %v75 = vld [vmem:[%s2 + $0x60] sm:$0xff]
    %v76 = vld [vmem:[%s2 + $0x68] sm:$0xff]
    %v77 = vld [vmem:[%s2 + $0x70] sm:$0xff]
    %v78 = vld [vmem:[%s2 + $0x78] sm:$0xff]
    %v79 = vld [vmem:[%s2 + $0x80] sm:$0xff]
    %v80 = vld [vmem:[%s2 + $0x88] sm:$0xff]
    %v81 = vld [vmem:[%s2 + $0x90] sm:$0xff]
    %v82 = vld [vmem:[%s2 + $0x98] sm:$0xff]
    %v83 = vld [vmem:[%s2 + $0xa0] sm:$0xff]
    %v84 = vld [vmem:[%s2 + $0xa8] sm:$0xff]
    %v85 = vld [vmem:[%s2 + $0xb0] sm:$0xff]
    %v86 = vld [vmem:[%s2 + $0xb8] sm:$0xff]
    %v87 = vld [vmem:[%s2 + $0xc0] sm:$0xff]
    %v88 = vld [vmem:[%s2 + $0xc8] sm:$0xff]
    %v89 = vld [vmem:[%s2 + $0xd0] sm:$0xff]
    %v90 = vld [vmem:[%s2 + $0xd8] sm:$0xff]
    %v91 = vld [vmem:[%s2 + $0xe0] sm:$0xff]
    %v92 = vld [vmem:[%s2 + $0xe8] sm:$0xff]
    %v93 = vld [vmem:[%s2 + $0xf0] sm:$0xff]
    %v94 = vld [vmem:[%s2 + $0xf8] sm:$0xff]
    %v95 = vld [vmem:[%s2 + $0x100] sm:$0xff]
    %v96 = vld [vmem:[%s2 + $0x108] sm:$0xff]
    %v97 = vld [vmem:[%s2 + $0x110] sm:$0xff]
    %v98 = vld [vmem:[%s2 + $0x118] sm:$0xff]
    %v99 = vld [vmem:[%s2 + $0x120] sm:$0xff]
    %v100 = vld [vmem:[%s2 + $0x128] sm:$0xff]
    %v101 = vld [vmem:[%s2 + $0x130] sm:$0xff]
    %v102 = vld [vmem:[%s2 + $0x138] sm:$0xff]
    %v103 = vld [vmem:[%s2 + $0x140] sm:$0xff]
    %v104 = vld [vmem:[%s2 + $0x148] sm:$0xff]
    %v105 = vld [vmem:[%s2 + $0x150] sm:$0xff]
    %v106 = vld [vmem:[%s2 + $0x158] sm:$0xff]
    %v107 = vld [vmem:[%s2 + $0x160] sm:$0xff]
    %v108 = vld [vmem:[%s2 + $0x168] sm:$0xff]
    %v109 = vld [vmem:[%s2 + $0x170] sm:$0xff]
    %v110 = vld [vmem:[%s2 + $0x178] sm:$0xff]
    %v111 = vld [vmem:[%s2 + $0x180] sm:$0xff]
    %v112 = vld [vmem:[%s2 + $0x188] sm:$0xff]
    %v113 = vld [vmem:[%s2 + $0x190] sm:$0xff]
    %v114 = vld [vmem:[%s2 + $0x198] sm:$0xff]
    %v115 = vld [vmem:[%s2 + $0x1a0] sm:$0xff]
    %v116 = vld [vmem:[%s2 + $0x1a8] sm:$0xff]
    %v117 = vld [vmem:[%s2 + $0x1b0] sm:$0xff]
    %v118 = vld [vmem:[%s2 + $0x1b8] sm:$0xff]
    %v119 = vld [vmem:[%s2 + $0x1c0] sm:$0xff]
    %v120 = vld [vmem:[%s2 + $0x1c8] sm:$0xff]
    %v121 = vld [vmem:[%s2 + $0x1d0] sm:$0xff]
    %v122 = vld [vmem:[%s2 + $0x1d8] sm:$0xff]
    %v123 = vld [vmem:[%s2 + $0x1e0] sm:$0xff]
    %v124 = vld [vmem:[%s2 + $0x1e8] sm:$0xff]
    %v125 = vld [vmem:[%s2 + $0x1f0] sm:$0xff]
    %v126 = vld [vmem:[%s2 + $0x1f8] sm:$0xff]
    %v127 = vld [vmem:[%s2 + $0x200] sm:$0xff]
    %v128 = vld [vmem:[%s2 + $0x208] sm:$0xff]
    %v129 = vld [vmem:[%s2 + $0x210] sm:$0xff]
    %v130 = vld [vmem:[%s2 + $0x218] sm:$0xff]
    %v131 = vld [vmem:[%s2 + $0x220] sm:$0xff]
    %v132 = vld [vmem:[%s2 + $0x228] sm:$0xff]
    %v133 = vld [vmem:[%s2 + $0x230] sm:$0xff]
    %v134 = vld [vmem:[%s2 + $0x238] sm:$0xff]
    %v135 = vld [vmem:[%s2 + $0x240] sm:$0xff]
    %v136 = vld [vmem:[%s2 + $0x248] sm:$0xff]
    %v137 = vld [vmem:[%s2 + $0x250] sm:$0xff]
    %v138 = vld [vmem:[%s2 + $0x258] sm:$0xff]
    %v139 = vld [vmem:[%s2 + $0x260] sm:$0xff]
    %v140 = vld [vmem:[%s2 + $0x268] sm:$0xff]
    %v141 = vld [vmem:[%s2 + $0x270] sm:$0xff]
    %v142 = vld [vmem:[%s2 + $0x278] sm:$0xff]
    %v143 = vld [vmem:[#allocation3] sm:$0xff]
    %v144 = vld [vmem:[#allocation3 + $0x8] sm:$0xff]
    %v145 = vld [vmem:[#allocation3 + $0x10] sm:$0xff]
    %v146 = vld [vmem:[#allocation3 + $0x18] sm:$0xff]
    %v147 = vld [vmem:[#allocation3 + $0x20] sm:$0xff]
    %v148 = vld [vmem:[%s1] sm:$0xff]
    %v149 = vld [vmem:[%s1 + $0x8] sm:$0xff]
    %v150 = vld [vmem:[%s1 + $0x10] sm:$0xff]
    %v151 = vld [vmem:[%s1 + $0x18] sm:$0xff]
    %v152 = vld [vmem:[%s1 + $0x20] sm:$0xff]
    %v153 = vld [vmem:[%s1 + $0x28] sm:$0xff]
    %v154 = vld [vmem:[%s1 + $0x30] sm:$0xff]
    %v155 = vld [vmem:[%s1 + $0x38] sm:$0xff]
    %v156 = vld [vmem:[%s1 + $0x40] sm:$0xff]
    %v157 = vld [vmem:[%s1 + $0x48] sm:$0xff]
    %v158 = vld [vmem:[%s1 + $0x50] sm:$0xff]
    %v159 = vld [vmem:[%s1 + $0x58] sm:$0xff]
    %v160 = vld [vmem:[%s1 + $0x60] sm:$0xff]
    %v161 = vld [vmem:[%s1 + $0x68] sm:$0xff]
    %v162 = vld [vmem:[%s1 + $0x70] sm:$0xff]
    %v163 = vld [vmem:[%s1 + $0x78] sm:$0xff]
    %v164 = vld [vmem:[%s1 + $0x80] sm:$0xff]
    %v165 = vld [vmem:[%s1 + $0x88] sm:$0xff]
    %v166 = vld [vmem:[%s1 + $0x90] sm:$0xff]
    %v167 = vld [vmem:[%s1 + $0x98] sm:$0xff]
    %v168 = vld [vmem:[%s1 + $0xa0] sm:$0xff]
    %v169 = vld [vmem:[%s1 + $0xa8] sm:$0xff]
    %v170 = vld [vmem:[%s1 + $0xb0] sm:$0xff]
    %v171 = vld [vmem:[%s1 + $0xb8] sm:$0xff]
    %v172 = vld [vmem:[%s1 + $0xc0] sm:$0xff]
    %v173 = vld [vmem:[%s1 + $0xc8] sm:$0xff]
    %v174 = vld [vmem:[%s1 + $0xd0] sm:$0xff]
    %v175 = vld [vmem:[%s1 + $0xd8] sm:$0xff]
    %v176 = vld [vmem:[%s1 + $0xe0] sm:$0xff]
    %v177 = vld [vmem:[%s1 + $0xe8] sm:$0xff]
    %v178 = vld [vmem:[%s1 + $0xf0] sm:$0xff]
    %v179 = vld [vmem:[%s1 + $0xf8] sm:$0xff]
    %v180 = vld [vmem:[%s1 + $0x100] sm:$0xff]
    %v181 = vld [vmem:[%s1 + $0x108] sm:$0xff]
    %v182 = vld [vmem:[%s1 + $0x110] sm:$0xff]
    %v183 = vld [vmem:[%s1 + $0x118] sm:$0xff]
    %v184 = vld [vmem:[%s1 + $0x120] sm:$0xff]
    %v185 = vld [vmem:[%s1 + $0x128] sm:$0xff]
    %v186 = vld [vmem:[%s1 + $0x130] sm:$0xff]
    %v187 = vld [vmem:[%s1 + $0x138] sm:$0xff]
    %v188 = vld [vmem:[%s1 + $0x140] sm:$0xff]
    %v189 = vld [vmem:[%s1 + $0x148] sm:$0xff]
    %v190 = vld [vmem:[%s1 + $0x150] sm:$0xff]
    %v191 = vld [vmem:[%s1 + $0x158] sm:$0xff]
    %v192 = vld [vmem:[%s1 + $0x160] sm:$0xff]
    %v193 = vld [vmem:[%s1 + $0x168] sm:$0xff]
    %v194 = vld [vmem:[%s1 + $0x170] sm:$0xff]
    %v195 = vld [vmem:[%s1 + $0x178] sm:$0xff]
    %v196 = vld [vmem:[%s1 + $0x180] sm:$0xff]
    %v197 = vld [vmem:[%s1 + $0x188] sm:$0xff]
    %v198 = vld [vmem:[%s1 + $0x190] sm:$0xff]
    %v199 = vld [vmem:[%s1 + $0x198] sm:$0xff]
    %v200 = vld [vmem:[%s1 + $0x1a0] sm:$0xff]
    %v201 = vld [vmem:[%s1 + $0x1a8] sm:$0xff]
    %v202 = vld [vmem:[%s1 + $0x1b0] sm:$0xff]
    %v203 = vld [vmem:[%s1 + $0x1b8] sm:$0xff]
    %v204 = vld [vmem:[%s1 + $0x1c0] sm:$0xff]
    %v205 = vld [vmem:[%s1 + $0x1c8] sm:$0xff]
    %v206 = vld [vmem:[%s1 + $0x1d0] sm:$0xff]
    %v207 = vld [vmem:[%s1 + $0x1d8] sm:$0xff]
    %v208 = vld [vmem:[%s1 + $0x1e0] sm:$0xff]
    %v209 = vld [vmem:[%s1 + $0x1e8] sm:$0xff]
    %v210 = vld [vmem:[%s1 + $0x1f0] sm:$0xff]
    %v211 = vld [vmem:[%s1 + $0x1f8] sm:$0xff]
    %v212 = vld [vmem:[%s1 + $0x200] sm:$0xff]
    %v213 = vld [vmem:[%s1 + $0x208] sm:$0xff]
    %v214 = vld [vmem:[%s1 + $0x210] sm:$0xff]
    %v215 = vld [vmem:[%s1 + $0x218] sm:$0xff]
    %v216 = vld [vmem:[%s1 + $0x220] sm:$0xff]
    %v217 = vld [vmem:[%s1 + $0x228] sm:$0xff]
    %v218 = vld [vmem:[%s1 + $0x230] sm:$0xff]
    %v219 = vld [vmem:[%s1 + $0x238] sm:$0xff]
    %v220 = vld [vmem:[%s1 + $0x240] sm:$0xff]
    %v221 = vld [vmem:[%s1 + $0x248] sm:$0xff]
    %v222 = vld [vmem:[%s1 + $0x250] sm:$0xff]
    %v223 = vld [vmem:[%s1 + $0x258] sm:$0xff]
    %v224 = vld [vmem:[%s1 + $0x260] sm:$0xff]
    %v225 = vld [vmem:[%s1 + $0x268] sm:$0xff]
    %v226 = vld [vmem:[%s1 + $0x270] sm:$0xff]
    %v227 = vld [vmem:[%s1 + $0x278] sm:$0xff]
    %v228 = vld [vmem:[%s5] sm:$0x1]
    %v229 = vld [vmem:[%s5 + $0x1] sm:$0x1]
    %v230 = vld [vmem:[%s5 + $0x2] sm:$0x1]
    %v231 = vld [vmem:[%s5 + $0x3] sm:$0x1]
    %v232 = vld [vmem:[%s5 + $0x4] sm:$0x1]
    %v233 = vld [vmem:[%s5 + $0x5] sm:$0x1]
    %v234 = vld [vmem:[#allocation6] sm:$0xff]
    %v235 = vld [vmem:[#allocation6 + $0x8] sm:$0xff]
    %v236 = vld [vmem:[#allocation6 + $0x10] sm:$0xff]
    %v237 = vld [vmem:[#allocation6 + $0x18] sm:$0xff]
    %v238 = vld [vmem:[#allocation6 + $0x20] sm:$0xff]
    %v239 = vld [vmem:[#allocation6 + $0x28] sm:$0xff]
    %v240 = vld [vmem:[#allocation6 + $0x30] sm:$0xff]
    %v241 = vld [vmem:[#allocation6 + $0x38] sm:$0xff]
    %v242 = vld [vmem:[#allocation6 + $0x40] sm:$0xff]
    %v243 = vld [vmem:[#allocation6 + $0x48] sm:$0xff]
    %v244 = vld [vmem:[#allocation6 + $0x50] sm:$0xff]
    %v245 = vld [vmem:[#allocation6 + $0x58] sm:$0xff]
    %v246 = vld [vmem:[#allocation6 + $0x60] sm:$0xff]
    %v247 = vld [vmem:[#allocation6 + $0x68] sm:$0xff]
    %v248 = vld [vmem:[#allocation6 + $0x70] sm:$0xff]
    %v249 = vld [vmem:[#allocation6 + $0x78] sm:$0xff]
    %v250 = vlaneseq
    %v251 = vshrl.u32 %v250, 7
    %v252 = vsub.s32 0, %v251
    %v253 = vrot.slane %v228, %v252
    %254 = vmatprep.subr.mxu0 0.0
    %255 = vmatpush1.msra.mxu0 %v249
    %256 = vmatprep.subr.mxu0 0.0
    %257 = vmatpush1.msra.mxu0 %v248
    %258 = vmatprep.subr.mxu0 0.0
    %259 = vmatpush1.msra.mxu0 %v247
    %260 = vmatprep.subr.mxu0 0.0
    %261 = vmatpush1.msra.mxu0 %v246
    %262 = vmatprep.subr.mxu0 0.0
    %263 = vmatpush1.msra.mxu0 %v245
    %264 = vmatprep.subr.mxu0 0.0
    %265 = vmatpush1.msra.mxu0 %v244
    %266 = vmatprep.subr.mxu0 0.0
    %267 = vmatpush1.msra.mxu0 %v243
    %268 = vmatprep.subr.mxu0 0.0
    %269 = vmatpush1.msra.mxu0 %v242
    %270 = vmatprep.subr.mxu0 0.0
    %271 = vmatpush1.msra.mxu0 %v241
    %272 = vmatprep.subr.mxu0 0.0
    %273 = vmatpush1.msra.mxu0 %v240
    %274 = vmatprep.subr.mxu0 0.0
    %275 = vmatpush1.msra.mxu0 %v239
    %276 = vmatprep.subr.mxu0 0.0
    %277 = vmatpush1.msra.mxu0 %v238
    %278 = vmatprep.subr.mxu0 0.0
    %279 = vmatpush1.msra.mxu0 %v237
    %280 = vmatprep.subr.mxu0 0.0
    %281 = vmatpush1.msra.mxu0 %v236
    %282 = vmatprep.subr.mxu0 0.0
    %283 = vmatpush1.msra.mxu0 %v235
    %284 = vmatprep.subr.mxu0 0.0
    %285 = vmatpush1.msra.mxu0 %v234
    %286 = vmatprep.subr.mxu0 0.0
    %287 = vmatpush2.msra.mxu0 0.0
    %288 = vmatprep.subr.mxu0 0.0
    %289 = vmatpush2.msra.mxu0 0.0
    %290 = vmatprep.subr.mxu0 0.0
    %291 = vmatpush2.msra.mxu0 0.0
    %292 = vmatprep.subr.mxu0 0.0
    %293 = vmatpush2.msra.mxu0 0.0
    %294 = vmatprep.subr.mxu0 0.0
    %295 = vmatpush2.msra.mxu0 0.0
    %296 = vmatprep.subr.mxu0 0.0
    %297 = vmatpush2.msra.mxu0 0.0
    %298 = vmatprep.subr.mxu0 0.0
    %299 = vmatpush2.msra.mxu0 0.0
    %300 = vmatprep.subr.mxu0 0.0
    %301 = vmatpush2.msra.mxu0 0.0
    %302 = vmatprep.subr.mxu0 0.0
    %303 = vmatpush2.msra.mxu0 0.0
    %304 = vmatprep.subr.mxu0 0.0
    %305 = vmatpush2.msra.mxu0 0.0
    %306 = vmatprep.subr.mxu0 0.0
    %307 = vmatpush2.msra.mxu0 0.0
    %308 = vmatprep.subr.mxu0 0.0
    %309 = vmatpush2.msra.mxu0 0.0
    %310 = vmatprep.subr.mxu0 0.0
    %311 = vmatpush2.msra.mxu0 0.0
    %312 = vmatprep.subr.mxu0 0.0
    %313 = vmatpush2.msra.mxu0 0.0
    %314 = vmatprep.subr.mxu0 0.0
    %315 = vmatpush2.msra.mxu0 0.0
    %316 = vmatprep.subr.mxu0 0.0
    %317 = vmatpush2.msra.mxu0 0.0
    %318 = vmatprep.mubr.f32.mxu0 0.0
    %319 = vmatmul.mubr.f32.gmra.mxu0 %v63
    %v320 = vpop.f32.mrf.mxu0
    %v321 = vadd.f32 %v253, %v320
    %v322 = vpop.f32.mrf.mxu0
    %323 = vmatprep.mubr.f32.mxu0 0.0
    %324 = vmatmul.mubr.f32.gmra.mxu0 %v64
    %v325 = vpop.f32.mrf.mxu0
    %v326 = vadd.f32 %v253, %v325
    %v327 = vpop.f32.mrf.mxu0
    %328 = vmatprep.mubr.f32.mxu0 0.0
    %329 = vmatmul.mubr.f32.gmra.mxu0 %v65
    %v330 = vpop.f32.mrf.mxu0
    %v331 = vadd.f32 %v253, %v330
    %v332 = vpop.f32.mrf.mxu0
    %333 = vmatprep.mubr.f32.mxu0 0.0
    %334 = vmatmul.mubr.f32.gmra.mxu0 %v66
    %v335 = vpop.f32.mrf.mxu0
    %v336 = vadd.f32 %v253, %v335
    %v337 = vpop.f32.mrf.mxu0
    %338 = vmatprep.mubr.f32.mxu0 0.0
    %339 = vmatmul.mubr.f32.gmra.mxu0 %v67
    %v340 = vpop.f32.mrf.mxu0
    %v341 = vadd.f32 %v253, %v340
    %v342 = vpop.f32.mrf.mxu0
    %343 = vmatprep.mubr.f32.mxu0 0.0
    %344 = vmatmul.mubr.f32.gmra.mxu0 %v68
    %v345 = vpop.f32.mrf.mxu0
    %v346 = vadd.f32 %v253, %v345
    %v347 = vpop.f32.mrf.mxu0
    %348 = vmatprep.mubr.f32.mxu0 0.0
    %349 = vmatmul.mubr.f32.gmra.mxu0 %v69
    %v350 = vpop.f32.mrf.mxu0
    %v351 = vadd.f32 %v253, %v350
    %v352 = vpop.f32.mrf.mxu0
    %353 = vmatprep.mubr.f32.mxu0 0.0
    %354 = vmatmul.mubr.f32.gmra.mxu0 %v70
    %v355 = vpop.f32.mrf.mxu0
    %v356 = vadd.f32 %v253, %v355
    %v357 = vpop.f32.mrf.mxu0
    %358 = vmatprep.mubr.f32.mxu0 0.0
    %359 = vmatmul.mubr.f32.gmra.mxu0 %v71
    %v360 = vpop.f32.mrf.mxu0
    %v361 = vadd.f32 %v253, %v360
    %v362 = vpop.f32.mrf.mxu0
    %363 = vmatprep.mubr.f32.mxu0 0.0
    %364 = vmatmul.mubr.f32.gmra.mxu0 %v72
    %v365 = vpop.f32.mrf.mxu0
    %v366 = vadd.f32 %v253, %v365
    %v367 = vpop.f32.mrf.mxu0
    %368 = vmatprep.mubr.f32.mxu0 0.0
    %369 = vmatmul.mubr.f32.gmra.mxu0 %v73
    %v370 = vpop.f32.mrf.mxu0
    %v371 = vadd.f32 %v253, %v370
    %v372 = vpop.f32.mrf.mxu0
    %373 = vmatprep.mubr.f32.mxu0 0.0
    %374 = vmatmul.mubr.f32.gmra.mxu0 %v74
    %v375 = vpop.f32.mrf.mxu0
    %v376 = vadd.f32 %v253, %v375
    %v377 = vpop.f32.mrf.mxu0
    %378 = vmatprep.mubr.f32.mxu0 0.0
    %379 = vmatmul.mubr.f32.gmra.mxu0 %v75
    %v380 = vpop.f32.mrf.mxu0
    %v381 = vadd.f32 %v253, %v380
    %v382 = vpop.f32.mrf.mxu0
    %383 = vmatprep.mubr.f32.mxu0 0.0
    %384 = vmatmul.mubr.f32.gmra.mxu0 %v76
    %v385 = vpop.f32.mrf.mxu0
    %v386 = vadd.f32 %v253, %v385
    %v387 = vpop.f32.mrf.mxu0
    %388 = vmatprep.mubr.f32.mxu0 0.0
    %389 = vmatmul.mubr.f32.gmra.mxu0 %v77
    %v390 = vpop.f32.mrf.mxu0
    %v391 = vadd.f32 %v253, %v390
    %v392 = vpop.f32.mrf.mxu0
    %393 = vmatprep.mubr.f32.mxu0 0.0
    %394 = vmatmul.mubr.f32.gmra.mxu0 %v78
    %v395 = vpop.f32.mrf.mxu0
    %v396 = vadd.f32 %v253, %v395
    %v397 = vpop.f32.mrf.mxu0
    %398 = vmatprep.mubr.f32.mxu0 0.0
    %399 = vmatmul.mubr.f32.gmra.mxu0 %v79
    %v400 = vpop.f32.mrf.mxu0
    %v401 = vadd.f32 %v253, %v400
    %v402 = vpop.f32.mrf.mxu0
    %403 = vmatprep.mubr.f32.mxu0 0.0
    %404 = vmatmul.mubr.f32.gmra.mxu0 %v80
    %v405 = vpop.f32.mrf.mxu0
    %v406 = vadd.f32 %v253, %v405
    %v407 = vpop.f32.mrf.mxu0
    %408 = vmatprep.mubr.f32.mxu0 0.0
    %409 = vmatmul.mubr.f32.gmra.mxu0 %v81
    %v410 = vpop.f32.mrf.mxu0
    %v411 = vadd.f32 %v253, %v410
    %v412 = vpop.f32.mrf.mxu0
    %413 = vmatprep.mubr.f32.mxu0 0.0
    %414 = vmatmul.mubr.f32.gmra.mxu0 %v82
    %v415 = vpop.f32.mrf.mxu0
    %v416 = vadd.f32 %v253, %v415
    %v417 = vpop.f32.mrf.mxu0
    %418 = vmatprep.mubr.f32.mxu0 0.0
    %419 = vmatmul.mubr.f32.gmra.mxu0 %v83
    %v420 = vpop.f32.mrf.mxu0
    %v421 = vadd.f32 %v253, %v420
    %v422 = vpop.f32.mrf.mxu0
    %423 = vmatprep.mubr.f32.mxu0 0.0
    %424 = vmatmul.mubr.f32.gmra.mxu0 %v84
    %v425 = vpop.f32.mrf.mxu0
    %v426 = vadd.f32 %v253, %v425
    %v427 = vpop.f32.mrf.mxu0
    %428 = vmatprep.mubr.f32.mxu0 0.0
    %429 = vmatmul.mubr.f32.gmra.mxu0 %v85
    %v430 = vpop.f32.mrf.mxu0
    %v431 = vadd.f32 %v253, %v430
    %v432 = vpop.f32.mrf.mxu0
    %433 = vmatprep.mubr.f32.mxu0 0.0
    %434 = vmatmul.mubr.f32.gmra.mxu0 %v86
    %v435 = vpop.f32.mrf.mxu0
    %v436 = vadd.f32 %v253, %v435
    %v437 = vpop.f32.mrf.mxu0
    %438 = vmatprep.mubr.f32.mxu0 0.0
    %439 = vmatmul.mubr.f32.gmra.mxu0 %v87
    %v440 = vpop.f32.mrf.mxu0
    %v441 = vadd.f32 %v253, %v440
    %v442 = vpop.f32.mrf.mxu0
    %443 = vmatprep.mubr.f32.mxu0 0.0
    %444 = vmatmul.mubr.f32.gmra.mxu0 %v88
    %v445 = vpop.f32.mrf.mxu0
    %v446 = vadd.f32 %v253, %v445
    %v447 = vpop.f32.mrf.mxu0
    %448 = vmatprep.mubr.f32.mxu0 0.0
    %449 = vmatmul.mubr.f32.gmra.mxu0 %v89
    %v450 = vpop.f32.mrf.mxu0
    %v451 = vadd.f32 %v253, %v450
    %v452 = vpop.f32.mrf.mxu0
    %453 = vmatprep.mubr.f32.mxu0 0.0
    %454 = vmatmul.mubr.f32.gmra.mxu0 %v90
    %v455 = vpop.f32.mrf.mxu0
    %v456 = vadd.f32 %v253, %v455
    %v457 = vpop.f32.mrf.mxu0
    %458 = vmatprep.mubr.f32.mxu0 0.0
    %459 = vmatmul.mubr.f32.gmra.mxu0 %v91
    %v460 = vpop.f32.mrf.mxu0
    %v461 = vadd.f32 %v253, %v460
    %v462 = vpop.f32.mrf.mxu0
    %463 = vmatprep.mubr.f32.mxu0 0.0
    %464 = vmatmul.mubr.f32.gmra.mxu0 %v92
    %v465 = vpop.f32.mrf.mxu0
    %v466 = vadd.f32 %v253, %v465
    %v467 = vpop.f32.mrf.mxu0
    %468 = vmatprep.mubr.f32.mxu0 0.0
    %469 = vmatmul.mubr.f32.gmra.mxu0 %v93
    %v470 = vpop.f32.mrf.mxu0
    %v471 = vadd.f32 %v253, %v470
    %v472 = vpop.f32.mrf.mxu0
    %473 = vmatprep.mubr.f32.mxu0 0.0
    %474 = vmatmul.mubr.f32.gmra.mxu0 %v94
    %v475 = vpop.f32.mrf.mxu0
    %v476 = vadd.f32 %v253, %v475
    %v477 = vpop.f32.mrf.mxu0
    %478 = vmatprep.mubr.f32.mxu0 0.0
    %479 = vmatmul.mubr.f32.gmra.mxu0 %v95
    %v480 = vpop.f32.mrf.mxu0
    %v481 = vadd.f32 %v253, %v480
    %v482 = vpop.f32.mrf.mxu0
    %483 = vmatprep.mubr.f32.mxu0 0.0
    %484 = vmatmul.mubr.f32.gmra.mxu0 %v96
    %v485 = vpop.f32.mrf.mxu0
    %v486 = vadd.f32 %v253, %v485
    %v487 = vpop.f32.mrf.mxu0
    %488 = vmatprep.mubr.f32.mxu0 0.0
    %489 = vmatmul.mubr.f32.gmra.mxu0 %v97
    %v490 = vpop.f32.mrf.mxu0
    %v491 = vadd.f32 %v253, %v490
    %v492 = vpop.f32.mrf.mxu0
    %493 = vmatprep.mubr.f32.mxu0 0.0
    %494 = vmatmul.mubr.f32.gmra.mxu0 %v98
    %v495 = vpop.f32.mrf.mxu0
    %v496 = vadd.f32 %v253, %v495
    %v497 = vpop.f32.mrf.mxu0
    %498 = vmatprep.mubr.f32.mxu0 0.0
    %499 = vmatmul.mubr.f32.gmra.mxu0 %v99
    %v500 = vpop.f32.mrf.mxu0
    %v501 = vadd.f32 %v253, %v500
    %v502 = vpop.f32.mrf.mxu0
    %503 = vmatprep.mubr.f32.mxu0 0.0
    %504 = vmatmul.mubr.f32.gmra.mxu0 %v100
    %v505 = vpop.f32.mrf.mxu0
    %v506 = vadd.f32 %v253, %v505
    %v507 = vpop.f32.mrf.mxu0
    %508 = vmatprep.mubr.f32.mxu0 0.0
    %509 = vmatmul.mubr.f32.gmra.mxu0 %v101
    %v510 = vpop.f32.mrf.mxu0
    %v511 = vadd.f32 %v253, %v510
    %v512 = vpop.f32.mrf.mxu0
    %513 = vmatprep.mubr.f32.mxu0 0.0
    %514 = vmatmul.mubr.f32.gmra.mxu0 %v102
    %v515 = vpop.f32.mrf.mxu0
    %v516 = vadd.f32 %v253, %v515
    %v517 = vpop.f32.mrf.mxu0
    %518 = vmatprep.mubr.f32.mxu0 0.0
    %519 = vmatmul.mubr.f32.gmra.mxu0 %v103
    %v520 = vpop.f32.mrf.mxu0
    %v521 = vadd.f32 %v253, %v520
    %v522 = vpop.f32.mrf.mxu0
    %523 = vmatprep.mubr.f32.mxu0 0.0
    %524 = vmatmul.mubr.f32.gmra.mxu0 %v104
    %v525 = vpop.f32.mrf.mxu0
    %v526 = vadd.f32 %v253, %v525
    %v527 = vpop.f32.mrf.mxu0
    %528 = vmatprep.mubr.f32.mxu0 0.0
    %529 = vmatmul.mubr.f32.gmra.mxu0 %v105
    %v530 = vpop.f32.mrf.mxu0
    %v531 = vadd.f32 %v253, %v530
    %v532 = vpop.f32.mrf.mxu0
    %533 = vmatprep.mubr.f32.mxu0 0.0
    %534 = vmatmul.mubr.f32.gmra.mxu0 %v106
    %v535 = vpop.f32.mrf.mxu0
    %v536 = vadd.f32 %v253, %v535
    %v537 = vpop.f32.mrf.mxu0
    %538 = vmatprep.mubr.f32.mxu0 0.0
    %539 = vmatmul.mubr.f32.gmra.mxu0 %v107
    %v540 = vpop.f32.mrf.mxu0
    %v541 = vadd.f32 %v253, %v540
    %v542 = vpop.f32.mrf.mxu0
    %543 = vmatprep.mubr.f32.mxu0 0.0
    %544 = vmatmul.mubr.f32.gmra.mxu0 %v108
    %v545 = vpop.f32.mrf.mxu0
    %v546 = vadd.f32 %v253, %v545
    %v547 = vpop.f32.mrf.mxu0
    %548 = vmatprep.mubr.f32.mxu0 0.0
    %549 = vmatmul.mubr.f32.gmra.mxu0 %v109
    %v550 = vpop.f32.mrf.mxu0
    %v551 = vadd.f32 %v253, %v550
    %v552 = vpop.f32.mrf.mxu0
    %553 = vmatprep.mubr.f32.mxu0 0.0
    %554 = vmatmul.mubr.f32.gmra.mxu0 %v110
    %v555 = vpop.f32.mrf.mxu0
    %v556 = vadd.f32 %v253, %v555
    %v557 = vpop.f32.mrf.mxu0
    %558 = vmatprep.mubr.f32.mxu0 0.0
    %559 = vmatmul.mubr.f32.gmra.mxu0 %v111
    %v560 = vpop.f32.mrf.mxu0
    %v561 = vadd.f32 %v253, %v560
    %v562 = vpop.f32.mrf.mxu0
    %563 = vmatprep.mubr.f32.mxu0 0.0
    %564 = vmatmul.mubr.f32.gmra.mxu0 %v112
    %v565 = vpop.f32.mrf.mxu0
    %v566 = vadd.f32 %v253, %v565
    %v567 = vpop.f32.mrf.mxu0
    %568 = vmatprep.mubr.f32.mxu0 0.0
    %569 = vmatmul.mubr.f32.gmra.mxu0 %v113
    %v570 = vpop.f32.mrf.mxu0
    %v571 = vadd.f32 %v253, %v570
    %v572 = vpop.f32.mrf.mxu0
    %573 = vmatprep.mubr.f32.mxu0 0.0
    %574 = vmatmul.mubr.f32.gmra.mxu0 %v114
    %v575 = vpop.f32.mrf.mxu0
    %v576 = vadd.f32 %v253, %v575
    %v577 = vpop.f32.mrf.mxu0
    %578 = vmatprep.mubr.f32.mxu0 0.0
    %579 = vmatmul.mubr.f32.gmra.mxu0 %v115
    %v580 = vpop.f32.mrf.mxu0
    %v581 = vadd.f32 %v253, %v580
    %v582 = vpop.f32.mrf.mxu0
    %583 = vmatprep.mubr.f32.mxu0 0.0
    %584 = vmatmul.mubr.f32.gmra.mxu0 %v116
    %v585 = vpop.f32.mrf.mxu0
    %v586 = vadd.f32 %v253, %v585
    %v587 = vpop.f32.mrf.mxu0
    %588 = vmatprep.mubr.f32.mxu0 0.0
    %589 = vmatmul.mubr.f32.gmra.mxu0 %v117
    %v590 = vpop.f32.mrf.mxu0
    %v591 = vadd.f32 %v253, %v590
    %v592 = vpop.f32.mrf.mxu0
    %593 = vmatprep.mubr.f32.mxu0 0.0
    %594 = vmatmul.mubr.f32.gmra.mxu0 %v118
    %v595 = vpop.f32.mrf.mxu0
    %v596 = vadd.f32 %v253, %v595
    %v597 = vpop.f32.mrf.mxu0
    %598 = vmatprep.mubr.f32.mxu0 0.0
    %599 = vmatmul.mubr.f32.gmra.mxu0 %v119
    %v600 = vpop.f32.mrf.mxu0
    %v601 = vadd.f32 %v253, %v600
    %v602 = vpop.f32.mrf.mxu0
    %603 = vmatprep.mubr.f32.mxu0 0.0
    %604 = vmatmul.mubr.f32.gmra.mxu0 %v120
    %v605 = vpop.f32.mrf.mxu0
    %v606 = vadd.f32 %v253, %v605
    %v607 = vpop.f32.mrf.mxu0
    %608 = vmatprep.mubr.f32.mxu0 0.0
    %609 = vmatmul.mubr.f32.gmra.mxu0 %v121
    %v610 = vpop.f32.mrf.mxu0
    %v611 = vadd.f32 %v253, %v610
    %v612 = vpop.f32.mrf.mxu0
    %613 = vmatprep.mubr.f32.mxu0 0.0
    %614 = vmatmul.mubr.f32.gmra.mxu0 %v122
    %v615 = vpop.f32.mrf.mxu0
    %v616 = vadd.f32 %v253, %v615
    %v617 = vpop.f32.mrf.mxu0
    %618 = vmatprep.mubr.f32.mxu0 0.0
    %619 = vmatmul.mubr.f32.gmra.mxu0 %v123
    %v620 = vpop.f32.mrf.mxu0
    %v621 = vadd.f32 %v253, %v620
    %v622 = vpop.f32.mrf.mxu0
    %623 = vmatprep.mubr.f32.mxu0 0.0
    %624 = vmatmul.mubr.f32.gmra.mxu0 %v124
    %v625 = vpop.f32.mrf.mxu0
    %v626 = vadd.f32 %v253, %v625
    %v627 = vpop.f32.mrf.mxu0
    %628 = vmatprep.mubr.f32.mxu0 0.0
    %629 = vmatmul.mubr.f32.gmra.mxu0 %v125
    %v630 = vpop.f32.mrf.mxu0
    %v631 = vadd.f32 %v253, %v630
    %v632 = vpop.f32.mrf.mxu0
    %633 = vmatprep.mubr.f32.mxu0 0.0
    %634 = vmatmul.mubr.f32.gmra.mxu0 %v126
    %v635 = vpop.f32.mrf.mxu0
    %v636 = vadd.f32 %v253, %v635
    %v637 = vpop.f32.mrf.mxu0
    %638 = vmatprep.mubr.f32.mxu0 0.0
    %639 = vmatmul.mubr.f32.gmra.mxu0 %v127
    %v640 = vpop.f32.mrf.mxu0
    %v641 = vadd.f32 %v253, %v640
    %v642 = vpop.f32.mrf.mxu0
    %643 = vmatprep.mubr.f32.mxu0 0.0
    %644 = vmatmul.mubr.f32.gmra.mxu0 %v128
    %v645 = vpop.f32.mrf.mxu0
    %v646 = vadd.f32 %v253, %v645
    %v647 = vpop.f32.mrf.mxu0
    %648 = vmatprep.mubr.f32.mxu0 0.0
    %649 = vmatmul.mubr.f32.gmra.mxu0 %v129
    %v650 = vpop.f32.mrf.mxu0
    %v651 = vadd.f32 %v253, %v650
    %v652 = vpop.f32.mrf.mxu0
    %653 = vmatprep.mubr.f32.mxu0 0.0
    %654 = vmatmul.mubr.f32.gmra.mxu0 %v130
    %v655 = vpop.f32.mrf.mxu0
    %v656 = vadd.f32 %v253, %v655
    %v657 = vpop.f32.mrf.mxu0
    %658 = vmatprep.mubr.f32.mxu0 0.0
    %659 = vmatmul.mubr.f32.gmra.mxu0 %v131
    %v660 = vpop.f32.mrf.mxu0
    %v661 = vadd.f32 %v253, %v660
    %v662 = vpop.f32.mrf.mxu0
    %663 = vmatprep.mubr.f32.mxu0 0.0
    %664 = vmatmul.mubr.f32.gmra.mxu0 %v132
    %v665 = vpop.f32.mrf.mxu0
    %v666 = vadd.f32 %v253, %v665
    %v667 = vpop.f32.mrf.mxu0
    %668 = vmatprep.mubr.f32.mxu0 0.0
    %669 = vmatmul.mubr.f32.gmra.mxu0 %v133
    %v670 = vpop.f32.mrf.mxu0
    %v671 = vadd.f32 %v253, %v670
    %v672 = vpop.f32.mrf.mxu0
    %673 = vmatprep.mubr.f32.mxu0 0.0
    %674 = vmatmul.mubr.f32.gmra.mxu0 %v134
    %v675 = vpop.f32.mrf.mxu0
    %v676 = vadd.f32 %v253, %v675
    %v677 = vpop.f32.mrf.mxu0
    %678 = vmatprep.mubr.f32.mxu0 0.0
    %679 = vmatmul.mubr.f32.gmra.mxu0 %v135
    %v680 = vpop.f32.mrf.mxu0
    %v681 = vadd.f32 %v253, %v680
    %v682 = vpop.f32.mrf.mxu0
    %683 = vmatprep.mubr.f32.mxu0 0.0
    %684 = vmatmul.mubr.f32.gmra.mxu0 %v136
    %v685 = vpop.f32.mrf.mxu0
    %v686 = vadd.f32 %v253, %v685
    %v687 = vpop.f32.mrf.mxu0
    %688 = vmatprep.mubr.f32.mxu0 0.0
    %689 = vmatmul.mubr.f32.gmra.mxu0 %v137
    %v690 = vpop.f32.mrf.mxu0
    %v691 = vadd.f32 %v253, %v690
    %v692 = vpop.f32.mrf.mxu0
    %693 = vmatprep.mubr.f32.mxu0 0.0
    %694 = vmatmul.mubr.f32.gmra.mxu0 %v138
    %v695 = vpop.f32.mrf.mxu0
    %v696 = vadd.f32 %v253, %v695
    %v697 = vpop.f32.mrf.mxu0
    %698 = vmatprep.mubr.f32.mxu0 0.0
    %699 = vmatmul.mubr.f32.gmra.mxu0 %v139
    %v700 = vpop.f32.mrf.mxu0
    %v701 = vadd.f32 %v253, %v700
    %v702 = vpop.f32.mrf.mxu0
    %703 = vmatprep.mubr.f32.mxu0 0.0
    %704 = vmatmul.mubr.f32.gmra.mxu0 %v140
    %v705 = vpop.f32.mrf.mxu0
    %v706 = vadd.f32 %v253, %v705
    %v707 = vpop.f32.mrf.mxu0
    %708 = vmatprep.mubr.f32.mxu0 0.0
    %709 = vmatmul.mubr.f32.gmra.mxu0 %v141
    %v710 = vpop.f32.mrf.mxu0
    %v711 = vadd.f32 %v253, %v710
    %v712 = vpop.f32.mrf.mxu0
    %713 = vmatprep.mubr.f32.mxu0 0.0
    %714 = vmatmul.mubr.f32.gmra.mxu0 %v142
    %v715 = vpop.f32.mrf.mxu0
    %v716 = vadd.f32 %v253, %v715
    %v717 = vpop.f32.mrf.mxu0
    %718 = vdwg.mxu0
    %v719 = vmax.f32 %v321, 0.0
    %v720 = vmax.f32 %v326, 0.0
    %v721 = vmax.f32 %v331, 0.0
    %v722 = vmax.f32 %v336, 0.0
    %v723 = vmax.f32 %v341, 0.0
    %v724 = vmax.f32 %v346, 0.0
    %v725 = vmax.f32 %v351, 0.0
    %v726 = vmax.f32 %v356, 0.0
    %v727 = vmax.f32 %v361, 0.0
    %v728 = vmax.f32 %v366, 0.0
    %v729 = vmax.f32 %v371, 0.0
    %v730 = vmax.f32 %v376, 0.0
    %v731 = vmax.f32 %v381, 0.0
    %v732 = vmax.f32 %v386, 0.0
    %v733 = vmax.f32 %v391, 0.0
    %v734 = vmax.f32 %v396, 0.0
    %v735 = vmax.f32 %v401, 0.0
    %v736 = vmax.f32 %v406, 0.0
    %v737 = vmax.f32 %v411, 0.0
    %v738 = vmax.f32 %v416, 0.0
    %v739 = vmax.f32 %v421, 0.0
    %v740 = vmax.f32 %v426, 0.0
    %v741 = vmax.f32 %v431, 0.0
    %v742 = vmax.f32 %v436, 0.0
    %v743 = vmax.f32 %v441, 0.0
    %v744 = vmax.f32 %v446, 0.0
    %v745 = vmax.f32 %v451, 0.0
    %v746 = vmax.f32 %v456, 0.0
    %v747 = vmax.f32 %v461, 0.0
    %v748 = vmax.f32 %v466, 0.0
    %v749 = vmax.f32 %v471, 0.0
    %v750 = vmax.f32 %v476, 0.0
    %v751 = vmax.f32 %v481, 0.0
    %v752 = vmax.f32 %v486, 0.0
    %v753 = vmax.f32 %v491, 0.0
    %v754 = vmax.f32 %v496, 0.0
    %v755 = vmax.f32 %v501, 0.0
    %v756 = vmax.f32 %v506, 0.0
    %v757 = vmax.f32 %v511, 0.0
    %v758 = vmax.f32 %v516, 0.0
    %v759 = vmax.f32 %v521, 0.0
    %v760 = vmax.f32 %v526, 0.0
    %v761 = vmax.f32 %v531, 0.0
    %v762 = vmax.f32 %v536, 0.0
    %v763 = vmax.f32 %v541, 0.0
    %v764 = vmax.f32 %v546, 0.0
    %v765 = vmax.f32 %v551, 0.0
    %v766 = vmax.f32 %v556, 0.0
    %v767 = vmax.f32 %v561, 0.0
    %v768 = vmax.f32 %v566, 0.0
    %v769 = vmax.f32 %v571, 0.0
    %v770 = vmax.f32 %v576, 0.0
    %v771 = vmax.f32 %v581, 0.0
    %v772 = vmax.f32 %v586, 0.0
    %v773 = vmax.f32 %v591, 0.0
    %v774 = vmax.f32 %v596, 0.0
    %v775 = vmax.f32 %v601, 0.0
    %v776 = vmax.f32 %v606, 0.0
    %v777 = vmax.f32 %v611, 0.0
    %v778 = vmax.f32 %v616, 0.0
    %v779 = vmax.f32 %v621, 0.0
    %v780 = vmax.f32 %v626, 0.0
    %v781 = vmax.f32 %v631, 0.0
    %v782 = vmax.f32 %v636, 0.0
    %v783 = vmax.f32 %v641, 0.0
    %v784 = vmax.f32 %v646, 0.0
    %v785 = vmax.f32 %v651, 0.0
    %v786 = vmax.f32 %v656, 0.0
    %v787 = vmax.f32 %v661, 0.0
    %v788 = vmax.f32 %v666, 0.0
    %v789 = vmax.f32 %v671, 0.0
    %v790 = vmax.f32 %v676, 0.0
    %v791 = vmax.f32 %v681, 0.0
    %v792 = vmax.f32 %v686, 0.0
    %v793 = vmax.f32 %v691, 0.0
    %v794 = vmax.f32 %v696, 0.0
    %v795 = vmax.f32 %v701, 0.0
    %v796 = vmax.f32 %v706, 0.0
    %v797 = vmax.f32 %v711, 0.0
    %v798 = vmax.f32 %v716, 0.0
    %799 = vmatprep.subr.mxu0 0.0
    %800 = vmatpush1.msra.mxu0 %v734
    %801 = vmatprep.subr.mxu0 0.0
    %802 = vmatpush1.msra.mxu0 %v733
    %803 = vmatprep.subr.mxu0 0.0
    %804 = vmatpush1.msra.mxu0 %v732
    %805 = vmatprep.subr.mxu0 0.0
    %806 = vmatpush1.msra.mxu0 %v731
    %807 = vmatprep.subr.mxu0 0.0
    %808 = vmatpush1.msra.mxu0 %v730
    %809 = vmatprep.subr.mxu0 0.0
    %810 = vmatpush1.msra.mxu0 %v729
    %811 = vmatprep.subr.mxu0 0.0
    %812 = vmatpush1.msra.mxu0 %v728
    %813 = vmatprep.subr.mxu0 0.0
    %814 = vmatpush1.msra.mxu0 %v727
    %815 = vmatprep.subr.mxu0 0.0
    %816 = vmatpush1.msra.mxu0 %v726
    %817 = vmatprep.subr.mxu0 0.0
    %818 = vmatpush1.msra.mxu0 %v725
    %819 = vmatprep.subr.mxu0 0.0
    %820 = vmatpush1.msra.mxu0 %v724
    %821 = vmatprep.subr.mxu0 0.0
    %822 = vmatpush1.msra.mxu0 %v723
    %823 = vmatprep.subr.mxu0 0.0
    %824 = vmatpush1.msra.mxu0 %v722
    %825 = vmatprep.subr.mxu0 0.0
    %826 = vmatpush1.msra.mxu0 %v721
    %827 = vmatprep.subr.mxu0 0.0
    %828 = vmatpush1.msra.mxu0 %v720
    %829 = vmatprep.subr.mxu0 0.0
    %830 = vmatpush1.msra.mxu0 %v719
    %831 = vmatprep.subr.mxu0 0.0
    %832 = vmatpush2.msra.mxu0 %v750
    %833 = vmatprep.subr.mxu0 0.0
    %834 = vmatpush2.msra.mxu0 %v749
    %835 = vmatprep.subr.mxu0 0.0
    %836 = vmatpush2.msra.mxu0 %v748
    %837 = vmatprep.subr.mxu0 0.0
    %838 = vmatpush2.msra.mxu0 %v747
    %839 = vmatprep.subr.mxu0 0.0
    %840 = vmatpush2.msra.mxu0 %v746
    %841 = vmatprep.subr.mxu0 0.0
    %842 = vmatpush2.msra.mxu0 %v745
    %843 = vmatprep.subr.mxu0 0.0
    %844 = vmatpush2.msra.mxu0 %v744
    %845 = vmatprep.subr.mxu0 0.0
    %846 = vmatpush2.msra.mxu0 %v743
    %847 = vmatprep.subr.mxu0 0.0
    %848 = vmatpush2.msra.mxu0 %v742
    %849 = vmatprep.subr.mxu0 0.0
    %850 = vmatpush2.msra.mxu0 %v741
    %851 = vmatprep.subr.mxu0 0.0
    %852 = vmatpush2.msra.mxu0 %v740
    %853 = vmatprep.subr.mxu0 0.0
    %854 = vmatpush2.msra.mxu0 %v739
    %855 = vmatprep.subr.mxu0 0.0
    %856 = vmatpush2.msra.mxu0 %v738
    %857 = vmatprep.subr.mxu0 0.0
    %858 = vmatpush2.msra.mxu0 %v737
    %859 = vmatprep.subr.mxu0 0.0
    %860 = vmatpush2.msra.mxu0 %v736
    %861 = vmatprep.subr.mxu0 0.0
    %862 = vmatpush2.msra.mxu0 %v735
    %863 = vmatprep.mubr.f32.mxu0 %v144
    %864 = vmatmul.mubr.f32.gmra.mxu0 %v143
    %v865 = vpop.f32.mrf.mxu0
    %v866 = vadd.f32 0.0, %v865
    %v867 = vpop.f32.mrf.mxu0
    %868 = vdwg.mxu0
    %869 = vmatprep.subr.mxu0 0.0
    %870 = vmatpush1.msra.mxu0 %v766
    %871 = vmatprep.subr.mxu0 0.0
    %872 = vmatpush1.msra.mxu0 %v765
    %873 = vmatprep.subr.mxu0 0.0
    %874 = vmatpush1.msra.mxu0 %v764
    %875 = vmatprep.subr.mxu0 0.0
    %876 = vmatpush1.msra.mxu0 %v763
    %877 = vmatprep.subr.mxu0 0.0
    %878 = vmatpush1.msra.mxu0 %v762
    %879 = vmatprep.subr.mxu0 0.0
    %880 = vmatpush1.msra.mxu0 %v761
    %881 = vmatprep.subr.mxu0 0.0
    %882 = vmatpush1.msra.mxu0 %v760
    %883 = vmatprep.subr.mxu0 0.0
    %884 = vmatpush1.msra.mxu0 %v759
    %885 = vmatprep.subr.mxu0 0.0
    %886 = vmatpush1.msra.mxu0 %v758
    %887 = vmatprep.subr.mxu0 0.0
    %888 = vmatpush1.msra.mxu0 %v757
    %889 = vmatprep.subr.mxu0 0.0
    %890 = vmatpush1.msra.mxu0 %v756
    %891 = vmatprep.subr.mxu0 0.0
    %892 = vmatpush1.msra.mxu0 %v755
    %893 = vmatprep.subr.mxu0 0.0
    %894 = vmatpush1.msra.mxu0 %v754
    %895 = vmatprep.subr.mxu0 0.0
    %896 = vmatpush1.msra.mxu0 %v753
    %897 = vmatprep.subr.mxu0 0.0
    %898 = vmatpush1.msra.mxu0 %v752
    %899 = vmatprep.subr.mxu0 0.0
    %900 = vmatpush1.msra.mxu0 %v751
    %901 = vmatprep.subr.mxu0 0.0
    %902 = vmatpush2.msra.mxu0 %v782
    %903 = vmatprep.subr.mxu0 0.0
    %904 = vmatpush2.msra.mxu0 %v781
    %905 = vmatprep.subr.mxu0 0.0
    %906 = vmatpush2.msra.mxu0 %v780
    %907 = vmatprep.subr.mxu0 0.0
    %908 = vmatpush2.msra.mxu0 %v779
    %909 = vmatprep.subr.mxu0 0.0
    %910 = vmatpush2.msra.mxu0 %v778
    %911 = vmatprep.subr.mxu0 0.0
    %912 = vmatpush2.msra.mxu0 %v777
    %913 = vmatprep.subr.mxu0 0.0
    %914 = vmatpush2.msra.mxu0 %v776
    %915 = vmatprep.subr.mxu0 0.0
    %916 = vmatpush2.msra.mxu0 %v775
    %917 = vmatprep.subr.mxu0 0.0
    %918 = vmatpush2.msra.mxu0 %v774
    %919 = vmatprep.subr.mxu0 0.0
    %920 = vmatpush2.msra.mxu0 %v773
    %921 = vmatprep.subr.mxu0 0.0
    %922 = vmatpush2.msra.mxu0 %v772
    %923 = vmatprep.subr.mxu0 0.0
    %924 = vmatpush2.msra.mxu0 %v771
    %925 = vmatprep.subr.mxu0 0.0
    %926 = vmatpush2.msra.mxu0 %v770
    %927 = vmatprep.subr.mxu0 0.0
    %928 = vmatpush2.msra.mxu0 %v769
    %929 = vmatprep.subr.mxu0 0.0
    %930 = vmatpush2.msra.mxu0 %v768
    %931 = vmatprep.subr.mxu0 0.0
    %932 = vmatpush2.msra.mxu0 %v767
    %933 = vmatprep.mubr.f32.mxu0 %v146
    %934 = vmatmul.mubr.f32.gmra.mxu0 %v145
    %v935 = vpop.f32.mrf.mxu0
    %v936 = vadd.f32 %v866, %v935
    %v937 = vpop.f32.mrf.mxu0
    %938 = vdwg.mxu0
    %939 = vmatprep.subr.mxu0 0.0
    %940 = vmatpush1.msra.mxu0 %v798
    %941 = vmatprep.subr.mxu0 0.0
    %942 = vmatpush1.msra.mxu0 %v797
    %943 = vmatprep.subr.mxu0 0.0
    %944 = vmatpush1.msra.mxu0 %v796
    %945 = vmatprep.subr.mxu0 0.0
    %946 = vmatpush1.msra.mxu0 %v795
    %947 = vmatprep.subr.mxu0 0.0
    %948 = vmatpush1.msra.mxu0 %v794
    %949 = vmatprep.subr.mxu0 0.0
    %950 = vmatpush1.msra.mxu0 %v793
    %951 = vmatprep.subr.mxu0 0.0
    %952 = vmatpush1.msra.mxu0 %v792
    %953 = vmatprep.subr.mxu0 0.0
    %954 = vmatpush1.msra.mxu0 %v791
    %955 = vmatprep.subr.mxu0 0.0
    %956 = vmatpush1.msra.mxu0 %v790
    %957 = vmatprep.subr.mxu0 0.0
    %958 = vmatpush1.msra.mxu0 %v789
    %959 = vmatprep.subr.mxu0 0.0
    %960 = vmatpush1.msra.mxu0 %v788
    %961 = vmatprep.subr.mxu0 0.0
    %962 = vmatpush1.msra.mxu0 %v787
    %963 = vmatprep.subr.mxu0 0.0
    %964 = vmatpush1.msra.mxu0 %v786
    %965 = vmatprep.subr.mxu0 0.0
    %966 = vmatpush1.msra.mxu0 %v785
    %967 = vmatprep.subr.mxu0 0.0
    %968 = vmatpush1.msra.mxu0 %v784
    %969 = vmatprep.subr.mxu0 0.0
    %970 = vmatpush1.msra.mxu0 %v783
    %971 = vmatprep.subr.mxu0 0.0
    %972 = vmatpush2.msra.mxu0 0.0
    %973 = vmatprep.subr.mxu0 0.0
    %974 = vmatpush2.msra.mxu0 0.0
    %975 = vmatprep.subr.mxu0 0.0
    %976 = vmatpush2.msra.mxu0 0.0
    %977 = vmatprep.subr.mxu0 0.0
    %978 = vmatpush2.msra.mxu0 0.0
    %979 = vmatprep.subr.mxu0 0.0
    %980 = vmatpush2.msra.mxu0 0.0
    %981 = vmatprep.subr.mxu0 0.0
    %982 = vmatpush2.msra.mxu0 0.0
    %983 = vmatprep.subr.mxu0 0.0
    %984 = vmatpush2.msra.mxu0 0.0
    %985 = vmatprep.subr.mxu0 0.0
    %986 = vmatpush2.msra.mxu0 0.0
    %987 = vmatprep.subr.mxu0 0.0
    %988 = vmatpush2.msra.mxu0 0.0
    %989 = vmatprep.subr.mxu0 0.0
    %990 = vmatpush2.msra.mxu0 0.0
    %991 = vmatprep.subr.mxu0 0.0
    %992 = vmatpush2.msra.mxu0 0.0
    %993 = vmatprep.subr.mxu0 0.0
    %994 = vmatpush2.msra.mxu0 0.0
    %995 = vmatprep.subr.mxu0 0.0
    %996 = vmatpush2.msra.mxu0 0.0
    %997 = vmatprep.subr.mxu0 0.0
    %998 = vmatpush2.msra.mxu0 0.0
    %999 = vmatprep.subr.mxu0 0.0
    %1000 = vmatpush2.msra.mxu0 0.0
    %1001 = vmatprep.subr.mxu0 0.0
    %1002 = vmatpush2.msra.mxu0 0.0
    %1003 = vmatprep.mubr.f32.mxu0 0.0
    %1004 = vmatmul.mubr.f32.gmra.mxu0 %v147
    %v1005 = vpop.f32.mrf.mxu0
    %v1006 = vadd.f32 %v936, %v1005
    %v1007 = vpop.f32.mrf.mxu0
    %1008 = vdwg.mxu0
    %v1009 = vmul.f32 %v1006, 0.001953125
    %v1010 = vlaneseq
    %v1011 = vshrl.u32 %v1010, 7
    %v1012 = vsub.s32 0, %v1011
    %v1013 = vrot.slane %v1009, %v1012
    %v1014 = vsub.f32 %v719, %v1013
    %v1015 = vsub.f32 %v720, %v1013
    %v1016 = vsub.f32 %v721, %v1013
    %v1017 = vsub.f32 %v722, %v1013
    %v1018 = vsub.f32 %v723, %v1013
    %v1019 = vsub.f32 %v724, %v1013
    %v1020 = vsub.f32 %v725, %v1013
    %v1021 = vsub.f32 %v726, %v1013
    %v1022 = vsub.f32 %v727, %v1013
    %v1023 = vsub.f32 %v728, %v1013
    %v1024 = vsub.f32 %v729, %v1013
    %v1025 = vsub.f32 %v730, %v1013
    %v1026 = vsub.f32 %v731, %v1013
    %v1027 = vsub.f32 %v732, %v1013
    %v1028 = vsub.f32 %v733, %v1013
    %v1029 = vsub.f32 %v734, %v1013
    %v1030 = vsub.f32 %v735, %v1013
    %v1031 = vsub.f32 %v736, %v1013
    %v1032 = vsub.f32 %v737, %v1013
    %v1033 = vsub.f32 %v738, %v1013
    %v1034 = vsub.f32 %v739, %v1013
    %v1035 = vsub.f32 %v740, %v1013
    %v1036 = vsub.f32 %v741, %v1013
    %v1037 = vsub.f32 %v742, %v1013
    %v1038 = vsub.f32 %v743, %v1013
    %v1039 = vsub.f32 %v744, %v1013
    %v1040 = vsub.f32 %v745, %v1013
    %v1041 = vsub.f32 %v746, %v1013
    %v1042 = vsub.f32 %v747, %v1013
    %v1043 = vsub.f32 %v748, %v1013
    %v1044 = vsub.f32 %v749, %v1013
    %v1045 = vsub.f32 %v750, %v1013
    %v1046 = vsub.f32 %v751, %v1013
    %v1047 = vsub.f32 %v752, %v1013
    %v1048 = vsub.f32 %v753, %v1013
    %v1049 = vsub.f32 %v754, %v1013
    %v1050 = vsub.f32 %v755, %v1013
    %v1051 = vsub.f32 %v756, %v1013
    %v1052 = vsub.f32 %v757, %v1013
    %v1053 = vsub.f32 %v758, %v1013
    %v1054 = vsub.f32 %v759, %v1013
    %v1055 = vsub.f32 %v760, %v1013
    %v1056 = vsub.f32 %v761, %v1013
    %v1057 = vsub.f32 %v762, %v1013
    %v1058 = vsub.f32 %v763, %v1013
    %v1059 = vsub.f32 %v764, %v1013
    %v1060 = vsub.f32 %v765, %v1013
    %v1061 = vsub.f32 %v766, %v1013
    %v1062 = vsub.f32 %v767, %v1013
    %v1063 = vsub.f32 %v768, %v1013
    %v1064 = vsub.f32 %v769, %v1013
    %v1065 = vsub.f32 %v770, %v1013
    %v1066 = vsub.f32 %v771, %v1013
    %v1067 = vsub.f32 %v772, %v1013
    %v1068 = vsub.f32 %v773, %v1013
    %v1069 = vsub.f32 %v774, %v1013
    %v1070 = vsub.f32 %v775, %v1013
    %v1071 = vsub.f32 %v776, %v1013
    %v1072 = vsub.f32 %v777, %v1013
    %v1073 = vsub.f32 %v778, %v1013
    %v1074 = vsub.f32 %v779, %v1013
    %v1075 = vsub.f32 %v780, %v1013
    %v1076 = vsub.f32 %v781, %v1013
    %v1077 = vsub.f32 %v782, %v1013
    %v1078 = vsub.f32 %v783, %v1013
    %v1079 = vsub.f32 %v784, %v1013
    %v1080 = vsub.f32 %v785, %v1013
    %v1081 = vsub.f32 %v786, %v1013
    %v1082 = vsub.f32 %v787, %v1013
    %v1083 = vsub.f32 %v788, %v1013
    %v1084 = vsub.f32 %v789, %v1013
    %v1085 = vsub.f32 %v790, %v1013
    %v1086 = vsub.f32 %v791, %v1013
    %v1087 = vsub.f32 %v792, %v1013
    %v1088 = vsub.f32 %v793, %v1013
    %v1089 = vsub.f32 %v794, %v1013
    %v1090 = vsub.f32 %v795, %v1013
    %v1091 = vsub.f32 %v796, %v1013
    %v1092 = vsub.f32 %v797, %v1013
    %v1093 = vsub.f32 %v798, %v1013
    %v1094 = vmul.f32 %v1014, %v1014
    %v1095 = vmul.f32 %v1015, %v1015
    %v1096 = vmul.f32 %v1016, %v1016
    %v1097 = vmul.f32 %v1017, %v1017
    %v1098 = vmul.f32 %v1018, %v1018
    %v1099 = vmul.f32 %v1019, %v1019
    %v1100 = vmul.f32 %v1020, %v1020
    %v1101 = vmul.f32 %v1021, %v1021
    %v1102 = vmul.f32 %v1022, %v1022
    %v1103 = vmul.f32 %v1023, %v1023
    %v1104 = vmul.f32 %v1024, %v1024
    %v1105 = vmul.f32 %v1025, %v1025
    %v1106 = vmul.f32 %v1026, %v1026
    %v1107 = vmul.f32 %v1027, %v1027
    %v1108 = vmul.f32 %v1028, %v1028
    %v1109 = vmul.f32 %v1029, %v1029
    %v1110 = vmul.f32 %v1030, %v1030
    %v1111 = vmul.f32 %v1031, %v1031
    %v1112 = vmul.f32 %v1032, %v1032
    %v1113 = vmul.f32 %v1033, %v1033
    %v1114 = vmul.f32 %v1034, %v1034
    %v1115 = vmul.f32 %v1035, %v1035
    %v1116 = vmul.f32 %v1036, %v1036
    %v1117 = vmul.f32 %v1037, %v1037
    %v1118 = vmul.f32 %v1038, %v1038
    %v1119 = vmul.f32 %v1039, %v1039
    %v1120 = vmul.f32 %v1040, %v1040
    %v1121 = vmul.f32 %v1041, %v1041
    %v1122 = vmul.f32 %v1042, %v1042
    %v1123 = vmul.f32 %v1043, %v1043
    %v1124 = vmul.f32 %v1044, %v1044
    %v1125 = vmul.f32 %v1045, %v1045
    %v1126 = vmul.f32 %v1046, %v1046
    %v1127 = vmul.f32 %v1047, %v1047
    %v1128 = vmul.f32 %v1048, %v1048
    %v1129 = vmul.f32 %v1049, %v1049
    %v1130 = vmul.f32 %v1050, %v1050
    %v1131 = vmul.f32 %v1051, %v1051
    %v1132 = vmul.f32 %v1052, %v1052
    %v1133 = vmul.f32 %v1053, %v1053
    %v1134 = vmul.f32 %v1054, %v1054
    %v1135 = vmul.f32 %v1055, %v1055
    %v1136 = vmul.f32 %v1056, %v1056
    %v1137 = vmul.f32 %v1057, %v1057
    %v1138 = vmul.f32 %v1058, %v1058
    %v1139 = vmul.f32 %v1059, %v1059
    %v1140 = vmul.f32 %v1060, %v1060
    %v1141 = vmul.f32 %v1061, %v1061
    %v1142 = vmul.f32 %v1062, %v1062
    %v1143 = vmul.f32 %v1063, %v1063
    %v1144 = vmul.f32 %v1064, %v1064
    %v1145 = vmul.f32 %v1065, %v1065
    %v1146 = vmul.f32 %v1066, %v1066
    %v1147 = vmul.f32 %v1067, %v1067
    %v1148 = vmul.f32 %v1068, %v1068
    %v1149 = vmul.f32 %v1069, %v1069
    %v1150 = vmul.f32 %v1070, %v1070
    %v1151 = vmul.f32 %v1071, %v1071
    %v1152 = vmul.f32 %v1072, %v1072
    %v1153 = vmul.f32 %v1073, %v1073
    %v1154 = vmul.f32 %v1074, %v1074
    %v1155 = vmul.f32 %v1075, %v1075
    %v1156 = vmul.f32 %v1076, %v1076
    %v1157 = vmul.f32 %v1077, %v1077
    %v1158 = vmul.f32 %v1078, %v1078
    %v1159 = vmul.f32 %v1079, %v1079
    %v1160 = vmul.f32 %v1080, %v1080
    %v1161 = vmul.f32 %v1081, %v1081
    %v1162 = vmul.f32 %v1082, %v1082
    %v1163 = vmul.f32 %v1083, %v1083
    %v1164 = vmul.f32 %v1084, %v1084
    %v1165 = vmul.f32 %v1085, %v1085
    %v1166 = vmul.f32 %v1086, %v1086
    %v1167 = vmul.f32 %v1087, %v1087
    %v1168 = vmul.f32 %v1088, %v1088
    %v1169 = vmul.f32 %v1089, %v1089
    %v1170 = vmul.f32 %v1090, %v1090
    %v1171 = vmul.f32 %v1091, %v1091
    %v1172 = vmul.f32 %v1092, %v1092
    %v1173 = vmul.f32 %v1093, %v1093
    %1174 = vmatprep.subr.mxu0 0.0
    %1175 = vmatpush1.msra.mxu0 %v1109
    %1176 = vmatprep.subr.mxu0 0.0
    %1177 = vmatpush1.msra.mxu0 %v1108
    %1178 = vmatprep.subr.mxu0 0.0
    %1179 = vmatpush1.msra.mxu0 %v1107
    %1180 = vmatprep.subr.mxu0 0.0
    %1181 = vmatpush1.msra.mxu0 %v1106
    %1182 = vmatprep.subr.mxu0 0.0
    %1183 = vmatpush1.msra.mxu0 %v1105
    %1184 = vmatprep.subr.mxu0 0.0
    %1185 = vmatpush1.msra.mxu0 %v1104
    %1186 = vmatprep.subr.mxu0 0.0
    %1187 = vmatpush1.msra.mxu0 %v1103
    %1188 = vmatprep.subr.mxu0 0.0
    %1189 = vmatpush1.msra.mxu0 %v1102
    %1190 = vmatprep.subr.mxu0 0.0
    %1191 = vmatpush1.msra.mxu0 %v1101
    %1192 = vmatprep.subr.mxu0 0.0
    %1193 = vmatpush1.msra.mxu0 %v1100
    %1194 = vmatprep.subr.mxu0 0.0
    %1195 = vmatpush1.msra.mxu0 %v1099
    %1196 = vmatprep.subr.mxu0 0.0
    %1197 = vmatpush1.msra.mxu0 %v1098
    %1198 = vmatprep.subr.mxu0 0.0
    %1199 = vmatpush1.msra.mxu0 %v1097
    %1200 = vmatprep.subr.mxu0 0.0
    %1201 = vmatpush1.msra.mxu0 %v1096
    %1202 = vmatprep.subr.mxu0 0.0
    %1203 = vmatpush1.msra.mxu0 %v1095
    %1204 = vmatprep.subr.mxu0 0.0
    %1205 = vmatpush1.msra.mxu0 %v1094
    %1206 = vmatprep.subr.mxu0 0.0
    %1207 = vmatpush2.msra.mxu0 %v1125
    %1208 = vmatprep.subr.mxu0 0.0
    %1209 = vmatpush2.msra.mxu0 %v1124
    %1210 = vmatprep.subr.mxu0 0.0
    %1211 = vmatpush2.msra.mxu0 %v1123
    %1212 = vmatprep.subr.mxu0 0.0
    %1213 = vmatpush2.msra.mxu0 %v1122
    %1214 = vmatprep.subr.mxu0 0.0
    %1215 = vmatpush2.msra.mxu0 %v1121
    %1216 = vmatprep.subr.mxu0 0.0
    %1217 = vmatpush2.msra.mxu0 %v1120
    %1218 = vmatprep.subr.mxu0 0.0
    %1219 = vmatpush2.msra.mxu0 %v1119
    %1220 = vmatprep.subr.mxu0 0.0
    %1221 = vmatpush2.msra.mxu0 %v1118
    %1222 = vmatprep.subr.mxu0 0.0
    %1223 = vmatpush2.msra.mxu0 %v1117
    %1224 = vmatprep.subr.mxu0 0.0
    %1225 = vmatpush2.msra.mxu0 %v1116
    %1226 = vmatprep.subr.mxu0 0.0
    %1227 = vmatpush2.msra.mxu0 %v1115
    %1228 = vmatprep.subr.mxu0 0.0
    %1229 = vmatpush2.msra.mxu0 %v1114
    %1230 = vmatprep.subr.mxu0 0.0
    %1231 = vmatpush2.msra.mxu0 %v1113
    %1232 = vmatprep.subr.mxu0 0.0
    %1233 = vmatpush2.msra.mxu0 %v1112
    %1234 = vmatprep.subr.mxu0 0.0
    %1235 = vmatpush2.msra.mxu0 %v1111
    %1236 = vmatprep.subr.mxu0 0.0
    %1237 = vmatpush2.msra.mxu0 %v1110
    %1238 = vmatprep.mubr.f32.mxu0 %v144
    %1239 = vmatmul.mubr.f32.gmra.mxu0 %v143
    %v1240 = vpop.f32.mrf.mxu0
    %v1241 = vadd.f32 0.0, %v1240
    %v1242 = vpop.f32.mrf.mxu0
    %1243 = vdwg.mxu0
    %1244 = vmatprep.subr.mxu0 0.0
    %1245 = vmatpush1.msra.mxu0 %v1141
    %1246 = vmatprep.subr.mxu0 0.0
    %1247 = vmatpush1.msra.mxu0 %v1140
    %1248 = vmatprep.subr.mxu0 0.0
    %1249 = vmatpush1.msra.mxu0 %v1139
    %1250 = vmatprep.subr.mxu0 0.0
    %1251 = vmatpush1.msra.mxu0 %v1138
    %1252 = vmatprep.subr.mxu0 0.0
    %1253 = vmatpush1.msra.mxu0 %v1137
    %1254 = vmatprep.subr.mxu0 0.0
    %1255 = vmatpush1.msra.mxu0 %v1136
    %1256 = vmatprep.subr.mxu0 0.0
    %1257 = vmatpush1.msra.mxu0 %v1135
    %1258 = vmatprep.subr.mxu0 0.0
    %1259 = vmatpush1.msra.mxu0 %v1134
    %1260 = vmatprep.subr.mxu0 0.0
    %1261 = vmatpush1.msra.mxu0 %v1133
    %1262 = vmatprep.subr.mxu0 0.0
    %1263 = vmatpush1.msra.mxu0 %v1132
    %1264 = vmatprep.subr.mxu0 0.0
    %1265 = vmatpush1.msra.mxu0 %v1131
    %1266 = vmatprep.subr.mxu0 0.0
    %1267 = vmatpush1.msra.mxu0 %v1130
    %1268 = vmatprep.subr.mxu0 0.0
    %1269 = vmatpush1.msra.mxu0 %v1129
    %1270 = vmatprep.subr.mxu0 0.0
    %1271 = vmatpush1.msra.mxu0 %v1128
    %1272 = vmatprep.subr.mxu0 0.0
    %1273 = vmatpush1.msra.mxu0 %v1127
    %1274 = vmatprep.subr.mxu0 0.0
    %1275 = vmatpush1.msra.mxu0 %v1126
    %1276 = vmatprep.subr.mxu0 0.0
    %1277 = vmatpush2.msra.mxu0 %v1157
    %1278 = vmatprep.subr.mxu0 0.0
    %1279 = vmatpush2.msra.mxu0 %v1156
    %1280 = vmatprep.subr.mxu0 0.0
    %1281 = vmatpush2.msra.mxu0 %v1155
    %1282 = vmatprep.subr.mxu0 0.0
    %1283 = vmatpush2.msra.mxu0 %v1154
    %1284 = vmatprep.subr.mxu0 0.0
    %1285 = vmatpush2.msra.mxu0 %v1153
    %1286 = vmatprep.subr.mxu0 0.0
    %1287 = vmatpush2.msra.mxu0 %v1152
    %1288 = vmatprep.subr.mxu0 0.0
    %1289 = vmatpush2.msra.mxu0 %v1151
    %1290 = vmatprep.subr.mxu0 0.0
    %1291 = vmatpush2.msra.mxu0 %v1150
    %1292 = vmatprep.subr.mxu0 0.0
    %1293 = vmatpush2.msra.mxu0 %v1149
    %1294 = vmatprep.subr.mxu0 0.0
    %1295 = vmatpush2.msra.mxu0 %v1148
    %1296 = vmatprep.subr.mxu0 0.0
    %1297 = vmatpush2.msra.mxu0 %v1147
    %1298 = vmatprep.subr.mxu0 0.0
    %1299 = vmatpush2.msra.mxu0 %v1146
    %1300 = vmatprep.subr.mxu0 0.0
    %1301 = vmatpush2.msra.mxu0 %v1145
    %1302 = vmatprep.subr.mxu0 0.0
    %1303 = vmatpush2.msra.mxu0 %v1144
    %1304 = vmatprep.subr.mxu0 0.0
    %1305 = vmatpush2.msra.mxu0 %v1143
    %1306 = vmatprep.subr.mxu0 0.0
    %1307 = vmatpush2.msra.mxu0 %v1142
    %1308 = vmatprep.mubr.f32.mxu0 %v146
    %1309 = vmatmul.mubr.f32.gmra.mxu0 %v145
    %v1310 = vpop.f32.mrf.mxu0
    %v1311 = vadd.f32 %v1241, %v1310
    %v1312 = vpop.f32.mrf.mxu0
    %1313 = vdwg.mxu0
    %1314 = vmatprep.subr.mxu0 0.0
    %1315 = vmatpush1.msra.mxu0 %v1173
    %1316 = vmatprep.subr.mxu0 0.0
    %1317 = vmatpush1.msra.mxu0 %v1172
    %1318 = vmatprep.subr.mxu0 0.0
    %1319 = vmatpush1.msra.mxu0 %v1171
    %1320 = vmatprep.subr.mxu0 0.0
    %1321 = vmatpush1.msra.mxu0 %v1170
    %1322 = vmatprep.subr.mxu0 0.0
    %1323 = vmatpush1.msra.mxu0 %v1169
    %1324 = vmatprep.subr.mxu0 0.0
    %1325 = vmatpush1.msra.mxu0 %v1168
    %1326 = vmatprep.subr.mxu0 0.0
    %1327 = vmatpush1.msra.mxu0 %v1167
    %1328 = vmatprep.subr.mxu0 0.0
    %1329 = vmatpush1.msra.mxu0 %v1166
    %1330 = vmatprep.subr.mxu0 0.0
    %1331 = vmatpush1.msra.mxu0 %v1165
    %1332 = vmatprep.subr.mxu0 0.0
    %1333 = vmatpush1.msra.mxu0 %v1164
    %1334 = vmatprep.subr.mxu0 0.0
    %1335 = vmatpush1.msra.mxu0 %v1163
    %1336 = vmatprep.subr.mxu0 0.0
    %1337 = vmatpush1.msra.mxu0 %v1162
    %1338 = vmatprep.subr.mxu0 0.0
    %1339 = vmatpush1.msra.mxu0 %v1161
    %1340 = vmatprep.subr.mxu0 0.0
    %1341 = vmatpush1.msra.mxu0 %v1160
    %1342 = vmatprep.subr.mxu0 0.0
    %1343 = vmatpush1.msra.mxu0 %v1159
    %1344 = vmatprep.subr.mxu0 0.0
    %1345 = vmatpush1.msra.mxu0 %v1158
    %1346 = vmatprep.subr.mxu0 0.0
    %1347 = vmatpush2.msra.mxu0 0.0
    %1348 = vmatprep.subr.mxu0 0.0
    %1349 = vmatpush2.msra.mxu0 0.0
    %1350 = vmatprep.subr.mxu0 0.0
    %1351 = vmatpush2.msra.mxu0 0.0
    %1352 = vmatprep.subr.mxu0 0.0
    %1353 = vmatpush2.msra.mxu0 0.0
    %1354 = vmatprep.subr.mxu0 0.0
    %1355 = vmatpush2.msra.mxu0 0.0
    %1356 = vmatprep.subr.mxu0 0.0
    %1357 = vmatpush2.msra.mxu0 0.0
    %1358 = vmatprep.subr.mxu0 0.0
    %1359 = vmatpush2.msra.mxu0 0.0
    %1360 = vmatprep.subr.mxu0 0.0
    %1361 = vmatpush2.msra.mxu0 0.0
    %1362 = vmatprep.subr.mxu0 0.0
    %1363 = vmatpush2.msra.mxu0 0.0
    %1364 = vmatprep.subr.mxu0 0.0
    %1365 = vmatpush2.msra.mxu0 0.0
    %1366 = vmatprep.subr.mxu0 0.0
    %1367 = vmatpush2.msra.mxu0 0.0
    %1368 = vmatprep.subr.mxu0 0.0
    %1369 = vmatpush2.msra.mxu0 0.0
    %1370 = vmatprep.subr.mxu0 0.0
    %1371 = vmatpush2.msra.mxu0 0.0
    %1372 = vmatprep.subr.mxu0 0.0
    %1373 = vmatpush2.msra.mxu0 0.0
    %1374 = vmatprep.subr.mxu0 0.0
    %1375 = vmatpush2.msra.mxu0 0.0
    %1376 = vmatprep.subr.mxu0 0.0
    %1377 = vmatpush2.msra.mxu0 0.0
    %1378 = vmatprep.mubr.f32.mxu0 0.0
    %1379 = vmatmul.mubr.f32.gmra.mxu0 %v147
    %v1380 = vpop.f32.mrf.mxu0
    %v1381 = vadd.f32 %v1311, %v1380
    %v1382 = vpop.f32.mrf.mxu0
    %1383 = vdwg.mxu0
    %v1384 = vmul.f32 %v1381, 0.001953125
    %v1385 = vadd.f32 %v1384, 1e-05
    %v1386 = vrsqrt.pop %v1385
    %v1387 = vmul.f32 %v1386, %v229
    %v1388 = vlaneseq
    %v1389 = vshrl.u32 %v1388, 7
    %v1390 = vsub.s32 0, %v1389
    %v1391 = vrot.slane %v1387, %v1390
    %v1392 = vmul.f32 %v1014, %v1391
    %v1393 = vmul.f32 %v1015, %v1391
    %v1394 = vmul.f32 %v1016, %v1391
    %v1395 = vmul.f32 %v1017, %v1391
    %v1396 = vmul.f32 %v1018, %v1391
    %v1397 = vmul.f32 %v1019, %v1391
    %v1398 = vmul.f32 %v1020, %v1391
    %v1399 = vmul.f32 %v1021, %v1391
    %v1400 = vmul.f32 %v1022, %v1391
    %v1401 = vmul.f32 %v1023, %v1391
    %v1402 = vmul.f32 %v1024, %v1391
    %v1403 = vmul.f32 %v1025, %v1391
    %v1404 = vmul.f32 %v1026, %v1391
    %v1405 = vmul.f32 %v1027, %v1391
    %v1406 = vmul.f32 %v1028, %v1391
    %v1407 = vmul.f32 %v1029, %v1391
    %v1408 = vmul.f32 %v1030, %v1391
    %v1409 = vmul.f32 %v1031, %v1391
    %v1410 = vmul.f32 %v1032, %v1391
    %v1411 = vmul.f32 %v1033, %v1391
    %v1412 = vmul.f32 %v1034, %v1391
    %v1413 = vmul.f32 %v1035, %v1391
    %v1414 = vmul.f32 %v1036, %v1391
    %v1415 = vmul.f32 %v1037, %v1391
    %v1416 = vmul.f32 %v1038, %v1391
    %v1417 = vmul.f32 %v1039, %v1391
    %v1418 = vmul.f32 %v1040, %v1391
    %v1419 = vmul.f32 %v1041, %v1391
    %v1420 = vmul.f32 %v1042, %v1391
    %v1421 = vmul.f32 %v1043, %v1391
    %v1422 = vmul.f32 %v1044, %v1391
    %v1423 = vmul.f32 %v1045, %v1391
    %v1424 = vmul.f32 %v1046, %v1391
    %v1425 = vmul.f32 %v1047, %v1391
    %v1426 = vmul.f32 %v1048, %v1391
    %v1427 = vmul.f32 %v1049, %v1391
    %v1428 = vmul.f32 %v1050, %v1391
    %v1429 = vmul.f32 %v1051, %v1391
    %v1430 = vmul.f32 %v1052, %v1391
    %v1431 = vmul.f32 %v1053, %v1391
    %v1432 = vmul.f32 %v1054, %v1391
    %v1433 = vmul.f32 %v1055, %v1391
    %v1434 = vmul.f32 %v1056, %v1391
    %v1435 = vmul.f32 %v1057, %v1391
    %v1436 = vmul.f32 %v1058, %v1391
    %v1437 = vmul.f32 %v1059, %v1391
    %v1438 = vmul.f32 %v1060, %v1391
    %v1439 = vmul.f32 %v1061, %v1391
    %v1440 = vmul.f32 %v1062, %v1391
    %v1441 = vmul.f32 %v1063, %v1391
    %v1442 = vmul.f32 %v1064, %v1391
    %v1443 = vmul.f32 %v1065, %v1391
    %v1444 = vmul.f32 %v1066, %v1391
    %v1445 = vmul.f32 %v1067, %v1391
    %v1446 = vmul.f32 %v1068, %v1391
    %v1447 = vmul.f32 %v1069, %v1391
    %v1448 = vmul.f32 %v1070, %v1391
    %v1449 = vmul.f32 %v1071, %v1391
    %v1450 = vmul.f32 %v1072, %v1391
    %v1451 = vmul.f32 %v1073, %v1391
    %v1452 = vmul.f32 %v1074, %v1391
    %v1453 = vmul.f32 %v1075, %v1391
    %v1454 = vmul.f32 %v1076, %v1391
    %v1455 = vmul.f32 %v1077, %v1391
    %v1456 = vmul.f32 %v1078, %v1391
    %v1457 = vmul.f32 %v1079, %v1391
    %v1458 = vmul.f32 %v1080, %v1391
    %v1459 = vmul.f32 %v1081, %v1391
    %v1460 = vmul.f32 %v1082, %v1391
    %v1461 = vmul.f32 %v1083, %v1391
    %v1462 = vmul.f32 %v1084, %v1391
    %v1463 = vmul.f32 %v1085, %v1391
    %v1464 = vmul.f32 %v1086, %v1391
    %v1465 = vmul.f32 %v1087, %v1391
    %v1466 = vmul.f32 %v1088, %v1391
    %v1467 = vmul.f32 %v1089, %v1391
    %v1468 = vmul.f32 %v1090, %v1391
    %v1469 = vmul.f32 %v1091, %v1391
    %v1470 = vmul.f32 %v1092, %v1391
    %v1471 = vmul.f32 %v1093, %v1391
    %v1472 = vlaneseq
    %v1473 = vshrl.u32 %v1472, 7
    %v1474 = vsub.s32 0, %v1473
    %v1475 = vrot.slane %v230, %v1474
    %v1476 = vadd.f32 %v1392, %v1475
    %v1477 = vadd.f32 %v1393, %v1475
    %v1478 = vadd.f32 %v1394, %v1475
    %v1479 = vadd.f32 %v1395, %v1475
    %v1480 = vadd.f32 %v1396, %v1475
    %v1481 = vadd.f32 %v1397, %v1475
    %v1482 = vadd.f32 %v1398, %v1475
    %v1483 = vadd.f32 %v1399, %v1475
    %v1484 = vadd.f32 %v1400, %v1475
    %v1485 = vadd.f32 %v1401, %v1475
    %v1486 = vadd.f32 %v1402, %v1475
    %v1487 = vadd.f32 %v1403, %v1475
    %v1488 = vadd.f32 %v1404, %v1475
    %v1489 = vadd.f32 %v1405, %v1475
    %v1490 = vadd.f32 %v1406, %v1475
    %v1491 = vadd.f32 %v1407, %v1475
    %v1492 = vadd.f32 %v1408, %v1475
    %v1493 = vadd.f32 %v1409, %v1475
    %v1494 = vadd.f32 %v1410, %v1475
    %v1495 = vadd.f32 %v1411, %v1475
    %v1496 = vadd.f32 %v1412, %v1475
    %v1497 = vadd.f32 %v1413, %v1475
    %v1498 = vadd.f32 %v1414, %v1475
    %v1499 = vadd.f32 %v1415, %v1475
    %v1500 = vadd.f32 %v1416, %v1475
    %v1501 = vadd.f32 %v1417, %v1475
    %v1502 = vadd.f32 %v1418, %v1475
    %v1503 = vadd.f32 %v1419, %v1475
    %v1504 = vadd.f32 %v1420, %v1475
    %v1505 = vadd.f32 %v1421, %v1475
    %v1506 = vadd.f32 %v1422, %v1475
    %v1507 = vadd.f32 %v1423, %v1475
    %v1508 = vadd.f32 %v1424, %v1475
    %v1509 = vadd.f32 %v1425, %v1475
    %v1510 = vadd.f32 %v1426, %v1475
    %v1511 = vadd.f32 %v1427, %v1475
    %v1512 = vadd.f32 %v1428, %v1475
    %v1513 = vadd.f32 %v1429, %v1475
    %v1514 = vadd.f32 %v1430, %v1475
    %v1515 = vadd.f32 %v1431, %v1475
    %v1516 = vadd.f32 %v1432, %v1475
    %v1517 = vadd.f32 %v1433, %v1475
    %v1518 = vadd.f32 %v1434, %v1475
    %v1519 = vadd.f32 %v1435, %v1475
    %v1520 = vadd.f32 %v1436, %v1475
    %v1521 = vadd.f32 %v1437, %v1475
    %v1522 = vadd.f32 %v1438, %v1475
    %v1523 = vadd.f32 %v1439, %v1475
    %v1524 = vadd.f32 %v1440, %v1475
    %v1525 = vadd.f32 %v1441, %v1475
    %v1526 = vadd.f32 %v1442, %v1475
    %v1527 = vadd.f32 %v1443, %v1475
    %v1528 = vadd.f32 %v1444, %v1475
    %v1529 = vadd.f32 %v1445, %v1475
    %v1530 = vadd.f32 %v1446, %v1475
    %v1531 = vadd.f32 %v1447, %v1475
    %v1532 = vadd.f32 %v1448, %v1475
    %v1533 = vadd.f32 %v1449, %v1475
    %v1534 = vadd.f32 %v1450, %v1475
    %v1535 = vadd.f32 %v1451, %v1475
    %v1536 = vadd.f32 %v1452, %v1475
    %v1537 = vadd.f32 %v1453, %v1475
    %v1538 = vadd.f32 %v1454, %v1475
    %v1539 = vadd.f32 %v1455, %v1475
    %v1540 = vadd.f32 %v1456, %v1475
    %v1541 = vadd.f32 %v1457, %v1475
    %v1542 = vadd.f32 %v1458, %v1475
    %v1543 = vadd.f32 %v1459, %v1475
    %v1544 = vadd.f32 %v1460, %v1475
    %v1545 = vadd.f32 %v1461, %v1475
    %v1546 = vadd.f32 %v1462, %v1475
    %v1547 = vadd.f32 %v1463, %v1475
    %v1548 = vadd.f32 %v1464, %v1475
    %v1549 = vadd.f32 %v1465, %v1475
    %v1550 = vadd.f32 %v1466, %v1475
    %v1551 = vadd.f32 %v1467, %v1475
    %v1552 = vadd.f32 %v1468, %v1475
    %v1553 = vadd.f32 %v1469, %v1475
    %v1554 = vadd.f32 %v1470, %v1475
    %v1555 = vadd.f32 %v1471, %v1475
    %1557 = vset.pattern.permute.xlu0 0
    %1558 = vperm.xlu0 %1557, %v148
    %v1559 = vpop.permute.xlu0 %1558
    %1562 = vset.pattern.permute.xlu0 0
    %1563 = vperm.xlu0 %1562, %v149
    %v1564 = vpop.permute.xlu0 %1563
    %1567 = vset.pattern.permute.xlu0 0
    %1568 = vperm.xlu0 %1567, %v150
    %v1569 = vpop.permute.xlu0 %1568
    %1572 = vset.pattern.permute.xlu0 0
    %1573 = vperm.xlu0 %1572, %v151
    %v1574 = vpop.permute.xlu0 %1573
    %1577 = vset.pattern.permute.xlu0 0
    %1578 = vperm.xlu0 %1577, %v152
    %v1579 = vpop.permute.xlu0 %1578
    %1582 = vset.pattern.permute.xlu0 0
    %1583 = vperm.xlu0 %1582, %v153
    %v1584 = vpop.permute.xlu0 %1583
    %1587 = vset.pattern.permute.xlu0 0
    %1588 = vperm.xlu0 %1587, %v154
    %v1589 = vpop.permute.xlu0 %1588
    %1592 = vset.pattern.permute.xlu0 0
    %1593 = vperm.xlu0 %1592, %v155
    %v1594 = vpop.permute.xlu0 %1593
    %1597 = vset.pattern.permute.xlu0 0
    %1598 = vperm.xlu0 %1597, %v156
    %v1599 = vpop.permute.xlu0 %1598
    %1602 = vset.pattern.permute.xlu0 0
    %1603 = vperm.xlu0 %1602, %v157
    %v1604 = vpop.permute.xlu0 %1603
    %1607 = vset.pattern.permute.xlu0 0
    %1608 = vperm.xlu0 %1607, %v158
    %v1609 = vpop.permute.xlu0 %1608
    %1612 = vset.pattern.permute.xlu0 0
    %1613 = vperm.xlu0 %1612, %v159
    %v1614 = vpop.permute.xlu0 %1613
    %1617 = vset.pattern.permute.xlu0 0
    %1618 = vperm.xlu0 %1617, %v160
    %v1619 = vpop.permute.xlu0 %1618
    %1622 = vset.pattern.permute.xlu0 0
    %1623 = vperm.xlu0 %1622, %v161
    %v1624 = vpop.permute.xlu0 %1623
    %1627 = vset.pattern.permute.xlu0 0
    %1628 = vperm.xlu0 %1627, %v162
    %v1629 = vpop.permute.xlu0 %1628
    %1632 = vset.pattern.permute.xlu0 0
    %1633 = vperm.xlu0 %1632, %v163
    %v1634 = vpop.permute.xlu0 %1633
    %1637 = vset.pattern.permute.xlu0 0
    %1638 = vperm.xlu0 %1637, %v164
    %v1639 = vpop.permute.xlu0 %1638
    %1642 = vset.pattern.permute.xlu0 0
    %1643 = vperm.xlu0 %1642, %v165
    %v1644 = vpop.permute.xlu0 %1643
    %1647 = vset.pattern.permute.xlu0 0
    %1648 = vperm.xlu0 %1647, %v166
    %v1649 = vpop.permute.xlu0 %1648
    %1652 = vset.pattern.permute.xlu0 0
    %1653 = vperm.xlu0 %1652, %v167
    %v1654 = vpop.permute.xlu0 %1653
    %1657 = vset.pattern.permute.xlu0 0
    %1658 = vperm.xlu0 %1657, %v168
    %v1659 = vpop.permute.xlu0 %1658
    %1662 = vset.pattern.permute.xlu0 0
    %1663 = vperm.xlu0 %1662, %v169
    %v1664 = vpop.permute.xlu0 %1663
    %1667 = vset.pattern.permute.xlu0 0
    %1668 = vperm.xlu0 %1667, %v170
    %v1669 = vpop.permute.xlu0 %1668
    %1672 = vset.pattern.permute.xlu0 0
    %1673 = vperm.xlu0 %1672, %v171
    %v1674 = vpop.permute.xlu0 %1673
    %1677 = vset.pattern.permute.xlu0 0
    %1678 = vperm.xlu0 %1677, %v172
    %v1679 = vpop.permute.xlu0 %1678
    %1682 = vset.pattern.permute.xlu0 0
    %1683 = vperm.xlu0 %1682, %v173
    %v1684 = vpop.permute.xlu0 %1683
    %1687 = vset.pattern.permute.xlu0 0
    %1688 = vperm.xlu0 %1687, %v174
    %v1689 = vpop.permute.xlu0 %1688
    %1692 = vset.pattern.permute.xlu0 0
    %1693 = vperm.xlu0 %1692, %v175
    %v1694 = vpop.permute.xlu0 %1693
    %1697 = vset.pattern.permute.xlu0 0
    %1698 = vperm.xlu0 %1697, %v176
    %v1699 = vpop.permute.xlu0 %1698
    %1702 = vset.pattern.permute.xlu0 0
    %1703 = vperm.xlu0 %1702, %v177
    %v1704 = vpop.permute.xlu0 %1703
    %1707 = vset.pattern.permute.xlu0 0
    %1708 = vperm.xlu0 %1707, %v178
    %v1709 = vpop.permute.xlu0 %1708
    %1712 = vset.pattern.permute.xlu0 0
    %1713 = vperm.xlu0 %1712, %v179
    %v1714 = vpop.permute.xlu0 %1713
    %1717 = vset.pattern.permute.xlu0 0
    %1718 = vperm.xlu0 %1717, %v180
    %v1719 = vpop.permute.xlu0 %1718
    %1722 = vset.pattern.permute.xlu0 0
    %1723 = vperm.xlu0 %1722, %v181
    %v1724 = vpop.permute.xlu0 %1723
    %1727 = vset.pattern.permute.xlu0 0
    %1728 = vperm.xlu0 %1727, %v182
    %v1729 = vpop.permute.xlu0 %1728
    %1732 = vset.pattern.permute.xlu0 0
    %1733 = vperm.xlu0 %1732, %v183
    %v1734 = vpop.permute.xlu0 %1733
    %1737 = vset.pattern.permute.xlu0 0
    %1738 = vperm.xlu0 %1737, %v184
    %v1739 = vpop.permute.xlu0 %1738
    %1742 = vset.pattern.permute.xlu0 0
    %1743 = vperm.xlu0 %1742, %v185
    %v1744 = vpop.permute.xlu0 %1743
    %1747 = vset.pattern.permute.xlu0 0
    %1748 = vperm.xlu0 %1747, %v186
    %v1749 = vpop.permute.xlu0 %1748
    %1752 = vset.pattern.permute.xlu0 0
    %1753 = vperm.xlu0 %1752, %v187
    %v1754 = vpop.permute.xlu0 %1753
    %1757 = vset.pattern.permute.xlu0 0
    %1758 = vperm.xlu0 %1757, %v188
    %v1759 = vpop.permute.xlu0 %1758
    %1762 = vset.pattern.permute.xlu0 0
    %1763 = vperm.xlu0 %1762, %v189
    %v1764 = vpop.permute.xlu0 %1763
    %1767 = vset.pattern.permute.xlu0 0
    %1768 = vperm.xlu0 %1767, %v190
    %v1769 = vpop.permute.xlu0 %1768
    %1772 = vset.pattern.permute.xlu0 0
    %1773 = vperm.xlu0 %1772, %v191
    %v1774 = vpop.permute.xlu0 %1773
    %1777 = vset.pattern.permute.xlu0 0
    %1778 = vperm.xlu0 %1777, %v192
    %v1779 = vpop.permute.xlu0 %1778
    %1782 = vset.pattern.permute.xlu0 0
    %1783 = vperm.xlu0 %1782, %v193
    %v1784 = vpop.permute.xlu0 %1783
    %1787 = vset.pattern.permute.xlu0 0
    %1788 = vperm.xlu0 %1787, %v194
    %v1789 = vpop.permute.xlu0 %1788
    %1792 = vset.pattern.permute.xlu0 0
    %1793 = vperm.xlu0 %1792, %v195
    %v1794 = vpop.permute.xlu0 %1793
    %1797 = vset.pattern.permute.xlu0 0
    %1798 = vperm.xlu0 %1797, %v196
    %v1799 = vpop.permute.xlu0 %1798
    %1802 = vset.pattern.permute.xlu0 0
    %1803 = vperm.xlu0 %1802, %v197
    %v1804 = vpop.permute.xlu0 %1803
    %1807 = vset.pattern.permute.xlu0 0
    %1808 = vperm.xlu0 %1807, %v198
    %v1809 = vpop.permute.xlu0 %1808
    %1812 = vset.pattern.permute.xlu0 0
    %1813 = vperm.xlu0 %1812, %v199
    %v1814 = vpop.permute.xlu0 %1813
    %1817 = vset.pattern.permute.xlu0 0
    %1818 = vperm.xlu0 %1817, %v200
    %v1819 = vpop.permute.xlu0 %1818
    %1822 = vset.pattern.permute.xlu0 0
    %1823 = vperm.xlu0 %1822, %v201
    %v1824 = vpop.permute.xlu0 %1823
    %1827 = vset.pattern.permute.xlu0 0
    %1828 = vperm.xlu0 %1827, %v202
    %v1829 = vpop.permute.xlu0 %1828
    %1832 = vset.pattern.permute.xlu0 0
    %1833 = vperm.xlu0 %1832, %v203
    %v1834 = vpop.permute.xlu0 %1833
    %1837 = vset.pattern.permute.xlu0 0
    %1838 = vperm.xlu0 %1837, %v204
    %v1839 = vpop.permute.xlu0 %1838
    %1842 = vset.pattern.permute.xlu0 0
    %1843 = vperm.xlu0 %1842, %v205
    %v1844 = vpop.permute.xlu0 %1843
    %1847 = vset.pattern.permute.xlu0 0
    %1848 = vperm.xlu0 %1847, %v206
    %v1849 = vpop.permute.xlu0 %1848
    %1852 = vset.pattern.permute.xlu0 0
    %1853 = vperm.xlu0 %1852, %v207
    %v1854 = vpop.permute.xlu0 %1853
    %1857 = vset.pattern.permute.xlu0 0
    %1858 = vperm.xlu0 %1857, %v208
    %v1859 = vpop.permute.xlu0 %1858
    %1862 = vset.pattern.permute.xlu0 0
    %1863 = vperm.xlu0 %1862, %v209
    %v1864 = vpop.permute.xlu0 %1863
    %1867 = vset.pattern.permute.xlu0 0
    %1868 = vperm.xlu0 %1867, %v210
    %v1869 = vpop.permute.xlu0 %1868
    %1872 = vset.pattern.permute.xlu0 0
    %1873 = vperm.xlu0 %1872, %v211
    %v1874 = vpop.permute.xlu0 %1873
    %1877 = vset.pattern.permute.xlu0 0
    %1878 = vperm.xlu0 %1877, %v212
    %v1879 = vpop.permute.xlu0 %1878
    %1882 = vset.pattern.permute.xlu0 0
    %1883 = vperm.xlu0 %1882, %v213
    %v1884 = vpop.permute.xlu0 %1883
    %1887 = vset.pattern.permute.xlu0 0
    %1888 = vperm.xlu0 %1887, %v214
    %v1889 = vpop.permute.xlu0 %1888
    %1892 = vset.pattern.permute.xlu0 0
    %1893 = vperm.xlu0 %1892, %v215
    %v1894 = vpop.permute.xlu0 %1893
    %1897 = vset.pattern.permute.xlu0 0
    %1898 = vperm.xlu0 %1897, %v216
    %v1899 = vpop.permute.xlu0 %1898
    %1902 = vset.pattern.permute.xlu0 0
    %1903 = vperm.xlu0 %1902, %v217
    %v1904 = vpop.permute.xlu0 %1903
    %1907 = vset.pattern.permute.xlu0 0
    %1908 = vperm.xlu0 %1907, %v218
    %v1909 = vpop.permute.xlu0 %1908
    %1912 = vset.pattern.permute.xlu0 0
    %1913 = vperm.xlu0 %1912, %v219
    %v1914 = vpop.permute.xlu0 %1913
    %1917 = vset.pattern.permute.xlu0 0
    %1918 = vperm.xlu0 %1917, %v220
    %v1919 = vpop.permute.xlu0 %1918
    %1922 = vset.pattern.permute.xlu0 0
    %1923 = vperm.xlu0 %1922, %v221
    %v1924 = vpop.permute.xlu0 %1923
    %1927 = vset.pattern.permute.xlu0 0
    %1928 = vperm.xlu0 %1927, %v222
    %v1929 = vpop.permute.xlu0 %1928
    %1932 = vset.pattern.permute.xlu0 0
    %1933 = vperm.xlu0 %1932, %v223
    %v1934 = vpop.permute.xlu0 %1933
    %1937 = vset.pattern.permute.xlu0 0
    %1938 = vperm.xlu0 %1937, %v224
    %v1939 = vpop.permute.xlu0 %1938
    %1942 = vset.pattern.permute.xlu0 0
    %1943 = vperm.xlu0 %1942, %v225
    %v1944 = vpop.permute.xlu0 %1943
    %1947 = vset.pattern.permute.xlu0 0
    %1948 = vperm.xlu0 %1947, %v226
    %v1949 = vpop.permute.xlu0 %1948
    %1952 = vset.pattern.permute.xlu0 0
    %1953 = vperm.xlu0 %1952, %v227
    %v1954 = vpop.permute.xlu0 %1953
    %v1956 = vmul.f32 %v1476, %v1559
    %v1957 = vmul.f32 %v1477, %v1564
    %v1958 = vmul.f32 %v1478, %v1569
    %v1959 = vmul.f32 %v1479, %v1574
    %v1960 = vmul.f32 %v1480, %v1579
    %v1961 = vmul.f32 %v1481, %v1584
    %v1962 = vmul.f32 %v1482, %v1589
    %v1963 = vmul.f32 %v1483, %v1594
    %v1964 = vmul.f32 %v1484, %v1599
    %v1965 = vmul.f32 %v1485, %v1604
    %v1966 = vmul.f32 %v1486, %v1609
    %v1967 = vmul.f32 %v1487, %v1614
    %v1968 = vmul.f32 %v1488, %v1619
    %v1969 = vmul.f32 %v1489, %v1624
    %v1970 = vmul.f32 %v1490, %v1629
    %v1971 = vmul.f32 %v1491, %v1634
    %v1972 = vmul.f32 %v1492, %v1639
    %v1973 = vmul.f32 %v1493, %v1644
    %v1974 = vmul.f32 %v1494, %v1649
    %v1975 = vmul.f32 %v1495, %v1654
    %v1976 = vmul.f32 %v1496, %v1659
    %v1977 = vmul.f32 %v1497, %v1664
    %v1978 = vmul.f32 %v1498, %v1669
    %v1979 = vmul.f32 %v1499, %v1674
    %v1980 = vmul.f32 %v1500, %v1679
    %v1981 = vmul.f32 %v1501, %v1684
    %v1982 = vmul.f32 %v1502, %v1689
    %v1983 = vmul.f32 %v1503, %v1694
    %v1984 = vmul.f32 %v1504, %v1699
    %v1985 = vmul.f32 %v1505, %v1704
    %v1986 = vmul.f32 %v1506, %v1709
    %v1987 = vmul.f32 %v1507, %v1714
    %v1988 = vmul.f32 %v1508, %v1719
    %v1989 = vmul.f32 %v1509, %v1724
    %v1990 = vmul.f32 %v1510, %v1729
    %v1991 = vmul.f32 %v1511, %v1734
    %v1992 = vmul.f32 %v1512, %v1739
    %v1993 = vmul.f32 %v1513, %v1744
    %v1994 = vmul.f32 %v1514, %v1749
    %v1995 = vmul.f32 %v1515, %v1754
    %v1996 = vmul.f32 %v1516, %v1759
    %v1997 = vmul.f32 %v1517, %v1764
    %v1998 = vmul.f32 %v1518, %v1769
    %v1999 = vmul.f32 %v1519, %v1774
    %v2000 = vmul.f32 %v1520, %v1779
    %v2001 = vmul.f32 %v1521, %v1784
    %v2002 = vmul.f32 %v1522, %v1789
    %v2003 = vmul.f32 %v1523, %v1794
    %v2004 = vmul.f32 %v1524, %v1799
    %v2005 = vmul.f32 %v1525, %v1804
    %v2006 = vmul.f32 %v1526, %v1809
    %v2007 = vmul.f32 %v1527, %v1814
    %v2008 = vmul.f32 %v1528, %v1819
    %v2009 = vmul.f32 %v1529, %v1824
    %v2010 = vmul.f32 %v1530, %v1829
    %v2011 = vmul.f32 %v1531, %v1834
    %v2012 = vmul.f32 %v1532, %v1839
    %v2013 = vmul.f32 %v1533, %v1844
    %v2014 = vmul.f32 %v1534, %v1849
    %v2015 = vmul.f32 %v1535, %v1854
    %v2016 = vmul.f32 %v1536, %v1859
    %v2017 = vmul.f32 %v1537, %v1864
    %v2018 = vmul.f32 %v1538, %v1869
    %v2019 = vmul.f32 %v1539, %v1874
    %v2020 = vmul.f32 %v1540, %v1879
    %v2021 = vmul.f32 %v1541, %v1884
    %v2022 = vmul.f32 %v1542, %v1889
    %v2023 = vmul.f32 %v1543, %v1894
    %v2024 = vmul.f32 %v1544, %v1899
    %v2025 = vmul.f32 %v1545, %v1904
    %v2026 = vmul.f32 %v1546, %v1909
    %v2027 = vmul.f32 %v1547, %v1914
    %v2028 = vmul.f32 %v1548, %v1919
    %v2029 = vmul.f32 %v1549, %v1924
    %v2030 = vmul.f32 %v1550, %v1929
    %v2031 = vmul.f32 %v1551, %v1934
    %v2032 = vmul.f32 %v1552, %v1939
    %v2033 = vmul.f32 %v1553, %v1944
    %v2034 = vmul.f32 %v1554, %v1949
    %v2035 = vmul.f32 %v1555, %v1954
    %2036 = vst [vmem:[#allocation2] sm:$0xff] 0.0
    %2037 = vst [vmem:[#allocation2 + $0x8] sm:$0xff] 0.0
    %2038 = vst [vmem:[#allocation2 + $0x10] sm:$0xff] 0.0
    %2039 = vst [vmem:[#allocation2 + $0x298] sm:$0xff] 0.0
    %2040 = vst [vmem:[#allocation2 + $0x2a0] sm:$0xff] 0.0
    %2041 = vst [vmem:[#allocation2 + $0x2a8] sm:$0xff] 0.0
    %2042 = vst [vmem:[#allocation2 + $0x18] sm:$0xff] %v1956
    %2043 = vst [vmem:[#allocation2 + $0x20] sm:$0xff] %v1957
    %2044 = vst [vmem:[#allocation2 + $0x28] sm:$0xff] %v1958
    %2045 = vst [vmem:[#allocation2 + $0x30] sm:$0xff] %v1959
    %2046 = vst [vmem:[#allocation2 + $0x38] sm:$0xff] %v1960
    %2047 = vst [vmem:[#allocation2 + $0x40] sm:$0xff] %v1961
    %2048 = vst [vmem:[#allocation2 + $0x48] sm:$0xff] %v1962
    %2049 = vst [vmem:[#allocation2 + $0x50] sm:$0xff] %v1963
    %2050 = vst [vmem:[#allocation2 + $0x58] sm:$0xff] %v1964
    %2051 = vst [vmem:[#allocation2 + $0x60] sm:$0xff] %v1965
    %2052 = vst [vmem:[#allocation2 + $0x68] sm:$0xff] %v1966
    %2053 = vst [vmem:[#allocation2 + $0x70] sm:$0xff] %v1967
    %2054 = vst [vmem:[#allocation2 + $0x78] sm:$0xff] %v1968
    %2055 = vst [vmem:[#allocation2 + $0x80] sm:$0xff] %v1969
    %2056 = vst [vmem:[#allocation2 + $0x88] sm:$0xff] %v1970
    %2057 = vst [vmem:[#allocation2 + $0x90] sm:$0xff] %v1971
    %2058 = vst [vmem:[#allocation2 + $0x98] sm:$0xff] %v1972
    %2059 = vst [vmem:[#allocation2 + $0xa0] sm:$0xff] %v1973
    %2060 = vst [vmem:[#allocation2 + $0xa8] sm:$0xff] %v1974
    %2061 = vst [vmem:[#allocation2 + $0xb0] sm:$0xff] %v1975
    %2062 = vst [vmem:[#allocation2 + $0xb8] sm:$0xff] %v1976
    %2063 = vst [vmem:[#allocation2 + $0xc0] sm:$0xff] %v1977
    %2064 = vst [vmem:[#allocation2 + $0xc8] sm:$0xff] %v1978
    %2065 = vst [vmem:[#allocation2 + $0xd0] sm:$0xff] %v1979
    %2066 = vst [vmem:[#allocation2 + $0xd8] sm:$0xff] %v1980
    %2067 = vst [vmem:[#allocation2 + $0xe0] sm:$0xff] %v1981
    %2068 = vst [vmem:[#allocation2 + $0xe8] sm:$0xff] %v1982
    %2069 = vst [vmem:[#allocation2 + $0xf0] sm:$0xff] %v1983
    %2070 = vst [vmem:[#allocation2 + $0xf8] sm:$0xff] %v1984
    %2071 = vst [vmem:[#allocation2 + $0x100] sm:$0xff] %v1985
    %2072 = vst [vmem:[#allocation2 + $0x108] sm:$0xff] %v1986
    %2073 = vst [vmem:[#allocation2 + $0x110] sm:$0xff] %v1987
    %2074 = vst [vmem:[#allocation2 + $0x118] sm:$0xff] %v1988
    %2075 = vst [vmem:[#allocation2 + $0x120] sm:$0xff] %v1989
    %2076 = vst [vmem:[#allocation2 + $0x128] sm:$0xff] %v1990
    %2077 = vst [vmem:[#allocation2 + $0x130] sm:$0xff] %v1991
    %2078 = vst [vmem:[#allocation2 + $0x138] sm:$0xff] %v1992
    %2079 = vst [vmem:[#allocation2 + $0x140] sm:$0xff] %v1993
    %2080 = vst [vmem:[#allocation2 + $0x148] sm:$0xff] %v1994
    %2081 = vst [vmem:[#allocation2 + $0x150] sm:$0xff] %v1995
    %2082 = vst [vmem:[#allocation2 + $0x158] sm:$0xff] %v1996
    %2083 = vst [vmem:[#allocation2 + $0x160] sm:$0xff] %v1997
    %2084 = vst [vmem:[#allocation2 + $0x168] sm:$0xff] %v1998
    %2085 = vst [vmem:[#allocation2 + $0x170] sm:$0xff] %v1999
    %2086 = vst [vmem:[#allocation2 + $0x178] sm:$0xff] %v2000
    %2087 = vst [vmem:[#allocation2 + $0x180] sm:$0xff] %v2001
    %2088 = vst [vmem:[#allocation2 + $0x188] sm:$0xff] %v2002
    %2089 = vst [vmem:[#allocation2 + $0x190] sm:$0xff] %v2003
    %2090 = vst [vmem:[#allocation2 + $0x198] sm:$0xff] %v2004
    %2091 = vst [vmem:[#allocation2 + $0x1a0] sm:$0xff] %v2005
    %2092 = vst [vmem:[#allocation2 + $0x1a8] sm:$0xff] %v2006
    %2093 = vst [vmem:[#allocation2 + $0x1b0] sm:$0xff] %v2007
    %2094 = vst [vmem:[#allocation2 + $0x1b8] sm:$0xff] %v2008
    %2095 = vst [vmem:[#allocation2 + $0x1c0] sm:$0xff] %v2009
    %2096 = vst [vmem:[#allocation2 + $0x1c8] sm:$0xff] %v2010
    %2097 = vst [vmem:[#allocation2 + $0x1d0] sm:$0xff] %v2011
    %2098 = vst [vmem:[#allocation2 + $0x1d8] sm:$0xff] %v2012
    %2099 = vst [vmem:[#allocation2 + $0x1e0] sm:$0xff] %v2013
    %2100 = vst [vmem:[#allocation2 + $0x1e8] sm:$0xff] %v2014
    %2101 = vst [vmem:[#allocation2 + $0x1f0] sm:$0xff] %v2015
    %2102 = vst [vmem:[#allocation2 + $0x1f8] sm:$0xff] %v2016
    %2103 = vst [vmem:[#allocation2 + $0x200] sm:$0xff] %v2017
    %2104 = vst [vmem:[#allocation2 + $0x208] sm:$0xff] %v2018
    %2105 = vst [vmem:[#allocation2 + $0x210] sm:$0xff] %v2019
    %2106 = vst [vmem:[#allocation2 + $0x218] sm:$0xff] %v2020
    %2107 = vst [vmem:[#allocation2 + $0x220] sm:$0xff] %v2021
    %2108 = vst [vmem:[#allocation2 + $0x228] sm:$0xff] %v2022
    %2109 = vst [vmem:[#allocation2 + $0x230] sm:$0xff] %v2023
    %2110 = vst [vmem:[#allocation2 + $0x238] sm:$0xff] %v2024
    %2111 = vst [vmem:[#allocation2 + $0x240] sm:$0xff] %v2025
    %2112 = vst [vmem:[#allocation2 + $0x248] sm:$0xff] %v2026
    %2113 = vst [vmem:[#allocation2 + $0x250] sm:$0xff] %v2027
    %2114 = vst [vmem:[#allocation2 + $0x258] sm:$0xff] %v2028
    %2115 = vst [vmem:[#allocation2 + $0x260] sm:$0xff] %v2029
    %2116 = vst [vmem:[#allocation2 + $0x268] sm:$0xff] %v2030
    %2117 = vst [vmem:[#allocation2 + $0x270] sm:$0xff] %v2031
    %2118 = vst [vmem:[#allocation2 + $0x278] sm:$0xff] %v2032
    %2119 = vst [vmem:[#allocation2 + $0x280] sm:$0xff] %v2033
    %2120 = vst [vmem:[#allocation2 + $0x288] sm:$0xff] %v2034
    %2121 = vst [vmem:[#allocation2 + $0x290] sm:$0xff] %v2035
    %v2122 = vld [vmem:[#allocation2 + $0x5] sm:$0xff]
    %v2123 = vld [vmem:[#allocation2 + $0xd] sm:$0xff]
    %v2124 = vld [vmem:[#allocation2 + $0x15] sm:$0xff]
    %v2125 = vld [vmem:[#allocation2 + $0x1d] sm:$0xff]
    %v2126 = vld [vmem:[#allocation2 + $0x25] sm:$0xff]
    %v2127 = vld [vmem:[#allocation2 + $0x2d] sm:$0xff]
    %v2128 = vld [vmem:[#allocation2 + $0x35] sm:$0xff]
    %v2129 = vld [vmem:[#allocation2 + $0x3d] sm:$0xff]
    %v2130 = vld [vmem:[#allocation2 + $0x45] sm:$0xff]
    %v2131 = vld [vmem:[#allocation2 + $0x4d] sm:$0xff]
    %v2132 = vld [vmem:[#allocation2 + $0x55] sm:$0xff]
    %v2133 = vld [vmem:[#allocation2 + $0x5d] sm:$0xff]
    %v2134 = vld [vmem:[#allocation2 + $0x65] sm:$0xff]
    %v2135 = vld [vmem:[#allocation2 + $0x6d] sm:$0xff]
    %v2136 = vld [vmem:[#allocation2 + $0x75] sm:$0xff]
    %v2137 = vld [vmem:[#allocation2 + $0x7d] sm:$0xff]
    %v2138 = vld [vmem:[#allocation2 + $0x85] sm:$0xff]
    %v2139 = vld [vmem:[#allocation2 + $0x8d] sm:$0xff]
    %v2140 = vld [vmem:[#allocation2 + $0x95] sm:$0xff]
    %v2141 = vld [vmem:[#allocation2 + $0x9d] sm:$0xff]
    %v2142 = vld [vmem:[#allocation2 + $0xa5] sm:$0xff]
    %v2143 = vld [vmem:[#allocation2 + $0xad] sm:$0xff]
    %v2144 = vld [vmem:[#allocation2 + $0xb5] sm:$0xff]
    %v2145 = vld [vmem:[#allocation2 + $0xbd] sm:$0xff]
    %v2146 = vld [vmem:[#allocation2 + $0xc5] sm:$0xff]
    %v2147 = vld [vmem:[#allocation2 + $0xcd] sm:$0xff]
    %v2148 = vld [vmem:[#allocation2 + $0xd5] sm:$0xff]
    %v2149 = vld [vmem:[#allocation2 + $0xdd] sm:$0xff]
    %v2150 = vld [vmem:[#allocation2 + $0xe5] sm:$0xff]
    %v2151 = vld [vmem:[#allocation2 + $0xed] sm:$0xff]
    %v2152 = vld [vmem:[#allocation2 + $0xf5] sm:$0xff]
    %v2153 = vld [vmem:[#allocation2 + $0xfd] sm:$0xff]
    %v2154 = vld [vmem:[#allocation2 + $0x105] sm:$0xff]
    %v2155 = vld [vmem:[#allocation2 + $0x10d] sm:$0xff]
    %v2156 = vld [vmem:[#allocation2 + $0x115] sm:$0xff]
    %v2157 = vld [vmem:[#allocation2 + $0x11d] sm:$0xff]
    %v2158 = vld [vmem:[#allocation2 + $0x125] sm:$0xff]
    %v2159 = vld [vmem:[#allocation2 + $0x12d] sm:$0xff]
    %v2160 = vld [vmem:[#allocation2 + $0x135] sm:$0xff]
    %v2161 = vld [vmem:[#allocation2 + $0x13d] sm:$0xff]
    %v2162 = vld [vmem:[#allocation2 + $0x145] sm:$0xff]
    %v2163 = vld [vmem:[#allocation2 + $0x14d] sm:$0xff]
    %v2164 = vld [vmem:[#allocation2 + $0x155] sm:$0xff]
    %v2165 = vld [vmem:[#allocation2 + $0x15d] sm:$0xff]
    %v2166 = vld [vmem:[#allocation2 + $0x165] sm:$0xff]
    %v2167 = vld [vmem:[#allocation2 + $0x16d] sm:$0xff]
    %v2168 = vld [vmem:[#allocation2 + $0x175] sm:$0xff]
    %v2169 = vld [vmem:[#allocation2 + $0x17d] sm:$0xff]
    %v2170 = vld [vmem:[#allocation2 + $0x185] sm:$0xff]
    %v2171 = vld [vmem:[#allocation2 + $0x18d] sm:$0xff]
    %v2172 = vld [vmem:[#allocation2 + $0x195] sm:$0xff]
    %v2173 = vld [vmem:[#allocation2 + $0x19d] sm:$0xff]
    %v2174 = vld [vmem:[#allocation2 + $0x1a5] sm:$0xff]
    %v2175 = vld [vmem:[#allocation2 + $0x1ad] sm:$0xff]
    %v2176 = vld [vmem:[#allocation2 + $0x1b5] sm:$0xff]
    %v2177 = vld [vmem:[#allocation2 + $0x1bd] sm:$0xff]
    %v2178 = vld [vmem:[#allocation2 + $0x1c5] sm:$0xff]
    %v2179 = vld [vmem:[#allocation2 + $0x1cd] sm:$0xff]
    %v2180 = vld [vmem:[#allocation2 + $0x1d5] sm:$0xff]
    %v2181 = vld [vmem:[#allocation2 + $0x1dd] sm:$0xff]
    %v2182 = vld [vmem:[#allocation2 + $0x1e5] sm:$0xff]
    %v2183 = vld [vmem:[#allocation2 + $0x1ed] sm:$0xff]
    %v2184 = vld [vmem:[#allocation2 + $0x1f5] sm:$0xff]
    %v2185 = vld [vmem:[#allocation2 + $0x1fd] sm:$0xff]
    %v2186 = vld [vmem:[#allocation2 + $0x205] sm:$0xff]
    %v2187 = vld [vmem:[#allocation2 + $0x20d] sm:$0xff]
    %v2188 = vld [vmem:[#allocation2 + $0x215] sm:$0xff]
    %v2189 = vld [vmem:[#allocation2 + $0x21d] sm:$0xff]
    %v2190 = vld [vmem:[#allocation2 + $0x225] sm:$0xff]
    %v2191 = vld [vmem:[#allocation2 + $0x22d] sm:$0xff]
    %v2192 = vld [vmem:[#allocation2 + $0x235] sm:$0xff]
    %v2193 = vld [vmem:[#allocation2 + $0x23d] sm:$0xff]
    %v2194 = vld [vmem:[#allocation2 + $0x245] sm:$0xff]
    %v2195 = vld [vmem:[#allocation2 + $0x24d] sm:$0xff]
    %v2196 = vld [vmem:[#allocation2 + $0x255] sm:$0xff]
    %v2197 = vld [vmem:[#allocation2 + $0x25d] sm:$0xff]
    %v2198 = vld [vmem:[#allocation2 + $0x265] sm:$0xff]
    %v2199 = vld [vmem:[#allocation2 + $0x26d] sm:$0xff]
    %v2200 = vld [vmem:[#allocation2 + $0x275] sm:$0xff]
    %v2201 = vld [vmem:[#allocation2 + $0x27d] sm:$0xff]
    %v2202 = vld [vmem:[#allocation8] sm:$0xff]
    %v2203 = vld [vmem:[#allocation8 + $0x8] sm:$0xff]
    %v2204 = vld [vmem:[#allocation8 + $0x10] sm:$0xff]
    %v2205 = vld [vmem:[#allocation8 + $0x18] sm:$0xff]
    %v2206 = vld [vmem:[#allocation8 + $0x20] sm:$0xff]
    %v2207 = vld [vmem:[#allocation8 + $0x28] sm:$0xff]
    %v2208 = vld [vmem:[#allocation8 + $0x30] sm:$0xff]
    %v2209 = vld [vmem:[#allocation8 + $0x38] sm:$0xff]
    %v2210 = vld [vmem:[#allocation8 + $0x40] sm:$0xff]
    %v2211 = vld [vmem:[#allocation8 + $0x48] sm:$0xff]
    %v2212 = vld [vmem:[#allocation8 + $0x50] sm:$0xff]
    %v2213 = vld [vmem:[#allocation8 + $0x58] sm:$0xff]
    %v2214 = vld [vmem:[#allocation8 + $0x60] sm:$0xff]
    %v2215 = vld [vmem:[#allocation8 + $0x68] sm:$0xff]
    %v2216 = vld [vmem:[#allocation8 + $0x70] sm:$0xff]
    %v2217 = vld [vmem:[#allocation8 + $0x78] sm:$0xff]
    %v2218 = vld [vmem:[#allocation2 + $0x6] sm:$0xff]
    %v2219 = vld [vmem:[#allocation2 + $0xe] sm:$0xff]
    %v2220 = vld [vmem:[#allocation2 + $0x16] sm:$0xff]
    %v2221 = vld [vmem:[#allocation2 + $0x1e] sm:$0xff]
    %v2222 = vld [vmem:[#allocation2 + $0x26] sm:$0xff]
    %v2223 = vld [vmem:[#allocation2 + $0x2e] sm:$0xff]
    %v2224 = vld [vmem:[#allocation2 + $0x36] sm:$0xff]
    %v2225 = vld [vmem:[#allocation2 + $0x3e] sm:$0xff]
    %v2226 = vld [vmem:[#allocation2 + $0x46] sm:$0xff]
    %v2227 = vld [vmem:[#allocation2 + $0x4e] sm:$0xff]
    %v2228 = vld [vmem:[#allocation2 + $0x56] sm:$0xff]
    %v2229 = vld [vmem:[#allocation2 + $0x5e] sm:$0xff]
    %v2230 = vld [vmem:[#allocation2 + $0x66] sm:$0xff]
    %v2231 = vld [vmem:[#allocation2 + $0x6e] sm:$0xff]
    %v2232 = vld [vmem:[#allocation2 + $0x76] sm:$0xff]
    %v2233 = vld [vmem:[#allocation2 + $0x7e] sm:$0xff]
    %v2234 = vld [vmem:[#allocation2 + $0x86] sm:$0xff]
    %v2235 = vld [vmem:[#allocation2 + $0x8e] sm:$0xff]
    %v2236 = vld [vmem:[#allocation2 + $0x96] sm:$0xff]
    %v2237 = vld [vmem:[#allocation2 + $0x9e] sm:$0xff]
    %v2238 = vld [vmem:[#allocation2 + $0xa6] sm:$0xff]
    %v2239 = vld [vmem:[#allocation2 + $0xae] sm:$0xff]
    %v2240 = vld [vmem:[#allocation2 + $0xb6] sm:$0xff]
    %v2241 = vld [vmem:[#allocation2 + $0xbe] sm:$0xff]
    %v2242 = vld [vmem:[#allocation2 + $0xc6] sm:$0xff]
    %v2243 = vld [vmem:[#allocation2 + $0xce] sm:$0xff]
    %v2244 = vld [vmem:[#allocation2 + $0xd6] sm:$0xff]
    %v2245 = vld [vmem:[#allocation2 + $0xde] sm:$0xff]
    %v2246 = vld [vmem:[#allocation2 + $0xe6] sm:$0xff]
    %v2247 = vld [vmem:[#allocation2 + $0xee] sm:$0xff]
    %v2248 = vld [vmem:[#allocation2 + $0xf6] sm:$0xff]
    %v2249 = vld [vmem:[#allocation2 + $0xfe] sm:$0xff]
    %v2250 = vld [vmem:[#allocation2 + $0x106] sm:$0xff]
    %v2251 = vld [vmem:[#allocation2 + $0x10e] sm:$0xff]
    %v2252 = vld [vmem:[#allocation2 + $0x116] sm:$0xff]
    %v2253 = vld [vmem:[#allocation2 + $0x11e] sm:$0xff]
    %v2254 = vld [vmem:[#allocation2 + $0x126] sm:$0xff]
    %v2255 = vld [vmem:[#allocation2 + $0x12e] sm:$0xff]
    %v2256 = vld [vmem:[#allocation2 + $0x136] sm:$0xff]
    %v2257 = vld [vmem:[#allocation2 + $0x13e] sm:$0xff]
    %v2258 = vld [vmem:[#allocation2 + $0x146] sm:$0xff]
    %v2259 = vld [vmem:[#allocation2 + $0x14e] sm:$0xff]
    %v2260 = vld [vmem:[#allocation2 + $0x156] sm:$0xff]
    %v2261 = vld [vmem:[#allocation2 + $0x15e] sm:$0xff]
    %v2262 = vld [vmem:[#allocation2 + $0x166] sm:$0xff]
    %v2263 = vld [vmem:[#allocation2 + $0x16e] sm:$0xff]
    %v2264 = vld [vmem:[#allocation2 + $0x176] sm:$0xff]
    %v2265 = vld [vmem:[#allocation2 + $0x17e] sm:$0xff]
    %v2266 = vld [vmem:[#allocation2 + $0x186] sm:$0xff]
    %v2267 = vld [vmem:[#allocation2 + $0x18e] sm:$0xff]
    %v2268 = vld [vmem:[#allocation2 + $0x196] sm:$0xff]
    %v2269 = vld [vmem:[#allocation2 + $0x19e] sm:$0xff]
    %v2270 = vld [vmem:[#allocation2 + $0x1a6] sm:$0xff]
    %v2271 = vld [vmem:[#allocation2 + $0x1ae] sm:$0xff]
    %v2272 = vld [vmem:[#allocation2 + $0x1b6] sm:$0xff]
    %v2273 = vld [vmem:[#allocation2 + $0x1be] sm:$0xff]
    %v2274 = vld [vmem:[#allocation2 + $0x1c6] sm:$0xff]
    %v2275 = vld [vmem:[#allocation2 + $0x1ce] sm:$0xff]
    %v2276 = vld [vmem:[#allocation2 + $0x1d6] sm:$0xff]
    %v2277 = vld [vmem:[#allocation2 + $0x1de] sm:$0xff]
    %v2278 = vld [vmem:[#allocation2 + $0x1e6] sm:$0xff]
    %v2279 = vld [vmem:[#allocation2 + $0x1ee] sm:$0xff]
    %v2280 = vld [vmem:[#allocation2 + $0x1f6] sm:$0xff]
    %v2281 = vld [vmem:[#allocation2 + $0x1fe] sm:$0xff]
    %v2282 = vld [vmem:[#allocation2 + $0x206] sm:$0xff]
    %v2283 = vld [vmem:[#allocation2 + $0x20e] sm:$0xff]
    %v2284 = vld [vmem:[#allocation2 + $0x216] sm:$0xff]
    %v2285 = vld [vmem:[#allocation2 + $0x21e] sm:$0xff]
    %v2286 = vld [vmem:[#allocation2 + $0x226] sm:$0xff]
    %v2287 = vld [vmem:[#allocation2 + $0x22e] sm:$0xff]
    %v2288 = vld [vmem:[#allocation2 + $0x236] sm:$0xff]
    %v2289 = vld [vmem:[#allocation2 + $0x23e] sm:$0xff]
    %v2290 = vld [vmem:[#allocation2 + $0x246] sm:$0xff]
    %v2291 = vld [vmem:[#allocation2 + $0x24e] sm:$0xff]
    %v2292 = vld [vmem:[#allocation2 + $0x256] sm:$0xff]
    %v2293 = vld [vmem:[#allocation2 + $0x25e] sm:$0xff]
    %v2294 = vld [vmem:[#allocation2 + $0x266] sm:$0xff]
    %v2295 = vld [vmem:[#allocation2 + $0x26e] sm:$0xff]
    %v2296 = vld [vmem:[#allocation2 + $0x276] sm:$0xff]
    %v2297 = vld [vmem:[#allocation2 + $0x27e] sm:$0xff]
    %s2298 = scalar_lea.vmem [#allocation8], 128
    %v2299 = vld [vmem:[%s2298] sm:$0xff]
    %v2300 = vld [vmem:[%s2298 + $0x8] sm:$0xff]
    %v2301 = vld [vmem:[%s2298 + $0x10] sm:$0xff]
    %v2302 = vld [vmem:[%s2298 + $0x18] sm:$0xff]
    %v2303 = vld [vmem:[%s2298 + $0x20] sm:$0xff]
    %v2304 = vld [vmem:[%s2298 + $0x28] sm:$0xff]
    %v2305 = vld [vmem:[%s2298 + $0x30] sm:$0xff]
    %v2306 = vld [vmem:[%s2298 + $0x38] sm:$0xff]
    %v2307 = vld [vmem:[%s2298 + $0x40] sm:$0xff]
    %v2308 = vld [vmem:[%s2298 + $0x48] sm:$0xff]
    %v2309 = vld [vmem:[%s2298 + $0x50] sm:$0xff]
    %v2310 = vld [vmem:[%s2298 + $0x58] sm:$0xff]
    %v2311 = vld [vmem:[%s2298 + $0x60] sm:$0xff]
    %v2312 = vld [vmem:[%s2298 + $0x68] sm:$0xff]
    %v2313 = vld [vmem:[%s2298 + $0x70] sm:$0xff]
    %v2314 = vld [vmem:[%s2298 + $0x78] sm:$0xff]
    %2315 = vmatprep.subr.mxu0 0.0
    %2316 = vmatpush1.msra.mxu0 %v2314
    %2317 = vmatprep.subr.mxu0 0.0
    %2318 = vmatpush1.msra.mxu0 %v2313
    %2319 = vmatprep.subr.mxu0 0.0
    %2320 = vmatpush1.msra.mxu0 %v2312
    %2321 = vmatprep.subr.mxu0 0.0
    %2322 = vmatpush1.msra.mxu0 %v2311
    %2323 = vmatprep.subr.mxu0 0.0
    %2324 = vmatpush1.msra.mxu0 %v2310
    %2325 = vmatprep.subr.mxu0 0.0
    %2326 = vmatpush1.msra.mxu0 %v2309
    %2327 = vmatprep.subr.mxu0 0.0
    %2328 = vmatpush1.msra.mxu0 %v2308
    %2329 = vmatprep.subr.mxu0 0.0
    %2330 = vmatpush1.msra.mxu0 %v2307
    %2331 = vmatprep.subr.mxu0 0.0
    %2332 = vmatpush1.msra.mxu0 %v2306
    %2333 = vmatprep.subr.mxu0 0.0
    %2334 = vmatpush1.msra.mxu0 %v2305
    %2335 = vmatprep.subr.mxu0 0.0
    %2336 = vmatpush1.msra.mxu0 %v2304
    %2337 = vmatprep.subr.mxu0 0.0
    %2338 = vmatpush1.msra.mxu0 %v2303
    %2339 = vmatprep.subr.mxu0 0.0
    %2340 = vmatpush1.msra.mxu0 %v2302
    %2341 = vmatprep.subr.mxu0 0.0
    %2342 = vmatpush1.msra.mxu0 %v2301
    %2343 = vmatprep.subr.mxu0 0.0
    %2344 = vmatpush1.msra.mxu0 %v2300
    %2345 = vmatprep.subr.mxu0 0.0
    %2346 = vmatpush1.msra.mxu0 %v2299
    %2347 = vmatprep.subr.mxu0 0.0
    %2348 = vmatpush2.msra.mxu0 0.0
    %2349 = vmatprep.subr.mxu0 0.0
    %2350 = vmatpush2.msra.mxu0 0.0
    %2351 = vmatprep.subr.mxu0 0.0
    %2352 = vmatpush2.msra.mxu0 0.0
    %2353 = vmatprep.subr.mxu0 0.0
    %2354 = vmatpush2.msra.mxu0 0.0
    %2355 = vmatprep.subr.mxu0 0.0
    %2356 = vmatpush2.msra.mxu0 0.0
    %2357 = vmatprep.subr.mxu0 0.0
    %2358 = vmatpush2.msra.mxu0 0.0
    %2359 = vmatprep.subr.mxu0 0.0
    %2360 = vmatpush2.msra.mxu0 0.0
    %2361 = vmatprep.subr.mxu0 0.0
    %2362 = vmatpush2.msra.mxu0 0.0
    %2363 = vmatprep.subr.mxu0 0.0
    %2364 = vmatpush2.msra.mxu0 0.0
    %2365 = vmatprep.subr.mxu0 0.0
    %2366 = vmatpush2.msra.mxu0 0.0
    %2367 = vmatprep.subr.mxu0 0.0
    %2368 = vmatpush2.msra.mxu0 0.0
    %2369 = vmatprep.subr.mxu0 0.0
    %2370 = vmatpush2.msra.mxu0 0.0
    %2371 = vmatprep.subr.mxu0 0.0
    %2372 = vmatpush2.msra.mxu0 0.0
    %2373 = vmatprep.subr.mxu0 0.0
    %2374 = vmatpush2.msra.mxu0 0.0
    %2375 = vmatprep.subr.mxu0 0.0
    %2376 = vmatpush2.msra.mxu0 0.0
    %2377 = vmatprep.subr.mxu0 0.0
    %2378 = vmatpush2.msra.mxu0 0.0
    %2379 = vmatprep.mubr.f32.mxu0 0.0
    %2380 = vmatmul.mubr.f32.gmra.mxu0 %v2218
    %v2381 = vpop.f32.mrf.mxu0
    %v2382 = vadd.f32 0.0, %v2381
    %v2383 = vpop.f32.mrf.mxu0
    %2384 = vmatprep.mubr.f32.mxu0 0.0
    %2385 = vmatmul.mubr.f32.gmra.mxu0 %v2219
    %v2386 = vpop.f32.mrf.mxu0
    %v2387 = vadd.f32 0.0, %v2386
    %v2388 = vpop.f32.mrf.mxu0
    %2389 = vmatprep.mubr.f32.mxu0 0.0
    %2390 = vmatmul.mubr.f32.gmra.mxu0 %v2220
    %v2391 = vpop.f32.mrf.mxu0
    %v2392 = vadd.f32 0.0, %v2391
    %v2393 = vpop.f32.mrf.mxu0
    %2394 = vmatprep.mubr.f32.mxu0 0.0
    %2395 = vmatmul.mubr.f32.gmra.mxu0 %v2221
    %v2396 = vpop.f32.mrf.mxu0
    %v2397 = vadd.f32 0.0, %v2396
    %v2398 = vpop.f32.mrf.mxu0
    %2399 = vmatprep.mubr.f32.mxu0 0.0
    %2400 = vmatmul.mubr.f32.gmra.mxu0 %v2222
    %v2401 = vpop.f32.mrf.mxu0
    %v2402 = vadd.f32 0.0, %v2401
    %v2403 = vpop.f32.mrf.mxu0
    %2404 = vmatprep.mubr.f32.mxu0 0.0
    %2405 = vmatmul.mubr.f32.gmra.mxu0 %v2223
    %v2406 = vpop.f32.mrf.mxu0
    %v2407 = vadd.f32 0.0, %v2406
    %v2408 = vpop.f32.mrf.mxu0
    %2409 = vmatprep.mubr.f32.mxu0 0.0
    %2410 = vmatmul.mubr.f32.gmra.mxu0 %v2224
    %v2411 = vpop.f32.mrf.mxu0
    %v2412 = vadd.f32 0.0, %v2411
    %v2413 = vpop.f32.mrf.mxu0
    %2414 = vmatprep.mubr.f32.mxu0 0.0
    %2415 = vmatmul.mubr.f32.gmra.mxu0 %v2225
    %v2416 = vpop.f32.mrf.mxu0
    %v2417 = vadd.f32 0.0, %v2416
    %v2418 = vpop.f32.mrf.mxu0
    %2419 = vmatprep.mubr.f32.mxu0 0.0
    %2420 = vmatmul.mubr.f32.gmra.mxu0 %v2226
    %v2421 = vpop.f32.mrf.mxu0
    %v2422 = vadd.f32 0.0, %v2421
    %v2423 = vpop.f32.mrf.mxu0
    %2424 = vmatprep.mubr.f32.mxu0 0.0
    %2425 = vmatmul.mubr.f32.gmra.mxu0 %v2227
    %v2426 = vpop.f32.mrf.mxu0
    %v2427 = vadd.f32 0.0, %v2426
    %v2428 = vpop.f32.mrf.mxu0
    %2429 = vmatprep.mubr.f32.mxu0 0.0
    %2430 = vmatmul.mubr.f32.gmra.mxu0 %v2228
    %v2431 = vpop.f32.mrf.mxu0
    %v2432 = vadd.f32 0.0, %v2431
    %v2433 = vpop.f32.mrf.mxu0
    %2434 = vmatprep.mubr.f32.mxu0 0.0
    %2435 = vmatmul.mubr.f32.gmra.mxu0 %v2229
    %v2436 = vpop.f32.mrf.mxu0
    %v2437 = vadd.f32 0.0, %v2436
    %v2438 = vpop.f32.mrf.mxu0
    %2439 = vmatprep.mubr.f32.mxu0 0.0
    %2440 = vmatmul.mubr.f32.gmra.mxu0 %v2230
    %v2441 = vpop.f32.mrf.mxu0
    %v2442 = vadd.f32 0.0, %v2441
    %v2443 = vpop.f32.mrf.mxu0
    %2444 = vmatprep.mubr.f32.mxu0 0.0
    %2445 = vmatmul.mubr.f32.gmra.mxu0 %v2231
    %v2446 = vpop.f32.mrf.mxu0
    %v2447 = vadd.f32 0.0, %v2446
    %v2448 = vpop.f32.mrf.mxu0
    %2449 = vmatprep.mubr.f32.mxu0 0.0
    %2450 = vmatmul.mubr.f32.gmra.mxu0 %v2232
    %v2451 = vpop.f32.mrf.mxu0
    %v2452 = vadd.f32 0.0, %v2451
    %v2453 = vpop.f32.mrf.mxu0
    %2454 = vmatprep.mubr.f32.mxu0 0.0
    %2455 = vmatmul.mubr.f32.gmra.mxu0 %v2233
    %v2456 = vpop.f32.mrf.mxu0
    %v2457 = vadd.f32 0.0, %v2456
    %v2458 = vpop.f32.mrf.mxu0
    %2459 = vmatprep.mubr.f32.mxu0 0.0
    %2460 = vmatmul.mubr.f32.gmra.mxu0 %v2234
    %v2461 = vpop.f32.mrf.mxu0
    %v2462 = vadd.f32 0.0, %v2461
    %v2463 = vpop.f32.mrf.mxu0
    %2464 = vmatprep.mubr.f32.mxu0 0.0
    %2465 = vmatmul.mubr.f32.gmra.mxu0 %v2235
    %v2466 = vpop.f32.mrf.mxu0
    %v2467 = vadd.f32 0.0, %v2466
    %v2468 = vpop.f32.mrf.mxu0
    %2469 = vmatprep.mubr.f32.mxu0 0.0
    %2470 = vmatmul.mubr.f32.gmra.mxu0 %v2236
    %v2471 = vpop.f32.mrf.mxu0
    %v2472 = vadd.f32 0.0, %v2471
    %v2473 = vpop.f32.mrf.mxu0
    %2474 = vmatprep.mubr.f32.mxu0 0.0
    %2475 = vmatmul.mubr.f32.gmra.mxu0 %v2237
    %v2476 = vpop.f32.mrf.mxu0
    %v2477 = vadd.f32 0.0, %v2476
    %v2478 = vpop.f32.mrf.mxu0
    %2479 = vmatprep.mubr.f32.mxu0 0.0
    %2480 = vmatmul.mubr.f32.gmra.mxu0 %v2238
    %v2481 = vpop.f32.mrf.mxu0
    %v2482 = vadd.f32 0.0, %v2481
    %v2483 = vpop.f32.mrf.mxu0
    %2484 = vmatprep.mubr.f32.mxu0 0.0
    %2485 = vmatmul.mubr.f32.gmra.mxu0 %v2239
    %v2486 = vpop.f32.mrf.mxu0
    %v2487 = vadd.f32 0.0, %v2486
    %v2488 = vpop.f32.mrf.mxu0
    %2489 = vmatprep.mubr.f32.mxu0 0.0
    %2490 = vmatmul.mubr.f32.gmra.mxu0 %v2240
    %v2491 = vpop.f32.mrf.mxu0
    %v2492 = vadd.f32 0.0, %v2491
    %v2493 = vpop.f32.mrf.mxu0
    %2494 = vmatprep.mubr.f32.mxu0 0.0
    %2495 = vmatmul.mubr.f32.gmra.mxu0 %v2241
    %v2496 = vpop.f32.mrf.mxu0
    %v2497 = vadd.f32 0.0, %v2496
    %v2498 = vpop.f32.mrf.mxu0
    %2499 = vmatprep.mubr.f32.mxu0 0.0
    %2500 = vmatmul.mubr.f32.gmra.mxu0 %v2242
    %v2501 = vpop.f32.mrf.mxu0
    %v2502 = vadd.f32 0.0, %v2501
    %v2503 = vpop.f32.mrf.mxu0
    %2504 = vmatprep.mubr.f32.mxu0 0.0
    %2505 = vmatmul.mubr.f32.gmra.mxu0 %v2243
    %v2506 = vpop.f32.mrf.mxu0
    %v2507 = vadd.f32 0.0, %v2506
    %v2508 = vpop.f32.mrf.mxu0
    %2509 = vmatprep.mubr.f32.mxu0 0.0
    %2510 = vmatmul.mubr.f32.gmra.mxu0 %v2244
    %v2511 = vpop.f32.mrf.mxu0
    %v2512 = vadd.f32 0.0, %v2511
    %v2513 = vpop.f32.mrf.mxu0
    %2514 = vmatprep.mubr.f32.mxu0 0.0
    %2515 = vmatmul.mubr.f32.gmra.mxu0 %v2245
    %v2516 = vpop.f32.mrf.mxu0
    %v2517 = vadd.f32 0.0, %v2516
    %v2518 = vpop.f32.mrf.mxu0
    %2519 = vmatprep.mubr.f32.mxu0 0.0
    %2520 = vmatmul.mubr.f32.gmra.mxu0 %v2246
    %v2521 = vpop.f32.mrf.mxu0
    %v2522 = vadd.f32 0.0, %v2521
    %v2523 = vpop.f32.mrf.mxu0
    %2524 = vmatprep.mubr.f32.mxu0 0.0
    %2525 = vmatmul.mubr.f32.gmra.mxu0 %v2247
    %v2526 = vpop.f32.mrf.mxu0
    %v2527 = vadd.f32 0.0, %v2526
    %v2528 = vpop.f32.mrf.mxu0
    %2529 = vmatprep.mubr.f32.mxu0 0.0
    %2530 = vmatmul.mubr.f32.gmra.mxu0 %v2248
    %v2531 = vpop.f32.mrf.mxu0
    %v2532 = vadd.f32 0.0, %v2531
    %v2533 = vpop.f32.mrf.mxu0
    %2534 = vmatprep.mubr.f32.mxu0 0.0
    %2535 = vmatmul.mubr.f32.gmra.mxu0 %v2249
    %v2536 = vpop.f32.mrf.mxu0
    %v2537 = vadd.f32 0.0, %v2536
    %v2538 = vpop.f32.mrf.mxu0
    %2539 = vmatprep.mubr.f32.mxu0 0.0
    %2540 = vmatmul.mubr.f32.gmra.mxu0 %v2250
    %v2541 = vpop.f32.mrf.mxu0
    %v2542 = vadd.f32 0.0, %v2541
    %v2543 = vpop.f32.mrf.mxu0
    %2544 = vmatprep.mubr.f32.mxu0 0.0
    %2545 = vmatmul.mubr.f32.gmra.mxu0 %v2251
    %v2546 = vpop.f32.mrf.mxu0
    %v2547 = vadd.f32 0.0, %v2546
    %v2548 = vpop.f32.mrf.mxu0
    %2549 = vmatprep.mubr.f32.mxu0 0.0
    %2550 = vmatmul.mubr.f32.gmra.mxu0 %v2252
    %v2551 = vpop.f32.mrf.mxu0
    %v2552 = vadd.f32 0.0, %v2551
    %v2553 = vpop.f32.mrf.mxu0
    %2554 = vmatprep.mubr.f32.mxu0 0.0
    %2555 = vmatmul.mubr.f32.gmra.mxu0 %v2253
    %v2556 = vpop.f32.mrf.mxu0
    %v2557 = vadd.f32 0.0, %v2556
    %v2558 = vpop.f32.mrf.mxu0
    %2559 = vmatprep.mubr.f32.mxu0 0.0
    %2560 = vmatmul.mubr.f32.gmra.mxu0 %v2254
    %v2561 = vpop.f32.mrf.mxu0
    %v2562 = vadd.f32 0.0, %v2561
    %v2563 = vpop.f32.mrf.mxu0
    %2564 = vmatprep.mubr.f32.mxu0 0.0
    %2565 = vmatmul.mubr.f32.gmra.mxu0 %v2255
    %v2566 = vpop.f32.mrf.mxu0
    %v2567 = vadd.f32 0.0, %v2566
    %v2568 = vpop.f32.mrf.mxu0
    %2569 = vmatprep.mubr.f32.mxu0 0.0
    %2570 = vmatmul.mubr.f32.gmra.mxu0 %v2256
    %v2571 = vpop.f32.mrf.mxu0
    %v2572 = vadd.f32 0.0, %v2571
    %v2573 = vpop.f32.mrf.mxu0
    %2574 = vmatprep.mubr.f32.mxu0 0.0
    %2575 = vmatmul.mubr.f32.gmra.mxu0 %v2257
    %v2576 = vpop.f32.mrf.mxu0
    %v2577 = vadd.f32 0.0, %v2576
    %v2578 = vpop.f32.mrf.mxu0
    %2579 = vmatprep.mubr.f32.mxu0 0.0
    %2580 = vmatmul.mubr.f32.gmra.mxu0 %v2258
    %v2581 = vpop.f32.mrf.mxu0
    %v2582 = vadd.f32 0.0, %v2581
    %v2583 = vpop.f32.mrf.mxu0
    %2584 = vmatprep.mubr.f32.mxu0 0.0
    %2585 = vmatmul.mubr.f32.gmra.mxu0 %v2259
    %v2586 = vpop.f32.mrf.mxu0
    %v2587 = vadd.f32 0.0, %v2586
    %v2588 = vpop.f32.mrf.mxu0
    %2589 = vmatprep.mubr.f32.mxu0 0.0
    %2590 = vmatmul.mubr.f32.gmra.mxu0 %v2260
    %v2591 = vpop.f32.mrf.mxu0
    %v2592 = vadd.f32 0.0, %v2591
    %v2593 = vpop.f32.mrf.mxu0
    %2594 = vmatprep.mubr.f32.mxu0 0.0
    %2595 = vmatmul.mubr.f32.gmra.mxu0 %v2261
    %v2596 = vpop.f32.mrf.mxu0
    %v2597 = vadd.f32 0.0, %v2596
    %v2598 = vpop.f32.mrf.mxu0
    %2599 = vmatprep.mubr.f32.mxu0 0.0
    %2600 = vmatmul.mubr.f32.gmra.mxu0 %v2262
    %v2601 = vpop.f32.mrf.mxu0
    %v2602 = vadd.f32 0.0, %v2601
    %v2603 = vpop.f32.mrf.mxu0
    %2604 = vmatprep.mubr.f32.mxu0 0.0
    %2605 = vmatmul.mubr.f32.gmra.mxu0 %v2263
    %v2606 = vpop.f32.mrf.mxu0
    %v2607 = vadd.f32 0.0, %v2606
    %v2608 = vpop.f32.mrf.mxu0
    %2609 = vmatprep.mubr.f32.mxu0 0.0
    %2610 = vmatmul.mubr.f32.gmra.mxu0 %v2264
    %v2611 = vpop.f32.mrf.mxu0
    %v2612 = vadd.f32 0.0, %v2611
    %v2613 = vpop.f32.mrf.mxu0
    %2614 = vmatprep.mubr.f32.mxu0 0.0
    %2615 = vmatmul.mubr.f32.gmra.mxu0 %v2265
    %v2616 = vpop.f32.mrf.mxu0
    %v2617 = vadd.f32 0.0, %v2616
    %v2618 = vpop.f32.mrf.mxu0
    %2619 = vmatprep.mubr.f32.mxu0 0.0
    %2620 = vmatmul.mubr.f32.gmra.mxu0 %v2266
    %v2621 = vpop.f32.mrf.mxu0
    %v2622 = vadd.f32 0.0, %v2621
    %v2623 = vpop.f32.mrf.mxu0
    %2624 = vmatprep.mubr.f32.mxu0 0.0
    %2625 = vmatmul.mubr.f32.gmra.mxu0 %v2267
    %v2626 = vpop.f32.mrf.mxu0
    %v2627 = vadd.f32 0.0, %v2626
    %v2628 = vpop.f32.mrf.mxu0
    %2629 = vmatprep.mubr.f32.mxu0 0.0
    %2630 = vmatmul.mubr.f32.gmra.mxu0 %v2268
    %v2631 = vpop.f32.mrf.mxu0
    %v2632 = vadd.f32 0.0, %v2631
    %v2633 = vpop.f32.mrf.mxu0
    %2634 = vmatprep.mubr.f32.mxu0 0.0
    %2635 = vmatmul.mubr.f32.gmra.mxu0 %v2269
    %v2636 = vpop.f32.mrf.mxu0
    %v2637 = vadd.f32 0.0, %v2636
    %v2638 = vpop.f32.mrf.mxu0
    %2639 = vmatprep.mubr.f32.mxu0 0.0
    %2640 = vmatmul.mubr.f32.gmra.mxu0 %v2270
    %v2641 = vpop.f32.mrf.mxu0
    %v2642 = vadd.f32 0.0, %v2641
    %v2643 = vpop.f32.mrf.mxu0
    %2644 = vmatprep.mubr.f32.mxu0 0.0
    %2645 = vmatmul.mubr.f32.gmra.mxu0 %v2271
    %v2646 = vpop.f32.mrf.mxu0
    %v2647 = vadd.f32 0.0, %v2646
    %v2648 = vpop.f32.mrf.mxu0
    %2649 = vmatprep.mubr.f32.mxu0 0.0
    %2650 = vmatmul.mubr.f32.gmra.mxu0 %v2272
    %v2651 = vpop.f32.mrf.mxu0
    %v2652 = vadd.f32 0.0, %v2651
    %v2653 = vpop.f32.mrf.mxu0
    %2654 = vmatprep.mubr.f32.mxu0 0.0
    %2655 = vmatmul.mubr.f32.gmra.mxu0 %v2273
    %v2656 = vpop.f32.mrf.mxu0
    %v2657 = vadd.f32 0.0, %v2656
    %v2658 = vpop.f32.mrf.mxu0
    %2659 = vmatprep.mubr.f32.mxu0 0.0
    %2660 = vmatmul.mubr.f32.gmra.mxu0 %v2274
    %v2661 = vpop.f32.mrf.mxu0
    %v2662 = vadd.f32 0.0, %v2661
    %v2663 = vpop.f32.mrf.mxu0
    %2664 = vmatprep.mubr.f32.mxu0 0.0
    %2665 = vmatmul.mubr.f32.gmra.mxu0 %v2275
    %v2666 = vpop.f32.mrf.mxu0
    %v2667 = vadd.f32 0.0, %v2666
    %v2668 = vpop.f32.mrf.mxu0
    %2669 = vmatprep.mubr.f32.mxu0 0.0
    %2670 = vmatmul.mubr.f32.gmra.mxu0 %v2276
    %v2671 = vpop.f32.mrf.mxu0
    %v2672 = vadd.f32 0.0, %v2671
    %v2673 = vpop.f32.mrf.mxu0
    %2674 = vmatprep.mubr.f32.mxu0 0.0
    %2675 = vmatmul.mubr.f32.gmra.mxu0 %v2277
    %v2676 = vpop.f32.mrf.mxu0
    %v2677 = vadd.f32 0.0, %v2676
    %v2678 = vpop.f32.mrf.mxu0
    %2679 = vmatprep.mubr.f32.mxu0 0.0
    %2680 = vmatmul.mubr.f32.gmra.mxu0 %v2278
    %v2681 = vpop.f32.mrf.mxu0
    %v2682 = vadd.f32 0.0, %v2681
    %v2683 = vpop.f32.mrf.mxu0
    %2684 = vmatprep.mubr.f32.mxu0 0.0
    %2685 = vmatmul.mubr.f32.gmra.mxu0 %v2279
    %v2686 = vpop.f32.mrf.mxu0
    %v2687 = vadd.f32 0.0, %v2686
    %v2688 = vpop.f32.mrf.mxu0
    %2689 = vmatprep.mubr.f32.mxu0 0.0
    %2690 = vmatmul.mubr.f32.gmra.mxu0 %v2280
    %v2691 = vpop.f32.mrf.mxu0
    %v2692 = vadd.f32 0.0, %v2691
    %v2693 = vpop.f32.mrf.mxu0
    %2694 = vmatprep.mubr.f32.mxu0 0.0
    %2695 = vmatmul.mubr.f32.gmra.mxu0 %v2281
    %v2696 = vpop.f32.mrf.mxu0
    %v2697 = vadd.f32 0.0, %v2696
    %v2698 = vpop.f32.mrf.mxu0
    %2699 = vmatprep.mubr.f32.mxu0 0.0
    %2700 = vmatmul.mubr.f32.gmra.mxu0 %v2282
    %v2701 = vpop.f32.mrf.mxu0
    %v2702 = vadd.f32 0.0, %v2701
    %v2703 = vpop.f32.mrf.mxu0
    %2704 = vmatprep.mubr.f32.mxu0 0.0
    %2705 = vmatmul.mubr.f32.gmra.mxu0 %v2283
    %v2706 = vpop.f32.mrf.mxu0
    %v2707 = vadd.f32 0.0, %v2706
    %v2708 = vpop.f32.mrf.mxu0
    %2709 = vmatprep.mubr.f32.mxu0 0.0
    %2710 = vmatmul.mubr.f32.gmra.mxu0 %v2284
    %v2711 = vpop.f32.mrf.mxu0
    %v2712 = vadd.f32 0.0, %v2711
    %v2713 = vpop.f32.mrf.mxu0
    %2714 = vmatprep.mubr.f32.mxu0 0.0
    %2715 = vmatmul.mubr.f32.gmra.mxu0 %v2285
    %v2716 = vpop.f32.mrf.mxu0
    %v2717 = vadd.f32 0.0, %v2716
    %v2718 = vpop.f32.mrf.mxu0
    %2719 = vmatprep.mubr.f32.mxu0 0.0
    %2720 = vmatmul.mubr.f32.gmra.mxu0 %v2286
    %v2721 = vpop.f32.mrf.mxu0
    %v2722 = vadd.f32 0.0, %v2721
    %v2723 = vpop.f32.mrf.mxu0
    %2724 = vmatprep.mubr.f32.mxu0 0.0
    %2725 = vmatmul.mubr.f32.gmra.mxu0 %v2287
    %v2726 = vpop.f32.mrf.mxu0
    %v2727 = vadd.f32 0.0, %v2726
    %v2728 = vpop.f32.mrf.mxu0
    %2729 = vmatprep.mubr.f32.mxu0 0.0
    %2730 = vmatmul.mubr.f32.gmra.mxu0 %v2288
    %v2731 = vpop.f32.mrf.mxu0
    %v2732 = vadd.f32 0.0, %v2731
    %v2733 = vpop.f32.mrf.mxu0
    %2734 = vmatprep.mubr.f32.mxu0 0.0
    %2735 = vmatmul.mubr.f32.gmra.mxu0 %v2289
    %v2736 = vpop.f32.mrf.mxu0
    %v2737 = vadd.f32 0.0, %v2736
    %v2738 = vpop.f32.mrf.mxu0
    %2739 = vmatprep.mubr.f32.mxu0 0.0
    %2740 = vmatmul.mubr.f32.gmra.mxu0 %v2290
    %v2741 = vpop.f32.mrf.mxu0
    %v2742 = vadd.f32 0.0, %v2741
    %v2743 = vpop.f32.mrf.mxu0
    %2744 = vmatprep.mubr.f32.mxu0 0.0
    %2745 = vmatmul.mubr.f32.gmra.mxu0 %v2291
    %v2746 = vpop.f32.mrf.mxu0
    %v2747 = vadd.f32 0.0, %v2746
    %v2748 = vpop.f32.mrf.mxu0
    %2749 = vmatprep.mubr.f32.mxu0 0.0
    %2750 = vmatmul.mubr.f32.gmra.mxu0 %v2292
    %v2751 = vpop.f32.mrf.mxu0
    %v2752 = vadd.f32 0.0, %v2751
    %v2753 = vpop.f32.mrf.mxu0
    %2754 = vmatprep.mubr.f32.mxu0 0.0
    %2755 = vmatmul.mubr.f32.gmra.mxu0 %v2293
    %v2756 = vpop.f32.mrf.mxu0
    %v2757 = vadd.f32 0.0, %v2756
    %v2758 = vpop.f32.mrf.mxu0
    %2759 = vmatprep.mubr.f32.mxu0 0.0
    %2760 = vmatmul.mubr.f32.gmra.mxu0 %v2294
    %v2761 = vpop.f32.mrf.mxu0
    %v2762 = vadd.f32 0.0, %v2761
    %v2763 = vpop.f32.mrf.mxu0
    %2764 = vmatprep.mubr.f32.mxu0 0.0
    %2765 = vmatmul.mubr.f32.gmra.mxu0 %v2295
    %v2766 = vpop.f32.mrf.mxu0
    %v2767 = vadd.f32 0.0, %v2766
    %v2768 = vpop.f32.mrf.mxu0
    %2769 = vmatprep.mubr.f32.mxu0 0.0
    %2770 = vmatmul.mubr.f32.gmra.mxu0 %v2296
    %v2771 = vpop.f32.mrf.mxu0
    %v2772 = vadd.f32 0.0, %v2771
    %v2773 = vpop.f32.mrf.mxu0
    %2774 = vmatprep.mubr.f32.mxu0 0.0
    %2775 = vmatmul.mubr.f32.gmra.mxu0 %v2297
    %v2776 = vpop.f32.mrf.mxu0
    %v2777 = vadd.f32 0.0, %v2776
    %v2778 = vpop.f32.mrf.mxu0
    %2779 = vdwg.mxu0
    %2780 = vmatprep.subr.mxu0 0.0
    %2781 = vmatpush1.msra.mxu0 %v2217
    %2782 = vmatprep.subr.mxu0 0.0
    %2783 = vmatpush1.msra.mxu0 %v2216
    %2784 = vmatprep.subr.mxu0 0.0
    %2785 = vmatpush1.msra.mxu0 %v2215
    %2786 = vmatprep.subr.mxu0 0.0
    %2787 = vmatpush1.msra.mxu0 %v2214
    %2788 = vmatprep.subr.mxu0 0.0
    %2789 = vmatpush1.msra.mxu0 %v2213
    %2790 = vmatprep.subr.mxu0 0.0
    %2791 = vmatpush1.msra.mxu0 %v2212
    %2792 = vmatprep.subr.mxu0 0.0
    %2793 = vmatpush1.msra.mxu0 %v2211
    %2794 = vmatprep.subr.mxu0 0.0
    %2795 = vmatpush1.msra.mxu0 %v2210
    %2796 = vmatprep.subr.mxu0 0.0
    %2797 = vmatpush1.msra.mxu0 %v2209
    %2798 = vmatprep.subr.mxu0 0.0
    %2799 = vmatpush1.msra.mxu0 %v2208
    %2800 = vmatprep.subr.mxu0 0.0
    %2801 = vmatpush1.msra.mxu0 %v2207
    %2802 = vmatprep.subr.mxu0 0.0
    %2803 = vmatpush1.msra.mxu0 %v2206
    %2804 = vmatprep.subr.mxu0 0.0
    %2805 = vmatpush1.msra.mxu0 %v2205
    %2806 = vmatprep.subr.mxu0 0.0
    %2807 = vmatpush1.msra.mxu0 %v2204
    %2808 = vmatprep.subr.mxu0 0.0
    %2809 = vmatpush1.msra.mxu0 %v2203
    %2810 = vmatprep.subr.mxu0 0.0
    %2811 = vmatpush1.msra.mxu0 %v2202
    %2812 = vmatprep.subr.mxu0 0.0
    %2813 = vmatpush2.msra.mxu0 0.0
    %2814 = vmatprep.subr.mxu0 0.0
    %2815 = vmatpush2.msra.mxu0 0.0
    %2816 = vmatprep.subr.mxu0 0.0
    %2817 = vmatpush2.msra.mxu0 0.0
    %2818 = vmatprep.subr.mxu0 0.0
    %2819 = vmatpush2.msra.mxu0 0.0
    %2820 = vmatprep.subr.mxu0 0.0
    %2821 = vmatpush2.msra.mxu0 0.0
    %2822 = vmatprep.subr.mxu0 0.0
    %2823 = vmatpush2.msra.mxu0 0.0
    %2824 = vmatprep.subr.mxu0 0.0
    %2825 = vmatpush2.msra.mxu0 0.0
    %2826 = vmatprep.subr.mxu0 0.0
    %2827 = vmatpush2.msra.mxu0 0.0
    %2828 = vmatprep.subr.mxu0 0.0
    %2829 = vmatpush2.msra.mxu0 0.0
    %2830 = vmatprep.subr.mxu0 0.0
    %2831 = vmatpush2.msra.mxu0 0.0
    %2832 = vmatprep.subr.mxu0 0.0
    %2833 = vmatpush2.msra.mxu0 0.0
    %2834 = vmatprep.subr.mxu0 0.0
    %2835 = vmatpush2.msra.mxu0 0.0
    %2836 = vmatprep.subr.mxu0 0.0
    %2837 = vmatpush2.msra.mxu0 0.0
    %2838 = vmatprep.subr.mxu0 0.0
    %2839 = vmatpush2.msra.mxu0 0.0
    %2840 = vmatprep.subr.mxu0 0.0
    %2841 = vmatpush2.msra.mxu0 0.0
    %2842 = vmatprep.subr.mxu0 0.0
    %2843 = vmatpush2.msra.mxu0 0.0
    %2844 = vmatprep.mubr.f32.mxu0 0.0
    %2845 = vmatmul.mubr.f32.gmra.mxu0 %v2122
    %v2846 = vpop.f32.mrf.mxu0
    %v2847 = vadd.f32 %v2382, %v2846
    %v2848 = vpop.f32.mrf.mxu0
    %2849 = vmatprep.mubr.f32.mxu0 0.0
    %2850 = vmatmul.mubr.f32.gmra.mxu0 %v2123
    %v2851 = vpop.f32.mrf.mxu0
    %v2852 = vadd.f32 %v2387, %v2851
    %v2853 = vpop.f32.mrf.mxu0
    %2854 = vmatprep.mubr.f32.mxu0 0.0
    %2855 = vmatmul.mubr.f32.gmra.mxu0 %v2124
    %v2856 = vpop.f32.mrf.mxu0
    %v2857 = vadd.f32 %v2392, %v2856
    %v2858 = vpop.f32.mrf.mxu0
    %2859 = vmatprep.mubr.f32.mxu0 0.0
    %2860 = vmatmul.mubr.f32.gmra.mxu0 %v2125
    %v2861 = vpop.f32.mrf.mxu0
    %v2862 = vadd.f32 %v2397, %v2861
    %v2863 = vpop.f32.mrf.mxu0
    %2864 = vmatprep.mubr.f32.mxu0 0.0
    %2865 = vmatmul.mubr.f32.gmra.mxu0 %v2126
    %v2866 = vpop.f32.mrf.mxu0
    %v2867 = vadd.f32 %v2402, %v2866
    %v2868 = vpop.f32.mrf.mxu0
    %2869 = vmatprep.mubr.f32.mxu0 0.0
    %2870 = vmatmul.mubr.f32.gmra.mxu0 %v2127
    %v2871 = vpop.f32.mrf.mxu0
    %v2872 = vadd.f32 %v2407, %v2871
    %v2873 = vpop.f32.mrf.mxu0
    %2874 = vmatprep.mubr.f32.mxu0 0.0
    %2875 = vmatmul.mubr.f32.gmra.mxu0 %v2128
    %v2876 = vpop.f32.mrf.mxu0
    %v2877 = vadd.f32 %v2412, %v2876
    %v2878 = vpop.f32.mrf.mxu0
    %2879 = vmatprep.mubr.f32.mxu0 0.0
    %2880 = vmatmul.mubr.f32.gmra.mxu0 %v2129
    %v2881 = vpop.f32.mrf.mxu0
    %v2882 = vadd.f32 %v2417, %v2881
    %v2883 = vpop.f32.mrf.mxu0
    %2884 = vmatprep.mubr.f32.mxu0 0.0
    %2885 = vmatmul.mubr.f32.gmra.mxu0 %v2130
    %v2886 = vpop.f32.mrf.mxu0
    %v2887 = vadd.f32 %v2422, %v2886
    %v2888 = vpop.f32.mrf.mxu0
    %2889 = vmatprep.mubr.f32.mxu0 0.0
    %2890 = vmatmul.mubr.f32.gmra.mxu0 %v2131
    %v2891 = vpop.f32.mrf.mxu0
    %v2892 = vadd.f32 %v2427, %v2891
    %v2893 = vpop.f32.mrf.mxu0
    %2894 = vmatprep.mubr.f32.mxu0 0.0
    %2895 = vmatmul.mubr.f32.gmra.mxu0 %v2132
    %v2896 = vpop.f32.mrf.mxu0
    %v2897 = vadd.f32 %v2432, %v2896
    %v2898 = vpop.f32.mrf.mxu0
    %2899 = vmatprep.mubr.f32.mxu0 0.0
    %2900 = vmatmul.mubr.f32.gmra.mxu0 %v2133
    %v2901 = vpop.f32.mrf.mxu0
    %v2902 = vadd.f32 %v2437, %v2901
    %v2903 = vpop.f32.mrf.mxu0
    %2904 = vmatprep.mubr.f32.mxu0 0.0
    %2905 = vmatmul.mubr.f32.gmra.mxu0 %v2134
    %v2906 = vpop.f32.mrf.mxu0
    %v2907 = vadd.f32 %v2442, %v2906
    %v2908 = vpop.f32.mrf.mxu0
    %2909 = vmatprep.mubr.f32.mxu0 0.0
    %2910 = vmatmul.mubr.f32.gmra.mxu0 %v2135
    %v2911 = vpop.f32.mrf.mxu0
    %v2912 = vadd.f32 %v2447, %v2911
    %v2913 = vpop.f32.mrf.mxu0
    %2914 = vmatprep.mubr.f32.mxu0 0.0
    %2915 = vmatmul.mubr.f32.gmra.mxu0 %v2136
    %v2916 = vpop.f32.mrf.mxu0
    %v2917 = vadd.f32 %v2452, %v2916
    %v2918 = vpop.f32.mrf.mxu0
    %2919 = vmatprep.mubr.f32.mxu0 0.0
    %2920 = vmatmul.mubr.f32.gmra.mxu0 %v2137
    %v2921 = vpop.f32.mrf.mxu0
    %v2922 = vadd.f32 %v2457, %v2921
    %v2923 = vpop.f32.mrf.mxu0
    %2924 = vmatprep.mubr.f32.mxu0 0.0
    %2925 = vmatmul.mubr.f32.gmra.mxu0 %v2138
    %v2926 = vpop.f32.mrf.mxu0
    %v2927 = vadd.f32 %v2462, %v2926
    %v2928 = vpop.f32.mrf.mxu0
    %2929 = vmatprep.mubr.f32.mxu0 0.0
    %2930 = vmatmul.mubr.f32.gmra.mxu0 %v2139
    %v2931 = vpop.f32.mrf.mxu0
    %v2932 = vadd.f32 %v2467, %v2931
    %v2933 = vpop.f32.mrf.mxu0
    %2934 = vmatprep.mubr.f32.mxu0 0.0
    %2935 = vmatmul.mubr.f32.gmra.mxu0 %v2140
    %v2936 = vpop.f32.mrf.mxu0
    %v2937 = vadd.f32 %v2472, %v2936
    %v2938 = vpop.f32.mrf.mxu0
    %2939 = vmatprep.mubr.f32.mxu0 0.0
    %2940 = vmatmul.mubr.f32.gmra.mxu0 %v2141
    %v2941 = vpop.f32.mrf.mxu0
    %v2942 = vadd.f32 %v2477, %v2941
    %v2943 = vpop.f32.mrf.mxu0
    %2944 = vmatprep.mubr.f32.mxu0 0.0
    %2945 = vmatmul.mubr.f32.gmra.mxu0 %v2142
    %v2946 = vpop.f32.mrf.mxu0
    %v2947 = vadd.f32 %v2482, %v2946
    %v2948 = vpop.f32.mrf.mxu0
    %2949 = vmatprep.mubr.f32.mxu0 0.0
    %2950 = vmatmul.mubr.f32.gmra.mxu0 %v2143
    %v2951 = vpop.f32.mrf.mxu0
    %v2952 = vadd.f32 %v2487, %v2951
    %v2953 = vpop.f32.mrf.mxu0
    %2954 = vmatprep.mubr.f32.mxu0 0.0
    %2955 = vmatmul.mubr.f32.gmra.mxu0 %v2144
    %v2956 = vpop.f32.mrf.mxu0
    %v2957 = vadd.f32 %v2492, %v2956
    %v2958 = vpop.f32.mrf.mxu0
    %2959 = vmatprep.mubr.f32.mxu0 0.0
    %2960 = vmatmul.mubr.f32.gmra.mxu0 %v2145
    %v2961 = vpop.f32.mrf.mxu0
    %v2962 = vadd.f32 %v2497, %v2961
    %v2963 = vpop.f32.mrf.mxu0
    %2964 = vmatprep.mubr.f32.mxu0 0.0
    %2965 = vmatmul.mubr.f32.gmra.mxu0 %v2146
    %v2966 = vpop.f32.mrf.mxu0
    %v2967 = vadd.f32 %v2502, %v2966
    %v2968 = vpop.f32.mrf.mxu0
    %2969 = vmatprep.mubr.f32.mxu0 0.0
    %2970 = vmatmul.mubr.f32.gmra.mxu0 %v2147
    %v2971 = vpop.f32.mrf.mxu0
    %v2972 = vadd.f32 %v2507, %v2971
    %v2973 = vpop.f32.mrf.mxu0
    %2974 = vmatprep.mubr.f32.mxu0 0.0
    %2975 = vmatmul.mubr.f32.gmra.mxu0 %v2148
    %v2976 = vpop.f32.mrf.mxu0
    %v2977 = vadd.f32 %v2512, %v2976
    %v2978 = vpop.f32.mrf.mxu0
    %2979 = vmatprep.mubr.f32.mxu0 0.0
    %2980 = vmatmul.mubr.f32.gmra.mxu0 %v2149
    %v2981 = vpop.f32.mrf.mxu0
    %v2982 = vadd.f32 %v2517, %v2981
    %v2983 = vpop.f32.mrf.mxu0
    %2984 = vmatprep.mubr.f32.mxu0 0.0
    %2985 = vmatmul.mubr.f32.gmra.mxu0 %v2150
    %v2986 = vpop.f32.mrf.mxu0
    %v2987 = vadd.f32 %v2522, %v2986
    %v2988 = vpop.f32.mrf.mxu0
    %2989 = vmatprep.mubr.f32.mxu0 0.0
    %2990 = vmatmul.mubr.f32.gmra.mxu0 %v2151
    %v2991 = vpop.f32.mrf.mxu0
    %v2992 = vadd.f32 %v2527, %v2991
    %v2993 = vpop.f32.mrf.mxu0
    %2994 = vmatprep.mubr.f32.mxu0 0.0
    %2995 = vmatmul.mubr.f32.gmra.mxu0 %v2152
    %v2996 = vpop.f32.mrf.mxu0
    %v2997 = vadd.f32 %v2532, %v2996
    %v2998 = vpop.f32.mrf.mxu0
    %2999 = vmatprep.mubr.f32.mxu0 0.0
    %3000 = vmatmul.mubr.f32.gmra.mxu0 %v2153
    %v3001 = vpop.f32.mrf.mxu0
    %v3002 = vadd.f32 %v2537, %v3001
    %v3003 = vpop.f32.mrf.mxu0
    %3004 = vmatprep.mubr.f32.mxu0 0.0
    %3005 = vmatmul.mubr.f32.gmra.mxu0 %v2154
    %v3006 = vpop.f32.mrf.mxu0
    %v3007 = vadd.f32 %v2542, %v3006
    %v3008 = vpop.f32.mrf.mxu0
    %3009 = vmatprep.mubr.f32.mxu0 0.0
    %3010 = vmatmul.mubr.f32.gmra.mxu0 %v2155
    %v3011 = vpop.f32.mrf.mxu0
    %v3012 = vadd.f32 %v2547, %v3011
    %v3013 = vpop.f32.mrf.mxu0
    %3014 = vmatprep.mubr.f32.mxu0 0.0
    %3015 = vmatmul.mubr.f32.gmra.mxu0 %v2156
    %v3016 = vpop.f32.mrf.mxu0
    %v3017 = vadd.f32 %v2552, %v3016
    %v3018 = vpop.f32.mrf.mxu0
    %3019 = vmatprep.mubr.f32.mxu0 0.0
    %3020 = vmatmul.mubr.f32.gmra.mxu0 %v2157
    %v3021 = vpop.f32.mrf.mxu0
    %v3022 = vadd.f32 %v2557, %v3021
    %v3023 = vpop.f32.mrf.mxu0
    %3024 = vmatprep.mubr.f32.mxu0 0.0
    %3025 = vmatmul.mubr.f32.gmra.mxu0 %v2158
    %v3026 = vpop.f32.mrf.mxu0
    %v3027 = vadd.f32 %v2562, %v3026
    %v3028 = vpop.f32.mrf.mxu0
    %3029 = vmatprep.mubr.f32.mxu0 0.0
    %3030 = vmatmul.mubr.f32.gmra.mxu0 %v2159
    %v3031 = vpop.f32.mrf.mxu0
    %v3032 = vadd.f32 %v2567, %v3031
    %v3033 = vpop.f32.mrf.mxu0
    %3034 = vmatprep.mubr.f32.mxu0 0.0
    %3035 = vmatmul.mubr.f32.gmra.mxu0 %v2160
    %v3036 = vpop.f32.mrf.mxu0
    %v3037 = vadd.f32 %v2572, %v3036
    %v3038 = vpop.f32.mrf.mxu0
    %3039 = vmatprep.mubr.f32.mxu0 0.0
    %3040 = vmatmul.mubr.f32.gmra.mxu0 %v2161
    %v3041 = vpop.f32.mrf.mxu0
    %v3042 = vadd.f32 %v2577, %v3041
    %v3043 = vpop.f32.mrf.mxu0
    %3044 = vmatprep.mubr.f32.mxu0 0.0
    %3045 = vmatmul.mubr.f32.gmra.mxu0 %v2162
    %v3046 = vpop.f32.mrf.mxu0
    %v3047 = vadd.f32 %v2582, %v3046
    %v3048 = vpop.f32.mrf.mxu0
    %3049 = vmatprep.mubr.f32.mxu0 0.0
    %3050 = vmatmul.mubr.f32.gmra.mxu0 %v2163
    %v3051 = vpop.f32.mrf.mxu0
    %v3052 = vadd.f32 %v2587, %v3051
    %v3053 = vpop.f32.mrf.mxu0
    %3054 = vmatprep.mubr.f32.mxu0 0.0
    %3055 = vmatmul.mubr.f32.gmra.mxu0 %v2164
    %v3056 = vpop.f32.mrf.mxu0
    %v3057 = vadd.f32 %v2592, %v3056
    %v3058 = vpop.f32.mrf.mxu0
    %3059 = vmatprep.mubr.f32.mxu0 0.0
    %3060 = vmatmul.mubr.f32.gmra.mxu0 %v2165
    %v3061 = vpop.f32.mrf.mxu0
    %v3062 = vadd.f32 %v2597, %v3061
    %v3063 = vpop.f32.mrf.mxu0
    %3064 = vmatprep.mubr.f32.mxu0 0.0
    %3065 = vmatmul.mubr.f32.gmra.mxu0 %v2166
    %v3066 = vpop.f32.mrf.mxu0
    %v3067 = vadd.f32 %v2602, %v3066
    %v3068 = vpop.f32.mrf.mxu0
    %3069 = vmatprep.mubr.f32.mxu0 0.0
    %3070 = vmatmul.mubr.f32.gmra.mxu0 %v2167
    %v3071 = vpop.f32.mrf.mxu0
    %v3072 = vadd.f32 %v2607, %v3071
    %v3073 = vpop.f32.mrf.mxu0
    %3074 = vmatprep.mubr.f32.mxu0 0.0
    %3075 = vmatmul.mubr.f32.gmra.mxu0 %v2168
    %v3076 = vpop.f32.mrf.mxu0
    %v3077 = vadd.f32 %v2612, %v3076
    %v3078 = vpop.f32.mrf.mxu0
    %3079 = vmatprep.mubr.f32.mxu0 0.0
    %3080 = vmatmul.mubr.f32.gmra.mxu0 %v2169
    %v3081 = vpop.f32.mrf.mxu0
    %v3082 = vadd.f32 %v2617, %v3081
    %v3083 = vpop.f32.mrf.mxu0
    %3084 = vmatprep.mubr.f32.mxu0 0.0
    %3085 = vmatmul.mubr.f32.gmra.mxu0 %v2170
    %v3086 = vpop.f32.mrf.mxu0
    %v3087 = vadd.f32 %v2622, %v3086
    %v3088 = vpop.f32.mrf.mxu0
    %3089 = vmatprep.mubr.f32.mxu0 0.0
    %3090 = vmatmul.mubr.f32.gmra.mxu0 %v2171
    %v3091 = vpop.f32.mrf.mxu0
    %v3092 = vadd.f32 %v2627, %v3091
    %v3093 = vpop.f32.mrf.mxu0
    %3094 = vmatprep.mubr.f32.mxu0 0.0
    %3095 = vmatmul.mubr.f32.gmra.mxu0 %v2172
    %v3096 = vpop.f32.mrf.mxu0
    %v3097 = vadd.f32 %v2632, %v3096
    %v3098 = vpop.f32.mrf.mxu0
    %3099 = vmatprep.mubr.f32.mxu0 0.0
    %3100 = vmatmul.mubr.f32.gmra.mxu0 %v2173
    %v3101 = vpop.f32.mrf.mxu0
    %v3102 = vadd.f32 %v2637, %v3101
    %v3103 = vpop.f32.mrf.mxu0
    %3104 = vmatprep.mubr.f32.mxu0 0.0
    %3105 = vmatmul.mubr.f32.gmra.mxu0 %v2174
    %v3106 = vpop.f32.mrf.mxu0
    %v3107 = vadd.f32 %v2642, %v3106
    %v3108 = vpop.f32.mrf.mxu0
    %3109 = vmatprep.mubr.f32.mxu0 0.0
    %3110 = vmatmul.mubr.f32.gmra.mxu0 %v2175
    %v3111 = vpop.f32.mrf.mxu0
    %v3112 = vadd.f32 %v2647, %v3111
    %v3113 = vpop.f32.mrf.mxu0
    %3114 = vmatprep.mubr.f32.mxu0 0.0
    %3115 = vmatmul.mubr.f32.gmra.mxu0 %v2176
    %v3116 = vpop.f32.mrf.mxu0
    %v3117 = vadd.f32 %v2652, %v3116
    %v3118 = vpop.f32.mrf.mxu0
    %3119 = vmatprep.mubr.f32.mxu0 0.0
    %3120 = vmatmul.mubr.f32.gmra.mxu0 %v2177
    %v3121 = vpop.f32.mrf.mxu0
    %v3122 = vadd.f32 %v2657, %v3121
    %v3123 = vpop.f32.mrf.mxu0
    %3124 = vmatprep.mubr.f32.mxu0 0.0
    %3125 = vmatmul.mubr.f32.gmra.mxu0 %v2178
    %v3126 = vpop.f32.mrf.mxu0
    %v3127 = vadd.f32 %v2662, %v3126
    %v3128 = vpop.f32.mrf.mxu0
    %3129 = vmatprep.mubr.f32.mxu0 0.0
    %3130 = vmatmul.mubr.f32.gmra.mxu0 %v2179
    %v3131 = vpop.f32.mrf.mxu0
    %v3132 = vadd.f32 %v2667, %v3131
    %v3133 = vpop.f32.mrf.mxu0
    %3134 = vmatprep.mubr.f32.mxu0 0.0
    %3135 = vmatmul.mubr.f32.gmra.mxu0 %v2180
    %v3136 = vpop.f32.mrf.mxu0
    %v3137 = vadd.f32 %v2672, %v3136
    %v3138 = vpop.f32.mrf.mxu0
    %3139 = vmatprep.mubr.f32.mxu0 0.0
    %3140 = vmatmul.mubr.f32.gmra.mxu0 %v2181
    %v3141 = vpop.f32.mrf.mxu0
    %v3142 = vadd.f32 %v2677, %v3141
    %v3143 = vpop.f32.mrf.mxu0
    %3144 = vmatprep.mubr.f32.mxu0 0.0
    %3145 = vmatmul.mubr.f32.gmra.mxu0 %v2182
    %v3146 = vpop.f32.mrf.mxu0
    %v3147 = vadd.f32 %v2682, %v3146
    %v3148 = vpop.f32.mrf.mxu0
    %3149 = vmatprep.mubr.f32.mxu0 0.0
    %3150 = vmatmul.mubr.f32.gmra.mxu0 %v2183
    %v3151 = vpop.f32.mrf.mxu0
    %v3152 = vadd.f32 %v2687, %v3151
    %v3153 = vpop.f32.mrf.mxu0
    %3154 = vmatprep.mubr.f32.mxu0 0.0
    %3155 = vmatmul.mubr.f32.gmra.mxu0 %v2184
    %v3156 = vpop.f32.mrf.mxu0
    %v3157 = vadd.f32 %v2692, %v3156
    %v3158 = vpop.f32.mrf.mxu0
    %3159 = vmatprep.mubr.f32.mxu0 0.0
    %3160 = vmatmul.mubr.f32.gmra.mxu0 %v2185
    %v3161 = vpop.f32.mrf.mxu0
    %v3162 = vadd.f32 %v2697, %v3161
    %v3163 = vpop.f32.mrf.mxu0
    %3164 = vmatprep.mubr.f32.mxu0 0.0
    %3165 = vmatmul.mubr.f32.gmra.mxu0 %v2186
    %v3166 = vpop.f32.mrf.mxu0
    %v3167 = vadd.f32 %v2702, %v3166
    %v3168 = vpop.f32.mrf.mxu0
    %3169 = vmatprep.mubr.f32.mxu0 0.0
    %3170 = vmatmul.mubr.f32.gmra.mxu0 %v2187
    %v3171 = vpop.f32.mrf.mxu0
    %v3172 = vadd.f32 %v2707, %v3171
    %v3173 = vpop.f32.mrf.mxu0
    %3174 = vmatprep.mubr.f32.mxu0 0.0
    %3175 = vmatmul.mubr.f32.gmra.mxu0 %v2188
    %v3176 = vpop.f32.mrf.mxu0
    %v3177 = vadd.f32 %v2712, %v3176
    %v3178 = vpop.f32.mrf.mxu0
    %3179 = vmatprep.mubr.f32.mxu0 0.0
    %3180 = vmatmul.mubr.f32.gmra.mxu0 %v2189
    %v3181 = vpop.f32.mrf.mxu0
    %v3182 = vadd.f32 %v2717, %v3181
    %v3183 = vpop.f32.mrf.mxu0
    %3184 = vmatprep.mubr.f32.mxu0 0.0
    %3185 = vmatmul.mubr.f32.gmra.mxu0 %v2190
    %v3186 = vpop.f32.mrf.mxu0
    %v3187 = vadd.f32 %v2722, %v3186
    %v3188 = vpop.f32.mrf.mxu0
    %3189 = vmatprep.mubr.f32.mxu0 0.0
    %3190 = vmatmul.mubr.f32.gmra.mxu0 %v2191
    %v3191 = vpop.f32.mrf.mxu0
    %v3192 = vadd.f32 %v2727, %v3191
    %v3193 = vpop.f32.mrf.mxu0
    %3194 = vmatprep.mubr.f32.mxu0 0.0
    %3195 = vmatmul.mubr.f32.gmra.mxu0 %v2192
    %v3196 = vpop.f32.mrf.mxu0
    %v3197 = vadd.f32 %v2732, %v3196
    %v3198 = vpop.f32.mrf.mxu0
    %3199 = vmatprep.mubr.f32.mxu0 0.0
    %3200 = vmatmul.mubr.f32.gmra.mxu0 %v2193
    %v3201 = vpop.f32.mrf.mxu0
    %v3202 = vadd.f32 %v2737, %v3201
    %v3203 = vpop.f32.mrf.mxu0
    %3204 = vmatprep.mubr.f32.mxu0 0.0
    %3205 = vmatmul.mubr.f32.gmra.mxu0 %v2194
    %v3206 = vpop.f32.mrf.mxu0
    %v3207 = vadd.f32 %v2742, %v3206
    %v3208 = vpop.f32.mrf.mxu0
    %3209 = vmatprep.mubr.f32.mxu0 0.0
    %3210 = vmatmul.mubr.f32.gmra.mxu0 %v2195
    %v3211 = vpop.f32.mrf.mxu0
    %v3212 = vadd.f32 %v2747, %v3211
    %v3213 = vpop.f32.mrf.mxu0
    %3214 = vmatprep.mubr.f32.mxu0 0.0
    %3215 = vmatmul.mubr.f32.gmra.mxu0 %v2196
    %v3216 = vpop.f32.mrf.mxu0
    %v3217 = vadd.f32 %v2752, %v3216
    %v3218 = vpop.f32.mrf.mxu0
    %3219 = vmatprep.mubr.f32.mxu0 0.0
    %3220 = vmatmul.mubr.f32.gmra.mxu0 %v2197
    %v3221 = vpop.f32.mrf.mxu0
    %v3222 = vadd.f32 %v2757, %v3221
    %v3223 = vpop.f32.mrf.mxu0
    %3224 = vmatprep.mubr.f32.mxu0 0.0
    %3225 = vmatmul.mubr.f32.gmra.mxu0 %v2198
    %v3226 = vpop.f32.mrf.mxu0
    %v3227 = vadd.f32 %v2762, %v3226
    %v3228 = vpop.f32.mrf.mxu0
    %3229 = vmatprep.mubr.f32.mxu0 0.0
    %3230 = vmatmul.mubr.f32.gmra.mxu0 %v2199
    %v3231 = vpop.f32.mrf.mxu0
    %v3232 = vadd.f32 %v2767, %v3231
    %v3233 = vpop.f32.mrf.mxu0
    %3234 = vmatprep.mubr.f32.mxu0 0.0
    %3235 = vmatmul.mubr.f32.gmra.mxu0 %v2200
    %v3236 = vpop.f32.mrf.mxu0
    %v3237 = vadd.f32 %v2772, %v3236
    %v3238 = vpop.f32.mrf.mxu0
    %3239 = vmatprep.mubr.f32.mxu0 0.0
    %3240 = vmatmul.mubr.f32.gmra.mxu0 %v2201
    %v3241 = vpop.f32.mrf.mxu0
    %v3242 = vadd.f32 %v2777, %v3241
    %v3243 = vpop.f32.mrf.mxu0
    %3244 = vdwg.mxu0
    %v3245 = vld [vmem:[#allocation2 + $0x7] sm:$0xff]
    %v3246 = vld [vmem:[#allocation2 + $0xf] sm:$0xff]
    %v3247 = vld [vmem:[#allocation2 + $0x17] sm:$0xff]
    %v3248 = vld [vmem:[#allocation2 + $0x1f] sm:$0xff]
    %v3249 = vld [vmem:[#allocation2 + $0x27] sm:$0xff]
    %v3250 = vld [vmem:[#allocation2 + $0x2f] sm:$0xff]
    %v3251 = vld [vmem:[#allocation2 + $0x37] sm:$0xff]
    %v3252 = vld [vmem:[#allocation2 + $0x3f] sm:$0xff]
    %v3253 = vld [vmem:[#allocation2 + $0x47] sm:$0xff]
    %v3254 = vld [vmem:[#allocation2 + $0x4f] sm:$0xff]
    %v3255 = vld [vmem:[#allocation2 + $0x57] sm:$0xff]
    %v3256 = vld [vmem:[#allocation2 + $0x5f] sm:$0xff]
    %v3257 = vld [vmem:[#allocation2 + $0x67] sm:$0xff]
    %v3258 = vld [vmem:[#allocation2 + $0x6f] sm:$0xff]
    %v3259 = vld [vmem:[#allocation2 + $0x77] sm:$0xff]
    %v3260 = vld [vmem:[#allocation2 + $0x7f] sm:$0xff]
    %v3261 = vld [vmem:[#allocation2 + $0x87] sm:$0xff]
    %v3262 = vld [vmem:[#allocation2 + $0x8f] sm:$0xff]
    %v3263 = vld [vmem:[#allocation2 + $0x97] sm:$0xff]
    %v3264 = vld [vmem:[#allocation2 + $0x9f] sm:$0xff]
    %v3265 = vld [vmem:[#allocation2 + $0xa7] sm:$0xff]
    %v3266 = vld [vmem:[#allocation2 + $0xaf] sm:$0xff]
    %v3267 = vld [vmem:[#allocation2 + $0xb7] sm:$0xff]
    %v3268 = vld [vmem:[#allocation2 + $0xbf] sm:$0xff]
    %v3269 = vld [vmem:[#allocation2 + $0xc7] sm:$0xff]
    %v3270 = vld [vmem:[#allocation2 + $0xcf] sm:$0xff]
    %v3271 = vld [vmem:[#allocation2 + $0xd7] sm:$0xff]
    %v3272 = vld [vmem:[#allocation2 + $0xdf] sm:$0xff]
    %v3273 = vld [vmem:[#allocation2 + $0xe7] sm:$0xff]
    %v3274 = vld [vmem:[#allocation2 + $0xef] sm:$0xff]
    %v3275 = vld [vmem:[#allocation2 + $0xf7] sm:$0xff]
    %v3276 = vld [vmem:[#allocation2 + $0xff] sm:$0xff]
    %v3277 = vld [vmem:[#allocation2 + $0x107] sm:$0xff]
    %v3278 = vld [vmem:[#allocation2 + $0x10f] sm:$0xff]
    %v3279 = vld [vmem:[#allocation2 + $0x117] sm:$0xff]
    %v3280 = vld [vmem:[#allocation2 + $0x11f] sm:$0xff]
    %v3281 = vld [vmem:[#allocation2 + $0x127] sm:$0xff]
    %v3282 = vld [vmem:[#allocation2 + $0x12f] sm:$0xff]
    %v3283 = vld [vmem:[#allocation2 + $0x137] sm:$0xff]
    %v3284 = vld [vmem:[#allocation2 + $0x13f] sm:$0xff]
    %v3285 = vld [vmem:[#allocation2 + $0x147] sm:$0xff]
    %v3286 = vld [vmem:[#allocation2 + $0x14f] sm:$0xff]
    %v3287 = vld [vmem:[#allocation2 + $0x157] sm:$0xff]
    %v3288 = vld [vmem:[#allocation2 + $0x15f] sm:$0xff]
    %v3289 = vld [vmem:[#allocation2 + $0x167] sm:$0xff]
    %v3290 = vld [vmem:[#allocation2 + $0x16f] sm:$0xff]
    %v3291 = vld [vmem:[#allocation2 + $0x177] sm:$0xff]
    %v3292 = vld [vmem:[#allocation2 + $0x17f] sm:$0xff]
    %v3293 = vld [vmem:[#allocation2 + $0x187] sm:$0xff]
    %v3294 = vld [vmem:[#allocation2 + $0x18f] sm:$0xff]
    %v3295 = vld [vmem:[#allocation2 + $0x197] sm:$0xff]
    %v3296 = vld [vmem:[#allocation2 + $0x19f] sm:$0xff]
    %v3297 = vld [vmem:[#allocation2 + $0x1a7] sm:$0xff]
    %v3298 = vld [vmem:[#allocation2 + $0x1af] sm:$0xff]
    %v3299 = vld [vmem:[#allocation2 + $0x1b7] sm:$0xff]
    %v3300 = vld [vmem:[#allocation2 + $0x1bf] sm:$0xff]
    %v3301 = vld [vmem:[#allocation2 + $0x1c7] sm:$0xff]
    %v3302 = vld [vmem:[#allocation2 + $0x1cf] sm:$0xff]
    %v3303 = vld [vmem:[#allocation2 + $0x1d7] sm:$0xff]
    %v3304 = vld [vmem:[#allocation2 + $0x1df] sm:$0xff]
    %v3305 = vld [vmem:[#allocation2 + $0x1e7] sm:$0xff]
    %v3306 = vld [vmem:[#allocation2 + $0x1ef] sm:$0xff]
    %v3307 = vld [vmem:[#allocation2 + $0x1f7] sm:$0xff]
    %v3308 = vld [vmem:[#allocation2 + $0x1ff] sm:$0xff]
    %v3309 = vld [vmem:[#allocation2 + $0x207] sm:$0xff]
    %v3310 = vld [vmem:[#allocation2 + $0x20f] sm:$0xff]
    %v3311 = vld [vmem:[#allocation2 + $0x217] sm:$0xff]
    %v3312 = vld [vmem:[#allocation2 + $0x21f] sm:$0xff]
    %v3313 = vld [vmem:[#allocation2 + $0x227] sm:$0xff]
    %v3314 = vld [vmem:[#allocation2 + $0x22f] sm:$0xff]
    %v3315 = vld [vmem:[#allocation2 + $0x237] sm:$0xff]
    %v3316 = vld [vmem:[#allocation2 + $0x23f] sm:$0xff]
    %v3317 = vld [vmem:[#allocation2 + $0x247] sm:$0xff]
    %v3318 = vld [vmem:[#allocation2 + $0x24f] sm:$0xff]
    %v3319 = vld [vmem:[#allocation2 + $0x257] sm:$0xff]
    %v3320 = vld [vmem:[#allocation2 + $0x25f] sm:$0xff]
    %v3321 = vld [vmem:[#allocation2 + $0x267] sm:$0xff]
    %v3322 = vld [vmem:[#allocation2 + $0x26f] sm:$0xff]
    %v3323 = vld [vmem:[#allocation2 + $0x277] sm:$0xff]
    %v3324 = vld [vmem:[#allocation2 + $0x27f] sm:$0xff]
    %s3325 = scalar_lea.vmem [#allocation8], 256
    %v3326 = vld [vmem:[%s3325] sm:$0xff]
    %v3327 = vld [vmem:[%s3325 + $0x8] sm:$0xff]
    %v3328 = vld [vmem:[%s3325 + $0x10] sm:$0xff]
    %v3329 = vld [vmem:[%s3325 + $0x18] sm:$0xff]
    %v3330 = vld [vmem:[%s3325 + $0x20] sm:$0xff]
    %v3331 = vld [vmem:[%s3325 + $0x28] sm:$0xff]
    %v3332 = vld [vmem:[%s3325 + $0x30] sm:$0xff]
    %v3333 = vld [vmem:[%s3325 + $0x38] sm:$0xff]
    %v3334 = vld [vmem:[%s3325 + $0x40] sm:$0xff]
    %v3335 = vld [vmem:[%s3325 + $0x48] sm:$0xff]
    %v3336 = vld [vmem:[%s3325 + $0x50] sm:$0xff]
    %v3337 = vld [vmem:[%s3325 + $0x58] sm:$0xff]
    %v3338 = vld [vmem:[%s3325 + $0x60] sm:$0xff]
    %v3339 = vld [vmem:[%s3325 + $0x68] sm:$0xff]
    %v3340 = vld [vmem:[%s3325 + $0x70] sm:$0xff]
    %v3341 = vld [vmem:[%s3325 + $0x78] sm:$0xff]
    %3342 = vmatprep.subr.mxu0 0.0
    %3343 = vmatpush1.msra.mxu0 %v3341
    %3344 = vmatprep.subr.mxu0 0.0
    %3345 = vmatpush1.msra.mxu0 %v3340
    %3346 = vmatprep.subr.mxu0 0.0
    %3347 = vmatpush1.msra.mxu0 %v3339
    %3348 = vmatprep.subr.mxu0 0.0
    %3349 = vmatpush1.msra.mxu0 %v3338
    %3350 = vmatprep.subr.mxu0 0.0
    %3351 = vmatpush1.msra.mxu0 %v3337
    %3352 = vmatprep.subr.mxu0 0.0
    %3353 = vmatpush1.msra.mxu0 %v3336
    %3354 = vmatprep.subr.mxu0 0.0
    %3355 = vmatpush1.msra.mxu0 %v3335
    %3356 = vmatprep.subr.mxu0 0.0
    %3357 = vmatpush1.msra.mxu0 %v3334
    %3358 = vmatprep.subr.mxu0 0.0
    %3359 = vmatpush1.msra.mxu0 %v3333
    %3360 = vmatprep.subr.mxu0 0.0
    %3361 = vmatpush1.msra.mxu0 %v3332
    %3362 = vmatprep.subr.mxu0 0.0
    %3363 = vmatpush1.msra.mxu0 %v3331
    %3364 = vmatprep.subr.mxu0 0.0
    %3365 = vmatpush1.msra.mxu0 %v3330
    %3366 = vmatprep.subr.mxu0 0.0
    %3367 = vmatpush1.msra.mxu0 %v3329
    %3368 = vmatprep.subr.mxu0 0.0
    %3369 = vmatpush1.msra.mxu0 %v3328
    %3370 = vmatprep.subr.mxu0 0.0
    %3371 = vmatpush1.msra.mxu0 %v3327
    %3372 = vmatprep.subr.mxu0 0.0
    %3373 = vmatpush1.msra.mxu0 %v3326
    %3374 = vmatprep.subr.mxu0 0.0
    %3375 = vmatpush2.msra.mxu0 0.0
    %3376 = vmatprep.subr.mxu0 0.0
    %3377 = vmatpush2.msra.mxu0 0.0
    %3378 = vmatprep.subr.mxu0 0.0
    %3379 = vmatpush2.msra.mxu0 0.0
    %3380 = vmatprep.subr.mxu0 0.0
    %3381 = vmatpush2.msra.mxu0 0.0
    %3382 = vmatprep.subr.mxu0 0.0
    %3383 = vmatpush2.msra.mxu0 0.0
    %3384 = vmatprep.subr.mxu0 0.0
    %3385 = vmatpush2.msra.mxu0 0.0
    %3386 = vmatprep.subr.mxu0 0.0
    %3387 = vmatpush2.msra.mxu0 0.0
    %3388 = vmatprep.subr.mxu0 0.0
    %3389 = vmatpush2.msra.mxu0 0.0
    %3390 = vmatprep.subr.mxu0 0.0
    %3391 = vmatpush2.msra.mxu0 0.0
    %3392 = vmatprep.subr.mxu0 0.0
    %3393 = vmatpush2.msra.mxu0 0.0
    %3394 = vmatprep.subr.mxu0 0.0
    %3395 = vmatpush2.msra.mxu0 0.0
    %3396 = vmatprep.subr.mxu0 0.0
    %3397 = vmatpush2.msra.mxu0 0.0
    %3398 = vmatprep.subr.mxu0 0.0
    %3399 = vmatpush2.msra.mxu0 0.0
    %3400 = vmatprep.subr.mxu0 0.0
    %3401 = vmatpush2.msra.mxu0 0.0
    %3402 = vmatprep.subr.mxu0 0.0
    %3403 = vmatpush2.msra.mxu0 0.0
    %3404 = vmatprep.subr.mxu0 0.0
    %3405 = vmatpush2.msra.mxu0 0.0
    %3406 = vmatprep.mubr.f32.mxu0 0.0
    %3407 = vmatmul.mubr.f32.gmra.mxu0 %v3245
    %v3408 = vpop.f32.mrf.mxu0
    %v3409 = vadd.f32 0.0, %v3408
    %v3410 = vpop.f32.mrf.mxu0
    %3411 = vmatprep.mubr.f32.mxu0 0.0
    %3412 = vmatmul.mubr.f32.gmra.mxu0 %v3246
    %v3413 = vpop.f32.mrf.mxu0
    %v3414 = vadd.f32 0.0, %v3413
    %v3415 = vpop.f32.mrf.mxu0
    %3416 = vmatprep.mubr.f32.mxu0 0.0
    %3417 = vmatmul.mubr.f32.gmra.mxu0 %v3247
    %v3418 = vpop.f32.mrf.mxu0
    %v3419 = vadd.f32 0.0, %v3418
    %v3420 = vpop.f32.mrf.mxu0
    %3421 = vmatprep.mubr.f32.mxu0 0.0
    %3422 = vmatmul.mubr.f32.gmra.mxu0 %v3248
    %v3423 = vpop.f32.mrf.mxu0
    %v3424 = vadd.f32 0.0, %v3423
    %v3425 = vpop.f32.mrf.mxu0
    %3426 = vmatprep.mubr.f32.mxu0 0.0
    %3427 = vmatmul.mubr.f32.gmra.mxu0 %v3249
    %v3428 = vpop.f32.mrf.mxu0
    %v3429 = vadd.f32 0.0, %v3428
    %v3430 = vpop.f32.mrf.mxu0
    %3431 = vmatprep.mubr.f32.mxu0 0.0
    %3432 = vmatmul.mubr.f32.gmra.mxu0 %v3250
    %v3433 = vpop.f32.mrf.mxu0
    %v3434 = vadd.f32 0.0, %v3433
    %v3435 = vpop.f32.mrf.mxu0
    %3436 = vmatprep.mubr.f32.mxu0 0.0
    %3437 = vmatmul.mubr.f32.gmra.mxu0 %v3251
    %v3438 = vpop.f32.mrf.mxu0
    %v3439 = vadd.f32 0.0, %v3438
    %v3440 = vpop.f32.mrf.mxu0
    %3441 = vmatprep.mubr.f32.mxu0 0.0
    %3442 = vmatmul.mubr.f32.gmra.mxu0 %v3252
    %v3443 = vpop.f32.mrf.mxu0
    %v3444 = vadd.f32 0.0, %v3443
    %v3445 = vpop.f32.mrf.mxu0
    %3446 = vmatprep.mubr.f32.mxu0 0.0
    %3447 = vmatmul.mubr.f32.gmra.mxu0 %v3253
    %v3448 = vpop.f32.mrf.mxu0
    %v3449 = vadd.f32 0.0, %v3448
    %v3450 = vpop.f32.mrf.mxu0
    %3451 = vmatprep.mubr.f32.mxu0 0.0
    %3452 = vmatmul.mubr.f32.gmra.mxu0 %v3254
    %v3453 = vpop.f32.mrf.mxu0
    %v3454 = vadd.f32 0.0, %v3453
    %v3455 = vpop.f32.mrf.mxu0
    %3456 = vmatprep.mubr.f32.mxu0 0.0
    %3457 = vmatmul.mubr.f32.gmra.mxu0 %v3255
    %v3458 = vpop.f32.mrf.mxu0
    %v3459 = vadd.f32 0.0, %v3458
    %v3460 = vpop.f32.mrf.mxu0
    %3461 = vmatprep.mubr.f32.mxu0 0.0
    %3462 = vmatmul.mubr.f32.gmra.mxu0 %v3256
    %v3463 = vpop.f32.mrf.mxu0
    %v3464 = vadd.f32 0.0, %v3463
    %v3465 = vpop.f32.mrf.mxu0
    %3466 = vmatprep.mubr.f32.mxu0 0.0
    %3467 = vmatmul.mubr.f32.gmra.mxu0 %v3257
    %v3468 = vpop.f32.mrf.mxu0
    %v3469 = vadd.f32 0.0, %v3468
    %v3470 = vpop.f32.mrf.mxu0
    %3471 = vmatprep.mubr.f32.mxu0 0.0
    %3472 = vmatmul.mubr.f32.gmra.mxu0 %v3258
    %v3473 = vpop.f32.mrf.mxu0
    %v3474 = vadd.f32 0.0, %v3473
    %v3475 = vpop.f32.mrf.mxu0
    %3476 = vmatprep.mubr.f32.mxu0 0.0
    %3477 = vmatmul.mubr.f32.gmra.mxu0 %v3259
    %v3478 = vpop.f32.mrf.mxu0
    %v3479 = vadd.f32 0.0, %v3478
    %v3480 = vpop.f32.mrf.mxu0
    %3481 = vmatprep.mubr.f32.mxu0 0.0
    %3482 = vmatmul.mubr.f32.gmra.mxu0 %v3260
    %v3483 = vpop.f32.mrf.mxu0
    %v3484 = vadd.f32 0.0, %v3483
    %v3485 = vpop.f32.mrf.mxu0
    %3486 = vmatprep.mubr.f32.mxu0 0.0
    %3487 = vmatmul.mubr.f32.gmra.mxu0 %v3261
    %v3488 = vpop.f32.mrf.mxu0
    %v3489 = vadd.f32 0.0, %v3488
    %v3490 = vpop.f32.mrf.mxu0
    %3491 = vmatprep.mubr.f32.mxu0 0.0
    %3492 = vmatmul.mubr.f32.gmra.mxu0 %v3262
    %v3493 = vpop.f32.mrf.mxu0
    %v3494 = vadd.f32 0.0, %v3493
    %v3495 = vpop.f32.mrf.mxu0
    %3496 = vmatprep.mubr.f32.mxu0 0.0
    %3497 = vmatmul.mubr.f32.gmra.mxu0 %v3263
    %v3498 = vpop.f32.mrf.mxu0
    %v3499 = vadd.f32 0.0, %v3498
    %v3500 = vpop.f32.mrf.mxu0
    %3501 = vmatprep.mubr.f32.mxu0 0.0
    %3502 = vmatmul.mubr.f32.gmra.mxu0 %v3264
    %v3503 = vpop.f32.mrf.mxu0
    %v3504 = vadd.f32 0.0, %v3503
    %v3505 = vpop.f32.mrf.mxu0
    %3506 = vmatprep.mubr.f32.mxu0 0.0
    %3507 = vmatmul.mubr.f32.gmra.mxu0 %v3265
    %v3508 = vpop.f32.mrf.mxu0
    %v3509 = vadd.f32 0.0, %v3508
    %v3510 = vpop.f32.mrf.mxu0
    %3511 = vmatprep.mubr.f32.mxu0 0.0
    %3512 = vmatmul.mubr.f32.gmra.mxu0 %v3266
    %v3513 = vpop.f32.mrf.mxu0
    %v3514 = vadd.f32 0.0, %v3513
    %v3515 = vpop.f32.mrf.mxu0
    %3516 = vmatprep.mubr.f32.mxu0 0.0
    %3517 = vmatmul.mubr.f32.gmra.mxu0 %v3267
    %v3518 = vpop.f32.mrf.mxu0
    %v3519 = vadd.f32 0.0, %v3518
    %v3520 = vpop.f32.mrf.mxu0
    %3521 = vmatprep.mubr.f32.mxu0 0.0
    %3522 = vmatmul.mubr.f32.gmra.mxu0 %v3268
    %v3523 = vpop.f32.mrf.mxu0
    %v3524 = vadd.f32 0.0, %v3523
    %v3525 = vpop.f32.mrf.mxu0
    %3526 = vmatprep.mubr.f32.mxu0 0.0
    %3527 = vmatmul.mubr.f32.gmra.mxu0 %v3269
    %v3528 = vpop.f32.mrf.mxu0
    %v3529 = vadd.f32 0.0, %v3528
    %v3530 = vpop.f32.mrf.mxu0
    %3531 = vmatprep.mubr.f32.mxu0 0.0
    %3532 = vmatmul.mubr.f32.gmra.mxu0 %v3270
    %v3533 = vpop.f32.mrf.mxu0
    %v3534 = vadd.f32 0.0, %v3533
    %v3535 = vpop.f32.mrf.mxu0
    %3536 = vmatprep.mubr.f32.mxu0 0.0
    %3537 = vmatmul.mubr.f32.gmra.mxu0 %v3271
    %v3538 = vpop.f32.mrf.mxu0
    %v3539 = vadd.f32 0.0, %v3538
    %v3540 = vpop.f32.mrf.mxu0
    %3541 = vmatprep.mubr.f32.mxu0 0.0
    %3542 = vmatmul.mubr.f32.gmra.mxu0 %v3272
    %v3543 = vpop.f32.mrf.mxu0
    %v3544 = vadd.f32 0.0, %v3543
    %v3545 = vpop.f32.mrf.mxu0
    %3546 = vmatprep.mubr.f32.mxu0 0.0
    %3547 = vmatmul.mubr.f32.gmra.mxu0 %v3273
    %v3548 = vpop.f32.mrf.mxu0
    %v3549 = vadd.f32 0.0, %v3548
    %v3550 = vpop.f32.mrf.mxu0
    %3551 = vmatprep.mubr.f32.mxu0 0.0
    %3552 = vmatmul.mubr.f32.gmra.mxu0 %v3274
    %v3553 = vpop.f32.mrf.mxu0
    %v3554 = vadd.f32 0.0, %v3553
    %v3555 = vpop.f32.mrf.mxu0
    %3556 = vmatprep.mubr.f32.mxu0 0.0
    %3557 = vmatmul.mubr.f32.gmra.mxu0 %v3275
    %v3558 = vpop.f32.mrf.mxu0
    %v3559 = vadd.f32 0.0, %v3558
    %v3560 = vpop.f32.mrf.mxu0
    %3561 = vmatprep.mubr.f32.mxu0 0.0
    %3562 = vmatmul.mubr.f32.gmra.mxu0 %v3276
    %v3563 = vpop.f32.mrf.mxu0
    %v3564 = vadd.f32 0.0, %v3563
    %v3565 = vpop.f32.mrf.mxu0
    %3566 = vmatprep.mubr.f32.mxu0 0.0
    %3567 = vmatmul.mubr.f32.gmra.mxu0 %v3277
    %v3568 = vpop.f32.mrf.mxu0
    %v3569 = vadd.f32 0.0, %v3568
    %v3570 = vpop.f32.mrf.mxu0
    %3571 = vmatprep.mubr.f32.mxu0 0.0
    %3572 = vmatmul.mubr.f32.gmra.mxu0 %v3278
    %v3573 = vpop.f32.mrf.mxu0
    %v3574 = vadd.f32 0.0, %v3573
    %v3575 = vpop.f32.mrf.mxu0
    %3576 = vmatprep.mubr.f32.mxu0 0.0
    %3577 = vmatmul.mubr.f32.gmra.mxu0 %v3279
    %v3578 = vpop.f32.mrf.mxu0
    %v3579 = vadd.f32 0.0, %v3578
    %v3580 = vpop.f32.mrf.mxu0
    %3581 = vmatprep.mubr.f32.mxu0 0.0
    %3582 = vmatmul.mubr.f32.gmra.mxu0 %v3280
    %v3583 = vpop.f32.mrf.mxu0
    %v3584 = vadd.f32 0.0, %v3583
    %v3585 = vpop.f32.mrf.mxu0
    %3586 = vmatprep.mubr.f32.mxu0 0.0
    %3587 = vmatmul.mubr.f32.gmra.mxu0 %v3281
    %v3588 = vpop.f32.mrf.mxu0
    %v3589 = vadd.f32 0.0, %v3588
    %v3590 = vpop.f32.mrf.mxu0
    %3591 = vmatprep.mubr.f32.mxu0 0.0
    %3592 = vmatmul.mubr.f32.gmra.mxu0 %v3282
    %v3593 = vpop.f32.mrf.mxu0
    %v3594 = vadd.f32 0.0, %v3593
    %v3595 = vpop.f32.mrf.mxu0
    %3596 = vmatprep.mubr.f32.mxu0 0.0
    %3597 = vmatmul.mubr.f32.gmra.mxu0 %v3283
    %v3598 = vpop.f32.mrf.mxu0
    %v3599 = vadd.f32 0.0, %v3598
    %v3600 = vpop.f32.mrf.mxu0
    %3601 = vmatprep.mubr.f32.mxu0 0.0
    %3602 = vmatmul.mubr.f32.gmra.mxu0 %v3284
    %v3603 = vpop.f32.mrf.mxu0
    %v3604 = vadd.f32 0.0, %v3603
    %v3605 = vpop.f32.mrf.mxu0
    %3606 = vmatprep.mubr.f32.mxu0 0.0
    %3607 = vmatmul.mubr.f32.gmra.mxu0 %v3285
    %v3608 = vpop.f32.mrf.mxu0
    %v3609 = vadd.f32 0.0, %v3608
    %v3610 = vpop.f32.mrf.mxu0
    %3611 = vmatprep.mubr.f32.mxu0 0.0
    %3612 = vmatmul.mubr.f32.gmra.mxu0 %v3286
    %v3613 = vpop.f32.mrf.mxu0
    %v3614 = vadd.f32 0.0, %v3613
    %v3615 = vpop.f32.mrf.mxu0
    %3616 = vmatprep.mubr.f32.mxu0 0.0
    %3617 = vmatmul.mubr.f32.gmra.mxu0 %v3287
    %v3618 = vpop.f32.mrf.mxu0
    %v3619 = vadd.f32 0.0, %v3618
    %v3620 = vpop.f32.mrf.mxu0
    %3621 = vmatprep.mubr.f32.mxu0 0.0
    %3622 = vmatmul.mubr.f32.gmra.mxu0 %v3288
    %v3623 = vpop.f32.mrf.mxu0
    %v3624 = vadd.f32 0.0, %v3623
    %v3625 = vpop.f32.mrf.mxu0
    %3626 = vmatprep.mubr.f32.mxu0 0.0
    %3627 = vmatmul.mubr.f32.gmra.mxu0 %v3289
    %v3628 = vpop.f32.mrf.mxu0
    %v3629 = vadd.f32 0.0, %v3628
    %v3630 = vpop.f32.mrf.mxu0
    %3631 = vmatprep.mubr.f32.mxu0 0.0
    %3632 = vmatmul.mubr.f32.gmra.mxu0 %v3290
    %v3633 = vpop.f32.mrf.mxu0
    %v3634 = vadd.f32 0.0, %v3633
    %v3635 = vpop.f32.mrf.mxu0
    %3636 = vmatprep.mubr.f32.mxu0 0.0
    %3637 = vmatmul.mubr.f32.gmra.mxu0 %v3291
    %v3638 = vpop.f32.mrf.mxu0
    %v3639 = vadd.f32 0.0, %v3638
    %v3640 = vpop.f32.mrf.mxu0
    %3641 = vmatprep.mubr.f32.mxu0 0.0
    %3642 = vmatmul.mubr.f32.gmra.mxu0 %v3292
    %v3643 = vpop.f32.mrf.mxu0
    %v3644 = vadd.f32 0.0, %v3643
    %v3645 = vpop.f32.mrf.mxu0
    %3646 = vmatprep.mubr.f32.mxu0 0.0
    %3647 = vmatmul.mubr.f32.gmra.mxu0 %v3293
    %v3648 = vpop.f32.mrf.mxu0
    %v3649 = vadd.f32 0.0, %v3648
    %v3650 = vpop.f32.mrf.mxu0
    %3651 = vmatprep.mubr.f32.mxu0 0.0
    %3652 = vmatmul.mubr.f32.gmra.mxu0 %v3294
    %v3653 = vpop.f32.mrf.mxu0
    %v3654 = vadd.f32 0.0, %v3653
    %v3655 = vpop.f32.mrf.mxu0
    %3656 = vmatprep.mubr.f32.mxu0 0.0
    %3657 = vmatmul.mubr.f32.gmra.mxu0 %v3295
    %v3658 = vpop.f32.mrf.mxu0
    %v3659 = vadd.f32 0.0, %v3658
    %v3660 = vpop.f32.mrf.mxu0
    %3661 = vmatprep.mubr.f32.mxu0 0.0
    %3662 = vmatmul.mubr.f32.gmra.mxu0 %v3296
    %v3663 = vpop.f32.mrf.mxu0
    %v3664 = vadd.f32 0.0, %v3663
    %v3665 = vpop.f32.mrf.mxu0
    %3666 = vmatprep.mubr.f32.mxu0 0.0
    %3667 = vmatmul.mubr.f32.gmra.mxu0 %v3297
    %v3668 = vpop.f32.mrf.mxu0
    %v3669 = vadd.f32 0.0, %v3668
    %v3670 = vpop.f32.mrf.mxu0
    %3671 = vmatprep.mubr.f32.mxu0 0.0
    %3672 = vmatmul.mubr.f32.gmra.mxu0 %v3298
    %v3673 = vpop.f32.mrf.mxu0
    %v3674 = vadd.f32 0.0, %v3673
    %v3675 = vpop.f32.mrf.mxu0
    %3676 = vmatprep.mubr.f32.mxu0 0.0
    %3677 = vmatmul.mubr.f32.gmra.mxu0 %v3299
    %v3678 = vpop.f32.mrf.mxu0
    %v3679 = vadd.f32 0.0, %v3678
    %v3680 = vpop.f32.mrf.mxu0
    %3681 = vmatprep.mubr.f32.mxu0 0.0
    %3682 = vmatmul.mubr.f32.gmra.mxu0 %v3300
    %v3683 = vpop.f32.mrf.mxu0
    %v3684 = vadd.f32 0.0, %v3683
    %v3685 = vpop.f32.mrf.mxu0
    %3686 = vmatprep.mubr.f32.mxu0 0.0
    %3687 = vmatmul.mubr.f32.gmra.mxu0 %v3301
    %v3688 = vpop.f32.mrf.mxu0
    %v3689 = vadd.f32 0.0, %v3688
    %v3690 = vpop.f32.mrf.mxu0
    %3691 = vmatprep.mubr.f32.mxu0 0.0
    %3692 = vmatmul.mubr.f32.gmra.mxu0 %v3302
    %v3693 = vpop.f32.mrf.mxu0
    %v3694 = vadd.f32 0.0, %v3693
    %v3695 = vpop.f32.mrf.mxu0
    %3696 = vmatprep.mubr.f32.mxu0 0.0
    %3697 = vmatmul.mubr.f32.gmra.mxu0 %v3303
    %v3698 = vpop.f32.mrf.mxu0
    %v3699 = vadd.f32 0.0, %v3698
    %v3700 = vpop.f32.mrf.mxu0
    %3701 = vmatprep.mubr.f32.mxu0 0.0
    %3702 = vmatmul.mubr.f32.gmra.mxu0 %v3304
    %v3703 = vpop.f32.mrf.mxu0
    %v3704 = vadd.f32 0.0, %v3703
    %v3705 = vpop.f32.mrf.mxu0
    %3706 = vmatprep.mubr.f32.mxu0 0.0
    %3707 = vmatmul.mubr.f32.gmra.mxu0 %v3305
    %v3708 = vpop.f32.mrf.mxu0
    %v3709 = vadd.f32 0.0, %v3708
    %v3710 = vpop.f32.mrf.mxu0
    %3711 = vmatprep.mubr.f32.mxu0 0.0
    %3712 = vmatmul.mubr.f32.gmra.mxu0 %v3306
    %v3713 = vpop.f32.mrf.mxu0
    %v3714 = vadd.f32 0.0, %v3713
    %v3715 = vpop.f32.mrf.mxu0
    %3716 = vmatprep.mubr.f32.mxu0 0.0
    %3717 = vmatmul.mubr.f32.gmra.mxu0 %v3307
    %v3718 = vpop.f32.mrf.mxu0
    %v3719 = vadd.f32 0.0, %v3718
    %v3720 = vpop.f32.mrf.mxu0
    %3721 = vmatprep.mubr.f32.mxu0 0.0
    %3722 = vmatmul.mubr.f32.gmra.mxu0 %v3308
    %v3723 = vpop.f32.mrf.mxu0
    %v3724 = vadd.f32 0.0, %v3723
    %v3725 = vpop.f32.mrf.mxu0
    %3726 = vmatprep.mubr.f32.mxu0 0.0
    %3727 = vmatmul.mubr.f32.gmra.mxu0 %v3309
    %v3728 = vpop.f32.mrf.mxu0
    %v3729 = vadd.f32 0.0, %v3728
    %v3730 = vpop.f32.mrf.mxu0
    %3731 = vmatprep.mubr.f32.mxu0 0.0
    %3732 = vmatmul.mubr.f32.gmra.mxu0 %v3310
    %v3733 = vpop.f32.mrf.mxu0
    %v3734 = vadd.f32 0.0, %v3733
    %v3735 = vpop.f32.mrf.mxu0
    %3736 = vmatprep.mubr.f32.mxu0 0.0
    %3737 = vmatmul.mubr.f32.gmra.mxu0 %v3311
    %v3738 = vpop.f32.mrf.mxu0
    %v3739 = vadd.f32 0.0, %v3738
    %v3740 = vpop.f32.mrf.mxu0
    %3741 = vmatprep.mubr.f32.mxu0 0.0
    %3742 = vmatmul.mubr.f32.gmra.mxu0 %v3312
    %v3743 = vpop.f32.mrf.mxu0
    %v3744 = vadd.f32 0.0, %v3743
    %v3745 = vpop.f32.mrf.mxu0
    %3746 = vmatprep.mubr.f32.mxu0 0.0
    %3747 = vmatmul.mubr.f32.gmra.mxu0 %v3313
    %v3748 = vpop.f32.mrf.mxu0
    %v3749 = vadd.f32 0.0, %v3748
    %v3750 = vpop.f32.mrf.mxu0
    %3751 = vmatprep.mubr.f32.mxu0 0.0
    %3752 = vmatmul.mubr.f32.gmra.mxu0 %v3314
    %v3753 = vpop.f32.mrf.mxu0
    %v3754 = vadd.f32 0.0, %v3753
    %v3755 = vpop.f32.mrf.mxu0
    %3756 = vmatprep.mubr.f32.mxu0 0.0
    %3757 = vmatmul.mubr.f32.gmra.mxu0 %v3315
    %v3758 = vpop.f32.mrf.mxu0
    %v3759 = vadd.f32 0.0, %v3758
    %v3760 = vpop.f32.mrf.mxu0
    %3761 = vmatprep.mubr.f32.mxu0 0.0
    %3762 = vmatmul.mubr.f32.gmra.mxu0 %v3316
    %v3763 = vpop.f32.mrf.mxu0
    %v3764 = vadd.f32 0.0, %v3763
    %v3765 = vpop.f32.mrf.mxu0
    %3766 = vmatprep.mubr.f32.mxu0 0.0
    %3767 = vmatmul.mubr.f32.gmra.mxu0 %v3317
    %v3768 = vpop.f32.mrf.mxu0
    %v3769 = vadd.f32 0.0, %v3768
    %v3770 = vpop.f32.mrf.mxu0
    %3771 = vmatprep.mubr.f32.mxu0 0.0
    %3772 = vmatmul.mubr.f32.gmra.mxu0 %v3318
    %v3773 = vpop.f32.mrf.mxu0
    %v3774 = vadd.f32 0.0, %v3773
    %v3775 = vpop.f32.mrf.mxu0
    %3776 = vmatprep.mubr.f32.mxu0 0.0
    %3777 = vmatmul.mubr.f32.gmra.mxu0 %v3319
    %v3778 = vpop.f32.mrf.mxu0
    %v3779 = vadd.f32 0.0, %v3778
    %v3780 = vpop.f32.mrf.mxu0
    %3781 = vmatprep.mubr.f32.mxu0 0.0
    %3782 = vmatmul.mubr.f32.gmra.mxu0 %v3320
    %v3783 = vpop.f32.mrf.mxu0
    %v3784 = vadd.f32 0.0, %v3783
    %v3785 = vpop.f32.mrf.mxu0
    %3786 = vmatprep.mubr.f32.mxu0 0.0
    %3787 = vmatmul.mubr.f32.gmra.mxu0 %v3321
    %v3788 = vpop.f32.mrf.mxu0
    %v3789 = vadd.f32 0.0, %v3788
    %v3790 = vpop.f32.mrf.mxu0
    %3791 = vmatprep.mubr.f32.mxu0 0.0
    %3792 = vmatmul.mubr.f32.gmra.mxu0 %v3322
    %v3793 = vpop.f32.mrf.mxu0
    %v3794 = vadd.f32 0.0, %v3793
    %v3795 = vpop.f32.mrf.mxu0
    %3796 = vmatprep.mubr.f32.mxu0 0.0
    %3797 = vmatmul.mubr.f32.gmra.mxu0 %v3323
    %v3798 = vpop.f32.mrf.mxu0
    %v3799 = vadd.f32 0.0, %v3798
    %v3800 = vpop.f32.mrf.mxu0
    %3801 = vmatprep.mubr.f32.mxu0 0.0
    %3802 = vmatmul.mubr.f32.gmra.mxu0 %v3324
    %v3803 = vpop.f32.mrf.mxu0
    %v3804 = vadd.f32 0.0, %v3803
    %v3805 = vpop.f32.mrf.mxu0
    %3806 = vdwg.mxu0
    %v3807 = vadd.f32 %v2847, %v3409
    %v3808 = vadd.f32 %v2852, %v3414
    %v3809 = vadd.f32 %v2857, %v3419
    %v3810 = vadd.f32 %v2862, %v3424
    %v3811 = vadd.f32 %v2867, %v3429
    %v3812 = vadd.f32 %v2872, %v3434
    %v3813 = vadd.f32 %v2877, %v3439
    %v3814 = vadd.f32 %v2882, %v3444
    %v3815 = vadd.f32 %v2887, %v3449
    %v3816 = vadd.f32 %v2892, %v3454
    %v3817 = vadd.f32 %v2897, %v3459
    %v3818 = vadd.f32 %v2902, %v3464
    %v3819 = vadd.f32 %v2907, %v3469
    %v3820 = vadd.f32 %v2912, %v3474
    %v3821 = vadd.f32 %v2917, %v3479
    %v3822 = vadd.f32 %v2922, %v3484
    %v3823 = vadd.f32 %v2927, %v3489
    %v3824 = vadd.f32 %v2932, %v3494
    %v3825 = vadd.f32 %v2937, %v3499
    %v3826 = vadd.f32 %v2942, %v3504
    %v3827 = vadd.f32 %v2947, %v3509
    %v3828 = vadd.f32 %v2952, %v3514
    %v3829 = vadd.f32 %v2957, %v3519
    %v3830 = vadd.f32 %v2962, %v3524
    %v3831 = vadd.f32 %v2967, %v3529
    %v3832 = vadd.f32 %v2972, %v3534
    %v3833 = vadd.f32 %v2977, %v3539
    %v3834 = vadd.f32 %v2982, %v3544
    %v3835 = vadd.f32 %v2987, %v3549
    %v3836 = vadd.f32 %v2992, %v3554
    %v3837 = vadd.f32 %v2997, %v3559
    %v3838 = vadd.f32 %v3002, %v3564
    %v3839 = vadd.f32 %v3007, %v3569
    %v3840 = vadd.f32 %v3012, %v3574
    %v3841 = vadd.f32 %v3017, %v3579
    %v3842 = vadd.f32 %v3022, %v3584
    %v3843 = vadd.f32 %v3027, %v3589
    %v3844 = vadd.f32 %v3032, %v3594
    %v3845 = vadd.f32 %v3037, %v3599
    %v3846 = vadd.f32 %v3042, %v3604
    %v3847 = vadd.f32 %v3047, %v3609
    %v3848 = vadd.f32 %v3052, %v3614
    %v3849 = vadd.f32 %v3057, %v3619
    %v3850 = vadd.f32 %v3062, %v3624
    %v3851 = vadd.f32 %v3067, %v3629
    %v3852 = vadd.f32 %v3072, %v3634
    %v3853 = vadd.f32 %v3077, %v3639
    %v3854 = vadd.f32 %v3082, %v3644
    %v3855 = vadd.f32 %v3087, %v3649
    %v3856 = vadd.f32 %v3092, %v3654
    %v3857 = vadd.f32 %v3097, %v3659
    %v3858 = vadd.f32 %v3102, %v3664
    %v3859 = vadd.f32 %v3107, %v3669
    %v3860 = vadd.f32 %v3112, %v3674
    %v3861 = vadd.f32 %v3117, %v3679
    %v3862 = vadd.f32 %v3122, %v3684
    %v3863 = vadd.f32 %v3127, %v3689
    %v3864 = vadd.f32 %v3132, %v3694
    %v3865 = vadd.f32 %v3137, %v3699
    %v3866 = vadd.f32 %v3142, %v3704
    %v3867 = vadd.f32 %v3147, %v3709
    %v3868 = vadd.f32 %v3152, %v3714
    %v3869 = vadd.f32 %v3157, %v3719
    %v3870 = vadd.f32 %v3162, %v3724
    %v3871 = vadd.f32 %v3167, %v3729
    %v3872 = vadd.f32 %v3172, %v3734
    %v3873 = vadd.f32 %v3177, %v3739
    %v3874 = vadd.f32 %v3182, %v3744
    %v3875 = vadd.f32 %v3187, %v3749
    %v3876 = vadd.f32 %v3192, %v3754
    %v3877 = vadd.f32 %v3197, %v3759
    %v3878 = vadd.f32 %v3202, %v3764
    %v3879 = vadd.f32 %v3207, %v3769
    %v3880 = vadd.f32 %v3212, %v3774
    %v3881 = vadd.f32 %v3217, %v3779
    %v3882 = vadd.f32 %v3222, %v3784
    %v3883 = vadd.f32 %v3227, %v3789
    %v3884 = vadd.f32 %v3232, %v3794
    %v3885 = vadd.f32 %v3237, %v3799
    %v3886 = vadd.f32 %v3242, %v3804
    %v3887 = vld [vmem:[#allocation2 + $0x17] sm:$0xff]
    %v3888 = vld [vmem:[#allocation2 + $0x1f] sm:$0xff]
    %v3889 = vld [vmem:[#allocation2 + $0x27] sm:$0xff]
    %v3890 = vld [vmem:[#allocation2 + $0x2f] sm:$0xff]
    %v3891 = vld [vmem:[#allocation2 + $0x37] sm:$0xff]
    %v3892 = vld [vmem:[#allocation2 + $0x3f] sm:$0xff]
    %v3893 = vld [vmem:[#allocation2 + $0x47] sm:$0xff]
    %v3894 = vld [vmem:[#allocation2 + $0x4f] sm:$0xff]
    %v3895 = vld [vmem:[#allocation2 + $0x57] sm:$0xff]
    %v3896 = vld [vmem:[#allocation2 + $0x5f] sm:$0xff]
    %v3897 = vld [vmem:[#allocation2 + $0x67] sm:$0xff]
    %v3898 = vld [vmem:[#allocation2 + $0x6f] sm:$0xff]
    %v3899 = vld [vmem:[#allocation2 + $0x77] sm:$0xff]
    %v3900 = vld [vmem:[#allocation2 + $0x7f] sm:$0xff]
    %v3901 = vld [vmem:[#allocation2 + $0x87] sm:$0xff]
    %v3902 = vld [vmem:[#allocation2 + $0x8f] sm:$0xff]
    %v3903 = vld [vmem:[#allocation2 + $0x97] sm:$0xff]
    %v3904 = vld [vmem:[#allocation2 + $0x9f] sm:$0xff]
    %v3905 = vld [vmem:[#allocation2 + $0xa7] sm:$0xff]
    %v3906 = vld [vmem:[#allocation2 + $0xaf] sm:$0xff]
    %v3907 = vld [vmem:[#allocation2 + $0xb7] sm:$0xff]
    %v3908 = vld [vmem:[#allocation2 + $0xbf] sm:$0xff]
    %v3909 = vld [vmem:[#allocation2 + $0xc7] sm:$0xff]
    %v3910 = vld [vmem:[#allocation2 + $0xcf] sm:$0xff]
    %v3911 = vld [vmem:[#allocation2 + $0xd7] sm:$0xff]
    %v3912 = vld [vmem:[#allocation2 + $0xdf] sm:$0xff]
    %v3913 = vld [vmem:[#allocation2 + $0xe7] sm:$0xff]
    %v3914 = vld [vmem:[#allocation2 + $0xef] sm:$0xff]
    %v3915 = vld [vmem:[#allocation2 + $0xf7] sm:$0xff]
    %v3916 = vld [vmem:[#allocation2 + $0xff] sm:$0xff]
    %v3917 = vld [vmem:[#allocation2 + $0x107] sm:$0xff]
    %v3918 = vld [vmem:[#allocation2 + $0x10f] sm:$0xff]
    %v3919 = vld [vmem:[#allocation2 + $0x117] sm:$0xff]
    %v3920 = vld [vmem:[#allocation2 + $0x11f] sm:$0xff]
    %v3921 = vld [vmem:[#allocation2 + $0x127] sm:$0xff]
    %v3922 = vld [vmem:[#allocation2 + $0x12f] sm:$0xff]
    %v3923 = vld [vmem:[#allocation2 + $0x137] sm:$0xff]
    %v3924 = vld [vmem:[#allocation2 + $0x13f] sm:$0xff]
    %v3925 = vld [vmem:[#allocation2 + $0x147] sm:$0xff]
    %v3926 = vld [vmem:[#allocation2 + $0x14f] sm:$0xff]
    %v3927 = vld [vmem:[#allocation2 + $0x157] sm:$0xff]
    %v3928 = vld [vmem:[#allocation2 + $0x15f] sm:$0xff]
    %v3929 = vld [vmem:[#allocation2 + $0x167] sm:$0xff]
    %v3930 = vld [vmem:[#allocation2 + $0x16f] sm:$0xff]
    %v3931 = vld [vmem:[#allocation2 + $0x177] sm:$0xff]
    %v3932 = vld [vmem:[#allocation2 + $0x17f] sm:$0xff]
    %v3933 = vld [vmem:[#allocation2 + $0x187] sm:$0xff]
    %v3934 = vld [vmem:[#allocation2 + $0x18f] sm:$0xff]
    %v3935 = vld [vmem:[#allocation2 + $0x197] sm:$0xff]
    %v3936 = vld [vmem:[#allocation2 + $0x19f] sm:$0xff]
    %v3937 = vld [vmem:[#allocation2 + $0x1a7] sm:$0xff]
    %v3938 = vld [vmem:[#allocation2 + $0x1af] sm:$0xff]
    %v3939 = vld [vmem:[#allocation2 + $0x1b7] sm:$0xff]
    %v3940 = vld [vmem:[#allocation2 + $0x1bf] sm:$0xff]
    %v3941 = vld [vmem:[#allocation2 + $0x1c7] sm:$0xff]
    %v3942 = vld [vmem:[#allocation2 + $0x1cf] sm:$0xff]
    %v3943 = vld [vmem:[#allocation2 + $0x1d7] sm:$0xff]
    %v3944 = vld [vmem:[#allocation2 + $0x1df] sm:$0xff]
    %v3945 = vld [vmem:[#allocation2 + $0x1e7] sm:$0xff]
    %v3946 = vld [vmem:[#allocation2 + $0x1ef] sm:$0xff]
    %v3947 = vld [vmem:[#allocation2 + $0x1f7] sm:$0xff]
    %v3948 = vld [vmem:[#allocation2 + $0x1ff] sm:$0xff]
    %v3949 = vld [vmem:[#allocation2 + $0x207] sm:$0xff]
    %v3950 = vld [vmem:[#allocation2 + $0x20f] sm:$0xff]
    %v3951 = vld [vmem:[#allocation2 + $0x217] sm:$0xff]
    %v3952 = vld [vmem:[#allocation2 + $0x21f] sm:$0xff]
    %v3953 = vld [vmem:[#allocation2 + $0x227] sm:$0xff]
    %v3954 = vld [vmem:[#allocation2 + $0x22f] sm:$0xff]
    %v3955 = vld [vmem:[#allocation2 + $0x237] sm:$0xff]
    %v3956 = vld [vmem:[#allocation2 + $0x23f] sm:$0xff]
    %v3957 = vld [vmem:[#allocation2 + $0x247] sm:$0xff]
    %v3958 = vld [vmem:[#allocation2 + $0x24f] sm:$0xff]
    %v3959 = vld [vmem:[#allocation2 + $0x257] sm:$0xff]
    %v3960 = vld [vmem:[#allocation2 + $0x25f] sm:$0xff]
    %v3961 = vld [vmem:[#allocation2 + $0x267] sm:$0xff]
    %v3962 = vld [vmem:[#allocation2 + $0x26f] sm:$0xff]
    %v3963 = vld [vmem:[#allocation2 + $0x277] sm:$0xff]
    %v3964 = vld [vmem:[#allocation2 + $0x27f] sm:$0xff]
    %v3965 = vld [vmem:[#allocation2 + $0x287] sm:$0xff]
    %v3966 = vld [vmem:[#allocation2 + $0x28f] sm:$0xff]
    %s3967 = scalar_lea.vmem [#allocation8], 384
    %v3968 = vld [vmem:[%s3967] sm:$0xff]
    %v3969 = vld [vmem:[%s3967 + $0x8] sm:$0xff]
    %v3970 = vld [vmem:[%s3967 + $0x10] sm:$0xff]
    %v3971 = vld [vmem:[%s3967 + $0x18] sm:$0xff]
    %v3972 = vld [vmem:[%s3967 + $0x20] sm:$0xff]
    %v3973 = vld [vmem:[%s3967 + $0x28] sm:$0xff]
    %v3974 = vld [vmem:[%s3967 + $0x30] sm:$0xff]
    %v3975 = vld [vmem:[%s3967 + $0x38] sm:$0xff]
    %v3976 = vld [vmem:[%s3967 + $0x40] sm:$0xff]
    %v3977 = vld [vmem:[%s3967 + $0x48] sm:$0xff]
    %v3978 = vld [vmem:[%s3967 + $0x50] sm:$0xff]
    %v3979 = vld [vmem:[%s3967 + $0x58] sm:$0xff]
    %v3980 = vld [vmem:[%s3967 + $0x60] sm:$0xff]
    %v3981 = vld [vmem:[%s3967 + $0x68] sm:$0xff]
    %v3982 = vld [vmem:[%s3967 + $0x70] sm:$0xff]
    %v3983 = vld [vmem:[%s3967 + $0x78] sm:$0xff]
    %3984 = vmatprep.subr.mxu0 0.0
    %3985 = vmatpush1.msra.mxu0 %v3983
    %3986 = vmatprep.subr.mxu0 0.0
    %3987 = vmatpush1.msra.mxu0 %v3982
    %3988 = vmatprep.subr.mxu0 0.0
    %3989 = vmatpush1.msra.mxu0 %v3981
    %3990 = vmatprep.subr.mxu0 0.0
    %3991 = vmatpush1.msra.mxu0 %v3980
    %3992 = vmatprep.subr.mxu0 0.0
    %3993 = vmatpush1.msra.mxu0 %v3979
    %3994 = vmatprep.subr.mxu0 0.0
    %3995 = vmatpush1.msra.mxu0 %v3978
    %3996 = vmatprep.subr.mxu0 0.0
    %3997 = vmatpush1.msra.mxu0 %v3977
    %3998 = vmatprep.subr.mxu0 0.0
    %3999 = vmatpush1.msra.mxu0 %v3976
    %4000 = vmatprep.subr.mxu0 0.0
    %4001 = vmatpush1.msra.mxu0 %v3975
    %4002 = vmatprep.subr.mxu0 0.0
    %4003 = vmatpush1.msra.mxu0 %v3974
    %4004 = vmatprep.subr.mxu0 0.0
    %4005 = vmatpush1.msra.mxu0 %v3973
    %4006 = vmatprep.subr.mxu0 0.0
    %4007 = vmatpush1.msra.mxu0 %v3972
    %4008 = vmatprep.subr.mxu0 0.0
    %4009 = vmatpush1.msra.mxu0 %v3971
    %4010 = vmatprep.subr.mxu0 0.0
    %4011 = vmatpush1.msra.mxu0 %v3970
    %4012 = vmatprep.subr.mxu0 0.0
    %4013 = vmatpush1.msra.mxu0 %v3969
    %4014 = vmatprep.subr.mxu0 0.0
    %4015 = vmatpush1.msra.mxu0 %v3968
    %4016 = vmatprep.subr.mxu0 0.0
    %4017 = vmatpush2.msra.mxu0 0.0
    %4018 = vmatprep.subr.mxu0 0.0
    %4019 = vmatpush2.msra.mxu0 0.0
    %4020 = vmatprep.subr.mxu0 0.0
    %4021 = vmatpush2.msra.mxu0 0.0
    %4022 = vmatprep.subr.mxu0 0.0
    %4023 = vmatpush2.msra.mxu0 0.0
    %4024 = vmatprep.subr.mxu0 0.0
    %4025 = vmatpush2.msra.mxu0 0.0
    %4026 = vmatprep.subr.mxu0 0.0
    %4027 = vmatpush2.msra.mxu0 0.0
    %4028 = vmatprep.subr.mxu0 0.0
    %4029 = vmatpush2.msra.mxu0 0.0
    %4030 = vmatprep.subr.mxu0 0.0
    %4031 = vmatpush2.msra.mxu0 0.0
    %4032 = vmatprep.subr.mxu0 0.0
    %4033 = vmatpush2.msra.mxu0 0.0
    %4034 = vmatprep.subr.mxu0 0.0
    %4035 = vmatpush2.msra.mxu0 0.0
    %4036 = vmatprep.subr.mxu0 0.0
    %4037 = vmatpush2.msra.mxu0 0.0
    %4038 = vmatprep.subr.mxu0 0.0
    %4039 = vmatpush2.msra.mxu0 0.0
    %4040 = vmatprep.subr.mxu0 0.0
    %4041 = vmatpush2.msra.mxu0 0.0
    %4042 = vmatprep.subr.mxu0 0.0
    %4043 = vmatpush2.msra.mxu0 0.0
    %4044 = vmatprep.subr.mxu0 0.0
    %4045 = vmatpush2.msra.mxu0 0.0
    %4046 = vmatprep.subr.mxu0 0.0
    %4047 = vmatpush2.msra.mxu0 0.0
    %4048 = vmatprep.mubr.f32.mxu0 0.0
    %4049 = vmatmul.mubr.f32.gmra.mxu0 %v3887
    %v4050 = vpop.f32.mrf.mxu0
    %v4051 = vadd.f32 0.0, %v4050
    %v4052 = vpop.f32.mrf.mxu0
    %4053 = vmatprep.mubr.f32.mxu0 0.0
    %4054 = vmatmul.mubr.f32.gmra.mxu0 %v3888
    %v4055 = vpop.f32.mrf.mxu0
    %v4056 = vadd.f32 0.0, %v4055
    %v4057 = vpop.f32.mrf.mxu0
    %4058 = vmatprep.mubr.f32.mxu0 0.0
    %4059 = vmatmul.mubr.f32.gmra.mxu0 %v3889
    %v4060 = vpop.f32.mrf.mxu0
    %v4061 = vadd.f32 0.0, %v4060
    %v4062 = vpop.f32.mrf.mxu0
    %4063 = vmatprep.mubr.f32.mxu0 0.0
    %4064 = vmatmul.mubr.f32.gmra.mxu0 %v3890
    %v4065 = vpop.f32.mrf.mxu0
    %v4066 = vadd.f32 0.0, %v4065
    %v4067 = vpop.f32.mrf.mxu0
    %4068 = vmatprep.mubr.f32.mxu0 0.0
    %4069 = vmatmul.mubr.f32.gmra.mxu0 %v3891
    %v4070 = vpop.f32.mrf.mxu0
    %v4071 = vadd.f32 0.0, %v4070
    %v4072 = vpop.f32.mrf.mxu0
    %4073 = vmatprep.mubr.f32.mxu0 0.0
    %4074 = vmatmul.mubr.f32.gmra.mxu0 %v3892
    %v4075 = vpop.f32.mrf.mxu0
    %v4076 = vadd.f32 0.0, %v4075
    %v4077 = vpop.f32.mrf.mxu0
    %4078 = vmatprep.mubr.f32.mxu0 0.0
    %4079 = vmatmul.mubr.f32.gmra.mxu0 %v3893
    %v4080 = vpop.f32.mrf.mxu0
    %v4081 = vadd.f32 0.0, %v4080
    %v4082 = vpop.f32.mrf.mxu0
    %4083 = vmatprep.mubr.f32.mxu0 0.0
    %4084 = vmatmul.mubr.f32.gmra.mxu0 %v3894
    %v4085 = vpop.f32.mrf.mxu0
    %v4086 = vadd.f32 0.0, %v4085
    %v4087 = vpop.f32.mrf.mxu0
    %4088 = vmatprep.mubr.f32.mxu0 0.0
    %4089 = vmatmul.mubr.f32.gmra.mxu0 %v3895
    %v4090 = vpop.f32.mrf.mxu0
    %v4091 = vadd.f32 0.0, %v4090
    %v4092 = vpop.f32.mrf.mxu0
    %4093 = vmatprep.mubr.f32.mxu0 0.0
    %4094 = vmatmul.mubr.f32.gmra.mxu0 %v3896
    %v4095 = vpop.f32.mrf.mxu0
    %v4096 = vadd.f32 0.0, %v4095
    %v4097 = vpop.f32.mrf.mxu0
    %4098 = vmatprep.mubr.f32.mxu0 0.0
    %4099 = vmatmul.mubr.f32.gmra.mxu0 %v3897
    %v4100 = vpop.f32.mrf.mxu0
    %v4101 = vadd.f32 0.0, %v4100
    %v4102 = vpop.f32.mrf.mxu0
    %4103 = vmatprep.mubr.f32.mxu0 0.0
    %4104 = vmatmul.mubr.f32.gmra.mxu0 %v3898
    %v4105 = vpop.f32.mrf.mxu0
    %v4106 = vadd.f32 0.0, %v4105
    %v4107 = vpop.f32.mrf.mxu0
    %4108 = vmatprep.mubr.f32.mxu0 0.0
    %4109 = vmatmul.mubr.f32.gmra.mxu0 %v3899
    %v4110 = vpop.f32.mrf.mxu0
    %v4111 = vadd.f32 0.0, %v4110
    %v4112 = vpop.f32.mrf.mxu0
    %4113 = vmatprep.mubr.f32.mxu0 0.0
    %4114 = vmatmul.mubr.f32.gmra.mxu0 %v3900
    %v4115 = vpop.f32.mrf.mxu0
    %v4116 = vadd.f32 0.0, %v4115
    %v4117 = vpop.f32.mrf.mxu0
    %4118 = vmatprep.mubr.f32.mxu0 0.0
    %4119 = vmatmul.mubr.f32.gmra.mxu0 %v3901
    %v4120 = vpop.f32.mrf.mxu0
    %v4121 = vadd.f32 0.0, %v4120
    %v4122 = vpop.f32.mrf.mxu0
    %4123 = vmatprep.mubr.f32.mxu0 0.0
    %4124 = vmatmul.mubr.f32.gmra.mxu0 %v3902
    %v4125 = vpop.f32.mrf.mxu0
    %v4126 = vadd.f32 0.0, %v4125
    %v4127 = vpop.f32.mrf.mxu0
    %4128 = vmatprep.mubr.f32.mxu0 0.0
    %4129 = vmatmul.mubr.f32.gmra.mxu0 %v3903
    %v4130 = vpop.f32.mrf.mxu0
    %v4131 = vadd.f32 0.0, %v4130
    %v4132 = vpop.f32.mrf.mxu0
    %4133 = vmatprep.mubr.f32.mxu0 0.0
    %4134 = vmatmul.mubr.f32.gmra.mxu0 %v3904
    %v4135 = vpop.f32.mrf.mxu0
    %v4136 = vadd.f32 0.0, %v4135
    %v4137 = vpop.f32.mrf.mxu0
    %4138 = vmatprep.mubr.f32.mxu0 0.0
    %4139 = vmatmul.mubr.f32.gmra.mxu0 %v3905
    %v4140 = vpop.f32.mrf.mxu0
    %v4141 = vadd.f32 0.0, %v4140
    %v4142 = vpop.f32.mrf.mxu0
    %4143 = vmatprep.mubr.f32.mxu0 0.0
    %4144 = vmatmul.mubr.f32.gmra.mxu0 %v3906
    %v4145 = vpop.f32.mrf.mxu0
    %v4146 = vadd.f32 0.0, %v4145
    %v4147 = vpop.f32.mrf.mxu0
    %4148 = vmatprep.mubr.f32.mxu0 0.0
    %4149 = vmatmul.mubr.f32.gmra.mxu0 %v3907
    %v4150 = vpop.f32.mrf.mxu0
    %v4151 = vadd.f32 0.0, %v4150
    %v4152 = vpop.f32.mrf.mxu0
    %4153 = vmatprep.mubr.f32.mxu0 0.0
    %4154 = vmatmul.mubr.f32.gmra.mxu0 %v3908
    %v4155 = vpop.f32.mrf.mxu0
    %v4156 = vadd.f32 0.0, %v4155
    %v4157 = vpop.f32.mrf.mxu0
    %4158 = vmatprep.mubr.f32.mxu0 0.0
    %4159 = vmatmul.mubr.f32.gmra.mxu0 %v3909
    %v4160 = vpop.f32.mrf.mxu0
    %v4161 = vadd.f32 0.0, %v4160
    %v4162 = vpop.f32.mrf.mxu0
    %4163 = vmatprep.mubr.f32.mxu0 0.0
    %4164 = vmatmul.mubr.f32.gmra.mxu0 %v3910
    %v4165 = vpop.f32.mrf.mxu0
    %v4166 = vadd.f32 0.0, %v4165
    %v4167 = vpop.f32.mrf.mxu0
    %4168 = vmatprep.mubr.f32.mxu0 0.0
    %4169 = vmatmul.mubr.f32.gmra.mxu0 %v3911
    %v4170 = vpop.f32.mrf.mxu0
    %v4171 = vadd.f32 0.0, %v4170
    %v4172 = vpop.f32.mrf.mxu0
    %4173 = vmatprep.mubr.f32.mxu0 0.0
    %4174 = vmatmul.mubr.f32.gmra.mxu0 %v3912
    %v4175 = vpop.f32.mrf.mxu0
    %v4176 = vadd.f32 0.0, %v4175
    %v4177 = vpop.f32.mrf.mxu0
    %4178 = vmatprep.mubr.f32.mxu0 0.0
    %4179 = vmatmul.mubr.f32.gmra.mxu0 %v3913
    %v4180 = vpop.f32.mrf.mxu0
    %v4181 = vadd.f32 0.0, %v4180
    %v4182 = vpop.f32.mrf.mxu0
    %4183 = vmatprep.mubr.f32.mxu0 0.0
    %4184 = vmatmul.mubr.f32.gmra.mxu0 %v3914
    %v4185 = vpop.f32.mrf.mxu0
    %v4186 = vadd.f32 0.0, %v4185
    %v4187 = vpop.f32.mrf.mxu0
    %4188 = vmatprep.mubr.f32.mxu0 0.0
    %4189 = vmatmul.mubr.f32.gmra.mxu0 %v3915
    %v4190 = vpop.f32.mrf.mxu0
    %v4191 = vadd.f32 0.0, %v4190
    %v4192 = vpop.f32.mrf.mxu0
    %4193 = vmatprep.mubr.f32.mxu0 0.0
    %4194 = vmatmul.mubr.f32.gmra.mxu0 %v3916
    %v4195 = vpop.f32.mrf.mxu0
    %v4196 = vadd.f32 0.0, %v4195
    %v4197 = vpop.f32.mrf.mxu0
    %4198 = vmatprep.mubr.f32.mxu0 0.0
    %4199 = vmatmul.mubr.f32.gmra.mxu0 %v3917
    %v4200 = vpop.f32.mrf.mxu0
    %v4201 = vadd.f32 0.0, %v4200
    %v4202 = vpop.f32.mrf.mxu0
    %4203 = vmatprep.mubr.f32.mxu0 0.0
    %4204 = vmatmul.mubr.f32.gmra.mxu0 %v3918
    %v4205 = vpop.f32.mrf.mxu0
    %v4206 = vadd.f32 0.0, %v4205
    %v4207 = vpop.f32.mrf.mxu0
    %4208 = vmatprep.mubr.f32.mxu0 0.0
    %4209 = vmatmul.mubr.f32.gmra.mxu0 %v3919
    %v4210 = vpop.f32.mrf.mxu0
    %v4211 = vadd.f32 0.0, %v4210
    %v4212 = vpop.f32.mrf.mxu0
    %4213 = vmatprep.mubr.f32.mxu0 0.0
    %4214 = vmatmul.mubr.f32.gmra.mxu0 %v3920
    %v4215 = vpop.f32.mrf.mxu0
    %v4216 = vadd.f32 0.0, %v4215
    %v4217 = vpop.f32.mrf.mxu0
    %4218 = vmatprep.mubr.f32.mxu0 0.0
    %4219 = vmatmul.mubr.f32.gmra.mxu0 %v3921
    %v4220 = vpop.f32.mrf.mxu0
    %v4221 = vadd.f32 0.0, %v4220
    %v4222 = vpop.f32.mrf.mxu0
    %4223 = vmatprep.mubr.f32.mxu0 0.0
    %4224 = vmatmul.mubr.f32.gmra.mxu0 %v3922
    %v4225 = vpop.f32.mrf.mxu0
    %v4226 = vadd.f32 0.0, %v4225
    %v4227 = vpop.f32.mrf.mxu0
    %4228 = vmatprep.mubr.f32.mxu0 0.0
    %4229 = vmatmul.mubr.f32.gmra.mxu0 %v3923
    %v4230 = vpop.f32.mrf.mxu0
    %v4231 = vadd.f32 0.0, %v4230
    %v4232 = vpop.f32.mrf.mxu0
    %4233 = vmatprep.mubr.f32.mxu0 0.0
    %4234 = vmatmul.mubr.f32.gmra.mxu0 %v3924
    %v4235 = vpop.f32.mrf.mxu0
    %v4236 = vadd.f32 0.0, %v4235
    %v4237 = vpop.f32.mrf.mxu0
    %4238 = vmatprep.mubr.f32.mxu0 0.0
    %4239 = vmatmul.mubr.f32.gmra.mxu0 %v3925
    %v4240 = vpop.f32.mrf.mxu0
    %v4241 = vadd.f32 0.0, %v4240
    %v4242 = vpop.f32.mrf.mxu0
    %4243 = vmatprep.mubr.f32.mxu0 0.0
    %4244 = vmatmul.mubr.f32.gmra.mxu0 %v3926
    %v4245 = vpop.f32.mrf.mxu0
    %v4246 = vadd.f32 0.0, %v4245
    %v4247 = vpop.f32.mrf.mxu0
    %4248 = vmatprep.mubr.f32.mxu0 0.0
    %4249 = vmatmul.mubr.f32.gmra.mxu0 %v3927
    %v4250 = vpop.f32.mrf.mxu0
    %v4251 = vadd.f32 0.0, %v4250
    %v4252 = vpop.f32.mrf.mxu0
    %4253 = vmatprep.mubr.f32.mxu0 0.0
    %4254 = vmatmul.mubr.f32.gmra.mxu0 %v3928
    %v4255 = vpop.f32.mrf.mxu0
    %v4256 = vadd.f32 0.0, %v4255
    %v4257 = vpop.f32.mrf.mxu0
    %4258 = vmatprep.mubr.f32.mxu0 0.0
    %4259 = vmatmul.mubr.f32.gmra.mxu0 %v3929
    %v4260 = vpop.f32.mrf.mxu0
    %v4261 = vadd.f32 0.0, %v4260
    %v4262 = vpop.f32.mrf.mxu0
    %4263 = vmatprep.mubr.f32.mxu0 0.0
    %4264 = vmatmul.mubr.f32.gmra.mxu0 %v3930
    %v4265 = vpop.f32.mrf.mxu0
    %v4266 = vadd.f32 0.0, %v4265
    %v4267 = vpop.f32.mrf.mxu0
    %4268 = vmatprep.mubr.f32.mxu0 0.0
    %4269 = vmatmul.mubr.f32.gmra.mxu0 %v3931
    %v4270 = vpop.f32.mrf.mxu0
    %v4271 = vadd.f32 0.0, %v4270
    %v4272 = vpop.f32.mrf.mxu0
    %4273 = vmatprep.mubr.f32.mxu0 0.0
    %4274 = vmatmul.mubr.f32.gmra.mxu0 %v3932
    %v4275 = vpop.f32.mrf.mxu0
    %v4276 = vadd.f32 0.0, %v4275
    %v4277 = vpop.f32.mrf.mxu0
    %4278 = vmatprep.mubr.f32.mxu0 0.0
    %4279 = vmatmul.mubr.f32.gmra.mxu0 %v3933
    %v4280 = vpop.f32.mrf.mxu0
    %v4281 = vadd.f32 0.0, %v4280
    %v4282 = vpop.f32.mrf.mxu0
    %4283 = vmatprep.mubr.f32.mxu0 0.0
    %4284 = vmatmul.mubr.f32.gmra.mxu0 %v3934
    %v4285 = vpop.f32.mrf.mxu0
    %v4286 = vadd.f32 0.0, %v4285
    %v4287 = vpop.f32.mrf.mxu0
    %4288 = vmatprep.mubr.f32.mxu0 0.0
    %4289 = vmatmul.mubr.f32.gmra.mxu0 %v3935
    %v4290 = vpop.f32.mrf.mxu0
    %v4291 = vadd.f32 0.0, %v4290
    %v4292 = vpop.f32.mrf.mxu0
    %4293 = vmatprep.mubr.f32.mxu0 0.0
    %4294 = vmatmul.mubr.f32.gmra.mxu0 %v3936
    %v4295 = vpop.f32.mrf.mxu0
    %v4296 = vadd.f32 0.0, %v4295
    %v4297 = vpop.f32.mrf.mxu0
    %4298 = vmatprep.mubr.f32.mxu0 0.0
    %4299 = vmatmul.mubr.f32.gmra.mxu0 %v3937
    %v4300 = vpop.f32.mrf.mxu0
    %v4301 = vadd.f32 0.0, %v4300
    %v4302 = vpop.f32.mrf.mxu0
    %4303 = vmatprep.mubr.f32.mxu0 0.0
    %4304 = vmatmul.mubr.f32.gmra.mxu0 %v3938
    %v4305 = vpop.f32.mrf.mxu0
    %v4306 = vadd.f32 0.0, %v4305
    %v4307 = vpop.f32.mrf.mxu0
    %4308 = vmatprep.mubr.f32.mxu0 0.0
    %4309 = vmatmul.mubr.f32.gmra.mxu0 %v3939
    %v4310 = vpop.f32.mrf.mxu0
    %v4311 = vadd.f32 0.0, %v4310
    %v4312 = vpop.f32.mrf.mxu0
    %4313 = vmatprep.mubr.f32.mxu0 0.0
    %4314 = vmatmul.mubr.f32.gmra.mxu0 %v3940
    %v4315 = vpop.f32.mrf.mxu0
    %v4316 = vadd.f32 0.0, %v4315
    %v4317 = vpop.f32.mrf.mxu0
    %4318 = vmatprep.mubr.f32.mxu0 0.0
    %4319 = vmatmul.mubr.f32.gmra.mxu0 %v3941
    %v4320 = vpop.f32.mrf.mxu0
    %v4321 = vadd.f32 0.0, %v4320
    %v4322 = vpop.f32.mrf.mxu0
    %4323 = vmatprep.mubr.f32.mxu0 0.0
    %4324 = vmatmul.mubr.f32.gmra.mxu0 %v3942
    %v4325 = vpop.f32.mrf.mxu0
    %v4326 = vadd.f32 0.0, %v4325
    %v4327 = vpop.f32.mrf.mxu0
    %4328 = vmatprep.mubr.f32.mxu0 0.0
    %4329 = vmatmul.mubr.f32.gmra.mxu0 %v3943
    %v4330 = vpop.f32.mrf.mxu0
    %v4331 = vadd.f32 0.0, %v4330
    %v4332 = vpop.f32.mrf.mxu0
    %4333 = vmatprep.mubr.f32.mxu0 0.0
    %4334 = vmatmul.mubr.f32.gmra.mxu0 %v3944
    %v4335 = vpop.f32.mrf.mxu0
    %v4336 = vadd.f32 0.0, %v4335
    %v4337 = vpop.f32.mrf.mxu0
    %4338 = vmatprep.mubr.f32.mxu0 0.0
    %4339 = vmatmul.mubr.f32.gmra.mxu0 %v3945
    %v4340 = vpop.f32.mrf.mxu0
    %v4341 = vadd.f32 0.0, %v4340
    %v4342 = vpop.f32.mrf.mxu0
    %4343 = vmatprep.mubr.f32.mxu0 0.0
    %4344 = vmatmul.mubr.f32.gmra.mxu0 %v3946
    %v4345 = vpop.f32.mrf.mxu0
    %v4346 = vadd.f32 0.0, %v4345
    %v4347 = vpop.f32.mrf.mxu0
    %4348 = vmatprep.mubr.f32.mxu0 0.0
    %4349 = vmatmul.mubr.f32.gmra.mxu0 %v3947
    %v4350 = vpop.f32.mrf.mxu0
    %v4351 = vadd.f32 0.0, %v4350
    %v4352 = vpop.f32.mrf.mxu0
    %4353 = vmatprep.mubr.f32.mxu0 0.0
    %4354 = vmatmul.mubr.f32.gmra.mxu0 %v3948
    %v4355 = vpop.f32.mrf.mxu0
    %v4356 = vadd.f32 0.0, %v4355
    %v4357 = vpop.f32.mrf.mxu0
    %4358 = vmatprep.mubr.f32.mxu0 0.0
    %4359 = vmatmul.mubr.f32.gmra.mxu0 %v3949
    %v4360 = vpop.f32.mrf.mxu0
    %v4361 = vadd.f32 0.0, %v4360
    %v4362 = vpop.f32.mrf.mxu0
    %4363 = vmatprep.mubr.f32.mxu0 0.0
    %4364 = vmatmul.mubr.f32.gmra.mxu0 %v3950
    %v4365 = vpop.f32.mrf.mxu0
    %v4366 = vadd.f32 0.0, %v4365
    %v4367 = vpop.f32.mrf.mxu0
    %4368 = vmatprep.mubr.f32.mxu0 0.0
    %4369 = vmatmul.mubr.f32.gmra.mxu0 %v3951
    %v4370 = vpop.f32.mrf.mxu0
    %v4371 = vadd.f32 0.0, %v4370
    %v4372 = vpop.f32.mrf.mxu0
    %4373 = vmatprep.mubr.f32.mxu0 0.0
    %4374 = vmatmul.mubr.f32.gmra.mxu0 %v3952
    %v4375 = vpop.f32.mrf.mxu0
    %v4376 = vadd.f32 0.0, %v4375
    %v4377 = vpop.f32.mrf.mxu0
    %4378 = vmatprep.mubr.f32.mxu0 0.0
    %4379 = vmatmul.mubr.f32.gmra.mxu0 %v3953
    %v4380 = vpop.f32.mrf.mxu0
    %v4381 = vadd.f32 0.0, %v4380
    %v4382 = vpop.f32.mrf.mxu0
    %4383 = vmatprep.mubr.f32.mxu0 0.0
    %4384 = vmatmul.mubr.f32.gmra.mxu0 %v3954
    %v4385 = vpop.f32.mrf.mxu0
    %v4386 = vadd.f32 0.0, %v4385
    %v4387 = vpop.f32.mrf.mxu0
    %4388 = vmatprep.mubr.f32.mxu0 0.0
    %4389 = vmatmul.mubr.f32.gmra.mxu0 %v3955
    %v4390 = vpop.f32.mrf.mxu0
    %v4391 = vadd.f32 0.0, %v4390
    %v4392 = vpop.f32.mrf.mxu0
    %4393 = vmatprep.mubr.f32.mxu0 0.0
    %4394 = vmatmul.mubr.f32.gmra.mxu0 %v3956
    %v4395 = vpop.f32.mrf.mxu0
    %v4396 = vadd.f32 0.0, %v4395
    %v4397 = vpop.f32.mrf.mxu0
    %4398 = vmatprep.mubr.f32.mxu0 0.0
    %4399 = vmatmul.mubr.f32.gmra.mxu0 %v3957
    %v4400 = vpop.f32.mrf.mxu0
    %v4401 = vadd.f32 0.0, %v4400
    %v4402 = vpop.f32.mrf.mxu0
    %4403 = vmatprep.mubr.f32.mxu0 0.0
    %4404 = vmatmul.mubr.f32.gmra.mxu0 %v3958
    %v4405 = vpop.f32.mrf.mxu0
    %v4406 = vadd.f32 0.0, %v4405
    %v4407 = vpop.f32.mrf.mxu0
    %4408 = vmatprep.mubr.f32.mxu0 0.0
    %4409 = vmatmul.mubr.f32.gmra.mxu0 %v3959
    %v4410 = vpop.f32.mrf.mxu0
    %v4411 = vadd.f32 0.0, %v4410
    %v4412 = vpop.f32.mrf.mxu0
    %4413 = vmatprep.mubr.f32.mxu0 0.0
    %4414 = vmatmul.mubr.f32.gmra.mxu0 %v3960
    %v4415 = vpop.f32.mrf.mxu0
    %v4416 = vadd.f32 0.0, %v4415
    %v4417 = vpop.f32.mrf.mxu0
    %4418 = vmatprep.mubr.f32.mxu0 0.0
    %4419 = vmatmul.mubr.f32.gmra.mxu0 %v3961
    %v4420 = vpop.f32.mrf.mxu0
    %v4421 = vadd.f32 0.0, %v4420
    %v4422 = vpop.f32.mrf.mxu0
    %4423 = vmatprep.mubr.f32.mxu0 0.0
    %4424 = vmatmul.mubr.f32.gmra.mxu0 %v3962
    %v4425 = vpop.f32.mrf.mxu0
    %v4426 = vadd.f32 0.0, %v4425
    %v4427 = vpop.f32.mrf.mxu0
    %4428 = vmatprep.mubr.f32.mxu0 0.0
    %4429 = vmatmul.mubr.f32.gmra.mxu0 %v3963
    %v4430 = vpop.f32.mrf.mxu0
    %v4431 = vadd.f32 0.0, %v4430
    %v4432 = vpop.f32.mrf.mxu0
    %4433 = vmatprep.mubr.f32.mxu0 0.0
    %4434 = vmatmul.mubr.f32.gmra.mxu0 %v3964
    %v4435 = vpop.f32.mrf.mxu0
    %v4436 = vadd.f32 0.0, %v4435
    %v4437 = vpop.f32.mrf.mxu0
    %4438 = vmatprep.mubr.f32.mxu0 0.0
    %4439 = vmatmul.mubr.f32.gmra.mxu0 %v3965
    %v4440 = vpop.f32.mrf.mxu0
    %v4441 = vadd.f32 0.0, %v4440
    %v4442 = vpop.f32.mrf.mxu0
    %4443 = vmatprep.mubr.f32.mxu0 0.0
    %4444 = vmatmul.mubr.f32.gmra.mxu0 %v3966
    %v4445 = vpop.f32.mrf.mxu0
    %v4446 = vadd.f32 0.0, %v4445
    %v4447 = vpop.f32.mrf.mxu0
    %4448 = vdwg.mxu0
    %v4449 = vadd.f32 %v3807, %v4051
    %v4450 = vadd.f32 %v3808, %v4056
    %v4451 = vadd.f32 %v3809, %v4061
    %v4452 = vadd.f32 %v3810, %v4066
    %v4453 = vadd.f32 %v3811, %v4071
    %v4454 = vadd.f32 %v3812, %v4076
    %v4455 = vadd.f32 %v3813, %v4081
    %v4456 = vadd.f32 %v3814, %v4086
    %v4457 = vadd.f32 %v3815, %v4091
    %v4458 = vadd.f32 %v3816, %v4096
    %v4459 = vadd.f32 %v3817, %v4101
    %v4460 = vadd.f32 %v3818, %v4106
    %v4461 = vadd.f32 %v3819, %v4111
    %v4462 = vadd.f32 %v3820, %v4116
    %v4463 = vadd.f32 %v3821, %v4121
    %v4464 = vadd.f32 %v3822, %v4126
    %v4465 = vadd.f32 %v3823, %v4131
    %v4466 = vadd.f32 %v3824, %v4136
    %v4467 = vadd.f32 %v3825, %v4141
    %v4468 = vadd.f32 %v3826, %v4146
    %v4469 = vadd.f32 %v3827, %v4151
    %v4470 = vadd.f32 %v3828, %v4156
    %v4471 = vadd.f32 %v3829, %v4161
    %v4472 = vadd.f32 %v3830, %v4166
    %v4473 = vadd.f32 %v3831, %v4171
    %v4474 = vadd.f32 %v3832, %v4176
    %v4475 = vadd.f32 %v3833, %v4181
    %v4476 = vadd.f32 %v3834, %v4186
    %v4477 = vadd.f32 %v3835, %v4191
    %v4478 = vadd.f32 %v3836, %v4196
    %v4479 = vadd.f32 %v3837, %v4201
    %v4480 = vadd.f32 %v3838, %v4206
    %v4481 = vadd.f32 %v3839, %v4211
    %v4482 = vadd.f32 %v3840, %v4216
    %v4483 = vadd.f32 %v3841, %v4221
    %v4484 = vadd.f32 %v3842, %v4226
    %v4485 = vadd.f32 %v3843, %v4231
    %v4486 = vadd.f32 %v3844, %v4236
    %v4487 = vadd.f32 %v3845, %v4241
    %v4488 = vadd.f32 %v3846, %v4246
    %v4489 = vadd.f32 %v3847, %v4251
    %v4490 = vadd.f32 %v3848, %v4256
    %v4491 = vadd.f32 %v3849, %v4261
    %v4492 = vadd.f32 %v3850, %v4266
    %v4493 = vadd.f32 %v3851, %v4271
    %v4494 = vadd.f32 %v3852, %v4276
    %v4495 = vadd.f32 %v3853, %v4281
    %v4496 = vadd.f32 %v3854, %v4286
    %v4497 = vadd.f32 %v3855, %v4291
    %v4498 = vadd.f32 %v3856, %v4296
    %v4499 = vadd.f32 %v3857, %v4301
    %v4500 = vadd.f32 %v3858, %v4306
    %v4501 = vadd.f32 %v3859, %v4311
    %v4502 = vadd.f32 %v3860, %v4316
    %v4503 = vadd.f32 %v3861, %v4321
    %v4504 = vadd.f32 %v3862, %v4326
    %v4505 = vadd.f32 %v3863, %v4331
    %v4506 = vadd.f32 %v3864, %v4336
    %v4507 = vadd.f32 %v3865, %v4341
    %v4508 = vadd.f32 %v3866, %v4346
    %v4509 = vadd.f32 %v3867, %v4351
    %v4510 = vadd.f32 %v3868, %v4356
    %v4511 = vadd.f32 %v3869, %v4361
    %v4512 = vadd.f32 %v3870, %v4366
    %v4513 = vadd.f32 %v3871, %v4371
    %v4514 = vadd.f32 %v3872, %v4376
    %v4515 = vadd.f32 %v3873, %v4381
    %v4516 = vadd.f32 %v3874, %v4386
    %v4517 = vadd.f32 %v3875, %v4391
    %v4518 = vadd.f32 %v3876, %v4396
    %v4519 = vadd.f32 %v3877, %v4401
    %v4520 = vadd.f32 %v3878, %v4406
    %v4521 = vadd.f32 %v3879, %v4411
    %v4522 = vadd.f32 %v3880, %v4416
    %v4523 = vadd.f32 %v3881, %v4421
    %v4524 = vadd.f32 %v3882, %v4426
    %v4525 = vadd.f32 %v3883, %v4431
    %v4526 = vadd.f32 %v3884, %v4436
    %v4527 = vadd.f32 %v3885, %v4441
    %v4528 = vadd.f32 %v3886, %v4446
    %v4529 = vld [vmem:[#allocation2 + $0x18] sm:$0xff]
    %v4530 = vld [vmem:[#allocation2 + $0x20] sm:$0xff]
    %v4531 = vld [vmem:[#allocation2 + $0x28] sm:$0xff]
    %v4532 = vld [vmem:[#allocation2 + $0x30] sm:$0xff]
    %v4533 = vld [vmem:[#allocation2 + $0x38] sm:$0xff]
    %v4534 = vld [vmem:[#allocation2 + $0x40] sm:$0xff]
    %v4535 = vld [vmem:[#allocation2 + $0x48] sm:$0xff]
    %v4536 = vld [vmem:[#allocation2 + $0x50] sm:$0xff]
    %v4537 = vld [vmem:[#allocation2 + $0x58] sm:$0xff]
    %v4538 = vld [vmem:[#allocation2 + $0x60] sm:$0xff]
    %v4539 = vld [vmem:[#allocation2 + $0x68] sm:$0xff]
    %v4540 = vld [vmem:[#allocation2 + $0x70] sm:$0xff]
    %v4541 = vld [vmem:[#allocation2 + $0x78] sm:$0xff]
    %v4542 = vld [vmem:[#allocation2 + $0x80] sm:$0xff]
    %v4543 = vld [vmem:[#allocation2 + $0x88] sm:$0xff]
    %v4544 = vld [vmem:[#allocation2 + $0x90] sm:$0xff]
    %v4545 = vld [vmem:[#allocation2 + $0x98] sm:$0xff]
    %v4546 = vld [vmem:[#allocation2 + $0xa0] sm:$0xff]
    %v4547 = vld [vmem:[#allocation2 + $0xa8] sm:$0xff]
    %v4548 = vld [vmem:[#allocation2 + $0xb0] sm:$0xff]
    %v4549 = vld [vmem:[#allocation2 + $0xb8] sm:$0xff]
    %v4550 = vld [vmem:[#allocation2 + $0xc0] sm:$0xff]
    %v4551 = vld [vmem:[#allocation2 + $0xc8] sm:$0xff]
    %v4552 = vld [vmem:[#allocation2 + $0xd0] sm:$0xff]
    %v4553 = vld [vmem:[#allocation2 + $0xd8] sm:$0xff]
    %v4554 = vld [vmem:[#allocation2 + $0xe0] sm:$0xff]
    %v4555 = vld [vmem:[#allocation2 + $0xe8] sm:$0xff]
    %v4556 = vld [vmem:[#allocation2 + $0xf0] sm:$0xff]
    %v4557 = vld [vmem:[#allocation2 + $0xf8] sm:$0xff]
    %v4558 = vld [vmem:[#allocation2 + $0x100] sm:$0xff]
    %v4559 = vld [vmem:[#allocation2 + $0x108] sm:$0xff]
    %v4560 = vld [vmem:[#allocation2 + $0x110] sm:$0xff]
    %v4561 = vld [vmem:[#allocation2 + $0x118] sm:$0xff]
    %v4562 = vld [vmem:[#allocation2 + $0x120] sm:$0xff]
    %v4563 = vld [vmem:[#allocation2 + $0x128] sm:$0xff]
    %v4564 = vld [vmem:[#allocation2 + $0x130] sm:$0xff]
    %v4565 = vld [vmem:[#allocation2 + $0x138] sm:$0xff]
    %v4566 = vld [vmem:[#allocation2 + $0x140] sm:$0xff]
    %v4567 = vld [vmem:[#allocation2 + $0x148] sm:$0xff]
    %v4568 = vld [vmem:[#allocation2 + $0x150] sm:$0xff]
    %v4569 = vld [vmem:[#allocation2 + $0x158] sm:$0xff]
    %v4570 = vld [vmem:[#allocation2 + $0x160] sm:$0xff]
    %v4571 = vld [vmem:[#allocation2 + $0x168] sm:$0xff]
    %v4572 = vld [vmem:[#allocation2 + $0x170] sm:$0xff]
    %v4573 = vld [vmem:[#allocation2 + $0x178] sm:$0xff]
    %v4574 = vld [vmem:[#allocation2 + $0x180] sm:$0xff]
    %v4575 = vld [vmem:[#allocation2 + $0x188] sm:$0xff]
    %v4576 = vld [vmem:[#allocation2 + $0x190] sm:$0xff]
    %v4577 = vld [vmem:[#allocation2 + $0x198] sm:$0xff]
    %v4578 = vld [vmem:[#allocation2 + $0x1a0] sm:$0xff]
    %v4579 = vld [vmem:[#allocation2 + $0x1a8] sm:$0xff]
    %v4580 = vld [vmem:[#allocation2 + $0x1b0] sm:$0xff]
    %v4581 = vld [vmem:[#allocation2 + $0x1b8] sm:$0xff]
    %v4582 = vld [vmem:[#allocation2 + $0x1c0] sm:$0xff]
    %v4583 = vld [vmem:[#allocation2 + $0x1c8] sm:$0xff]
    %v4584 = vld [vmem:[#allocation2 + $0x1d0] sm:$0xff]
    %v4585 = vld [vmem:[#allocation2 + $0x1d8] sm:$0xff]
    %v4586 = vld [vmem:[#allocation2 + $0x1e0] sm:$0xff]
    %v4587 = vld [vmem:[#allocation2 + $0x1e8] sm:$0xff]
    %v4588 = vld [vmem:[#allocation2 + $0x1f0] sm:$0xff]
    %v4589 = vld [vmem:[#allocation2 + $0x1f8] sm:$0xff]
    %v4590 = vld [vmem:[#allocation2 + $0x200] sm:$0xff]
    %v4591 = vld [vmem:[#allocation2 + $0x208] sm:$0xff]
    %v4592 = vld [vmem:[#allocation2 + $0x210] sm:$0xff]
    %v4593 = vld [vmem:[#allocation2 + $0x218] sm:$0xff]
    %v4594 = vld [vmem:[#allocation2 + $0x220] sm:$0xff]
    %v4595 = vld [vmem:[#allocation2 + $0x228] sm:$0xff]
    %v4596 = vld [vmem:[#allocation2 + $0x230] sm:$0xff]
    %v4597 = vld [vmem:[#allocation2 + $0x238] sm:$0xff]
    %v4598 = vld [vmem:[#allocation2 + $0x240] sm:$0xff]
    %v4599 = vld [vmem:[#allocation2 + $0x248] sm:$0xff]
    %v4600 = vld [vmem:[#allocation2 + $0x250] sm:$0xff]
    %v4601 = vld [vmem:[#allocation2 + $0x258] sm:$0xff]
    %v4602 = vld [vmem:[#allocation2 + $0x260] sm:$0xff]
    %v4603 = vld [vmem:[#allocation2 + $0x268] sm:$0xff]
    %v4604 = vld [vmem:[#allocation2 + $0x270] sm:$0xff]
    %v4605 = vld [vmem:[#allocation2 + $0x278] sm:$0xff]
    %v4606 = vld [vmem:[#allocation2 + $0x280] sm:$0xff]
    %v4607 = vld [vmem:[#allocation2 + $0x288] sm:$0xff]
    %v4608 = vld [vmem:[#allocation2 + $0x290] sm:$0xff]
    %s4609 = scalar_lea.vmem [#allocation8], 512
    %v4610 = vld [vmem:[%s4609] sm:$0xff]
    %v4611 = vld [vmem:[%s4609 + $0x8] sm:$0xff]
    %v4612 = vld [vmem:[%s4609 + $0x10] sm:$0xff]
    %v4613 = vld [vmem:[%s4609 + $0x18] sm:$0xff]
    %v4614 = vld [vmem:[%s4609 + $0x20] sm:$0xff]
    %v4615 = vld [vmem:[%s4609 + $0x28] sm:$0xff]
    %v4616 = vld [vmem:[%s4609 + $0x30] sm:$0xff]
    %v4617 = vld [vmem:[%s4609 + $0x38] sm:$0xff]
    %v4618 = vld [vmem:[%s4609 + $0x40] sm:$0xff]
    %v4619 = vld [vmem:[%s4609 + $0x48] sm:$0xff]
    %v4620 = vld [vmem:[%s4609 + $0x50] sm:$0xff]
    %v4621 = vld [vmem:[%s4609 + $0x58] sm:$0xff]
    %v4622 = vld [vmem:[%s4609 + $0x60] sm:$0xff]
    %v4623 = vld [vmem:[%s4609 + $0x68] sm:$0xff]
    %v4624 = vld [vmem:[%s4609 + $0x70] sm:$0xff]
    %v4625 = vld [vmem:[%s4609 + $0x78] sm:$0xff]
    %4626 = vmatprep.subr.mxu0 0.0
    %4627 = vmatpush1.msra.mxu0 %v4625
    %4628 = vmatprep.subr.mxu0 0.0
    %4629 = vmatpush1.msra.mxu0 %v4624
    %4630 = vmatprep.subr.mxu0 0.0
    %4631 = vmatpush1.msra.mxu0 %v4623
    %4632 = vmatprep.subr.mxu0 0.0
    %4633 = vmatpush1.msra.mxu0 %v4622
    %4634 = vmatprep.subr.mxu0 0.0
    %4635 = vmatpush1.msra.mxu0 %v4621
    %4636 = vmatprep.subr.mxu0 0.0
    %4637 = vmatpush1.msra.mxu0 %v4620
    %4638 = vmatprep.subr.mxu0 0.0
    %4639 = vmatpush1.msra.mxu0 %v4619
    %4640 = vmatprep.subr.mxu0 0.0
    %4641 = vmatpush1.msra.mxu0 %v4618
    %4642 = vmatprep.subr.mxu0 0.0
    %4643 = vmatpush1.msra.mxu0 %v4617
    %4644 = vmatprep.subr.mxu0 0.0
    %4645 = vmatpush1.msra.mxu0 %v4616
    %4646 = vmatprep.subr.mxu0 0.0
    %4647 = vmatpush1.msra.mxu0 %v4615
    %4648 = vmatprep.subr.mxu0 0.0
    %4649 = vmatpush1.msra.mxu0 %v4614
    %4650 = vmatprep.subr.mxu0 0.0
    %4651 = vmatpush1.msra.mxu0 %v4613
    %4652 = vmatprep.subr.mxu0 0.0
    %4653 = vmatpush1.msra.mxu0 %v4612
    %4654 = vmatprep.subr.mxu0 0.0
    %4655 = vmatpush1.msra.mxu0 %v4611
    %4656 = vmatprep.subr.mxu0 0.0
    %4657 = vmatpush1.msra.mxu0 %v4610
    %4658 = vmatprep.subr.mxu0 0.0
    %4659 = vmatpush2.msra.mxu0 0.0
    %4660 = vmatprep.subr.mxu0 0.0
    %4661 = vmatpush2.msra.mxu0 0.0
    %4662 = vmatprep.subr.mxu0 0.0
    %4663 = vmatpush2.msra.mxu0 0.0
    %4664 = vmatprep.subr.mxu0 0.0
    %4665 = vmatpush2.msra.mxu0 0.0
    %4666 = vmatprep.subr.mxu0 0.0
    %4667 = vmatpush2.msra.mxu0 0.0
    %4668 = vmatprep.subr.mxu0 0.0
    %4669 = vmatpush2.msra.mxu0 0.0
    %4670 = vmatprep.subr.mxu0 0.0
    %4671 = vmatpush2.msra.mxu0 0.0
    %4672 = vmatprep.subr.mxu0 0.0
    %4673 = vmatpush2.msra.mxu0 0.0
    %4674 = vmatprep.subr.mxu0 0.0
    %4675 = vmatpush2.msra.mxu0 0.0
    %4676 = vmatprep.subr.mxu0 0.0
    %4677 = vmatpush2.msra.mxu0 0.0
    %4678 = vmatprep.subr.mxu0 0.0
    %4679 = vmatpush2.msra.mxu0 0.0
    %4680 = vmatprep.subr.mxu0 0.0
    %4681 = vmatpush2.msra.mxu0 0.0
    %4682 = vmatprep.subr.mxu0 0.0
    %4683 = vmatpush2.msra.mxu0 0.0
    %4684 = vmatprep.subr.mxu0 0.0
    %4685 = vmatpush2.msra.mxu0 0.0
    %4686 = vmatprep.subr.mxu0 0.0
    %4687 = vmatpush2.msra.mxu0 0.0
    %4688 = vmatprep.subr.mxu0 0.0
    %4689 = vmatpush2.msra.mxu0 0.0
    %4690 = vmatprep.mubr.f32.mxu0 0.0
    %4691 = vmatmul.mubr.f32.gmra.mxu0 %v4529
    %v4692 = vpop.f32.mrf.mxu0
    %v4693 = vadd.f32 0.0, %v4692
    %v4694 = vpop.f32.mrf.mxu0
    %4695 = vmatprep.mubr.f32.mxu0 0.0
    %4696 = vmatmul.mubr.f32.gmra.mxu0 %v4530
    %v4697 = vpop.f32.mrf.mxu0
    %v4698 = vadd.f32 0.0, %v4697
    %v4699 = vpop.f32.mrf.mxu0
    %4700 = vmatprep.mubr.f32.mxu0 0.0
    %4701 = vmatmul.mubr.f32.gmra.mxu0 %v4531
    %v4702 = vpop.f32.mrf.mxu0
    %v4703 = vadd.f32 0.0, %v4702
    %v4704 = vpop.f32.mrf.mxu0
    %4705 = vmatprep.mubr.f32.mxu0 0.0
    %4706 = vmatmul.mubr.f32.gmra.mxu0 %v4532
    %v4707 = vpop.f32.mrf.mxu0
    %v4708 = vadd.f32 0.0, %v4707
    %v4709 = vpop.f32.mrf.mxu0
    %4710 = vmatprep.mubr.f32.mxu0 0.0
    %4711 = vmatmul.mubr.f32.gmra.mxu0 %v4533
    %v4712 = vpop.f32.mrf.mxu0
    %v4713 = vadd.f32 0.0, %v4712
    %v4714 = vpop.f32.mrf.mxu0
    %4715 = vmatprep.mubr.f32.mxu0 0.0
    %4716 = vmatmul.mubr.f32.gmra.mxu0 %v4534
    %v4717 = vpop.f32.mrf.mxu0
    %v4718 = vadd.f32 0.0, %v4717
    %v4719 = vpop.f32.mrf.mxu0
    %4720 = vmatprep.mubr.f32.mxu0 0.0
    %4721 = vmatmul.mubr.f32.gmra.mxu0 %v4535
    %v4722 = vpop.f32.mrf.mxu0
    %v4723 = vadd.f32 0.0, %v4722
    %v4724 = vpop.f32.mrf.mxu0
    %4725 = vmatprep.mubr.f32.mxu0 0.0
    %4726 = vmatmul.mubr.f32.gmra.mxu0 %v4536
    %v4727 = vpop.f32.mrf.mxu0
    %v4728 = vadd.f32 0.0, %v4727
    %v4729 = vpop.f32.mrf.mxu0
    %4730 = vmatprep.mubr.f32.mxu0 0.0
    %4731 = vmatmul.mubr.f32.gmra.mxu0 %v4537
    %v4732 = vpop.f32.mrf.mxu0
    %v4733 = vadd.f32 0.0, %v4732
    %v4734 = vpop.f32.mrf.mxu0
    %4735 = vmatprep.mubr.f32.mxu0 0.0
    %4736 = vmatmul.mubr.f32.gmra.mxu0 %v4538
    %v4737 = vpop.f32.mrf.mxu0
    %v4738 = vadd.f32 0.0, %v4737
    %v4739 = vpop.f32.mrf.mxu0
    %4740 = vmatprep.mubr.f32.mxu0 0.0
    %4741 = vmatmul.mubr.f32.gmra.mxu0 %v4539
    %v4742 = vpop.f32.mrf.mxu0
    %v4743 = vadd.f32 0.0, %v4742
    %v4744 = vpop.f32.mrf.mxu0
    %4745 = vmatprep.mubr.f32.mxu0 0.0
    %4746 = vmatmul.mubr.f32.gmra.mxu0 %v4540
    %v4747 = vpop.f32.mrf.mxu0
    %v4748 = vadd.f32 0.0, %v4747
    %v4749 = vpop.f32.mrf.mxu0
    %4750 = vmatprep.mubr.f32.mxu0 0.0
    %4751 = vmatmul.mubr.f32.gmra.mxu0 %v4541
    %v4752 = vpop.f32.mrf.mxu0
    %v4753 = vadd.f32 0.0, %v4752
    %v4754 = vpop.f32.mrf.mxu0
    %4755 = vmatprep.mubr.f32.mxu0 0.0
    %4756 = vmatmul.mubr.f32.gmra.mxu0 %v4542
    %v4757 = vpop.f32.mrf.mxu0
    %v4758 = vadd.f32 0.0, %v4757
    %v4759 = vpop.f32.mrf.mxu0
    %4760 = vmatprep.mubr.f32.mxu0 0.0
    %4761 = vmatmul.mubr.f32.gmra.mxu0 %v4543
    %v4762 = vpop.f32.mrf.mxu0
    %v4763 = vadd.f32 0.0, %v4762
    %v4764 = vpop.f32.mrf.mxu0
    %4765 = vmatprep.mubr.f32.mxu0 0.0
    %4766 = vmatmul.mubr.f32.gmra.mxu0 %v4544
    %v4767 = vpop.f32.mrf.mxu0
    %v4768 = vadd.f32 0.0, %v4767
    %v4769 = vpop.f32.mrf.mxu0
    %4770 = vmatprep.mubr.f32.mxu0 0.0
    %4771 = vmatmul.mubr.f32.gmra.mxu0 %v4545
    %v4772 = vpop.f32.mrf.mxu0
    %v4773 = vadd.f32 0.0, %v4772
    %v4774 = vpop.f32.mrf.mxu0
    %4775 = vmatprep.mubr.f32.mxu0 0.0
    %4776 = vmatmul.mubr.f32.gmra.mxu0 %v4546
    %v4777 = vpop.f32.mrf.mxu0
    %v4778 = vadd.f32 0.0, %v4777
    %v4779 = vpop.f32.mrf.mxu0
    %4780 = vmatprep.mubr.f32.mxu0 0.0
    %4781 = vmatmul.mubr.f32.gmra.mxu0 %v4547
    %v4782 = vpop.f32.mrf.mxu0
    %v4783 = vadd.f32 0.0, %v4782
    %v4784 = vpop.f32.mrf.mxu0
    %4785 = vmatprep.mubr.f32.mxu0 0.0
    %4786 = vmatmul.mubr.f32.gmra.mxu0 %v4548
    %v4787 = vpop.f32.mrf.mxu0
    %v4788 = vadd.f32 0.0, %v4787
    %v4789 = vpop.f32.mrf.mxu0
    %4790 = vmatprep.mubr.f32.mxu0 0.0
    %4791 = vmatmul.mubr.f32.gmra.mxu0 %v4549
    %v4792 = vpop.f32.mrf.mxu0
    %v4793 = vadd.f32 0.0, %v4792
    %v4794 = vpop.f32.mrf.mxu0
    %4795 = vmatprep.mubr.f32.mxu0 0.0
    %4796 = vmatmul.mubr.f32.gmra.mxu0 %v4550
    %v4797 = vpop.f32.mrf.mxu0
    %v4798 = vadd.f32 0.0, %v4797
    %v4799 = vpop.f32.mrf.mxu0
    %4800 = vmatprep.mubr.f32.mxu0 0.0
    %4801 = vmatmul.mubr.f32.gmra.mxu0 %v4551
    %v4802 = vpop.f32.mrf.mxu0
    %v4803 = vadd.f32 0.0, %v4802
    %v4804 = vpop.f32.mrf.mxu0
    %4805 = vmatprep.mubr.f32.mxu0 0.0
    %4806 = vmatmul.mubr.f32.gmra.mxu0 %v4552
    %v4807 = vpop.f32.mrf.mxu0
    %v4808 = vadd.f32 0.0, %v4807
    %v4809 = vpop.f32.mrf.mxu0
    %4810 = vmatprep.mubr.f32.mxu0 0.0
    %4811 = vmatmul.mubr.f32.gmra.mxu0 %v4553
    %v4812 = vpop.f32.mrf.mxu0
    %v4813 = vadd.f32 0.0, %v4812
    %v4814 = vpop.f32.mrf.mxu0
    %4815 = vmatprep.mubr.f32.mxu0 0.0
    %4816 = vmatmul.mubr.f32.gmra.mxu0 %v4554
    %v4817 = vpop.f32.mrf.mxu0
    %v4818 = vadd.f32 0.0, %v4817
    %v4819 = vpop.f32.mrf.mxu0
    %4820 = vmatprep.mubr.f32.mxu0 0.0
    %4821 = vmatmul.mubr.f32.gmra.mxu0 %v4555
    %v4822 = vpop.f32.mrf.mxu0
    %v4823 = vadd.f32 0.0, %v4822
    %v4824 = vpop.f32.mrf.mxu0
    %4825 = vmatprep.mubr.f32.mxu0 0.0
    %4826 = vmatmul.mubr.f32.gmra.mxu0 %v4556
    %v4827 = vpop.f32.mrf.mxu0
    %v4828 = vadd.f32 0.0, %v4827
    %v4829 = vpop.f32.mrf.mxu0
    %4830 = vmatprep.mubr.f32.mxu0 0.0
    %4831 = vmatmul.mubr.f32.gmra.mxu0 %v4557
    %v4832 = vpop.f32.mrf.mxu0
    %v4833 = vadd.f32 0.0, %v4832
    %v4834 = vpop.f32.mrf.mxu0
    %4835 = vmatprep.mubr.f32.mxu0 0.0
    %4836 = vmatmul.mubr.f32.gmra.mxu0 %v4558
    %v4837 = vpop.f32.mrf.mxu0
    %v4838 = vadd.f32 0.0, %v4837
    %v4839 = vpop.f32.mrf.mxu0
    %4840 = vmatprep.mubr.f32.mxu0 0.0
    %4841 = vmatmul.mubr.f32.gmra.mxu0 %v4559
    %v4842 = vpop.f32.mrf.mxu0
    %v4843 = vadd.f32 0.0, %v4842
    %v4844 = vpop.f32.mrf.mxu0
    %4845 = vmatprep.mubr.f32.mxu0 0.0
    %4846 = vmatmul.mubr.f32.gmra.mxu0 %v4560
    %v4847 = vpop.f32.mrf.mxu0
    %v4848 = vadd.f32 0.0, %v4847
    %v4849 = vpop.f32.mrf.mxu0
    %4850 = vmatprep.mubr.f32.mxu0 0.0
    %4851 = vmatmul.mubr.f32.gmra.mxu0 %v4561
    %v4852 = vpop.f32.mrf.mxu0
    %v4853 = vadd.f32 0.0, %v4852
    %v4854 = vpop.f32.mrf.mxu0
    %4855 = vmatprep.mubr.f32.mxu0 0.0
    %4856 = vmatmul.mubr.f32.gmra.mxu0 %v4562
    %v4857 = vpop.f32.mrf.mxu0
    %v4858 = vadd.f32 0.0, %v4857
    %v4859 = vpop.f32.mrf.mxu0
    %4860 = vmatprep.mubr.f32.mxu0 0.0
    %4861 = vmatmul.mubr.f32.gmra.mxu0 %v4563
    %v4862 = vpop.f32.mrf.mxu0
    %v4863 = vadd.f32 0.0, %v4862
    %v4864 = vpop.f32.mrf.mxu0
    %4865 = vmatprep.mubr.f32.mxu0 0.0
    %4866 = vmatmul.mubr.f32.gmra.mxu0 %v4564
    %v4867 = vpop.f32.mrf.mxu0
    %v4868 = vadd.f32 0.0, %v4867
    %v4869 = vpop.f32.mrf.mxu0
    %4870 = vmatprep.mubr.f32.mxu0 0.0
    %4871 = vmatmul.mubr.f32.gmra.mxu0 %v4565
    %v4872 = vpop.f32.mrf.mxu0
    %v4873 = vadd.f32 0.0, %v4872
    %v4874 = vpop.f32.mrf.mxu0
    %4875 = vmatprep.mubr.f32.mxu0 0.0
    %4876 = vmatmul.mubr.f32.gmra.mxu0 %v4566
    %v4877 = vpop.f32.mrf.mxu0
    %v4878 = vadd.f32 0.0, %v4877
    %v4879 = vpop.f32.mrf.mxu0
    %4880 = vmatprep.mubr.f32.mxu0 0.0
    %4881 = vmatmul.mubr.f32.gmra.mxu0 %v4567
    %v4882 = vpop.f32.mrf.mxu0
    %v4883 = vadd.f32 0.0, %v4882
    %v4884 = vpop.f32.mrf.mxu0
    %4885 = vmatprep.mubr.f32.mxu0 0.0
    %4886 = vmatmul.mubr.f32.gmra.mxu0 %v4568
    %v4887 = vpop.f32.mrf.mxu0
    %v4888 = vadd.f32 0.0, %v4887
    %v4889 = vpop.f32.mrf.mxu0
    %4890 = vmatprep.mubr.f32.mxu0 0.0
    %4891 = vmatmul.mubr.f32.gmra.mxu0 %v4569
    %v4892 = vpop.f32.mrf.mxu0
    %v4893 = vadd.f32 0.0, %v4892
    %v4894 = vpop.f32.mrf.mxu0
    %4895 = vmatprep.mubr.f32.mxu0 0.0
    %4896 = vmatmul.mubr.f32.gmra.mxu0 %v4570
    %v4897 = vpop.f32.mrf.mxu0
    %v4898 = vadd.f32 0.0, %v4897
    %v4899 = vpop.f32.mrf.mxu0
    %4900 = vmatprep.mubr.f32.mxu0 0.0
    %4901 = vmatmul.mubr.f32.gmra.mxu0 %v4571
    %v4902 = vpop.f32.mrf.mxu0
    %v4903 = vadd.f32 0.0, %v4902
    %v4904 = vpop.f32.mrf.mxu0
    %4905 = vmatprep.mubr.f32.mxu0 0.0
    %4906 = vmatmul.mubr.f32.gmra.mxu0 %v4572
    %v4907 = vpop.f32.mrf.mxu0
    %v4908 = vadd.f32 0.0, %v4907
    %v4909 = vpop.f32.mrf.mxu0
    %4910 = vmatprep.mubr.f32.mxu0 0.0
    %4911 = vmatmul.mubr.f32.gmra.mxu0 %v4573
    %v4912 = vpop.f32.mrf.mxu0
    %v4913 = vadd.f32 0.0, %v4912
    %v4914 = vpop.f32.mrf.mxu0
    %4915 = vmatprep.mubr.f32.mxu0 0.0
    %4916 = vmatmul.mubr.f32.gmra.mxu0 %v4574
    %v4917 = vpop.f32.mrf.mxu0
    %v4918 = vadd.f32 0.0, %v4917
    %v4919 = vpop.f32.mrf.mxu0
    %4920 = vmatprep.mubr.f32.mxu0 0.0
    %4921 = vmatmul.mubr.f32.gmra.mxu0 %v4575
    %v4922 = vpop.f32.mrf.mxu0
    %v4923 = vadd.f32 0.0, %v4922
    %v4924 = vpop.f32.mrf.mxu0
    %4925 = vmatprep.mubr.f32.mxu0 0.0
    %4926 = vmatmul.mubr.f32.gmra.mxu0 %v4576
    %v4927 = vpop.f32.mrf.mxu0
    %v4928 = vadd.f32 0.0, %v4927
    %v4929 = vpop.f32.mrf.mxu0
    %4930 = vmatprep.mubr.f32.mxu0 0.0
    %4931 = vmatmul.mubr.f32.gmra.mxu0 %v4577
    %v4932 = vpop.f32.mrf.mxu0
    %v4933 = vadd.f32 0.0, %v4932
    %v4934 = vpop.f32.mrf.mxu0
    %4935 = vmatprep.mubr.f32.mxu0 0.0
    %4936 = vmatmul.mubr.f32.gmra.mxu0 %v4578
    %v4937 = vpop.f32.mrf.mxu0
    %v4938 = vadd.f32 0.0, %v4937
    %v4939 = vpop.f32.mrf.mxu0
    %4940 = vmatprep.mubr.f32.mxu0 0.0
    %4941 = vmatmul.mubr.f32.gmra.mxu0 %v4579
    %v4942 = vpop.f32.mrf.mxu0
    %v4943 = vadd.f32 0.0, %v4942
    %v4944 = vpop.f32.mrf.mxu0
    %4945 = vmatprep.mubr.f32.mxu0 0.0
    %4946 = vmatmul.mubr.f32.gmra.mxu0 %v4580
    %v4947 = vpop.f32.mrf.mxu0
    %v4948 = vadd.f32 0.0, %v4947
    %v4949 = vpop.f32.mrf.mxu0
    %4950 = vmatprep.mubr.f32.mxu0 0.0
    %4951 = vmatmul.mubr.f32.gmra.mxu0 %v4581
    %v4952 = vpop.f32.mrf.mxu0
    %v4953 = vadd.f32 0.0, %v4952
    %v4954 = vpop.f32.mrf.mxu0
    %4955 = vmatprep.mubr.f32.mxu0 0.0
    %4956 = vmatmul.mubr.f32.gmra.mxu0 %v4582
    %v4957 = vpop.f32.mrf.mxu0
    %v4958 = vadd.f32 0.0, %v4957
    %v4959 = vpop.f32.mrf.mxu0
    %4960 = vmatprep.mubr.f32.mxu0 0.0
    %4961 = vmatmul.mubr.f32.gmra.mxu0 %v4583
    %v4962 = vpop.f32.mrf.mxu0
    %v4963 = vadd.f32 0.0, %v4962
    %v4964 = vpop.f32.mrf.mxu0
    %4965 = vmatprep.mubr.f32.mxu0 0.0
    %4966 = vmatmul.mubr.f32.gmra.mxu0 %v4584
    %v4967 = vpop.f32.mrf.mxu0
    %v4968 = vadd.f32 0.0, %v4967
    %v4969 = vpop.f32.mrf.mxu0
    %4970 = vmatprep.mubr.f32.mxu0 0.0
    %4971 = vmatmul.mubr.f32.gmra.mxu0 %v4585
    %v4972 = vpop.f32.mrf.mxu0
    %v4973 = vadd.f32 0.0, %v4972
    %v4974 = vpop.f32.mrf.mxu0
    %4975 = vmatprep.mubr.f32.mxu0 0.0
    %4976 = vmatmul.mubr.f32.gmra.mxu0 %v4586
    %v4977 = vpop.f32.mrf.mxu0
    %v4978 = vadd.f32 0.0, %v4977
    %v4979 = vpop.f32.mrf.mxu0
    %4980 = vmatprep.mubr.f32.mxu0 0.0
    %4981 = vmatmul.mubr.f32.gmra.mxu0 %v4587
    %v4982 = vpop.f32.mrf.mxu0
    %v4983 = vadd.f32 0.0, %v4982
    %v4984 = vpop.f32.mrf.mxu0
    %4985 = vmatprep.mubr.f32.mxu0 0.0
    %4986 = vmatmul.mubr.f32.gmra.mxu0 %v4588
    %v4987 = vpop.f32.mrf.mxu0
    %v4988 = vadd.f32 0.0, %v4987
    %v4989 = vpop.f32.mrf.mxu0
    %4990 = vmatprep.mubr.f32.mxu0 0.0
    %4991 = vmatmul.mubr.f32.gmra.mxu0 %v4589
    %v4992 = vpop.f32.mrf.mxu0
    %v4993 = vadd.f32 0.0, %v4992
    %v4994 = vpop.f32.mrf.mxu0
    %4995 = vmatprep.mubr.f32.mxu0 0.0
    %4996 = vmatmul.mubr.f32.gmra.mxu0 %v4590
    %v4997 = vpop.f32.mrf.mxu0
    %v4998 = vadd.f32 0.0, %v4997
    %v4999 = vpop.f32.mrf.mxu0
    %5000 = vmatprep.mubr.f32.mxu0 0.0
    %5001 = vmatmul.mubr.f32.gmra.mxu0 %v4591
    %v5002 = vpop.f32.mrf.mxu0
    %v5003 = vadd.f32 0.0, %v5002
    %v5004 = vpop.f32.mrf.mxu0
    %5005 = vmatprep.mubr.f32.mxu0 0.0
    %5006 = vmatmul.mubr.f32.gmra.mxu0 %v4592
    %v5007 = vpop.f32.mrf.mxu0
    %v5008 = vadd.f32 0.0, %v5007
    %v5009 = vpop.f32.mrf.mxu0
    %5010 = vmatprep.mubr.f32.mxu0 0.0
    %5011 = vmatmul.mubr.f32.gmra.mxu0 %v4593
    %v5012 = vpop.f32.mrf.mxu0
    %v5013 = vadd.f32 0.0, %v5012
    %v5014 = vpop.f32.mrf.mxu0
    %5015 = vmatprep.mubr.f32.mxu0 0.0
    %5016 = vmatmul.mubr.f32.gmra.mxu0 %v4594
    %v5017 = vpop.f32.mrf.mxu0
    %v5018 = vadd.f32 0.0, %v5017
    %v5019 = vpop.f32.mrf.mxu0
    %5020 = vmatprep.mubr.f32.mxu0 0.0
    %5021 = vmatmul.mubr.f32.gmra.mxu0 %v4595
    %v5022 = vpop.f32.mrf.mxu0
    %v5023 = vadd.f32 0.0, %v5022
    %v5024 = vpop.f32.mrf.mxu0
    %5025 = vmatprep.mubr.f32.mxu0 0.0
    %5026 = vmatmul.mubr.f32.gmra.mxu0 %v4596
    %v5027 = vpop.f32.mrf.mxu0
    %v5028 = vadd.f32 0.0, %v5027
    %v5029 = vpop.f32.mrf.mxu0
    %5030 = vmatprep.mubr.f32.mxu0 0.0
    %5031 = vmatmul.mubr.f32.gmra.mxu0 %v4597
    %v5032 = vpop.f32.mrf.mxu0
    %v5033 = vadd.f32 0.0, %v5032
    %v5034 = vpop.f32.mrf.mxu0
    %5035 = vmatprep.mubr.f32.mxu0 0.0
    %5036 = vmatmul.mubr.f32.gmra.mxu0 %v4598
    %v5037 = vpop.f32.mrf.mxu0
    %v5038 = vadd.f32 0.0, %v5037
    %v5039 = vpop.f32.mrf.mxu0
    %5040 = vmatprep.mubr.f32.mxu0 0.0
    %5041 = vmatmul.mubr.f32.gmra.mxu0 %v4599
    %v5042 = vpop.f32.mrf.mxu0
    %v5043 = vadd.f32 0.0, %v5042
    %v5044 = vpop.f32.mrf.mxu0
    %5045 = vmatprep.mubr.f32.mxu0 0.0
    %5046 = vmatmul.mubr.f32.gmra.mxu0 %v4600
    %v5047 = vpop.f32.mrf.mxu0
    %v5048 = vadd.f32 0.0, %v5047
    %v5049 = vpop.f32.mrf.mxu0
    %5050 = vmatprep.mubr.f32.mxu0 0.0
    %5051 = vmatmul.mubr.f32.gmra.mxu0 %v4601
    %v5052 = vpop.f32.mrf.mxu0
    %v5053 = vadd.f32 0.0, %v5052
    %v5054 = vpop.f32.mrf.mxu0
    %5055 = vmatprep.mubr.f32.mxu0 0.0
    %5056 = vmatmul.mubr.f32.gmra.mxu0 %v4602
    %v5057 = vpop.f32.mrf.mxu0
    %v5058 = vadd.f32 0.0, %v5057
    %v5059 = vpop.f32.mrf.mxu0
    %5060 = vmatprep.mubr.f32.mxu0 0.0
    %5061 = vmatmul.mubr.f32.gmra.mxu0 %v4603
    %v5062 = vpop.f32.mrf.mxu0
    %v5063 = vadd.f32 0.0, %v5062
    %v5064 = vpop.f32.mrf.mxu0
    %5065 = vmatprep.mubr.f32.mxu0 0.0
    %5066 = vmatmul.mubr.f32.gmra.mxu0 %v4604
    %v5067 = vpop.f32.mrf.mxu0
    %v5068 = vadd.f32 0.0, %v5067
    %v5069 = vpop.f32.mrf.mxu0
    %5070 = vmatprep.mubr.f32.mxu0 0.0
    %5071 = vmatmul.mubr.f32.gmra.mxu0 %v4605
    %v5072 = vpop.f32.mrf.mxu0
    %v5073 = vadd.f32 0.0, %v5072
    %v5074 = vpop.f32.mrf.mxu0
    %5075 = vmatprep.mubr.f32.mxu0 0.0
    %5076 = vmatmul.mubr.f32.gmra.mxu0 %v4606
    %v5077 = vpop.f32.mrf.mxu0
    %v5078 = vadd.f32 0.0, %v5077
    %v5079 = vpop.f32.mrf.mxu0
    %5080 = vmatprep.mubr.f32.mxu0 0.0
    %5081 = vmatmul.mubr.f32.gmra.mxu0 %v4607
    %v5082 = vpop.f32.mrf.mxu0
    %v5083 = vadd.f32 0.0, %v5082
    %v5084 = vpop.f32.mrf.mxu0
    %5085 = vmatprep.mubr.f32.mxu0 0.0
    %5086 = vmatmul.mubr.f32.gmra.mxu0 %v4608
    %v5087 = vpop.f32.mrf.mxu0
    %v5088 = vadd.f32 0.0, %v5087
    %v5089 = vpop.f32.mrf.mxu0
    %5090 = vdwg.mxu0
    %v5091 = vadd.f32 %v4449, %v4693
    %v5092 = vadd.f32 %v4450, %v4698
    %v5093 = vadd.f32 %v4451, %v4703
    %v5094 = vadd.f32 %v4452, %v4708
    %v5095 = vadd.f32 %v4453, %v4713
    %v5096 = vadd.f32 %v4454, %v4718
    %v5097 = vadd.f32 %v4455, %v4723
    %v5098 = vadd.f32 %v4456, %v4728
    %v5099 = vadd.f32 %v4457, %v4733
    %v5100 = vadd.f32 %v4458, %v4738
    %v5101 = vadd.f32 %v4459, %v4743
    %v5102 = vadd.f32 %v4460, %v4748
    %v5103 = vadd.f32 %v4461, %v4753
    %v5104 = vadd.f32 %v4462, %v4758
    %v5105 = vadd.f32 %v4463, %v4763
    %v5106 = vadd.f32 %v4464, %v4768
    %v5107 = vadd.f32 %v4465, %v4773
    %v5108 = vadd.f32 %v4466, %v4778
    %v5109 = vadd.f32 %v4467, %v4783
    %v5110 = vadd.f32 %v4468, %v4788
    %v5111 = vadd.f32 %v4469, %v4793
    %v5112 = vadd.f32 %v4470, %v4798
    %v5113 = vadd.f32 %v4471, %v4803
    %v5114 = vadd.f32 %v4472, %v4808
    %v5115 = vadd.f32 %v4473, %v4813
    %v5116 = vadd.f32 %v4474, %v4818
    %v5117 = vadd.f32 %v4475, %v4823
    %v5118 = vadd.f32 %v4476, %v4828
    %v5119 = vadd.f32 %v4477, %v4833
    %v5120 = vadd.f32 %v4478, %v4838
    %v5121 = vadd.f32 %v4479, %v4843
    %v5122 = vadd.f32 %v4480, %v4848
    %v5123 = vadd.f32 %v4481, %v4853
    %v5124 = vadd.f32 %v4482, %v4858
    %v5125 = vadd.f32 %v4483, %v4863
    %v5126 = vadd.f32 %v4484, %v4868
    %v5127 = vadd.f32 %v4485, %v4873
    %v5128 = vadd.f32 %v4486, %v4878
    %v5129 = vadd.f32 %v4487, %v4883
    %v5130 = vadd.f32 %v4488, %v4888
    %v5131 = vadd.f32 %v4489, %v4893
    %v5132 = vadd.f32 %v4490, %v4898
    %v5133 = vadd.f32 %v4491, %v4903
    %v5134 = vadd.f32 %v4492, %v4908
    %v5135 = vadd.f32 %v4493, %v4913
    %v5136 = vadd.f32 %v4494, %v4918
    %v5137 = vadd.f32 %v4495, %v4923
    %v5138 = vadd.f32 %v4496, %v4928
    %v5139 = vadd.f32 %v4497, %v4933
    %v5140 = vadd.f32 %v4498, %v4938
    %v5141 = vadd.f32 %v4499, %v4943
    %v5142 = vadd.f32 %v4500, %v4948
    %v5143 = vadd.f32 %v4501, %v4953
    %v5144 = vadd.f32 %v4502, %v4958
    %v5145 = vadd.f32 %v4503, %v4963
    %v5146 = vadd.f32 %v4504, %v4968
    %v5147 = vadd.f32 %v4505, %v4973
    %v5148 = vadd.f32 %v4506, %v4978
    %v5149 = vadd.f32 %v4507, %v4983
    %v5150 = vadd.f32 %v4508, %v4988
    %v5151 = vadd.f32 %v4509, %v4993
    %v5152 = vadd.f32 %v4510, %v4998
    %v5153 = vadd.f32 %v4511, %v5003
    %v5154 = vadd.f32 %v4512, %v5008
    %v5155 = vadd.f32 %v4513, %v5013
    %v5156 = vadd.f32 %v4514, %v5018
    %v5157 = vadd.f32 %v4515, %v5023
    %v5158 = vadd.f32 %v4516, %v5028
    %v5159 = vadd.f32 %v4517, %v5033
    %v5160 = vadd.f32 %v4518, %v5038
    %v5161 = vadd.f32 %v4519, %v5043
    %v5162 = vadd.f32 %v4520, %v5048
    %v5163 = vadd.f32 %v4521, %v5053
    %v5164 = vadd.f32 %v4522, %v5058
    %v5165 = vadd.f32 %v4523, %v5063
    %v5166 = vadd.f32 %v4524, %v5068
    %v5167 = vadd.f32 %v4525, %v5073
    %v5168 = vadd.f32 %v4526, %v5078
    %v5169 = vadd.f32 %v4527, %v5083
    %v5170 = vadd.f32 %v4528, %v5088
    %v5171 = vld [vmem:[#allocation2 + $0x19] sm:$0xff]
    %v5172 = vld [vmem:[#allocation2 + $0x21] sm:$0xff]
    %v5173 = vld [vmem:[#allocation2 + $0x29] sm:$0xff]
    %v5174 = vld [vmem:[#allocation2 + $0x31] sm:$0xff]
    %v5175 = vld [vmem:[#allocation2 + $0x39] sm:$0xff]
    %v5176 = vld [vmem:[#allocation2 + $0x41] sm:$0xff]
    %v5177 = vld [vmem:[#allocation2 + $0x49] sm:$0xff]
    %v5178 = vld [vmem:[#allocation2 + $0x51] sm:$0xff]
    %v5179 = vld [vmem:[#allocation2 + $0x59] sm:$0xff]
    %v5180 = vld [vmem:[#allocation2 + $0x61] sm:$0xff]
    %v5181 = vld [vmem:[#allocation2 + $0x69] sm:$0xff]
    %v5182 = vld [vmem:[#allocation2 + $0x71] sm:$0xff]
    %v5183 = vld [vmem:[#allocation2 + $0x79] sm:$0xff]
    %v5184 = vld [vmem:[#allocation2 + $0x81] sm:$0xff]
    %v5185 = vld [vmem:[#allocation2 + $0x89] sm:$0xff]
    %v5186 = vld [vmem:[#allocation2 + $0x91] sm:$0xff]
    %v5187 = vld [vmem:[#allocation2 + $0x99] sm:$0xff]
    %v5188 = vld [vmem:[#allocation2 + $0xa1] sm:$0xff]
    %v5189 = vld [vmem:[#allocation2 + $0xa9] sm:$0xff]
    %v5190 = vld [vmem:[#allocation2 + $0xb1] sm:$0xff]
    %v5191 = vld [vmem:[#allocation2 + $0xb9] sm:$0xff]
    %v5192 = vld [vmem:[#allocation2 + $0xc1] sm:$0xff]
    %v5193 = vld [vmem:[#allocation2 + $0xc9] sm:$0xff]
    %v5194 = vld [vmem:[#allocation2 + $0xd1] sm:$0xff]
    %v5195 = vld [vmem:[#allocation2 + $0xd9] sm:$0xff]
    %v5196 = vld [vmem:[#allocation2 + $0xe1] sm:$0xff]
    %v5197 = vld [vmem:[#allocation2 + $0xe9] sm:$0xff]
    %v5198 = vld [vmem:[#allocation2 + $0xf1] sm:$0xff]
    %v5199 = vld [vmem:[#allocation2 + $0xf9] sm:$0xff]
    %v5200 = vld [vmem:[#allocation2 + $0x101] sm:$0xff]
    %v5201 = vld [vmem:[#allocation2 + $0x109] sm:$0xff]
    %v5202 = vld [vmem:[#allocation2 + $0x111] sm:$0xff]
    %v5203 = vld [vmem:[#allocation2 + $0x119] sm:$0xff]
    %v5204 = vld [vmem:[#allocation2 + $0x121] sm:$0xff]
    %v5205 = vld [vmem:[#allocation2 + $0x129] sm:$0xff]
    %v5206 = vld [vmem:[#allocation2 + $0x131] sm:$0xff]
    %v5207 = vld [vmem:[#allocation2 + $0x139] sm:$0xff]
    %v5208 = vld [vmem:[#allocation2 + $0x141] sm:$0xff]
    %v5209 = vld [vmem:[#allocation2 + $0x149] sm:$0xff]
    %v5210 = vld [vmem:[#allocation2 + $0x151] sm:$0xff]
    %v5211 = vld [vmem:[#allocation2 + $0x159] sm:$0xff]
    %v5212 = vld [vmem:[#allocation2 + $0x161] sm:$0xff]
    %v5213 = vld [vmem:[#allocation2 + $0x169] sm:$0xff]
    %v5214 = vld [vmem:[#allocation2 + $0x171] sm:$0xff]
    %v5215 = vld [vmem:[#allocation2 + $0x179] sm:$0xff]
    %v5216 = vld [vmem:[#allocation2 + $0x181] sm:$0xff]
    %v5217 = vld [vmem:[#allocation2 + $0x189] sm:$0xff]
    %v5218 = vld [vmem:[#allocation2 + $0x191] sm:$0xff]
    %v5219 = vld [vmem:[#allocation2 + $0x199] sm:$0xff]
    %v5220 = vld [vmem:[#allocation2 + $0x1a1] sm:$0xff]
    %v5221 = vld [vmem:[#allocation2 + $0x1a9] sm:$0xff]
    %v5222 = vld [vmem:[#allocation2 + $0x1b1] sm:$0xff]
    %v5223 = vld [vmem:[#allocation2 + $0x1b9] sm:$0xff]
    %v5224 = vld [vmem:[#allocation2 + $0x1c1] sm:$0xff]
    %v5225 = vld [vmem:[#allocation2 + $0x1c9] sm:$0xff]
    %v5226 = vld [vmem:[#allocation2 + $0x1d1] sm:$0xff]
    %v5227 = vld [vmem:[#allocation2 + $0x1d9] sm:$0xff]
    %v5228 = vld [vmem:[#allocation2 + $0x1e1] sm:$0xff]
    %v5229 = vld [vmem:[#allocation2 + $0x1e9] sm:$0xff]
    %v5230 = vld [vmem:[#allocation2 + $0x1f1] sm:$0xff]
    %v5231 = vld [vmem:[#allocation2 + $0x1f9] sm:$0xff]
    %v5232 = vld [vmem:[#allocation2 + $0x201] sm:$0xff]
    %v5233 = vld [vmem:[#allocation2 + $0x209] sm:$0xff]
    %v5234 = vld [vmem:[#allocation2 + $0x211] sm:$0xff]
    %v5235 = vld [vmem:[#allocation2 + $0x219] sm:$0xff]
    %v5236 = vld [vmem:[#allocation2 + $0x221] sm:$0xff]
    %v5237 = vld [vmem:[#allocation2 + $0x229] sm:$0xff]
    %v5238 = vld [vmem:[#allocation2 + $0x231] sm:$0xff]
    %v5239 = vld [vmem:[#allocation2 + $0x239] sm:$0xff]
    %v5240 = vld [vmem:[#allocation2 + $0x241] sm:$0xff]
    %v5241 = vld [vmem:[#allocation2 + $0x249] sm:$0xff]
    %v5242 = vld [vmem:[#allocation2 + $0x251] sm:$0xff]
    %v5243 = vld [vmem:[#allocation2 + $0x259] sm:$0xff]
    %v5244 = vld [vmem:[#allocation2 + $0x261] sm:$0xff]
    %v5245 = vld [vmem:[#allocation2 + $0x269] sm:$0xff]
    %v5246 = vld [vmem:[#allocation2 + $0x271] sm:$0xff]
    %v5247 = vld [vmem:[#allocation2 + $0x279] sm:$0xff]
    %v5248 = vld [vmem:[#allocation2 + $0x281] sm:$0xff]
    %v5249 = vld [vmem:[#allocation2 + $0x289] sm:$0xff]
    %v5250 = vld [vmem:[#allocation2 + $0x291] sm:$0xff]
    %s5251 = scalar_lea.vmem [#allocation8], 640
    %v5252 = vld [vmem:[%s5251] sm:$0xff]
    %v5253 = vld [vmem:[%s5251 + $0x8] sm:$0xff]
    %v5254 = vld [vmem:[%s5251 + $0x10] sm:$0xff]
    %v5255 = vld [vmem:[%s5251 + $0x18] sm:$0xff]
    %v5256 = vld [vmem:[%s5251 + $0x20] sm:$0xff]
    %v5257 = vld [vmem:[%s5251 + $0x28] sm:$0xff]
    %v5258 = vld [vmem:[%s5251 + $0x30] sm:$0xff]
    %v5259 = vld [vmem:[%s5251 + $0x38] sm:$0xff]
    %v5260 = vld [vmem:[%s5251 + $0x40] sm:$0xff]
    %v5261 = vld [vmem:[%s5251 + $0x48] sm:$0xff]
    %v5262 = vld [vmem:[%s5251 + $0x50] sm:$0xff]
    %v5263 = vld [vmem:[%s5251 + $0x58] sm:$0xff]
    %v5264 = vld [vmem:[%s5251 + $0x60] sm:$0xff]
    %v5265 = vld [vmem:[%s5251 + $0x68] sm:$0xff]
    %v5266 = vld [vmem:[%s5251 + $0x70] sm:$0xff]
    %v5267 = vld [vmem:[%s5251 + $0x78] sm:$0xff]
    %5268 = vmatprep.subr.mxu0 0.0
    %5269 = vmatpush1.msra.mxu0 %v5267
    %5270 = vmatprep.subr.mxu0 0.0
    %5271 = vmatpush1.msra.mxu0 %v5266
    %5272 = vmatprep.subr.mxu0 0.0
    %5273 = vmatpush1.msra.mxu0 %v5265
    %5274 = vmatprep.subr.mxu0 0.0
    %5275 = vmatpush1.msra.mxu0 %v5264
    %5276 = vmatprep.subr.mxu0 0.0
    %5277 = vmatpush1.msra.mxu0 %v5263
    %5278 = vmatprep.subr.mxu0 0.0
    %5279 = vmatpush1.msra.mxu0 %v5262
    %5280 = vmatprep.subr.mxu0 0.0
    %5281 = vmatpush1.msra.mxu0 %v5261
    %5282 = vmatprep.subr.mxu0 0.0
    %5283 = vmatpush1.msra.mxu0 %v5260
    %5284 = vmatprep.subr.mxu0 0.0
    %5285 = vmatpush1.msra.mxu0 %v5259
    %5286 = vmatprep.subr.mxu0 0.0
    %5287 = vmatpush1.msra.mxu0 %v5258
    %5288 = vmatprep.subr.mxu0 0.0
    %5289 = vmatpush1.msra.mxu0 %v5257
    %5290 = vmatprep.subr.mxu0 0.0
    %5291 = vmatpush1.msra.mxu0 %v5256
    %5292 = vmatprep.subr.mxu0 0.0
    %5293 = vmatpush1.msra.mxu0 %v5255
    %5294 = vmatprep.subr.mxu0 0.0
    %5295 = vmatpush1.msra.mxu0 %v5254
    %5296 = vmatprep.subr.mxu0 0.0
    %5297 = vmatpush1.msra.mxu0 %v5253
    %5298 = vmatprep.subr.mxu0 0.0
    %5299 = vmatpush1.msra.mxu0 %v5252
    %5300 = vmatprep.subr.mxu0 0.0
    %5301 = vmatpush2.msra.mxu0 0.0
    %5302 = vmatprep.subr.mxu0 0.0
    %5303 = vmatpush2.msra.mxu0 0.0
    %5304 = vmatprep.subr.mxu0 0.0
    %5305 = vmatpush2.msra.mxu0 0.0
    %5306 = vmatprep.subr.mxu0 0.0
    %5307 = vmatpush2.msra.mxu0 0.0
    %5308 = vmatprep.subr.mxu0 0.0
    %5309 = vmatpush2.msra.mxu0 0.0
    %5310 = vmatprep.subr.mxu0 0.0
    %5311 = vmatpush2.msra.mxu0 0.0
    %5312 = vmatprep.subr.mxu0 0.0
    %5313 = vmatpush2.msra.mxu0 0.0
    %5314 = vmatprep.subr.mxu0 0.0
    %5315 = vmatpush2.msra.mxu0 0.0
    %5316 = vmatprep.subr.mxu0 0.0
    %5317 = vmatpush2.msra.mxu0 0.0
    %5318 = vmatprep.subr.mxu0 0.0
    %5319 = vmatpush2.msra.mxu0 0.0
    %5320 = vmatprep.subr.mxu0 0.0
    %5321 = vmatpush2.msra.mxu0 0.0
    %5322 = vmatprep.subr.mxu0 0.0
    %5323 = vmatpush2.msra.mxu0 0.0
    %5324 = vmatprep.subr.mxu0 0.0
    %5325 = vmatpush2.msra.mxu0 0.0
    %5326 = vmatprep.subr.mxu0 0.0
    %5327 = vmatpush2.msra.mxu0 0.0
    %5328 = vmatprep.subr.mxu0 0.0
    %5329 = vmatpush2.msra.mxu0 0.0
    %5330 = vmatprep.subr.mxu0 0.0
    %5331 = vmatpush2.msra.mxu0 0.0
    %5332 = vmatprep.mubr.f32.mxu0 0.0
    %5333 = vmatmul.mubr.f32.gmra.mxu0 %v5171
    %v5334 = vpop.f32.mrf.mxu0
    %v5335 = vadd.f32 0.0, %v5334
    %v5336 = vpop.f32.mrf.mxu0
    %5337 = vmatprep.mubr.f32.mxu0 0.0
    %5338 = vmatmul.mubr.f32.gmra.mxu0 %v5172
    %v5339 = vpop.f32.mrf.mxu0
    %v5340 = vadd.f32 0.0, %v5339
    %v5341 = vpop.f32.mrf.mxu0
    %5342 = vmatprep.mubr.f32.mxu0 0.0
    %5343 = vmatmul.mubr.f32.gmra.mxu0 %v5173
    %v5344 = vpop.f32.mrf.mxu0
    %v5345 = vadd.f32 0.0, %v5344
    %v5346 = vpop.f32.mrf.mxu0
    %5347 = vmatprep.mubr.f32.mxu0 0.0
    %5348 = vmatmul.mubr.f32.gmra.mxu0 %v5174
    %v5349 = vpop.f32.mrf.mxu0
    %v5350 = vadd.f32 0.0, %v5349
    %v5351 = vpop.f32.mrf.mxu0
    %5352 = vmatprep.mubr.f32.mxu0 0.0
    %5353 = vmatmul.mubr.f32.gmra.mxu0 %v5175
    %v5354 = vpop.f32.mrf.mxu0
    %v5355 = vadd.f32 0.0, %v5354
    %v5356 = vpop.f32.mrf.mxu0
    %5357 = vmatprep.mubr.f32.mxu0 0.0
    %5358 = vmatmul.mubr.f32.gmra.mxu0 %v5176
    %v5359 = vpop.f32.mrf.mxu0
    %v5360 = vadd.f32 0.0, %v5359
    %v5361 = vpop.f32.mrf.mxu0
    %5362 = vmatprep.mubr.f32.mxu0 0.0
    %5363 = vmatmul.mubr.f32.gmra.mxu0 %v5177
    %v5364 = vpop.f32.mrf.mxu0
    %v5365 = vadd.f32 0.0, %v5364
    %v5366 = vpop.f32.mrf.mxu0
    %5367 = vmatprep.mubr.f32.mxu0 0.0
    %5368 = vmatmul.mubr.f32.gmra.mxu0 %v5178
    %v5369 = vpop.f32.mrf.mxu0
    %v5370 = vadd.f32 0.0, %v5369
    %v5371 = vpop.f32.mrf.mxu0
    %5372 = vmatprep.mubr.f32.mxu0 0.0
    %5373 = vmatmul.mubr.f32.gmra.mxu0 %v5179
    %v5374 = vpop.f32.mrf.mxu0
    %v5375 = vadd.f32 0.0, %v5374
    %v5376 = vpop.f32.mrf.mxu0
    %5377 = vmatprep.mubr.f32.mxu0 0.0
    %5378 = vmatmul.mubr.f32.gmra.mxu0 %v5180
    %v5379 = vpop.f32.mrf.mxu0
    %v5380 = vadd.f32 0.0, %v5379
    %v5381 = vpop.f32.mrf.mxu0
    %5382 = vmatprep.mubr.f32.mxu0 0.0
    %5383 = vmatmul.mubr.f32.gmra.mxu0 %v5181
    %v5384 = vpop.f32.mrf.mxu0
    %v5385 = vadd.f32 0.0, %v5384
    %v5386 = vpop.f32.mrf.mxu0
    %5387 = vmatprep.mubr.f32.mxu0 0.0
    %5388 = vmatmul.mubr.f32.gmra.mxu0 %v5182
    %v5389 = vpop.f32.mrf.mxu0
    %v5390 = vadd.f32 0.0, %v5389
    %v5391 = vpop.f32.mrf.mxu0
    %5392 = vmatprep.mubr.f32.mxu0 0.0
    %5393 = vmatmul.mubr.f32.gmra.mxu0 %v5183
    %v5394 = vpop.f32.mrf.mxu0
    %v5395 = vadd.f32 0.0, %v5394
    %v5396 = vpop.f32.mrf.mxu0
    %5397 = vmatprep.mubr.f32.mxu0 0.0
    %5398 = vmatmul.mubr.f32.gmra.mxu0 %v5184
    %v5399 = vpop.f32.mrf.mxu0
    %v5400 = vadd.f32 0.0, %v5399
    %v5401 = vpop.f32.mrf.mxu0
    %5402 = vmatprep.mubr.f32.mxu0 0.0
    %5403 = vmatmul.mubr.f32.gmra.mxu0 %v5185
    %v5404 = vpop.f32.mrf.mxu0
    %v5405 = vadd.f32 0.0, %v5404
    %v5406 = vpop.f32.mrf.mxu0
    %5407 = vmatprep.mubr.f32.mxu0 0.0
    %5408 = vmatmul.mubr.f32.gmra.mxu0 %v5186
    %v5409 = vpop.f32.mrf.mxu0
    %v5410 = vadd.f32 0.0, %v5409
    %v5411 = vpop.f32.mrf.mxu0
    %5412 = vmatprep.mubr.f32.mxu0 0.0
    %5413 = vmatmul.mubr.f32.gmra.mxu0 %v5187
    %v5414 = vpop.f32.mrf.mxu0
    %v5415 = vadd.f32 0.0, %v5414
    %v5416 = vpop.f32.mrf.mxu0
    %5417 = vmatprep.mubr.f32.mxu0 0.0
    %5418 = vmatmul.mubr.f32.gmra.mxu0 %v5188
    %v5419 = vpop.f32.mrf.mxu0
    %v5420 = vadd.f32 0.0, %v5419
    %v5421 = vpop.f32.mrf.mxu0
    %5422 = vmatprep.mubr.f32.mxu0 0.0
    %5423 = vmatmul.mubr.f32.gmra.mxu0 %v5189
    %v5424 = vpop.f32.mrf.mxu0
    %v5425 = vadd.f32 0.0, %v5424
    %v5426 = vpop.f32.mrf.mxu0
    %5427 = vmatprep.mubr.f32.mxu0 0.0
    %5428 = vmatmul.mubr.f32.gmra.mxu0 %v5190
    %v5429 = vpop.f32.mrf.mxu0
    %v5430 = vadd.f32 0.0, %v5429
    %v5431 = vpop.f32.mrf.mxu0
    %5432 = vmatprep.mubr.f32.mxu0 0.0
    %5433 = vmatmul.mubr.f32.gmra.mxu0 %v5191
    %v5434 = vpop.f32.mrf.mxu0
    %v5435 = vadd.f32 0.0, %v5434
    %v5436 = vpop.f32.mrf.mxu0
    %5437 = vmatprep.mubr.f32.mxu0 0.0
    %5438 = vmatmul.mubr.f32.gmra.mxu0 %v5192
    %v5439 = vpop.f32.mrf.mxu0
    %v5440 = vadd.f32 0.0, %v5439
    %v5441 = vpop.f32.mrf.mxu0
    %5442 = vmatprep.mubr.f32.mxu0 0.0
    %5443 = vmatmul.mubr.f32.gmra.mxu0 %v5193
    %v5444 = vpop.f32.mrf.mxu0
    %v5445 = vadd.f32 0.0, %v5444
    %v5446 = vpop.f32.mrf.mxu0
    %5447 = vmatprep.mubr.f32.mxu0 0.0
    %5448 = vmatmul.mubr.f32.gmra.mxu0 %v5194
    %v5449 = vpop.f32.mrf.mxu0
    %v5450 = vadd.f32 0.0, %v5449
    %v5451 = vpop.f32.mrf.mxu0
    %5452 = vmatprep.mubr.f32.mxu0 0.0
    %5453 = vmatmul.mubr.f32.gmra.mxu0 %v5195
    %v5454 = vpop.f32.mrf.mxu0
    %v5455 = vadd.f32 0.0, %v5454
    %v5456 = vpop.f32.mrf.mxu0
    %5457 = vmatprep.mubr.f32.mxu0 0.0
    %5458 = vmatmul.mubr.f32.gmra.mxu0 %v5196
    %v5459 = vpop.f32.mrf.mxu0
    %v5460 = vadd.f32 0.0, %v5459
    %v5461 = vpop.f32.mrf.mxu0
    %5462 = vmatprep.mubr.f32.mxu0 0.0
    %5463 = vmatmul.mubr.f32.gmra.mxu0 %v5197
    %v5464 = vpop.f32.mrf.mxu0
    %v5465 = vadd.f32 0.0, %v5464
    %v5466 = vpop.f32.mrf.mxu0
    %5467 = vmatprep.mubr.f32.mxu0 0.0
    %5468 = vmatmul.mubr.f32.gmra.mxu0 %v5198
    %v5469 = vpop.f32.mrf.mxu0
    %v5470 = vadd.f32 0.0, %v5469
    %v5471 = vpop.f32.mrf.mxu0
    %5472 = vmatprep.mubr.f32.mxu0 0.0
    %5473 = vmatmul.mubr.f32.gmra.mxu0 %v5199
    %v5474 = vpop.f32.mrf.mxu0
    %v5475 = vadd.f32 0.0, %v5474
    %v5476 = vpop.f32.mrf.mxu0
    %5477 = vmatprep.mubr.f32.mxu0 0.0
    %5478 = vmatmul.mubr.f32.gmra.mxu0 %v5200
    %v5479 = vpop.f32.mrf.mxu0
    %v5480 = vadd.f32 0.0, %v5479
    %v5481 = vpop.f32.mrf.mxu0
    %5482 = vmatprep.mubr.f32.mxu0 0.0
    %5483 = vmatmul.mubr.f32.gmra.mxu0 %v5201
    %v5484 = vpop.f32.mrf.mxu0
    %v5485 = vadd.f32 0.0, %v5484
    %v5486 = vpop.f32.mrf.mxu0
    %5487 = vmatprep.mubr.f32.mxu0 0.0
    %5488 = vmatmul.mubr.f32.gmra.mxu0 %v5202
    %v5489 = vpop.f32.mrf.mxu0
    %v5490 = vadd.f32 0.0, %v5489
    %v5491 = vpop.f32.mrf.mxu0
    %5492 = vmatprep.mubr.f32.mxu0 0.0
    %5493 = vmatmul.mubr.f32.gmra.mxu0 %v5203
    %v5494 = vpop.f32.mrf.mxu0
    %v5495 = vadd.f32 0.0, %v5494
    %v5496 = vpop.f32.mrf.mxu0
    %5497 = vmatprep.mubr.f32.mxu0 0.0
    %5498 = vmatmul.mubr.f32.gmra.mxu0 %v5204
    %v5499 = vpop.f32.mrf.mxu0
    %v5500 = vadd.f32 0.0, %v5499
    %v5501 = vpop.f32.mrf.mxu0
    %5502 = vmatprep.mubr.f32.mxu0 0.0
    %5503 = vmatmul.mubr.f32.gmra.mxu0 %v5205
    %v5504 = vpop.f32.mrf.mxu0
    %v5505 = vadd.f32 0.0, %v5504
    %v5506 = vpop.f32.mrf.mxu0
    %5507 = vmatprep.mubr.f32.mxu0 0.0
    %5508 = vmatmul.mubr.f32.gmra.mxu0 %v5206
    %v5509 = vpop.f32.mrf.mxu0
    %v5510 = vadd.f32 0.0, %v5509
    %v5511 = vpop.f32.mrf.mxu0
    %5512 = vmatprep.mubr.f32.mxu0 0.0
    %5513 = vmatmul.mubr.f32.gmra.mxu0 %v5207
    %v5514 = vpop.f32.mrf.mxu0
    %v5515 = vadd.f32 0.0, %v5514
    %v5516 = vpop.f32.mrf.mxu0
    %5517 = vmatprep.mubr.f32.mxu0 0.0
    %5518 = vmatmul.mubr.f32.gmra.mxu0 %v5208
    %v5519 = vpop.f32.mrf.mxu0
    %v5520 = vadd.f32 0.0, %v5519
    %v5521 = vpop.f32.mrf.mxu0
    %5522 = vmatprep.mubr.f32.mxu0 0.0
    %5523 = vmatmul.mubr.f32.gmra.mxu0 %v5209
    %v5524 = vpop.f32.mrf.mxu0
    %v5525 = vadd.f32 0.0, %v5524
    %v5526 = vpop.f32.mrf.mxu0
    %5527 = vmatprep.mubr.f32.mxu0 0.0
    %5528 = vmatmul.mubr.f32.gmra.mxu0 %v5210
    %v5529 = vpop.f32.mrf.mxu0
    %v5530 = vadd.f32 0.0, %v5529
    %v5531 = vpop.f32.mrf.mxu0
    %5532 = vmatprep.mubr.f32.mxu0 0.0
    %5533 = vmatmul.mubr.f32.gmra.mxu0 %v5211
    %v5534 = vpop.f32.mrf.mxu0
    %v5535 = vadd.f32 0.0, %v5534
    %v5536 = vpop.f32.mrf.mxu0
    %5537 = vmatprep.mubr.f32.mxu0 0.0
    %5538 = vmatmul.mubr.f32.gmra.mxu0 %v5212
    %v5539 = vpop.f32.mrf.mxu0
    %v5540 = vadd.f32 0.0, %v5539
    %v5541 = vpop.f32.mrf.mxu0
    %5542 = vmatprep.mubr.f32.mxu0 0.0
    %5543 = vmatmul.mubr.f32.gmra.mxu0 %v5213
    %v5544 = vpop.f32.mrf.mxu0
    %v5545 = vadd.f32 0.0, %v5544
    %v5546 = vpop.f32.mrf.mxu0
    %5547 = vmatprep.mubr.f32.mxu0 0.0
    %5548 = vmatmul.mubr.f32.gmra.mxu0 %v5214
    %v5549 = vpop.f32.mrf.mxu0
    %v5550 = vadd.f32 0.0, %v5549
    %v5551 = vpop.f32.mrf.mxu0
    %5552 = vmatprep.mubr.f32.mxu0 0.0
    %5553 = vmatmul.mubr.f32.gmra.mxu0 %v5215
    %v5554 = vpop.f32.mrf.mxu0
    %v5555 = vadd.f32 0.0, %v5554
    %v5556 = vpop.f32.mrf.mxu0
    %5557 = vmatprep.mubr.f32.mxu0 0.0
    %5558 = vmatmul.mubr.f32.gmra.mxu0 %v5216
    %v5559 = vpop.f32.mrf.mxu0
    %v5560 = vadd.f32 0.0, %v5559
    %v5561 = vpop.f32.mrf.mxu0
    %5562 = vmatprep.mubr.f32.mxu0 0.0
    %5563 = vmatmul.mubr.f32.gmra.mxu0 %v5217
    %v5564 = vpop.f32.mrf.mxu0
    %v5565 = vadd.f32 0.0, %v5564
    %v5566 = vpop.f32.mrf.mxu0
    %5567 = vmatprep.mubr.f32.mxu0 0.0
    %5568 = vmatmul.mubr.f32.gmra.mxu0 %v5218
    %v5569 = vpop.f32.mrf.mxu0
    %v5570 = vadd.f32 0.0, %v5569
    %v5571 = vpop.f32.mrf.mxu0
    %5572 = vmatprep.mubr.f32.mxu0 0.0
    %5573 = vmatmul.mubr.f32.gmra.mxu0 %v5219
    %v5574 = vpop.f32.mrf.mxu0
    %v5575 = vadd.f32 0.0, %v5574
    %v5576 = vpop.f32.mrf.mxu0
    %5577 = vmatprep.mubr.f32.mxu0 0.0
    %5578 = vmatmul.mubr.f32.gmra.mxu0 %v5220
    %v5579 = vpop.f32.mrf.mxu0
    %v5580 = vadd.f32 0.0, %v5579
    %v5581 = vpop.f32.mrf.mxu0
    %5582 = vmatprep.mubr.f32.mxu0 0.0
    %5583 = vmatmul.mubr.f32.gmra.mxu0 %v5221
    %v5584 = vpop.f32.mrf.mxu0
    %v5585 = vadd.f32 0.0, %v5584
    %v5586 = vpop.f32.mrf.mxu0
    %5587 = vmatprep.mubr.f32.mxu0 0.0
    %5588 = vmatmul.mubr.f32.gmra.mxu0 %v5222
    %v5589 = vpop.f32.mrf.mxu0
    %v5590 = vadd.f32 0.0, %v5589
    %v5591 = vpop.f32.mrf.mxu0
    %5592 = vmatprep.mubr.f32.mxu0 0.0
    %5593 = vmatmul.mubr.f32.gmra.mxu0 %v5223
    %v5594 = vpop.f32.mrf.mxu0
    %v5595 = vadd.f32 0.0, %v5594
    %v5596 = vpop.f32.mrf.mxu0
    %5597 = vmatprep.mubr.f32.mxu0 0.0
    %5598 = vmatmul.mubr.f32.gmra.mxu0 %v5224
    %v5599 = vpop.f32.mrf.mxu0
    %v5600 = vadd.f32 0.0, %v5599
    %v5601 = vpop.f32.mrf.mxu0
    %5602 = vmatprep.mubr.f32.mxu0 0.0
    %5603 = vmatmul.mubr.f32.gmra.mxu0 %v5225
    %v5604 = vpop.f32.mrf.mxu0
    %v5605 = vadd.f32 0.0, %v5604
    %v5606 = vpop.f32.mrf.mxu0
    %5607 = vmatprep.mubr.f32.mxu0 0.0
    %5608 = vmatmul.mubr.f32.gmra.mxu0 %v5226
    %v5609 = vpop.f32.mrf.mxu0
    %v5610 = vadd.f32 0.0, %v5609
    %v5611 = vpop.f32.mrf.mxu0
    %5612 = vmatprep.mubr.f32.mxu0 0.0
    %5613 = vmatmul.mubr.f32.gmra.mxu0 %v5227
    %v5614 = vpop.f32.mrf.mxu0
    %v5615 = vadd.f32 0.0, %v5614
    %v5616 = vpop.f32.mrf.mxu0
    %5617 = vmatprep.mubr.f32.mxu0 0.0
    %5618 = vmatmul.mubr.f32.gmra.mxu0 %v5228
    %v5619 = vpop.f32.mrf.mxu0
    %v5620 = vadd.f32 0.0, %v5619
    %v5621 = vpop.f32.mrf.mxu0
    %5622 = vmatprep.mubr.f32.mxu0 0.0
    %5623 = vmatmul.mubr.f32.gmra.mxu0 %v5229
    %v5624 = vpop.f32.mrf.mxu0
    %v5625 = vadd.f32 0.0, %v5624
    %v5626 = vpop.f32.mrf.mxu0
    %5627 = vmatprep.mubr.f32.mxu0 0.0
    %5628 = vmatmul.mubr.f32.gmra.mxu0 %v5230
    %v5629 = vpop.f32.mrf.mxu0
    %v5630 = vadd.f32 0.0, %v5629
    %v5631 = vpop.f32.mrf.mxu0
    %5632 = vmatprep.mubr.f32.mxu0 0.0
    %5633 = vmatmul.mubr.f32.gmra.mxu0 %v5231
    %v5634 = vpop.f32.mrf.mxu0
    %v5635 = vadd.f32 0.0, %v5634
    %v5636 = vpop.f32.mrf.mxu0
    %5637 = vmatprep.mubr.f32.mxu0 0.0
    %5638 = vmatmul.mubr.f32.gmra.mxu0 %v5232
    %v5639 = vpop.f32.mrf.mxu0
    %v5640 = vadd.f32 0.0, %v5639
    %v5641 = vpop.f32.mrf.mxu0
    %5642 = vmatprep.mubr.f32.mxu0 0.0
    %5643 = vmatmul.mubr.f32.gmra.mxu0 %v5233
    %v5644 = vpop.f32.mrf.mxu0
    %v5645 = vadd.f32 0.0, %v5644
    %v5646 = vpop.f32.mrf.mxu0
    %5647 = vmatprep.mubr.f32.mxu0 0.0
    %5648 = vmatmul.mubr.f32.gmra.mxu0 %v5234
    %v5649 = vpop.f32.mrf.mxu0
    %v5650 = vadd.f32 0.0, %v5649
    %v5651 = vpop.f32.mrf.mxu0
    %5652 = vmatprep.mubr.f32.mxu0 0.0
    %5653 = vmatmul.mubr.f32.gmra.mxu0 %v5235
    %v5654 = vpop.f32.mrf.mxu0
    %v5655 = vadd.f32 0.0, %v5654
    %v5656 = vpop.f32.mrf.mxu0
    %5657 = vmatprep.mubr.f32.mxu0 0.0
    %5658 = vmatmul.mubr.f32.gmra.mxu0 %v5236
    %v5659 = vpop.f32.mrf.mxu0
    %v5660 = vadd.f32 0.0, %v5659
    %v5661 = vpop.f32.mrf.mxu0
    %5662 = vmatprep.mubr.f32.mxu0 0.0
    %5663 = vmatmul.mubr.f32.gmra.mxu0 %v5237
    %v5664 = vpop.f32.mrf.mxu0
    %v5665 = vadd.f32 0.0, %v5664
    %v5666 = vpop.f32.mrf.mxu0
    %5667 = vmatprep.mubr.f32.mxu0 0.0
    %5668 = vmatmul.mubr.f32.gmra.mxu0 %v5238
    %v5669 = vpop.f32.mrf.mxu0
    %v5670 = vadd.f32 0.0, %v5669
    %v5671 = vpop.f32.mrf.mxu0
    %5672 = vmatprep.mubr.f32.mxu0 0.0
    %5673 = vmatmul.mubr.f32.gmra.mxu0 %v5239
    %v5674 = vpop.f32.mrf.mxu0
    %v5675 = vadd.f32 0.0, %v5674
    %v5676 = vpop.f32.mrf.mxu0
    %5677 = vmatprep.mubr.f32.mxu0 0.0
    %5678 = vmatmul.mubr.f32.gmra.mxu0 %v5240
    %v5679 = vpop.f32.mrf.mxu0
    %v5680 = vadd.f32 0.0, %v5679
    %v5681 = vpop.f32.mrf.mxu0
    %5682 = vmatprep.mubr.f32.mxu0 0.0
    %5683 = vmatmul.mubr.f32.gmra.mxu0 %v5241
    %v5684 = vpop.f32.mrf.mxu0
    %v5685 = vadd.f32 0.0, %v5684
    %v5686 = vpop.f32.mrf.mxu0
    %5687 = vmatprep.mubr.f32.mxu0 0.0
    %5688 = vmatmul.mubr.f32.gmra.mxu0 %v5242
    %v5689 = vpop.f32.mrf.mxu0
    %v5690 = vadd.f32 0.0, %v5689
    %v5691 = vpop.f32.mrf.mxu0
    %5692 = vmatprep.mubr.f32.mxu0 0.0
    %5693 = vmatmul.mubr.f32.gmra.mxu0 %v5243
    %v5694 = vpop.f32.mrf.mxu0
    %v5695 = vadd.f32 0.0, %v5694
    %v5696 = vpop.f32.mrf.mxu0
    %5697 = vmatprep.mubr.f32.mxu0 0.0
    %5698 = vmatmul.mubr.f32.gmra.mxu0 %v5244
    %v5699 = vpop.f32.mrf.mxu0
    %v5700 = vadd.f32 0.0, %v5699
    %v5701 = vpop.f32.mrf.mxu0
    %5702 = vmatprep.mubr.f32.mxu0 0.0
    %5703 = vmatmul.mubr.f32.gmra.mxu0 %v5245
    %v5704 = vpop.f32.mrf.mxu0
    %v5705 = vadd.f32 0.0, %v5704
    %v5706 = vpop.f32.mrf.mxu0
    %5707 = vmatprep.mubr.f32.mxu0 0.0
    %5708 = vmatmul.mubr.f32.gmra.mxu0 %v5246
    %v5709 = vpop.f32.mrf.mxu0
    %v5710 = vadd.f32 0.0, %v5709
    %v5711 = vpop.f32.mrf.mxu0
    %5712 = vmatprep.mubr.f32.mxu0 0.0
    %5713 = vmatmul.mubr.f32.gmra.mxu0 %v5247
    %v5714 = vpop.f32.mrf.mxu0
    %v5715 = vadd.f32 0.0, %v5714
    %v5716 = vpop.f32.mrf.mxu0
    %5717 = vmatprep.mubr.f32.mxu0 0.0
    %5718 = vmatmul.mubr.f32.gmra.mxu0 %v5248
    %v5719 = vpop.f32.mrf.mxu0
    %v5720 = vadd.f32 0.0, %v5719
    %v5721 = vpop.f32.mrf.mxu0
    %5722 = vmatprep.mubr.f32.mxu0 0.0
    %5723 = vmatmul.mubr.f32.gmra.mxu0 %v5249
    %v5724 = vpop.f32.mrf.mxu0
    %v5725 = vadd.f32 0.0, %v5724
    %v5726 = vpop.f32.mrf.mxu0
    %5727 = vmatprep.mubr.f32.mxu0 0.0
    %5728 = vmatmul.mubr.f32.gmra.mxu0 %v5250
    %v5729 = vpop.f32.mrf.mxu0
    %v5730 = vadd.f32 0.0, %v5729
    %v5731 = vpop.f32.mrf.mxu0
    %5732 = vdwg.mxu0
    %v5733 = vadd.f32 %v5091, %v5335
    %v5734 = vadd.f32 %v5092, %v5340
    %v5735 = vadd.f32 %v5093, %v5345
    %v5736 = vadd.f32 %v5094, %v5350
    %v5737 = vadd.f32 %v5095, %v5355
    %v5738 = vadd.f32 %v5096, %v5360
    %v5739 = vadd.f32 %v5097, %v5365
    %v5740 = vadd.f32 %v5098, %v5370
    %v5741 = vadd.f32 %v5099, %v5375
    %v5742 = vadd.f32 %v5100, %v5380
    %v5743 = vadd.f32 %v5101, %v5385
    %v5744 = vadd.f32 %v5102, %v5390
    %v5745 = vadd.f32 %v5103, %v5395
    %v5746 = vadd.f32 %v5104, %v5400
    %v5747 = vadd.f32 %v5105, %v5405
    %v5748 = vadd.f32 %v5106, %v5410
    %v5749 = vadd.f32 %v5107, %v5415
    %v5750 = vadd.f32 %v5108, %v5420
    %v5751 = vadd.f32 %v5109, %v5425
    %v5752 = vadd.f32 %v5110, %v5430
    %v5753 = vadd.f32 %v5111, %v5435
    %v5754 = vadd.f32 %v5112, %v5440
    %v5755 = vadd.f32 %v5113, %v5445
    %v5756 = vadd.f32 %v5114, %v5450
    %v5757 = vadd.f32 %v5115, %v5455
    %v5758 = vadd.f32 %v5116, %v5460
    %v5759 = vadd.f32 %v5117, %v5465
    %v5760 = vadd.f32 %v5118, %v5470
    %v5761 = vadd.f32 %v5119, %v5475
    %v5762 = vadd.f32 %v5120, %v5480
    %v5763 = vadd.f32 %v5121, %v5485
    %v5764 = vadd.f32 %v5122, %v5490
    %v5765 = vadd.f32 %v5123, %v5495
    %v5766 = vadd.f32 %v5124, %v5500
    %v5767 = vadd.f32 %v5125, %v5505
    %v5768 = vadd.f32 %v5126, %v5510
    %v5769 = vadd.f32 %v5127, %v5515
    %v5770 = vadd.f32 %v5128, %v5520
    %v5771 = vadd.f32 %v5129, %v5525
    %v5772 = vadd.f32 %v5130, %v5530
    %v5773 = vadd.f32 %v5131, %v5535
    %v5774 = vadd.f32 %v5132, %v5540
    %v5775 = vadd.f32 %v5133, %v5545
    %v5776 = vadd.f32 %v5134, %v5550
    %v5777 = vadd.f32 %v5135, %v5555
    %v5778 = vadd.f32 %v5136, %v5560
    %v5779 = vadd.f32 %v5137, %v5565
    %v5780 = vadd.f32 %v5138, %v5570
    %v5781 = vadd.f32 %v5139, %v5575
    %v5782 = vadd.f32 %v5140, %v5580
    %v5783 = vadd.f32 %v5141, %v5585
    %v5784 = vadd.f32 %v5142, %v5590
    %v5785 = vadd.f32 %v5143, %v5595
    %v5786 = vadd.f32 %v5144, %v5600
    %v5787 = vadd.f32 %v5145, %v5605
    %v5788 = vadd.f32 %v5146, %v5610
    %v5789 = vadd.f32 %v5147, %v5615
    %v5790 = vadd.f32 %v5148, %v5620
    %v5791 = vadd.f32 %v5149, %v5625
    %v5792 = vadd.f32 %v5150, %v5630
    %v5793 = vadd.f32 %v5151, %v5635
    %v5794 = vadd.f32 %v5152, %v5640
    %v5795 = vadd.f32 %v5153, %v5645
    %v5796 = vadd.f32 %v5154, %v5650
    %v5797 = vadd.f32 %v5155, %v5655
    %v5798 = vadd.f32 %v5156, %v5660
    %v5799 = vadd.f32 %v5157, %v5665
    %v5800 = vadd.f32 %v5158, %v5670
    %v5801 = vadd.f32 %v5159, %v5675
    %v5802 = vadd.f32 %v5160, %v5680
    %v5803 = vadd.f32 %v5161, %v5685
    %v5804 = vadd.f32 %v5162, %v5690
    %v5805 = vadd.f32 %v5163, %v5695
    %v5806 = vadd.f32 %v5164, %v5700
    %v5807 = vadd.f32 %v5165, %v5705
    %v5808 = vadd.f32 %v5166, %v5710
    %v5809 = vadd.f32 %v5167, %v5715
    %v5810 = vadd.f32 %v5168, %v5720
    %v5811 = vadd.f32 %v5169, %v5725
    %v5812 = vadd.f32 %v5170, %v5730
    %v5813 = vld [vmem:[#allocation2 + $0x29] sm:$0xff]
    %v5814 = vld [vmem:[#allocation2 + $0x31] sm:$0xff]
    %v5815 = vld [vmem:[#allocation2 + $0x39] sm:$0xff]
    %v5816 = vld [vmem:[#allocation2 + $0x41] sm:$0xff]
    %v5817 = vld [vmem:[#allocation2 + $0x49] sm:$0xff]
    %v5818 = vld [vmem:[#allocation2 + $0x51] sm:$0xff]
    %v5819 = vld [vmem:[#allocation2 + $0x59] sm:$0xff]
    %v5820 = vld [vmem:[#allocation2 + $0x61] sm:$0xff]
    %v5821 = vld [vmem:[#allocation2 + $0x69] sm:$0xff]
    %v5822 = vld [vmem:[#allocation2 + $0x71] sm:$0xff]
    %v5823 = vld [vmem:[#allocation2 + $0x79] sm:$0xff]
    %v5824 = vld [vmem:[#allocation2 + $0x81] sm:$0xff]
    %v5825 = vld [vmem:[#allocation2 + $0x89] sm:$0xff]
    %v5826 = vld [vmem:[#allocation2 + $0x91] sm:$0xff]
    %v5827 = vld [vmem:[#allocation2 + $0x99] sm:$0xff]
    %v5828 = vld [vmem:[#allocation2 + $0xa1] sm:$0xff]
    %v5829 = vld [vmem:[#allocation2 + $0xa9] sm:$0xff]
    %v5830 = vld [vmem:[#allocation2 + $0xb1] sm:$0xff]
    %v5831 = vld [vmem:[#allocation2 + $0xb9] sm:$0xff]
    %v5832 = vld [vmem:[#allocation2 + $0xc1] sm:$0xff]
    %v5833 = vld [vmem:[#allocation2 + $0xc9] sm:$0xff]
    %v5834 = vld [vmem:[#allocation2 + $0xd1] sm:$0xff]
    %v5835 = vld [vmem:[#allocation2 + $0xd9] sm:$0xff]
    %v5836 = vld [vmem:[#allocation2 + $0xe1] sm:$0xff]
    %v5837 = vld [vmem:[#allocation2 + $0xe9] sm:$0xff]
    %v5838 = vld [vmem:[#allocation2 + $0xf1] sm:$0xff]
    %v5839 = vld [vmem:[#allocation2 + $0xf9] sm:$0xff]
    %v5840 = vld [vmem:[#allocation2 + $0x101] sm:$0xff]
    %v5841 = vld [vmem:[#allocation2 + $0x109] sm:$0xff]
    %v5842 = vld [vmem:[#allocation2 + $0x111] sm:$0xff]
    %v5843 = vld [vmem:[#allocation2 + $0x119] sm:$0xff]
    %v5844 = vld [vmem:[#allocation2 + $0x121] sm:$0xff]
    %v5845 = vld [vmem:[#allocation2 + $0x129] sm:$0xff]
    %v5846 = vld [vmem:[#allocation2 + $0x131] sm:$0xff]
    %v5847 = vld [vmem:[#allocation2 + $0x139] sm:$0xff]
    %v5848 = vld [vmem:[#allocation2 + $0x141] sm:$0xff]
    %v5849 = vld [vmem:[#allocation2 + $0x149] sm:$0xff]
    %v5850 = vld [vmem:[#allocation2 + $0x151] sm:$0xff]
    %v5851 = vld [vmem:[#allocation2 + $0x159] sm:$0xff]
    %v5852 = vld [vmem:[#allocation2 + $0x161] sm:$0xff]
    %v5853 = vld [vmem:[#allocation2 + $0x169] sm:$0xff]
    %v5854 = vld [vmem:[#allocation2 + $0x171] sm:$0xff]
    %v5855 = vld [vmem:[#allocation2 + $0x179] sm:$0xff]
    %v5856 = vld [vmem:[#allocation2 + $0x181] sm:$0xff]
    %v5857 = vld [vmem:[#allocation2 + $0x189] sm:$0xff]
    %v5858 = vld [vmem:[#allocation2 + $0x191] sm:$0xff]
    %v5859 = vld [vmem:[#allocation2 + $0x199] sm:$0xff]
    %v5860 = vld [vmem:[#allocation2 + $0x1a1] sm:$0xff]
    %v5861 = vld [vmem:[#allocation2 + $0x1a9] sm:$0xff]
    %v5862 = vld [vmem:[#allocation2 + $0x1b1] sm:$0xff]
    %v5863 = vld [vmem:[#allocation2 + $0x1b9] sm:$0xff]
    %v5864 = vld [vmem:[#allocation2 + $0x1c1] sm:$0xff]
    %v5865 = vld [vmem:[#allocation2 + $0x1c9] sm:$0xff]
    %v5866 = vld [vmem:[#allocation2 + $0x1d1] sm:$0xff]
    %v5867 = vld [vmem:[#allocation2 + $0x1d9] sm:$0xff]
    %v5868 = vld [vmem:[#allocation2 + $0x1e1] sm:$0xff]
    %v5869 = vld [vmem:[#allocation2 + $0x1e9] sm:$0xff]
    %v5870 = vld [vmem:[#allocation2 + $0x1f1] sm:$0xff]
    %v5871 = vld [vmem:[#allocation2 + $0x1f9] sm:$0xff]
    %v5872 = vld [vmem:[#allocation2 + $0x201] sm:$0xff]
    %v5873 = vld [vmem:[#allocation2 + $0x209] sm:$0xff]
    %v5874 = vld [vmem:[#allocation2 + $0x211] sm:$0xff]
    %v5875 = vld [vmem:[#allocation2 + $0x219] sm:$0xff]
    %v5876 = vld [vmem:[#allocation2 + $0x221] sm:$0xff]
    %v5877 = vld [vmem:[#allocation2 + $0x229] sm:$0xff]
    %v5878 = vld [vmem:[#allocation2 + $0x231] sm:$0xff]
    %v5879 = vld [vmem:[#allocation2 + $0x239] sm:$0xff]
    %v5880 = vld [vmem:[#allocation2 + $0x241] sm:$0xff]
    %v5881 = vld [vmem:[#allocation2 + $0x249] sm:$0xff]
    %v5882 = vld [vmem:[#allocation2 + $0x251] sm:$0xff]
    %v5883 = vld [vmem:[#allocation2 + $0x259] sm:$0xff]
    %v5884 = vld [vmem:[#allocation2 + $0x261] sm:$0xff]
    %v5885 = vld [vmem:[#allocation2 + $0x269] sm:$0xff]
    %v5886 = vld [vmem:[#allocation2 + $0x271] sm:$0xff]
    %v5887 = vld [vmem:[#allocation2 + $0x279] sm:$0xff]
    %v5888 = vld [vmem:[#allocation2 + $0x281] sm:$0xff]
    %v5889 = vld [vmem:[#allocation2 + $0x289] sm:$0xff]
    %v5890 = vld [vmem:[#allocation2 + $0x291] sm:$0xff]
    %v5891 = vld [vmem:[#allocation2 + $0x299] sm:$0xff]
    %v5892 = vld [vmem:[#allocation2 + $0x2a1] sm:$0xff]
    %s5893 = scalar_lea.vmem [#allocation8], 768
    %v5894 = vld [vmem:[%s5893] sm:$0xff]
    %v5895 = vld [vmem:[%s5893 + $0x8] sm:$0xff]
    %v5896 = vld [vmem:[%s5893 + $0x10] sm:$0xff]
    %v5897 = vld [vmem:[%s5893 + $0x18] sm:$0xff]
    %v5898 = vld [vmem:[%s5893 + $0x20] sm:$0xff]
    %v5899 = vld [vmem:[%s5893 + $0x28] sm:$0xff]
    %v5900 = vld [vmem:[%s5893 + $0x30] sm:$0xff]
    %v5901 = vld [vmem:[%s5893 + $0x38] sm:$0xff]
    %v5902 = vld [vmem:[%s5893 + $0x40] sm:$0xff]
    %v5903 = vld [vmem:[%s5893 + $0x48] sm:$0xff]
    %v5904 = vld [vmem:[%s5893 + $0x50] sm:$0xff]
    %v5905 = vld [vmem:[%s5893 + $0x58] sm:$0xff]
    %v5906 = vld [vmem:[%s5893 + $0x60] sm:$0xff]
    %v5907 = vld [vmem:[%s5893 + $0x68] sm:$0xff]
    %v5908 = vld [vmem:[%s5893 + $0x70] sm:$0xff]
    %v5909 = vld [vmem:[%s5893 + $0x78] sm:$0xff]
    %5910 = vmatprep.subr.mxu0 0.0
    %5911 = vmatpush1.msra.mxu0 %v5909
    %5912 = vmatprep.subr.mxu0 0.0
    %5913 = vmatpush1.msra.mxu0 %v5908
    %5914 = vmatprep.subr.mxu0 0.0
    %5915 = vmatpush1.msra.mxu0 %v5907
    %5916 = vmatprep.subr.mxu0 0.0
    %5917 = vmatpush1.msra.mxu0 %v5906
    %5918 = vmatprep.subr.mxu0 0.0
    %5919 = vmatpush1.msra.mxu0 %v5905
    %5920 = vmatprep.subr.mxu0 0.0
    %5921 = vmatpush1.msra.mxu0 %v5904
    %5922 = vmatprep.subr.mxu0 0.0
    %5923 = vmatpush1.msra.mxu0 %v5903
    %5924 = vmatprep.subr.mxu0 0.0
    %5925 = vmatpush1.msra.mxu0 %v5902
    %5926 = vmatprep.subr.mxu0 0.0
    %5927 = vmatpush1.msra.mxu0 %v5901
    %5928 = vmatprep.subr.mxu0 0.0
    %5929 = vmatpush1.msra.mxu0 %v5900
    %5930 = vmatprep.subr.mxu0 0.0
    %5931 = vmatpush1.msra.mxu0 %v5899
    %5932 = vmatprep.subr.mxu0 0.0
    %5933 = vmatpush1.msra.mxu0 %v5898
    %5934 = vmatprep.subr.mxu0 0.0
    %5935 = vmatpush1.msra.mxu0 %v5897
    %5936 = vmatprep.subr.mxu0 0.0
    %5937 = vmatpush1.msra.mxu0 %v5896
    %5938 = vmatprep.subr.mxu0 0.0
    %5939 = vmatpush1.msra.mxu0 %v5895
    %5940 = vmatprep.subr.mxu0 0.0
    %5941 = vmatpush1.msra.mxu0 %v5894
    %5942 = vmatprep.subr.mxu0 0.0
    %5943 = vmatpush2.msra.mxu0 0.0
    %5944 = vmatprep.subr.mxu0 0.0
    %5945 = vmatpush2.msra.mxu0 0.0
    %5946 = vmatprep.subr.mxu0 0.0
    %5947 = vmatpush2.msra.mxu0 0.0
    %5948 = vmatprep.subr.mxu0 0.0
    %5949 = vmatpush2.msra.mxu0 0.0
    %5950 = vmatprep.subr.mxu0 0.0
    %5951 = vmatpush2.msra.mxu0 0.0
    %5952 = vmatprep.subr.mxu0 0.0
    %5953 = vmatpush2.msra.mxu0 0.0
    %5954 = vmatprep.subr.mxu0 0.0
    %5955 = vmatpush2.msra.mxu0 0.0
    %5956 = vmatprep.subr.mxu0 0.0
    %5957 = vmatpush2.msra.mxu0 0.0
    %5958 = vmatprep.subr.mxu0 0.0
    %5959 = vmatpush2.msra.mxu0 0.0
    %5960 = vmatprep.subr.mxu0 0.0
    %5961 = vmatpush2.msra.mxu0 0.0
    %5962 = vmatprep.subr.mxu0 0.0
    %5963 = vmatpush2.msra.mxu0 0.0
    %5964 = vmatprep.subr.mxu0 0.0
    %5965 = vmatpush2.msra.mxu0 0.0
    %5966 = vmatprep.subr.mxu0 0.0
    %5967 = vmatpush2.msra.mxu0 0.0
    %5968 = vmatprep.subr.mxu0 0.0
    %5969 = vmatpush2.msra.mxu0 0.0
    %5970 = vmatprep.subr.mxu0 0.0
    %5971 = vmatpush2.msra.mxu0 0.0
    %5972 = vmatprep.subr.mxu0 0.0
    %5973 = vmatpush2.msra.mxu0 0.0
    %5974 = vmatprep.mubr.f32.mxu0 0.0
    %5975 = vmatmul.mubr.f32.gmra.mxu0 %v5813
    %v5976 = vpop.f32.mrf.mxu0
    %v5977 = vadd.f32 0.0, %v5976
    %v5978 = vpop.f32.mrf.mxu0
    %5979 = vmatprep.mubr.f32.mxu0 0.0
    %5980 = vmatmul.mubr.f32.gmra.mxu0 %v5814
    %v5981 = vpop.f32.mrf.mxu0
    %v5982 = vadd.f32 0.0, %v5981
    %v5983 = vpop.f32.mrf.mxu0
    %5984 = vmatprep.mubr.f32.mxu0 0.0
    %5985 = vmatmul.mubr.f32.gmra.mxu0 %v5815
    %v5986 = vpop.f32.mrf.mxu0
    %v5987 = vadd.f32 0.0, %v5986
    %v5988 = vpop.f32.mrf.mxu0
    %5989 = vmatprep.mubr.f32.mxu0 0.0
    %5990 = vmatmul.mubr.f32.gmra.mxu0 %v5816
    %v5991 = vpop.f32.mrf.mxu0
    %v5992 = vadd.f32 0.0, %v5991
    %v5993 = vpop.f32.mrf.mxu0
    %5994 = vmatprep.mubr.f32.mxu0 0.0
    %5995 = vmatmul.mubr.f32.gmra.mxu0 %v5817
    %v5996 = vpop.f32.mrf.mxu0
    %v5997 = vadd.f32 0.0, %v5996
    %v5998 = vpop.f32.mrf.mxu0
    %5999 = vmatprep.mubr.f32.mxu0 0.0
    %6000 = vmatmul.mubr.f32.gmra.mxu0 %v5818
    %v6001 = vpop.f32.mrf.mxu0
    %v6002 = vadd.f32 0.0, %v6001
    %v6003 = vpop.f32.mrf.mxu0
    %6004 = vmatprep.mubr.f32.mxu0 0.0
    %6005 = vmatmul.mubr.f32.gmra.mxu0 %v5819
    %v6006 = vpop.f32.mrf.mxu0
    %v6007 = vadd.f32 0.0, %v6006
    %v6008 = vpop.f32.mrf.mxu0
    %6009 = vmatprep.mubr.f32.mxu0 0.0
    %6010 = vmatmul.mubr.f32.gmra.mxu0 %v5820
    %v6011 = vpop.f32.mrf.mxu0
    %v6012 = vadd.f32 0.0, %v6011
    %v6013 = vpop.f32.mrf.mxu0
    %6014 = vmatprep.mubr.f32.mxu0 0.0
    %6015 = vmatmul.mubr.f32.gmra.mxu0 %v5821
    %v6016 = vpop.f32.mrf.mxu0
    %v6017 = vadd.f32 0.0, %v6016
    %v6018 = vpop.f32.mrf.mxu0
    %6019 = vmatprep.mubr.f32.mxu0 0.0
    %6020 = vmatmul.mubr.f32.gmra.mxu0 %v5822
    %v6021 = vpop.f32.mrf.mxu0
    %v6022 = vadd.f32 0.0, %v6021
    %v6023 = vpop.f32.mrf.mxu0
    %6024 = vmatprep.mubr.f32.mxu0 0.0
    %6025 = vmatmul.mubr.f32.gmra.mxu0 %v5823
    %v6026 = vpop.f32.mrf.mxu0
    %v6027 = vadd.f32 0.0, %v6026
    %v6028 = vpop.f32.mrf.mxu0
    %6029 = vmatprep.mubr.f32.mxu0 0.0
    %6030 = vmatmul.mubr.f32.gmra.mxu0 %v5824
    %v6031 = vpop.f32.mrf.mxu0
    %v6032 = vadd.f32 0.0, %v6031
    %v6033 = vpop.f32.mrf.mxu0
    %6034 = vmatprep.mubr.f32.mxu0 0.0
    %6035 = vmatmul.mubr.f32.gmra.mxu0 %v5825
    %v6036 = vpop.f32.mrf.mxu0
    %v6037 = vadd.f32 0.0, %v6036
    %v6038 = vpop.f32.mrf.mxu0
    %6039 = vmatprep.mubr.f32.mxu0 0.0
    %6040 = vmatmul.mubr.f32.gmra.mxu0 %v5826
    %v6041 = vpop.f32.mrf.mxu0
    %v6042 = vadd.f32 0.0, %v6041
    %v6043 = vpop.f32.mrf.mxu0
    %6044 = vmatprep.mubr.f32.mxu0 0.0
    %6045 = vmatmul.mubr.f32.gmra.mxu0 %v5827
    %v6046 = vpop.f32.mrf.mxu0
    %v6047 = vadd.f32 0.0, %v6046
    %v6048 = vpop.f32.mrf.mxu0
    %6049 = vmatprep.mubr.f32.mxu0 0.0
    %6050 = vmatmul.mubr.f32.gmra.mxu0 %v5828
    %v6051 = vpop.f32.mrf.mxu0
    %v6052 = vadd.f32 0.0, %v6051
    %v6053 = vpop.f32.mrf.mxu0
    %6054 = vmatprep.mubr.f32.mxu0 0.0
    %6055 = vmatmul.mubr.f32.gmra.mxu0 %v5829
    %v6056 = vpop.f32.mrf.mxu0
    %v6057 = vadd.f32 0.0, %v6056
    %v6058 = vpop.f32.mrf.mxu0
    %6059 = vmatprep.mubr.f32.mxu0 0.0
    %6060 = vmatmul.mubr.f32.gmra.mxu0 %v5830
    %v6061 = vpop.f32.mrf.mxu0
    %v6062 = vadd.f32 0.0, %v6061
    %v6063 = vpop.f32.mrf.mxu0
    %6064 = vmatprep.mubr.f32.mxu0 0.0
    %6065 = vmatmul.mubr.f32.gmra.mxu0 %v5831
    %v6066 = vpop.f32.mrf.mxu0
    %v6067 = vadd.f32 0.0, %v6066
    %v6068 = vpop.f32.mrf.mxu0
    %6069 = vmatprep.mubr.f32.mxu0 0.0
    %6070 = vmatmul.mubr.f32.gmra.mxu0 %v5832
    %v6071 = vpop.f32.mrf.mxu0
    %v6072 = vadd.f32 0.0, %v6071
    %v6073 = vpop.f32.mrf.mxu0
    %6074 = vmatprep.mubr.f32.mxu0 0.0
    %6075 = vmatmul.mubr.f32.gmra.mxu0 %v5833
    %v6076 = vpop.f32.mrf.mxu0
    %v6077 = vadd.f32 0.0, %v6076
    %v6078 = vpop.f32.mrf.mxu0
    %6079 = vmatprep.mubr.f32.mxu0 0.0
    %6080 = vmatmul.mubr.f32.gmra.mxu0 %v5834
    %v6081 = vpop.f32.mrf.mxu0
    %v6082 = vadd.f32 0.0, %v6081
    %v6083 = vpop.f32.mrf.mxu0
    %6084 = vmatprep.mubr.f32.mxu0 0.0
    %6085 = vmatmul.mubr.f32.gmra.mxu0 %v5835
    %v6086 = vpop.f32.mrf.mxu0
    %v6087 = vadd.f32 0.0, %v6086
    %v6088 = vpop.f32.mrf.mxu0
    %6089 = vmatprep.mubr.f32.mxu0 0.0
    %6090 = vmatmul.mubr.f32.gmra.mxu0 %v5836
    %v6091 = vpop.f32.mrf.mxu0
    %v6092 = vadd.f32 0.0, %v6091
    %v6093 = vpop.f32.mrf.mxu0
    %6094 = vmatprep.mubr.f32.mxu0 0.0
    %6095 = vmatmul.mubr.f32.gmra.mxu0 %v5837
    %v6096 = vpop.f32.mrf.mxu0
    %v6097 = vadd.f32 0.0, %v6096
    %v6098 = vpop.f32.mrf.mxu0
    %6099 = vmatprep.mubr.f32.mxu0 0.0
    %6100 = vmatmul.mubr.f32.gmra.mxu0 %v5838
    %v6101 = vpop.f32.mrf.mxu0
    %v6102 = vadd.f32 0.0, %v6101
    %v6103 = vpop.f32.mrf.mxu0
    %6104 = vmatprep.mubr.f32.mxu0 0.0
    %6105 = vmatmul.mubr.f32.gmra.mxu0 %v5839
    %v6106 = vpop.f32.mrf.mxu0
    %v6107 = vadd.f32 0.0, %v6106
    %v6108 = vpop.f32.mrf.mxu0
    %6109 = vmatprep.mubr.f32.mxu0 0.0
    %6110 = vmatmul.mubr.f32.gmra.mxu0 %v5840
    %v6111 = vpop.f32.mrf.mxu0
    %v6112 = vadd.f32 0.0, %v6111
    %v6113 = vpop.f32.mrf.mxu0
    %6114 = vmatprep.mubr.f32.mxu0 0.0
    %6115 = vmatmul.mubr.f32.gmra.mxu0 %v5841
    %v6116 = vpop.f32.mrf.mxu0
    %v6117 = vadd.f32 0.0, %v6116
    %v6118 = vpop.f32.mrf.mxu0
    %6119 = vmatprep.mubr.f32.mxu0 0.0
    %6120 = vmatmul.mubr.f32.gmra.mxu0 %v5842
    %v6121 = vpop.f32.mrf.mxu0
    %v6122 = vadd.f32 0.0, %v6121
    %v6123 = vpop.f32.mrf.mxu0
    %6124 = vmatprep.mubr.f32.mxu0 0.0
    %6125 = vmatmul.mubr.f32.gmra.mxu0 %v5843
    %v6126 = vpop.f32.mrf.mxu0
    %v6127 = vadd.f32 0.0, %v6126
    %v6128 = vpop.f32.mrf.mxu0
    %6129 = vmatprep.mubr.f32.mxu0 0.0
    %6130 = vmatmul.mubr.f32.gmra.mxu0 %v5844
    %v6131 = vpop.f32.mrf.mxu0
    %v6132 = vadd.f32 0.0, %v6131
    %v6133 = vpop.f32.mrf.mxu0
    %6134 = vmatprep.mubr.f32.mxu0 0.0
    %6135 = vmatmul.mubr.f32.gmra.mxu0 %v5845
    %v6136 = vpop.f32.mrf.mxu0
    %v6137 = vadd.f32 0.0, %v6136
    %v6138 = vpop.f32.mrf.mxu0
    %6139 = vmatprep.mubr.f32.mxu0 0.0
    %6140 = vmatmul.mubr.f32.gmra.mxu0 %v5846
    %v6141 = vpop.f32.mrf.mxu0
    %v6142 = vadd.f32 0.0, %v6141
    %v6143 = vpop.f32.mrf.mxu0
    %6144 = vmatprep.mubr.f32.mxu0 0.0
    %6145 = vmatmul.mubr.f32.gmra.mxu0 %v5847
    %v6146 = vpop.f32.mrf.mxu0
    %v6147 = vadd.f32 0.0, %v6146
    %v6148 = vpop.f32.mrf.mxu0
    %6149 = vmatprep.mubr.f32.mxu0 0.0
    %6150 = vmatmul.mubr.f32.gmra.mxu0 %v5848
    %v6151 = vpop.f32.mrf.mxu0
    %v6152 = vadd.f32 0.0, %v6151
    %v6153 = vpop.f32.mrf.mxu0
    %6154 = vmatprep.mubr.f32.mxu0 0.0
    %6155 = vmatmul.mubr.f32.gmra.mxu0 %v5849
    %v6156 = vpop.f32.mrf.mxu0
    %v6157 = vadd.f32 0.0, %v6156
    %v6158 = vpop.f32.mrf.mxu0
    %6159 = vmatprep.mubr.f32.mxu0 0.0
    %6160 = vmatmul.mubr.f32.gmra.mxu0 %v5850
    %v6161 = vpop.f32.mrf.mxu0
    %v6162 = vadd.f32 0.0, %v6161
    %v6163 = vpop.f32.mrf.mxu0
    %6164 = vmatprep.mubr.f32.mxu0 0.0
    %6165 = vmatmul.mubr.f32.gmra.mxu0 %v5851
    %v6166 = vpop.f32.mrf.mxu0
    %v6167 = vadd.f32 0.0, %v6166
    %v6168 = vpop.f32.mrf.mxu0
    %6169 = vmatprep.mubr.f32.mxu0 0.0
    %6170 = vmatmul.mubr.f32.gmra.mxu0 %v5852
    %v6171 = vpop.f32.mrf.mxu0
    %v6172 = vadd.f32 0.0, %v6171
    %v6173 = vpop.f32.mrf.mxu0
    %6174 = vmatprep.mubr.f32.mxu0 0.0
    %6175 = vmatmul.mubr.f32.gmra.mxu0 %v5853
    %v6176 = vpop.f32.mrf.mxu0
    %v6177 = vadd.f32 0.0, %v6176
    %v6178 = vpop.f32.mrf.mxu0
    %6179 = vmatprep.mubr.f32.mxu0 0.0
    %6180 = vmatmul.mubr.f32.gmra.mxu0 %v5854
    %v6181 = vpop.f32.mrf.mxu0
    %v6182 = vadd.f32 0.0, %v6181
    %v6183 = vpop.f32.mrf.mxu0
    %6184 = vmatprep.mubr.f32.mxu0 0.0
    %6185 = vmatmul.mubr.f32.gmra.mxu0 %v5855
    %v6186 = vpop.f32.mrf.mxu0
    %v6187 = vadd.f32 0.0, %v6186
    %v6188 = vpop.f32.mrf.mxu0
    %6189 = vmatprep.mubr.f32.mxu0 0.0
    %6190 = vmatmul.mubr.f32.gmra.mxu0 %v5856
    %v6191 = vpop.f32.mrf.mxu0
    %v6192 = vadd.f32 0.0, %v6191
    %v6193 = vpop.f32.mrf.mxu0
    %6194 = vmatprep.mubr.f32.mxu0 0.0
    %6195 = vmatmul.mubr.f32.gmra.mxu0 %v5857
    %v6196 = vpop.f32.mrf.mxu0
    %v6197 = vadd.f32 0.0, %v6196
    %v6198 = vpop.f32.mrf.mxu0
    %6199 = vmatprep.mubr.f32.mxu0 0.0
    %6200 = vmatmul.mubr.f32.gmra.mxu0 %v5858
    %v6201 = vpop.f32.mrf.mxu0
    %v6202 = vadd.f32 0.0, %v6201
    %v6203 = vpop.f32.mrf.mxu0
    %6204 = vmatprep.mubr.f32.mxu0 0.0
    %6205 = vmatmul.mubr.f32.gmra.mxu0 %v5859
    %v6206 = vpop.f32.mrf.mxu0
    %v6207 = vadd.f32 0.0, %v6206
    %v6208 = vpop.f32.mrf.mxu0
    %6209 = vmatprep.mubr.f32.mxu0 0.0
    %6210 = vmatmul.mubr.f32.gmra.mxu0 %v5860
    %v6211 = vpop.f32.mrf.mxu0
    %v6212 = vadd.f32 0.0, %v6211
    %v6213 = vpop.f32.mrf.mxu0
    %6214 = vmatprep.mubr.f32.mxu0 0.0
    %6215 = vmatmul.mubr.f32.gmra.mxu0 %v5861
    %v6216 = vpop.f32.mrf.mxu0
    %v6217 = vadd.f32 0.0, %v6216
    %v6218 = vpop.f32.mrf.mxu0
    %6219 = vmatprep.mubr.f32.mxu0 0.0
    %6220 = vmatmul.mubr.f32.gmra.mxu0 %v5862
    %v6221 = vpop.f32.mrf.mxu0
    %v6222 = vadd.f32 0.0, %v6221
    %v6223 = vpop.f32.mrf.mxu0
    %6224 = vmatprep.mubr.f32.mxu0 0.0
    %6225 = vmatmul.mubr.f32.gmra.mxu0 %v5863
    %v6226 = vpop.f32.mrf.mxu0
    %v6227 = vadd.f32 0.0, %v6226
    %v6228 = vpop.f32.mrf.mxu0
    %6229 = vmatprep.mubr.f32.mxu0 0.0
    %6230 = vmatmul.mubr.f32.gmra.mxu0 %v5864
    %v6231 = vpop.f32.mrf.mxu0
    %v6232 = vadd.f32 0.0, %v6231
    %v6233 = vpop.f32.mrf.mxu0
    %6234 = vmatprep.mubr.f32.mxu0 0.0
    %6235 = vmatmul.mubr.f32.gmra.mxu0 %v5865
    %v6236 = vpop.f32.mrf.mxu0
    %v6237 = vadd.f32 0.0, %v6236
    %v6238 = vpop.f32.mrf.mxu0
    %6239 = vmatprep.mubr.f32.mxu0 0.0
    %6240 = vmatmul.mubr.f32.gmra.mxu0 %v5866
    %v6241 = vpop.f32.mrf.mxu0
    %v6242 = vadd.f32 0.0, %v6241
    %v6243 = vpop.f32.mrf.mxu0
    %6244 = vmatprep.mubr.f32.mxu0 0.0
    %6245 = vmatmul.mubr.f32.gmra.mxu0 %v5867
    %v6246 = vpop.f32.mrf.mxu0
    %v6247 = vadd.f32 0.0, %v6246
    %v6248 = vpop.f32.mrf.mxu0
    %6249 = vmatprep.mubr.f32.mxu0 0.0
    %6250 = vmatmul.mubr.f32.gmra.mxu0 %v5868
    %v6251 = vpop.f32.mrf.mxu0
    %v6252 = vadd.f32 0.0, %v6251
    %v6253 = vpop.f32.mrf.mxu0
    %6254 = vmatprep.mubr.f32.mxu0 0.0
    %6255 = vmatmul.mubr.f32.gmra.mxu0 %v5869
    %v6256 = vpop.f32.mrf.mxu0
    %v6257 = vadd.f32 0.0, %v6256
    %v6258 = vpop.f32.mrf.mxu0
    %6259 = vmatprep.mubr.f32.mxu0 0.0
    %6260 = vmatmul.mubr.f32.gmra.mxu0 %v5870
    %v6261 = vpop.f32.mrf.mxu0
    %v6262 = vadd.f32 0.0, %v6261
    %v6263 = vpop.f32.mrf.mxu0
    %6264 = vmatprep.mubr.f32.mxu0 0.0
    %6265 = vmatmul.mubr.f32.gmra.mxu0 %v5871
    %v6266 = vpop.f32.mrf.mxu0
    %v6267 = vadd.f32 0.0, %v6266
    %v6268 = vpop.f32.mrf.mxu0
    %6269 = vmatprep.mubr.f32.mxu0 0.0
    %6270 = vmatmul.mubr.f32.gmra.mxu0 %v5872
    %v6271 = vpop.f32.mrf.mxu0
    %v6272 = vadd.f32 0.0, %v6271
    %v6273 = vpop.f32.mrf.mxu0
    %6274 = vmatprep.mubr.f32.mxu0 0.0
    %6275 = vmatmul.mubr.f32.gmra.mxu0 %v5873
    %v6276 = vpop.f32.mrf.mxu0
    %v6277 = vadd.f32 0.0, %v6276
    %v6278 = vpop.f32.mrf.mxu0
    %6279 = vmatprep.mubr.f32.mxu0 0.0
    %6280 = vmatmul.mubr.f32.gmra.mxu0 %v5874
    %v6281 = vpop.f32.mrf.mxu0
    %v6282 = vadd.f32 0.0, %v6281
    %v6283 = vpop.f32.mrf.mxu0
    %6284 = vmatprep.mubr.f32.mxu0 0.0
    %6285 = vmatmul.mubr.f32.gmra.mxu0 %v5875
    %v6286 = vpop.f32.mrf.mxu0
    %v6287 = vadd.f32 0.0, %v6286
    %v6288 = vpop.f32.mrf.mxu0
    %6289 = vmatprep.mubr.f32.mxu0 0.0
    %6290 = vmatmul.mubr.f32.gmra.mxu0 %v5876
    %v6291 = vpop.f32.mrf.mxu0
    %v6292 = vadd.f32 0.0, %v6291
    %v6293 = vpop.f32.mrf.mxu0
    %6294 = vmatprep.mubr.f32.mxu0 0.0
    %6295 = vmatmul.mubr.f32.gmra.mxu0 %v5877
    %v6296 = vpop.f32.mrf.mxu0
    %v6297 = vadd.f32 0.0, %v6296
    %v6298 = vpop.f32.mrf.mxu0
    %6299 = vmatprep.mubr.f32.mxu0 0.0
    %6300 = vmatmul.mubr.f32.gmra.mxu0 %v5878
    %v6301 = vpop.f32.mrf.mxu0
    %v6302 = vadd.f32 0.0, %v6301
    %v6303 = vpop.f32.mrf.mxu0
    %6304 = vmatprep.mubr.f32.mxu0 0.0
    %6305 = vmatmul.mubr.f32.gmra.mxu0 %v5879
    %v6306 = vpop.f32.mrf.mxu0
    %v6307 = vadd.f32 0.0, %v6306
    %v6308 = vpop.f32.mrf.mxu0
    %6309 = vmatprep.mubr.f32.mxu0 0.0
    %6310 = vmatmul.mubr.f32.gmra.mxu0 %v5880
    %v6311 = vpop.f32.mrf.mxu0
    %v6312 = vadd.f32 0.0, %v6311
    %v6313 = vpop.f32.mrf.mxu0
    %6314 = vmatprep.mubr.f32.mxu0 0.0
    %6315 = vmatmul.mubr.f32.gmra.mxu0 %v5881
    %v6316 = vpop.f32.mrf.mxu0
    %v6317 = vadd.f32 0.0, %v6316
    %v6318 = vpop.f32.mrf.mxu0
    %6319 = vmatprep.mubr.f32.mxu0 0.0
    %6320 = vmatmul.mubr.f32.gmra.mxu0 %v5882
    %v6321 = vpop.f32.mrf.mxu0
    %v6322 = vadd.f32 0.0, %v6321
    %v6323 = vpop.f32.mrf.mxu0
    %6324 = vmatprep.mubr.f32.mxu0 0.0
    %6325 = vmatmul.mubr.f32.gmra.mxu0 %v5883
    %v6326 = vpop.f32.mrf.mxu0
    %v6327 = vadd.f32 0.0, %v6326
    %v6328 = vpop.f32.mrf.mxu0
    %6329 = vmatprep.mubr.f32.mxu0 0.0
    %6330 = vmatmul.mubr.f32.gmra.mxu0 %v5884
    %v6331 = vpop.f32.mrf.mxu0
    %v6332 = vadd.f32 0.0, %v6331
    %v6333 = vpop.f32.mrf.mxu0
    %6334 = vmatprep.mubr.f32.mxu0 0.0
    %6335 = vmatmul.mubr.f32.gmra.mxu0 %v5885
    %v6336 = vpop.f32.mrf.mxu0
    %v6337 = vadd.f32 0.0, %v6336
    %v6338 = vpop.f32.mrf.mxu0
    %6339 = vmatprep.mubr.f32.mxu0 0.0
    %6340 = vmatmul.mubr.f32.gmra.mxu0 %v5886
    %v6341 = vpop.f32.mrf.mxu0
    %v6342 = vadd.f32 0.0, %v6341
    %v6343 = vpop.f32.mrf.mxu0
    %6344 = vmatprep.mubr.f32.mxu0 0.0
    %6345 = vmatmul.mubr.f32.gmra.mxu0 %v5887
    %v6346 = vpop.f32.mrf.mxu0
    %v6347 = vadd.f32 0.0, %v6346
    %v6348 = vpop.f32.mrf.mxu0
    %6349 = vmatprep.mubr.f32.mxu0 0.0
    %6350 = vmatmul.mubr.f32.gmra.mxu0 %v5888
    %v6351 = vpop.f32.mrf.mxu0
    %v6352 = vadd.f32 0.0, %v6351
    %v6353 = vpop.f32.mrf.mxu0
    %6354 = vmatprep.mubr.f32.mxu0 0.0
    %6355 = vmatmul.mubr.f32.gmra.mxu0 %v5889
    %v6356 = vpop.f32.mrf.mxu0
    %v6357 = vadd.f32 0.0, %v6356
    %v6358 = vpop.f32.mrf.mxu0
    %6359 = vmatprep.mubr.f32.mxu0 0.0
    %6360 = vmatmul.mubr.f32.gmra.mxu0 %v5890
    %v6361 = vpop.f32.mrf.mxu0
    %v6362 = vadd.f32 0.0, %v6361
    %v6363 = vpop.f32.mrf.mxu0
    %6364 = vmatprep.mubr.f32.mxu0 0.0
    %6365 = vmatmul.mubr.f32.gmra.mxu0 %v5891
    %v6366 = vpop.f32.mrf.mxu0
    %v6367 = vadd.f32 0.0, %v6366
    %v6368 = vpop.f32.mrf.mxu0
    %6369 = vmatprep.mubr.f32.mxu0 0.0
    %6370 = vmatmul.mubr.f32.gmra.mxu0 %v5892
    %v6371 = vpop.f32.mrf.mxu0
    %v6372 = vadd.f32 0.0, %v6371
    %v6373 = vpop.f32.mrf.mxu0
    %6374 = vdwg.mxu0
    %v6375 = vadd.f32 %v5733, %v5977
    %v6376 = vadd.f32 %v5734, %v5982
    %v6377 = vadd.f32 %v5735, %v5987
    %v6378 = vadd.f32 %v5736, %v5992
    %v6379 = vadd.f32 %v5737, %v5997
    %v6380 = vadd.f32 %v5738, %v6002
    %v6381 = vadd.f32 %v5739, %v6007
    %v6382 = vadd.f32 %v5740, %v6012
    %v6383 = vadd.f32 %v5741, %v6017
    %v6384 = vadd.f32 %v5742, %v6022
    %v6385 = vadd.f32 %v5743, %v6027
    %v6386 = vadd.f32 %v5744, %v6032
    %v6387 = vadd.f32 %v5745, %v6037
    %v6388 = vadd.f32 %v5746, %v6042
    %v6389 = vadd.f32 %v5747, %v6047
    %v6390 = vadd.f32 %v5748, %v6052
    %v6391 = vadd.f32 %v5749, %v6057
    %v6392 = vadd.f32 %v5750, %v6062
    %v6393 = vadd.f32 %v5751, %v6067
    %v6394 = vadd.f32 %v5752, %v6072
    %v6395 = vadd.f32 %v5753, %v6077
    %v6396 = vadd.f32 %v5754, %v6082
    %v6397 = vadd.f32 %v5755, %v6087
    %v6398 = vadd.f32 %v5756, %v6092
    %v6399 = vadd.f32 %v5757, %v6097
    %v6400 = vadd.f32 %v5758, %v6102
    %v6401 = vadd.f32 %v5759, %v6107
    %v6402 = vadd.f32 %v5760, %v6112
    %v6403 = vadd.f32 %v5761, %v6117
    %v6404 = vadd.f32 %v5762, %v6122
    %v6405 = vadd.f32 %v5763, %v6127
    %v6406 = vadd.f32 %v5764, %v6132
    %v6407 = vadd.f32 %v5765, %v6137
    %v6408 = vadd.f32 %v5766, %v6142
    %v6409 = vadd.f32 %v5767, %v6147
    %v6410 = vadd.f32 %v5768, %v6152
    %v6411 = vadd.f32 %v5769, %v6157
    %v6412 = vadd.f32 %v5770, %v6162
    %v6413 = vadd.f32 %v5771, %v6167
    %v6414 = vadd.f32 %v5772, %v6172
    %v6415 = vadd.f32 %v5773, %v6177
    %v6416 = vadd.f32 %v5774, %v6182
    %v6417 = vadd.f32 %v5775, %v6187
    %v6418 = vadd.f32 %v5776, %v6192
    %v6419 = vadd.f32 %v5777, %v6197
    %v6420 = vadd.f32 %v5778, %v6202
    %v6421 = vadd.f32 %v5779, %v6207
    %v6422 = vadd.f32 %v5780, %v6212
    %v6423 = vadd.f32 %v5781, %v6217
    %v6424 = vadd.f32 %v5782, %v6222
    %v6425 = vadd.f32 %v5783, %v6227
    %v6426 = vadd.f32 %v5784, %v6232
    %v6427 = vadd.f32 %v5785, %v6237
    %v6428 = vadd.f32 %v5786, %v6242
    %v6429 = vadd.f32 %v5787, %v6247
    %v6430 = vadd.f32 %v5788, %v6252
    %v6431 = vadd.f32 %v5789, %v6257
    %v6432 = vadd.f32 %v5790, %v6262
    %v6433 = vadd.f32 %v5791, %v6267
    %v6434 = vadd.f32 %v5792, %v6272
    %v6435 = vadd.f32 %v5793, %v6277
    %v6436 = vadd.f32 %v5794, %v6282
    %v6437 = vadd.f32 %v5795, %v6287
    %v6438 = vadd.f32 %v5796, %v6292
    %v6439 = vadd.f32 %v5797, %v6297
    %v6440 = vadd.f32 %v5798, %v6302
    %v6441 = vadd.f32 %v5799, %v6307
    %v6442 = vadd.f32 %v5800, %v6312
    %v6443 = vadd.f32 %v5801, %v6317
    %v6444 = vadd.f32 %v5802, %v6322
    %v6445 = vadd.f32 %v5803, %v6327
    %v6446 = vadd.f32 %v5804, %v6332
    %v6447 = vadd.f32 %v5805, %v6337
    %v6448 = vadd.f32 %v5806, %v6342
    %v6449 = vadd.f32 %v5807, %v6347
    %v6450 = vadd.f32 %v5808, %v6352
    %v6451 = vadd.f32 %v5809, %v6357
    %v6452 = vadd.f32 %v5810, %v6362
    %v6453 = vadd.f32 %v5811, %v6367
    %v6454 = vadd.f32 %v5812, %v6372
    %v6455 = vld [vmem:[#allocation2 + $0x2a] sm:$0xff]
    %v6456 = vld [vmem:[#allocation2 + $0x32] sm:$0xff]
    %v6457 = vld [vmem:[#allocation2 + $0x3a] sm:$0xff]
    %v6458 = vld [vmem:[#allocation2 + $0x42] sm:$0xff]
    %v6459 = vld [vmem:[#allocation2 + $0x4a] sm:$0xff]
    %v6460 = vld [vmem:[#allocation2 + $0x52] sm:$0xff]
    %v6461 = vld [vmem:[#allocation2 + $0x5a] sm:$0xff]
    %v6462 = vld [vmem:[#allocation2 + $0x62] sm:$0xff]
    %v6463 = vld [vmem:[#allocation2 + $0x6a] sm:$0xff]
    %v6464 = vld [vmem:[#allocation2 + $0x72] sm:$0xff]
    %v6465 = vld [vmem:[#allocation2 + $0x7a] sm:$0xff]
    %v6466 = vld [vmem:[#allocation2 + $0x82] sm:$0xff]
    %v6467 = vld [vmem:[#allocation2 + $0x8a] sm:$0xff]
    %v6468 = vld [vmem:[#allocation2 + $0x92] sm:$0xff]
    %v6469 = vld [vmem:[#allocation2 + $0x9a] sm:$0xff]
    %v6470 = vld [vmem:[#allocation2 + $0xa2] sm:$0xff]
    %v6471 = vld [vmem:[#allocation2 + $0xaa] sm:$0xff]
    %v6472 = vld [vmem:[#allocation2 + $0xb2] sm:$0xff]
    %v6473 = vld [vmem:[#allocation2 + $0xba] sm:$0xff]
    %v6474 = vld [vmem:[#allocation2 + $0xc2] sm:$0xff]
    %v6475 = vld [vmem:[#allocation2 + $0xca] sm:$0xff]
    %v6476 = vld [vmem:[#allocation2 + $0xd2] sm:$0xff]
    %v6477 = vld [vmem:[#allocation2 + $0xda] sm:$0xff]
    %v6478 = vld [vmem:[#allocation2 + $0xe2] sm:$0xff]
    %v6479 = vld [vmem:[#allocation2 + $0xea] sm:$0xff]
    %v6480 = vld [vmem:[#allocation2 + $0xf2] sm:$0xff]
    %v6481 = vld [vmem:[#allocation2 + $0xfa] sm:$0xff]
    %v6482 = vld [vmem:[#allocation2 + $0x102] sm:$0xff]
    %v6483 = vld [vmem:[#allocation2 + $0x10a] sm:$0xff]
    %v6484 = vld [vmem:[#allocation2 + $0x112] sm:$0xff]
    %v6485 = vld [vmem:[#allocation2 + $0x11a] sm:$0xff]
    %v6486 = vld [vmem:[#allocation2 + $0x122] sm:$0xff]
    %v6487 = vld [vmem:[#allocation2 + $0x12a] sm:$0xff]
    %v6488 = vld [vmem:[#allocation2 + $0x132] sm:$0xff]
    %v6489 = vld [vmem:[#allocation2 + $0x13a] sm:$0xff]
    %v6490 = vld [vmem:[#allocation2 + $0x142] sm:$0xff]
    %v6491 = vld [vmem:[#allocation2 + $0x14a] sm:$0xff]
    %v6492 = vld [vmem:[#allocation2 + $0x152] sm:$0xff]
    %v6493 = vld [vmem:[#allocation2 + $0x15a] sm:$0xff]
    %v6494 = vld [vmem:[#allocation2 + $0x162] sm:$0xff]
    %v6495 = vld [vmem:[#allocation2 + $0x16a] sm:$0xff]
    %v6496 = vld [vmem:[#allocation2 + $0x172] sm:$0xff]
    %v6497 = vld [vmem:[#allocation2 + $0x17a] sm:$0xff]
    %v6498 = vld [vmem:[#allocation2 + $0x182] sm:$0xff]
    %v6499 = vld [vmem:[#allocation2 + $0x18a] sm:$0xff]
    %v6500 = vld [vmem:[#allocation2 + $0x192] sm:$0xff]
    %v6501 = vld [vmem:[#allocation2 + $0x19a] sm:$0xff]
    %v6502 = vld [vmem:[#allocation2 + $0x1a2] sm:$0xff]
    %v6503 = vld [vmem:[#allocation2 + $0x1aa] sm:$0xff]
    %v6504 = vld [vmem:[#allocation2 + $0x1b2] sm:$0xff]
    %v6505 = vld [vmem:[#allocation2 + $0x1ba] sm:$0xff]
    %v6506 = vld [vmem:[#allocation2 + $0x1c2] sm:$0xff]
    %v6507 = vld [vmem:[#allocation2 + $0x1ca] sm:$0xff]
    %v6508 = vld [vmem:[#allocation2 + $0x1d2] sm:$0xff]
    %v6509 = vld [vmem:[#allocation2 + $0x1da] sm:$0xff]
    %v6510 = vld [vmem:[#allocation2 + $0x1e2] sm:$0xff]
    %v6511 = vld [vmem:[#allocation2 + $0x1ea] sm:$0xff]
    %v6512 = vld [vmem:[#allocation2 + $0x1f2] sm:$0xff]
    %v6513 = vld [vmem:[#allocation2 + $0x1fa] sm:$0xff]
    %v6514 = vld [vmem:[#allocation2 + $0x202] sm:$0xff]
    %v6515 = vld [vmem:[#allocation2 + $0x20a] sm:$0xff]
    %v6516 = vld [vmem:[#allocation2 + $0x212] sm:$0xff]
    %v6517 = vld [vmem:[#allocation2 + $0x21a] sm:$0xff]
    %v6518 = vld [vmem:[#allocation2 + $0x222] sm:$0xff]
    %v6519 = vld [vmem:[#allocation2 + $0x22a] sm:$0xff]
    %v6520 = vld [vmem:[#allocation2 + $0x232] sm:$0xff]
    %v6521 = vld [vmem:[#allocation2 + $0x23a] sm:$0xff]
    %v6522 = vld [vmem:[#allocation2 + $0x242] sm:$0xff]
    %v6523 = vld [vmem:[#allocation2 + $0x24a] sm:$0xff]
    %v6524 = vld [vmem:[#allocation2 + $0x252] sm:$0xff]
    %v6525 = vld [vmem:[#allocation2 + $0x25a] sm:$0xff]
    %v6526 = vld [vmem:[#allocation2 + $0x262] sm:$0xff]
    %v6527 = vld [vmem:[#allocation2 + $0x26a] sm:$0xff]
    %v6528 = vld [vmem:[#allocation2 + $0x272] sm:$0xff]
    %v6529 = vld [vmem:[#allocation2 + $0x27a] sm:$0xff]
    %v6530 = vld [vmem:[#allocation2 + $0x282] sm:$0xff]
    %v6531 = vld [vmem:[#allocation2 + $0x28a] sm:$0xff]
    %v6532 = vld [vmem:[#allocation2 + $0x292] sm:$0xff]
    %v6533 = vld [vmem:[#allocation2 + $0x29a] sm:$0xff]
    %v6534 = vld [vmem:[#allocation2 + $0x2a2] sm:$0xff]
    %s6535 = scalar_lea.vmem [#allocation8], 896
    %v6536 = vld [vmem:[%s6535] sm:$0xff]
    %v6537 = vld [vmem:[%s6535 + $0x8] sm:$0xff]
    %v6538 = vld [vmem:[%s6535 + $0x10] sm:$0xff]
    %v6539 = vld [vmem:[%s6535 + $0x18] sm:$0xff]
    %v6540 = vld [vmem:[%s6535 + $0x20] sm:$0xff]
    %v6541 = vld [vmem:[%s6535 + $0x28] sm:$0xff]
    %v6542 = vld [vmem:[%s6535 + $0x30] sm:$0xff]
    %v6543 = vld [vmem:[%s6535 + $0x38] sm:$0xff]
    %v6544 = vld [vmem:[%s6535 + $0x40] sm:$0xff]
    %v6545 = vld [vmem:[%s6535 + $0x48] sm:$0xff]
    %v6546 = vld [vmem:[%s6535 + $0x50] sm:$0xff]
    %v6547 = vld [vmem:[%s6535 + $0x58] sm:$0xff]
    %v6548 = vld [vmem:[%s6535 + $0x60] sm:$0xff]
    %v6549 = vld [vmem:[%s6535 + $0x68] sm:$0xff]
    %v6550 = vld [vmem:[%s6535 + $0x70] sm:$0xff]
    %v6551 = vld [vmem:[%s6535 + $0x78] sm:$0xff]
    %6552 = vmatprep.subr.mxu0 0.0
    %6553 = vmatpush1.msra.mxu0 %v6551
    %6554 = vmatprep.subr.mxu0 0.0
    %6555 = vmatpush1.msra.mxu0 %v6550
    %6556 = vmatprep.subr.mxu0 0.0
    %6557 = vmatpush1.msra.mxu0 %v6549
    %6558 = vmatprep.subr.mxu0 0.0
    %6559 = vmatpush1.msra.mxu0 %v6548
    %6560 = vmatprep.subr.mxu0 0.0
    %6561 = vmatpush1.msra.mxu0 %v6547
    %6562 = vmatprep.subr.mxu0 0.0
    %6563 = vmatpush1.msra.mxu0 %v6546
    %6564 = vmatprep.subr.mxu0 0.0
    %6565 = vmatpush1.msra.mxu0 %v6545
    %6566 = vmatprep.subr.mxu0 0.0
    %6567 = vmatpush1.msra.mxu0 %v6544
    %6568 = vmatprep.subr.mxu0 0.0
    %6569 = vmatpush1.msra.mxu0 %v6543
    %6570 = vmatprep.subr.mxu0 0.0
    %6571 = vmatpush1.msra.mxu0 %v6542
    %6572 = vmatprep.subr.mxu0 0.0
    %6573 = vmatpush1.msra.mxu0 %v6541
    %6574 = vmatprep.subr.mxu0 0.0
    %6575 = vmatpush1.msra.mxu0 %v6540
    %6576 = vmatprep.subr.mxu0 0.0
    %6577 = vmatpush1.msra.mxu0 %v6539
    %6578 = vmatprep.subr.mxu0 0.0
    %6579 = vmatpush1.msra.mxu0 %v6538
    %6580 = vmatprep.subr.mxu0 0.0
    %6581 = vmatpush1.msra.mxu0 %v6537
    %6582 = vmatprep.subr.mxu0 0.0
    %6583 = vmatpush1.msra.mxu0 %v6536
    %6584 = vmatprep.subr.mxu0 0.0
    %6585 = vmatpush2.msra.mxu0 0.0
    %6586 = vmatprep.subr.mxu0 0.0
    %6587 = vmatpush2.msra.mxu0 0.0
    %6588 = vmatprep.subr.mxu0 0.0
    %6589 = vmatpush2.msra.mxu0 0.0
    %6590 = vmatprep.subr.mxu0 0.0
    %6591 = vmatpush2.msra.mxu0 0.0
    %6592 = vmatprep.subr.mxu0 0.0
    %6593 = vmatpush2.msra.mxu0 0.0
    %6594 = vmatprep.subr.mxu0 0.0
    %6595 = vmatpush2.msra.mxu0 0.0
    %6596 = vmatprep.subr.mxu0 0.0
    %6597 = vmatpush2.msra.mxu0 0.0
    %6598 = vmatprep.subr.mxu0 0.0
    %6599 = vmatpush2.msra.mxu0 0.0
    %6600 = vmatprep.subr.mxu0 0.0
    %6601 = vmatpush2.msra.mxu0 0.0
    %6602 = vmatprep.subr.mxu0 0.0
    %6603 = vmatpush2.msra.mxu0 0.0
    %6604 = vmatprep.subr.mxu0 0.0
    %6605 = vmatpush2.msra.mxu0 0.0
    %6606 = vmatprep.subr.mxu0 0.0
    %6607 = vmatpush2.msra.mxu0 0.0
    %6608 = vmatprep.subr.mxu0 0.0
    %6609 = vmatpush2.msra.mxu0 0.0
    %6610 = vmatprep.subr.mxu0 0.0
    %6611 = vmatpush2.msra.mxu0 0.0
    %6612 = vmatprep.subr.mxu0 0.0
    %6613 = vmatpush2.msra.mxu0 0.0
    %6614 = vmatprep.subr.mxu0 0.0
    %6615 = vmatpush2.msra.mxu0 0.0
    %6616 = vmatprep.mubr.f32.mxu0 0.0
    %6617 = vmatmul.mubr.f32.gmra.mxu0 %v6455
    %v6618 = vpop.f32.mrf.mxu0
    %v6619 = vadd.f32 0.0, %v6618
    %v6620 = vpop.f32.mrf.mxu0
    %6621 = vmatprep.mubr.f32.mxu0 0.0
    %6622 = vmatmul.mubr.f32.gmra.mxu0 %v6456
    %v6623 = vpop.f32.mrf.mxu0
    %v6624 = vadd.f32 0.0, %v6623
    %v6625 = vpop.f32.mrf.mxu0
    %6626 = vmatprep.mubr.f32.mxu0 0.0
    %6627 = vmatmul.mubr.f32.gmra.mxu0 %v6457
    %v6628 = vpop.f32.mrf.mxu0
    %v6629 = vadd.f32 0.0, %v6628
    %v6630 = vpop.f32.mrf.mxu0
    %6631 = vmatprep.mubr.f32.mxu0 0.0
    %6632 = vmatmul.mubr.f32.gmra.mxu0 %v6458
    %v6633 = vpop.f32.mrf.mxu0
    %v6634 = vadd.f32 0.0, %v6633
    %v6635 = vpop.f32.mrf.mxu0
    %6636 = vmatprep.mubr.f32.mxu0 0.0
    %6637 = vmatmul.mubr.f32.gmra.mxu0 %v6459
    %v6638 = vpop.f32.mrf.mxu0
    %v6639 = vadd.f32 0.0, %v6638
    %v6640 = vpop.f32.mrf.mxu0
    %6641 = vmatprep.mubr.f32.mxu0 0.0
    %6642 = vmatmul.mubr.f32.gmra.mxu0 %v6460
    %v6643 = vpop.f32.mrf.mxu0
    %v6644 = vadd.f32 0.0, %v6643
    %v6645 = vpop.f32.mrf.mxu0
    %6646 = vmatprep.mubr.f32.mxu0 0.0
    %6647 = vmatmul.mubr.f32.gmra.mxu0 %v6461
    %v6648 = vpop.f32.mrf.mxu0
    %v6649 = vadd.f32 0.0, %v6648
    %v6650 = vpop.f32.mrf.mxu0
    %6651 = vmatprep.mubr.f32.mxu0 0.0
    %6652 = vmatmul.mubr.f32.gmra.mxu0 %v6462
    %v6653 = vpop.f32.mrf.mxu0
    %v6654 = vadd.f32 0.0, %v6653
    %v6655 = vpop.f32.mrf.mxu0
    %6656 = vmatprep.mubr.f32.mxu0 0.0
    %6657 = vmatmul.mubr.f32.gmra.mxu0 %v6463
    %v6658 = vpop.f32.mrf.mxu0
    %v6659 = vadd.f32 0.0, %v6658
    %v6660 = vpop.f32.mrf.mxu0
    %6661 = vmatprep.mubr.f32.mxu0 0.0
    %6662 = vmatmul.mubr.f32.gmra.mxu0 %v6464
    %v6663 = vpop.f32.mrf.mxu0
    %v6664 = vadd.f32 0.0, %v6663
    %v6665 = vpop.f32.mrf.mxu0
    %6666 = vmatprep.mubr.f32.mxu0 0.0
    %6667 = vmatmul.mubr.f32.gmra.mxu0 %v6465
    %v6668 = vpop.f32.mrf.mxu0
    %v6669 = vadd.f32 0.0, %v6668
    %v6670 = vpop.f32.mrf.mxu0
    %6671 = vmatprep.mubr.f32.mxu0 0.0
    %6672 = vmatmul.mubr.f32.gmra.mxu0 %v6466
    %v6673 = vpop.f32.mrf.mxu0
    %v6674 = vadd.f32 0.0, %v6673
    %v6675 = vpop.f32.mrf.mxu0
    %6676 = vmatprep.mubr.f32.mxu0 0.0
    %6677 = vmatmul.mubr.f32.gmra.mxu0 %v6467
    %v6678 = vpop.f32.mrf.mxu0
    %v6679 = vadd.f32 0.0, %v6678
    %v6680 = vpop.f32.mrf.mxu0
    %6681 = vmatprep.mubr.f32.mxu0 0.0
    %6682 = vmatmul.mubr.f32.gmra.mxu0 %v6468
    %v6683 = vpop.f32.mrf.mxu0
    %v6684 = vadd.f32 0.0, %v6683
    %v6685 = vpop.f32.mrf.mxu0
    %6686 = vmatprep.mubr.f32.mxu0 0.0
    %6687 = vmatmul.mubr.f32.gmra.mxu0 %v6469
    %v6688 = vpop.f32.mrf.mxu0
    %v6689 = vadd.f32 0.0, %v6688
    %v6690 = vpop.f32.mrf.mxu0
    %6691 = vmatprep.mubr.f32.mxu0 0.0
    %6692 = vmatmul.mubr.f32.gmra.mxu0 %v6470
    %v6693 = vpop.f32.mrf.mxu0
    %v6694 = vadd.f32 0.0, %v6693
    %v6695 = vpop.f32.mrf.mxu0
    %6696 = vmatprep.mubr.f32.mxu0 0.0
    %6697 = vmatmul.mubr.f32.gmra.mxu0 %v6471
    %v6698 = vpop.f32.mrf.mxu0
    %v6699 = vadd.f32 0.0, %v6698
    %v6700 = vpop.f32.mrf.mxu0
    %6701 = vmatprep.mubr.f32.mxu0 0.0
    %6702 = vmatmul.mubr.f32.gmra.mxu0 %v6472
    %v6703 = vpop.f32.mrf.mxu0
    %v6704 = vadd.f32 0.0, %v6703
    %v6705 = vpop.f32.mrf.mxu0
    %6706 = vmatprep.mubr.f32.mxu0 0.0
    %6707 = vmatmul.mubr.f32.gmra.mxu0 %v6473
    %v6708 = vpop.f32.mrf.mxu0
    %v6709 = vadd.f32 0.0, %v6708
    %v6710 = vpop.f32.mrf.mxu0
    %6711 = vmatprep.mubr.f32.mxu0 0.0
    %6712 = vmatmul.mubr.f32.gmra.mxu0 %v6474
    %v6713 = vpop.f32.mrf.mxu0
    %v6714 = vadd.f32 0.0, %v6713
    %v6715 = vpop.f32.mrf.mxu0
    %6716 = vmatprep.mubr.f32.mxu0 0.0
    %6717 = vmatmul.mubr.f32.gmra.mxu0 %v6475
    %v6718 = vpop.f32.mrf.mxu0
    %v6719 = vadd.f32 0.0, %v6718
    %v6720 = vpop.f32.mrf.mxu0
    %6721 = vmatprep.mubr.f32.mxu0 0.0
    %6722 = vmatmul.mubr.f32.gmra.mxu0 %v6476
    %v6723 = vpop.f32.mrf.mxu0
    %v6724 = vadd.f32 0.0, %v6723
    %v6725 = vpop.f32.mrf.mxu0
    %6726 = vmatprep.mubr.f32.mxu0 0.0
    %6727 = vmatmul.mubr.f32.gmra.mxu0 %v6477
    %v6728 = vpop.f32.mrf.mxu0
    %v6729 = vadd.f32 0.0, %v6728
    %v6730 = vpop.f32.mrf.mxu0
    %6731 = vmatprep.mubr.f32.mxu0 0.0
    %6732 = vmatmul.mubr.f32.gmra.mxu0 %v6478
    %v6733 = vpop.f32.mrf.mxu0
    %v6734 = vadd.f32 0.0, %v6733
    %v6735 = vpop.f32.mrf.mxu0
    %6736 = vmatprep.mubr.f32.mxu0 0.0
    %6737 = vmatmul.mubr.f32.gmra.mxu0 %v6479
    %v6738 = vpop.f32.mrf.mxu0
    %v6739 = vadd.f32 0.0, %v6738
    %v6740 = vpop.f32.mrf.mxu0
    %6741 = vmatprep.mubr.f32.mxu0 0.0
    %6742 = vmatmul.mubr.f32.gmra.mxu0 %v6480
    %v6743 = vpop.f32.mrf.mxu0
    %v6744 = vadd.f32 0.0, %v6743
    %v6745 = vpop.f32.mrf.mxu0
    %6746 = vmatprep.mubr.f32.mxu0 0.0
    %6747 = vmatmul.mubr.f32.gmra.mxu0 %v6481
    %v6748 = vpop.f32.mrf.mxu0
    %v6749 = vadd.f32 0.0, %v6748
    %v6750 = vpop.f32.mrf.mxu0
    %6751 = vmatprep.mubr.f32.mxu0 0.0
    %6752 = vmatmul.mubr.f32.gmra.mxu0 %v6482
    %v6753 = vpop.f32.mrf.mxu0
    %v6754 = vadd.f32 0.0, %v6753
    %v6755 = vpop.f32.mrf.mxu0
    %6756 = vmatprep.mubr.f32.mxu0 0.0
    %6757 = vmatmul.mubr.f32.gmra.mxu0 %v6483
    %v6758 = vpop.f32.mrf.mxu0
    %v6759 = vadd.f32 0.0, %v6758
    %v6760 = vpop.f32.mrf.mxu0
    %6761 = vmatprep.mubr.f32.mxu0 0.0
    %6762 = vmatmul.mubr.f32.gmra.mxu0 %v6484
    %v6763 = vpop.f32.mrf.mxu0
    %v6764 = vadd.f32 0.0, %v6763
    %v6765 = vpop.f32.mrf.mxu0
    %6766 = vmatprep.mubr.f32.mxu0 0.0
    %6767 = vmatmul.mubr.f32.gmra.mxu0 %v6485
    %v6768 = vpop.f32.mrf.mxu0
    %v6769 = vadd.f32 0.0, %v6768
    %v6770 = vpop.f32.mrf.mxu0
    %6771 = vmatprep.mubr.f32.mxu0 0.0
    %6772 = vmatmul.mubr.f32.gmra.mxu0 %v6486
    %v6773 = vpop.f32.mrf.mxu0
    %v6774 = vadd.f32 0.0, %v6773
    %v6775 = vpop.f32.mrf.mxu0
    %6776 = vmatprep.mubr.f32.mxu0 0.0
    %6777 = vmatmul.mubr.f32.gmra.mxu0 %v6487
    %v6778 = vpop.f32.mrf.mxu0
    %v6779 = vadd.f32 0.0, %v6778
    %v6780 = vpop.f32.mrf.mxu0
    %6781 = vmatprep.mubr.f32.mxu0 0.0
    %6782 = vmatmul.mubr.f32.gmra.mxu0 %v6488
    %v6783 = vpop.f32.mrf.mxu0
    %v6784 = vadd.f32 0.0, %v6783
    %v6785 = vpop.f32.mrf.mxu0
    %6786 = vmatprep.mubr.f32.mxu0 0.0
    %6787 = vmatmul.mubr.f32.gmra.mxu0 %v6489
    %v6788 = vpop.f32.mrf.mxu0
    %v6789 = vadd.f32 0.0, %v6788
    %v6790 = vpop.f32.mrf.mxu0
    %6791 = vmatprep.mubr.f32.mxu0 0.0
    %6792 = vmatmul.mubr.f32.gmra.mxu0 %v6490
    %v6793 = vpop.f32.mrf.mxu0
    %v6794 = vadd.f32 0.0, %v6793
    %v6795 = vpop.f32.mrf.mxu0
    %6796 = vmatprep.mubr.f32.mxu0 0.0
    %6797 = vmatmul.mubr.f32.gmra.mxu0 %v6491
    %v6798 = vpop.f32.mrf.mxu0
    %v6799 = vadd.f32 0.0, %v6798
    %v6800 = vpop.f32.mrf.mxu0
    %6801 = vmatprep.mubr.f32.mxu0 0.0
    %6802 = vmatmul.mubr.f32.gmra.mxu0 %v6492
    %v6803 = vpop.f32.mrf.mxu0
    %v6804 = vadd.f32 0.0, %v6803
    %v6805 = vpop.f32.mrf.mxu0
    %6806 = vmatprep.mubr.f32.mxu0 0.0
    %6807 = vmatmul.mubr.f32.gmra.mxu0 %v6493
    %v6808 = vpop.f32.mrf.mxu0
    %v6809 = vadd.f32 0.0, %v6808
    %v6810 = vpop.f32.mrf.mxu0
    %6811 = vmatprep.mubr.f32.mxu0 0.0
    %6812 = vmatmul.mubr.f32.gmra.mxu0 %v6494
    %v6813 = vpop.f32.mrf.mxu0
    %v6814 = vadd.f32 0.0, %v6813
    %v6815 = vpop.f32.mrf.mxu0
    %6816 = vmatprep.mubr.f32.mxu0 0.0
    %6817 = vmatmul.mubr.f32.gmra.mxu0 %v6495
    %v6818 = vpop.f32.mrf.mxu0
    %v6819 = vadd.f32 0.0, %v6818
    %v6820 = vpop.f32.mrf.mxu0
    %6821 = vmatprep.mubr.f32.mxu0 0.0
    %6822 = vmatmul.mubr.f32.gmra.mxu0 %v6496
    %v6823 = vpop.f32.mrf.mxu0
    %v6824 = vadd.f32 0.0, %v6823
    %v6825 = vpop.f32.mrf.mxu0
    %6826 = vmatprep.mubr.f32.mxu0 0.0
    %6827 = vmatmul.mubr.f32.gmra.mxu0 %v6497
    %v6828 = vpop.f32.mrf.mxu0
    %v6829 = vadd.f32 0.0, %v6828
    %v6830 = vpop.f32.mrf.mxu0
    %6831 = vmatprep.mubr.f32.mxu0 0.0
    %6832 = vmatmul.mubr.f32.gmra.mxu0 %v6498
    %v6833 = vpop.f32.mrf.mxu0
    %v6834 = vadd.f32 0.0, %v6833
    %v6835 = vpop.f32.mrf.mxu0
    %6836 = vmatprep.mubr.f32.mxu0 0.0
    %6837 = vmatmul.mubr.f32.gmra.mxu0 %v6499
    %v6838 = vpop.f32.mrf.mxu0
    %v6839 = vadd.f32 0.0, %v6838
    %v6840 = vpop.f32.mrf.mxu0
    %6841 = vmatprep.mubr.f32.mxu0 0.0
    %6842 = vmatmul.mubr.f32.gmra.mxu0 %v6500
    %v6843 = vpop.f32.mrf.mxu0
    %v6844 = vadd.f32 0.0, %v6843
    %v6845 = vpop.f32.mrf.mxu0
    %6846 = vmatprep.mubr.f32.mxu0 0.0
    %6847 = vmatmul.mubr.f32.gmra.mxu0 %v6501
    %v6848 = vpop.f32.mrf.mxu0
    %v6849 = vadd.f32 0.0, %v6848
    %v6850 = vpop.f32.mrf.mxu0
    %6851 = vmatprep.mubr.f32.mxu0 0.0
    %6852 = vmatmul.mubr.f32.gmra.mxu0 %v6502
    %v6853 = vpop.f32.mrf.mxu0
    %v6854 = vadd.f32 0.0, %v6853
    %v6855 = vpop.f32.mrf.mxu0
    %6856 = vmatprep.mubr.f32.mxu0 0.0
    %6857 = vmatmul.mubr.f32.gmra.mxu0 %v6503
    %v6858 = vpop.f32.mrf.mxu0
    %v6859 = vadd.f32 0.0, %v6858
    %v6860 = vpop.f32.mrf.mxu0
    %6861 = vmatprep.mubr.f32.mxu0 0.0
    %6862 = vmatmul.mubr.f32.gmra.mxu0 %v6504
    %v6863 = vpop.f32.mrf.mxu0
    %v6864 = vadd.f32 0.0, %v6863
    %v6865 = vpop.f32.mrf.mxu0
    %6866 = vmatprep.mubr.f32.mxu0 0.0
    %6867 = vmatmul.mubr.f32.gmra.mxu0 %v6505
    %v6868 = vpop.f32.mrf.mxu0
    %v6869 = vadd.f32 0.0, %v6868
    %v6870 = vpop.f32.mrf.mxu0
    %6871 = vmatprep.mubr.f32.mxu0 0.0
    %6872 = vmatmul.mubr.f32.gmra.mxu0 %v6506
    %v6873 = vpop.f32.mrf.mxu0
    %v6874 = vadd.f32 0.0, %v6873
    %v6875 = vpop.f32.mrf.mxu0
    %6876 = vmatprep.mubr.f32.mxu0 0.0
    %6877 = vmatmul.mubr.f32.gmra.mxu0 %v6507
    %v6878 = vpop.f32.mrf.mxu0
    %v6879 = vadd.f32 0.0, %v6878
    %v6880 = vpop.f32.mrf.mxu0
    %6881 = vmatprep.mubr.f32.mxu0 0.0
    %6882 = vmatmul.mubr.f32.gmra.mxu0 %v6508
    %v6883 = vpop.f32.mrf.mxu0
    %v6884 = vadd.f32 0.0, %v6883
    %v6885 = vpop.f32.mrf.mxu0
    %6886 = vmatprep.mubr.f32.mxu0 0.0
    %6887 = vmatmul.mubr.f32.gmra.mxu0 %v6509
    %v6888 = vpop.f32.mrf.mxu0
    %v6889 = vadd.f32 0.0, %v6888
    %v6890 = vpop.f32.mrf.mxu0
    %6891 = vmatprep.mubr.f32.mxu0 0.0
    %6892 = vmatmul.mubr.f32.gmra.mxu0 %v6510
    %v6893 = vpop.f32.mrf.mxu0
    %v6894 = vadd.f32 0.0, %v6893
    %v6895 = vpop.f32.mrf.mxu0
    %6896 = vmatprep.mubr.f32.mxu0 0.0
    %6897 = vmatmul.mubr.f32.gmra.mxu0 %v6511
    %v6898 = vpop.f32.mrf.mxu0
    %v6899 = vadd.f32 0.0, %v6898
    %v6900 = vpop.f32.mrf.mxu0
    %6901 = vmatprep.mubr.f32.mxu0 0.0
    %6902 = vmatmul.mubr.f32.gmra.mxu0 %v6512
    %v6903 = vpop.f32.mrf.mxu0
    %v6904 = vadd.f32 0.0, %v6903
    %v6905 = vpop.f32.mrf.mxu0
    %6906 = vmatprep.mubr.f32.mxu0 0.0
    %6907 = vmatmul.mubr.f32.gmra.mxu0 %v6513
    %v6908 = vpop.f32.mrf.mxu0
    %v6909 = vadd.f32 0.0, %v6908
    %v6910 = vpop.f32.mrf.mxu0
    %6911 = vmatprep.mubr.f32.mxu0 0.0
    %6912 = vmatmul.mubr.f32.gmra.mxu0 %v6514
    %v6913 = vpop.f32.mrf.mxu0
    %v6914 = vadd.f32 0.0, %v6913
    %v6915 = vpop.f32.mrf.mxu0
    %6916 = vmatprep.mubr.f32.mxu0 0.0
    %6917 = vmatmul.mubr.f32.gmra.mxu0 %v6515
    %v6918 = vpop.f32.mrf.mxu0
    %v6919 = vadd.f32 0.0, %v6918
    %v6920 = vpop.f32.mrf.mxu0
    %6921 = vmatprep.mubr.f32.mxu0 0.0
    %6922 = vmatmul.mubr.f32.gmra.mxu0 %v6516
    %v6923 = vpop.f32.mrf.mxu0
    %v6924 = vadd.f32 0.0, %v6923
    %v6925 = vpop.f32.mrf.mxu0
    %6926 = vmatprep.mubr.f32.mxu0 0.0
    %6927 = vmatmul.mubr.f32.gmra.mxu0 %v6517
    %v6928 = vpop.f32.mrf.mxu0
    %v6929 = vadd.f32 0.0, %v6928
    %v6930 = vpop.f32.mrf.mxu0
    %6931 = vmatprep.mubr.f32.mxu0 0.0
    %6932 = vmatmul.mubr.f32.gmra.mxu0 %v6518
    %v6933 = vpop.f32.mrf.mxu0
    %v6934 = vadd.f32 0.0, %v6933
    %v6935 = vpop.f32.mrf.mxu0
    %6936 = vmatprep.mubr.f32.mxu0 0.0
    %6937 = vmatmul.mubr.f32.gmra.mxu0 %v6519
    %v6938 = vpop.f32.mrf.mxu0
    %v6939 = vadd.f32 0.0, %v6938
    %v6940 = vpop.f32.mrf.mxu0
    %6941 = vmatprep.mubr.f32.mxu0 0.0
    %6942 = vmatmul.mubr.f32.gmra.mxu0 %v6520
    %v6943 = vpop.f32.mrf.mxu0
    %v6944 = vadd.f32 0.0, %v6943
    %v6945 = vpop.f32.mrf.mxu0
    %6946 = vmatprep.mubr.f32.mxu0 0.0
    %6947 = vmatmul.mubr.f32.gmra.mxu0 %v6521
    %v6948 = vpop.f32.mrf.mxu0
    %v6949 = vadd.f32 0.0, %v6948
    %v6950 = vpop.f32.mrf.mxu0
    %6951 = vmatprep.mubr.f32.mxu0 0.0
    %6952 = vmatmul.mubr.f32.gmra.mxu0 %v6522
    %v6953 = vpop.f32.mrf.mxu0
    %v6954 = vadd.f32 0.0, %v6953
    %v6955 = vpop.f32.mrf.mxu0
    %6956 = vmatprep.mubr.f32.mxu0 0.0
    %6957 = vmatmul.mubr.f32.gmra.mxu0 %v6523
    %v6958 = vpop.f32.mrf.mxu0
    %v6959 = vadd.f32 0.0, %v6958
    %v6960 = vpop.f32.mrf.mxu0
    %6961 = vmatprep.mubr.f32.mxu0 0.0
    %6962 = vmatmul.mubr.f32.gmra.mxu0 %v6524
    %v6963 = vpop.f32.mrf.mxu0
    %v6964 = vadd.f32 0.0, %v6963
    %v6965 = vpop.f32.mrf.mxu0
    %6966 = vmatprep.mubr.f32.mxu0 0.0
    %6967 = vmatmul.mubr.f32.gmra.mxu0 %v6525
    %v6968 = vpop.f32.mrf.mxu0
    %v6969 = vadd.f32 0.0, %v6968
    %v6970 = vpop.f32.mrf.mxu0
    %6971 = vmatprep.mubr.f32.mxu0 0.0
    %6972 = vmatmul.mubr.f32.gmra.mxu0 %v6526
    %v6973 = vpop.f32.mrf.mxu0
    %v6974 = vadd.f32 0.0, %v6973
    %v6975 = vpop.f32.mrf.mxu0
    %6976 = vmatprep.mubr.f32.mxu0 0.0
    %6977 = vmatmul.mubr.f32.gmra.mxu0 %v6527
    %v6978 = vpop.f32.mrf.mxu0
    %v6979 = vadd.f32 0.0, %v6978
    %v6980 = vpop.f32.mrf.mxu0
    %6981 = vmatprep.mubr.f32.mxu0 0.0
    %6982 = vmatmul.mubr.f32.gmra.mxu0 %v6528
    %v6983 = vpop.f32.mrf.mxu0
    %v6984 = vadd.f32 0.0, %v6983
    %v6985 = vpop.f32.mrf.mxu0
    %6986 = vmatprep.mubr.f32.mxu0 0.0
    %6987 = vmatmul.mubr.f32.gmra.mxu0 %v6529
    %v6988 = vpop.f32.mrf.mxu0
    %v6989 = vadd.f32 0.0, %v6988
    %v6990 = vpop.f32.mrf.mxu0
    %6991 = vmatprep.mubr.f32.mxu0 0.0
    %6992 = vmatmul.mubr.f32.gmra.mxu0 %v6530
    %v6993 = vpop.f32.mrf.mxu0
    %v6994 = vadd.f32 0.0, %v6993
    %v6995 = vpop.f32.mrf.mxu0
    %6996 = vmatprep.mubr.f32.mxu0 0.0
    %6997 = vmatmul.mubr.f32.gmra.mxu0 %v6531
    %v6998 = vpop.f32.mrf.mxu0
    %v6999 = vadd.f32 0.0, %v6998
    %v7000 = vpop.f32.mrf.mxu0
    %7001 = vmatprep.mubr.f32.mxu0 0.0
    %7002 = vmatmul.mubr.f32.gmra.mxu0 %v6532
    %v7003 = vpop.f32.mrf.mxu0
    %v7004 = vadd.f32 0.0, %v7003
    %v7005 = vpop.f32.mrf.mxu0
    %7006 = vmatprep.mubr.f32.mxu0 0.0
    %7007 = vmatmul.mubr.f32.gmra.mxu0 %v6533
    %v7008 = vpop.f32.mrf.mxu0
    %v7009 = vadd.f32 0.0, %v7008
    %v7010 = vpop.f32.mrf.mxu0
    %7011 = vmatprep.mubr.f32.mxu0 0.0
    %7012 = vmatmul.mubr.f32.gmra.mxu0 %v6534
    %v7013 = vpop.f32.mrf.mxu0
    %v7014 = vadd.f32 0.0, %v7013
    %v7015 = vpop.f32.mrf.mxu0
    %7016 = vdwg.mxu0
    %v7017 = vadd.f32 %v6375, %v6619
    %v7018 = vadd.f32 %v6376, %v6624
    %v7019 = vadd.f32 %v6377, %v6629
    %v7020 = vadd.f32 %v6378, %v6634
    %v7021 = vadd.f32 %v6379, %v6639
    %v7022 = vadd.f32 %v6380, %v6644
    %v7023 = vadd.f32 %v6381, %v6649
    %v7024 = vadd.f32 %v6382, %v6654
    %v7025 = vadd.f32 %v6383, %v6659
    %v7026 = vadd.f32 %v6384, %v6664
    %v7027 = vadd.f32 %v6385, %v6669
    %v7028 = vadd.f32 %v6386, %v6674
    %v7029 = vadd.f32 %v6387, %v6679
    %v7030 = vadd.f32 %v6388, %v6684
    %v7031 = vadd.f32 %v6389, %v6689
    %v7032 = vadd.f32 %v6390, %v6694
    %v7033 = vadd.f32 %v6391, %v6699
    %v7034 = vadd.f32 %v6392, %v6704
    %v7035 = vadd.f32 %v6393, %v6709
    %v7036 = vadd.f32 %v6394, %v6714
    %v7037 = vadd.f32 %v6395, %v6719
    %v7038 = vadd.f32 %v6396, %v6724
    %v7039 = vadd.f32 %v6397, %v6729
    %v7040 = vadd.f32 %v6398, %v6734
    %v7041 = vadd.f32 %v6399, %v6739
    %v7042 = vadd.f32 %v6400, %v6744
    %v7043 = vadd.f32 %v6401, %v6749
    %v7044 = vadd.f32 %v6402, %v6754
    %v7045 = vadd.f32 %v6403, %v6759
    %v7046 = vadd.f32 %v6404, %v6764
    %v7047 = vadd.f32 %v6405, %v6769
    %v7048 = vadd.f32 %v6406, %v6774
    %v7049 = vadd.f32 %v6407, %v6779
    %v7050 = vadd.f32 %v6408, %v6784
    %v7051 = vadd.f32 %v6409, %v6789
    %v7052 = vadd.f32 %v6410, %v6794
    %v7053 = vadd.f32 %v6411, %v6799
    %v7054 = vadd.f32 %v6412, %v6804
    %v7055 = vadd.f32 %v6413, %v6809
    %v7056 = vadd.f32 %v6414, %v6814
    %v7057 = vadd.f32 %v6415, %v6819
    %v7058 = vadd.f32 %v6416, %v6824
    %v7059 = vadd.f32 %v6417, %v6829
    %v7060 = vadd.f32 %v6418, %v6834
    %v7061 = vadd.f32 %v6419, %v6839
    %v7062 = vadd.f32 %v6420, %v6844
    %v7063 = vadd.f32 %v6421, %v6849
    %v7064 = vadd.f32 %v6422, %v6854
    %v7065 = vadd.f32 %v6423, %v6859
    %v7066 = vadd.f32 %v6424, %v6864
    %v7067 = vadd.f32 %v6425, %v6869
    %v7068 = vadd.f32 %v6426, %v6874
    %v7069 = vadd.f32 %v6427, %v6879
    %v7070 = vadd.f32 %v6428, %v6884
    %v7071 = vadd.f32 %v6429, %v6889
    %v7072 = vadd.f32 %v6430, %v6894
    %v7073 = vadd.f32 %v6431, %v6899
    %v7074 = vadd.f32 %v6432, %v6904
    %v7075 = vadd.f32 %v6433, %v6909
    %v7076 = vadd.f32 %v6434, %v6914
    %v7077 = vadd.f32 %v6435, %v6919
    %v7078 = vadd.f32 %v6436, %v6924
    %v7079 = vadd.f32 %v6437, %v6929
    %v7080 = vadd.f32 %v6438, %v6934
    %v7081 = vadd.f32 %v6439, %v6939
    %v7082 = vadd.f32 %v6440, %v6944
    %v7083 = vadd.f32 %v6441, %v6949
    %v7084 = vadd.f32 %v6442, %v6954
    %v7085 = vadd.f32 %v6443, %v6959
    %v7086 = vadd.f32 %v6444, %v6964
    %v7087 = vadd.f32 %v6445, %v6969
    %v7088 = vadd.f32 %v6446, %v6974
    %v7089 = vadd.f32 %v6447, %v6979
    %v7090 = vadd.f32 %v6448, %v6984
    %v7091 = vadd.f32 %v6449, %v6989
    %v7092 = vadd.f32 %v6450, %v6994
    %v7093 = vadd.f32 %v6451, %v6999
    %v7094 = vadd.f32 %v6452, %v7004
    %v7095 = vadd.f32 %v6453, %v7009
    %v7096 = vadd.f32 %v6454, %v7014
    %v7097 = vld [vmem:[#allocation2 + $0x2b] sm:$0xff]
    %v7098 = vld [vmem:[#allocation2 + $0x33] sm:$0xff]
    %v7099 = vld [vmem:[#allocation2 + $0x3b] sm:$0xff]
    %v7100 = vld [vmem:[#allocation2 + $0x43] sm:$0xff]
    %v7101 = vld [vmem:[#allocation2 + $0x4b] sm:$0xff]
    %v7102 = vld [vmem:[#allocation2 + $0x53] sm:$0xff]
    %v7103 = vld [vmem:[#allocation2 + $0x5b] sm:$0xff]
    %v7104 = vld [vmem:[#allocation2 + $0x63] sm:$0xff]
    %v7105 = vld [vmem:[#allocation2 + $0x6b] sm:$0xff]
    %v7106 = vld [vmem:[#allocation2 + $0x73] sm:$0xff]
    %v7107 = vld [vmem:[#allocation2 + $0x7b] sm:$0xff]
    %v7108 = vld [vmem:[#allocation2 + $0x83] sm:$0xff]
    %v7109 = vld [vmem:[#allocation2 + $0x8b] sm:$0xff]
    %v7110 = vld [vmem:[#allocation2 + $0x93] sm:$0xff]
    %v7111 = vld [vmem:[#allocation2 + $0x9b] sm:$0xff]
    %v7112 = vld [vmem:[#allocation2 + $0xa3] sm:$0xff]
    %v7113 = vld [vmem:[#allocation2 + $0xab] sm:$0xff]
    %v7114 = vld [vmem:[#allocation2 + $0xb3] sm:$0xff]
    %v7115 = vld [vmem:[#allocation2 + $0xbb] sm:$0xff]
    %v7116 = vld [vmem:[#allocation2 + $0xc3] sm:$0xff]
    %v7117 = vld [vmem:[#allocation2 + $0xcb] sm:$0xff]
    %v7118 = vld [vmem:[#allocation2 + $0xd3] sm:$0xff]
    %v7119 = vld [vmem:[#allocation2 + $0xdb] sm:$0xff]
    %v7120 = vld [vmem:[#allocation2 + $0xe3] sm:$0xff]
    %v7121 = vld [vmem:[#allocation2 + $0xeb] sm:$0xff]
    %v7122 = vld [vmem:[#allocation2 + $0xf3] sm:$0xff]
    %v7123 = vld [vmem:[#allocation2 + $0xfb] sm:$0xff]
    %v7124 = vld [vmem:[#allocation2 + $0x103] sm:$0xff]
    %v7125 = vld [vmem:[#allocation2 + $0x10b] sm:$0xff]
    %v7126 = vld [vmem:[#allocation2 + $0x113] sm:$0xff]
    %v7127 = vld [vmem:[#allocation2 + $0x11b] sm:$0xff]
    %v7128 = vld [vmem:[#allocation2 + $0x123] sm:$0xff]
    %v7129 = vld [vmem:[#allocation2 + $0x12b] sm:$0xff]
    %v7130 = vld [vmem:[#allocation2 + $0x133] sm:$0xff]
    %v7131 = vld [vmem:[#allocation2 + $0x13b] sm:$0xff]
    %v7132 = vld [vmem:[#allocation2 + $0x143] sm:$0xff]
    %v7133 = vld [vmem:[#allocation2 + $0x14b] sm:$0xff]
    %v7134 = vld [vmem:[#allocation2 + $0x153] sm:$0xff]
    %v7135 = vld [vmem:[#allocation2 + $0x15b] sm:$0xff]
    %v7136 = vld [vmem:[#allocation2 + $0x163] sm:$0xff]
    %v7137 = vld [vmem:[#allocation2 + $0x16b] sm:$0xff]
    %v7138 = vld [vmem:[#allocation2 + $0x173] sm:$0xff]
    %v7139 = vld [vmem:[#allocation2 + $0x17b] sm:$0xff]
    %v7140 = vld [vmem:[#allocation2 + $0x183] sm:$0xff]
    %v7141 = vld [vmem:[#allocation2 + $0x18b] sm:$0xff]
    %v7142 = vld [vmem:[#allocation2 + $0x193] sm:$0xff]
    %v7143 = vld [vmem:[#allocation2 + $0x19b] sm:$0xff]
    %v7144 = vld [vmem:[#allocation2 + $0x1a3] sm:$0xff]
    %v7145 = vld [vmem:[#allocation2 + $0x1ab] sm:$0xff]
    %v7146 = vld [vmem:[#allocation2 + $0x1b3] sm:$0xff]
    %v7147 = vld [vmem:[#allocation2 + $0x1bb] sm:$0xff]
    %v7148 = vld [vmem:[#allocation2 + $0x1c3] sm:$0xff]
    %v7149 = vld [vmem:[#allocation2 + $0x1cb] sm:$0xff]
    %v7150 = vld [vmem:[#allocation2 + $0x1d3] sm:$0xff]
    %v7151 = vld [vmem:[#allocation2 + $0x1db] sm:$0xff]
    %v7152 = vld [vmem:[#allocation2 + $0x1e3] sm:$0xff]
    %v7153 = vld [vmem:[#allocation2 + $0x1eb] sm:$0xff]
    %v7154 = vld [vmem:[#allocation2 + $0x1f3] sm:$0xff]
    %v7155 = vld [vmem:[#allocation2 + $0x1fb] sm:$0xff]
    %v7156 = vld [vmem:[#allocation2 + $0x203] sm:$0xff]
    %v7157 = vld [vmem:[#allocation2 + $0x20b] sm:$0xff]
    %v7158 = vld [vmem:[#allocation2 + $0x213] sm:$0xff]
    %v7159 = vld [vmem:[#allocation2 + $0x21b] sm:$0xff]
    %v7160 = vld [vmem:[#allocation2 + $0x223] sm:$0xff]
    %v7161 = vld [vmem:[#allocation2 + $0x22b] sm:$0xff]
    %v7162 = vld [vmem:[#allocation2 + $0x233] sm:$0xff]
    %v7163 = vld [vmem:[#allocation2 + $0x23b] sm:$0xff]
    %v7164 = vld [vmem:[#allocation2 + $0x243] sm:$0xff]
    %v7165 = vld [vmem:[#allocation2 + $0x24b] sm:$0xff]
    %v7166 = vld [vmem:[#allocation2 + $0x253] sm:$0xff]
    %v7167 = vld [vmem:[#allocation2 + $0x25b] sm:$0xff]
    %v7168 = vld [vmem:[#allocation2 + $0x263] sm:$0xff]
    %v7169 = vld [vmem:[#allocation2 + $0x26b] sm:$0xff]
    %v7170 = vld [vmem:[#allocation2 + $0x273] sm:$0xff]
    %v7171 = vld [vmem:[#allocation2 + $0x27b] sm:$0xff]
    %v7172 = vld [vmem:[#allocation2 + $0x283] sm:$0xff]
    %v7173 = vld [vmem:[#allocation2 + $0x28b] sm:$0xff]
    %v7174 = vld [vmem:[#allocation2 + $0x293] sm:$0xff]
    %v7175 = vld [vmem:[#allocation2 + $0x29b] sm:$0xff]
    %v7176 = vld [vmem:[#allocation2 + $0x2a3] sm:$0xff]
    %s7177 = scalar_lea.vmem [#allocation8], 1024
    %v7178 = vld [vmem:[%s7177] sm:$0xff]
    %v7179 = vld [vmem:[%s7177 + $0x8] sm:$0xff]
    %v7180 = vld [vmem:[%s7177 + $0x10] sm:$0xff]
    %v7181 = vld [vmem:[%s7177 + $0x18] sm:$0xff]
    %v7182 = vld [vmem:[%s7177 + $0x20] sm:$0xff]
    %v7183 = vld [vmem:[%s7177 + $0x28] sm:$0xff]
    %v7184 = vld [vmem:[%s7177 + $0x30] sm:$0xff]
    %v7185 = vld [vmem:[%s7177 + $0x38] sm:$0xff]
    %v7186 = vld [vmem:[%s7177 + $0x40] sm:$0xff]
    %v7187 = vld [vmem:[%s7177 + $0x48] sm:$0xff]
    %v7188 = vld [vmem:[%s7177 + $0x50] sm:$0xff]
    %v7189 = vld [vmem:[%s7177 + $0x58] sm:$0xff]
    %v7190 = vld [vmem:[%s7177 + $0x60] sm:$0xff]
    %v7191 = vld [vmem:[%s7177 + $0x68] sm:$0xff]
    %v7192 = vld [vmem:[%s7177 + $0x70] sm:$0xff]
    %v7193 = vld [vmem:[%s7177 + $0x78] sm:$0xff]
    %7194 = vmatprep.subr.mxu0 0.0
    %7195 = vmatpush1.msra.mxu0 %v7193
    %7196 = vmatprep.subr.mxu0 0.0
    %7197 = vmatpush1.msra.mxu0 %v7192
    %7198 = vmatprep.subr.mxu0 0.0
    %7199 = vmatpush1.msra.mxu0 %v7191
    %7200 = vmatprep.subr.mxu0 0.0
    %7201 = vmatpush1.msra.mxu0 %v7190
    %7202 = vmatprep.subr.mxu0 0.0
    %7203 = vmatpush1.msra.mxu0 %v7189
    %7204 = vmatprep.subr.mxu0 0.0
    %7205 = vmatpush1.msra.mxu0 %v7188
    %7206 = vmatprep.subr.mxu0 0.0
    %7207 = vmatpush1.msra.mxu0 %v7187
    %7208 = vmatprep.subr.mxu0 0.0
    %7209 = vmatpush1.msra.mxu0 %v7186
    %7210 = vmatprep.subr.mxu0 0.0
    %7211 = vmatpush1.msra.mxu0 %v7185
    %7212 = vmatprep.subr.mxu0 0.0
    %7213 = vmatpush1.msra.mxu0 %v7184
    %7214 = vmatprep.subr.mxu0 0.0
    %7215 = vmatpush1.msra.mxu0 %v7183
    %7216 = vmatprep.subr.mxu0 0.0
    %7217 = vmatpush1.msra.mxu0 %v7182
    %7218 = vmatprep.subr.mxu0 0.0
    %7219 = vmatpush1.msra.mxu0 %v7181
    %7220 = vmatprep.subr.mxu0 0.0
    %7221 = vmatpush1.msra.mxu0 %v7180
    %7222 = vmatprep.subr.mxu0 0.0
    %7223 = vmatpush1.msra.mxu0 %v7179
    %7224 = vmatprep.subr.mxu0 0.0
    %7225 = vmatpush1.msra.mxu0 %v7178
    %7226 = vmatprep.subr.mxu0 0.0
    %7227 = vmatpush2.msra.mxu0 0.0
    %7228 = vmatprep.subr.mxu0 0.0
    %7229 = vmatpush2.msra.mxu0 0.0
    %7230 = vmatprep.subr.mxu0 0.0
    %7231 = vmatpush2.msra.mxu0 0.0
    %7232 = vmatprep.subr.mxu0 0.0
    %7233 = vmatpush2.msra.mxu0 0.0
    %7234 = vmatprep.subr.mxu0 0.0
    %7235 = vmatpush2.msra.mxu0 0.0
    %7236 = vmatprep.subr.mxu0 0.0
    %7237 = vmatpush2.msra.mxu0 0.0
    %7238 = vmatprep.subr.mxu0 0.0
    %7239 = vmatpush2.msra.mxu0 0.0
    %7240 = vmatprep.subr.mxu0 0.0
    %7241 = vmatpush2.msra.mxu0 0.0
    %7242 = vmatprep.subr.mxu0 0.0
    %7243 = vmatpush2.msra.mxu0 0.0
    %7244 = vmatprep.subr.mxu0 0.0
    %7245 = vmatpush2.msra.mxu0 0.0
    %7246 = vmatprep.subr.mxu0 0.0
    %7247 = vmatpush2.msra.mxu0 0.0
    %7248 = vmatprep.subr.mxu0 0.0
    %7249 = vmatpush2.msra.mxu0 0.0
    %7250 = vmatprep.subr.mxu0 0.0
    %7251 = vmatpush2.msra.mxu0 0.0
    %7252 = vmatprep.subr.mxu0 0.0
    %7253 = vmatpush2.msra.mxu0 0.0
    %7254 = vmatprep.subr.mxu0 0.0
    %7255 = vmatpush2.msra.mxu0 0.0
    %7256 = vmatprep.subr.mxu0 0.0
    %7257 = vmatpush2.msra.mxu0 0.0
    %7258 = vmatprep.mubr.f32.mxu0 0.0
    %7259 = vmatmul.mubr.f32.gmra.mxu0 %v7097
    %v7260 = vpop.f32.mrf.mxu0
    %v7261 = vadd.f32 0.0, %v7260
    %v7262 = vpop.f32.mrf.mxu0
    %7263 = vmatprep.mubr.f32.mxu0 0.0
    %7264 = vmatmul.mubr.f32.gmra.mxu0 %v7098
    %v7265 = vpop.f32.mrf.mxu0
    %v7266 = vadd.f32 0.0, %v7265
    %v7267 = vpop.f32.mrf.mxu0
    %7268 = vmatprep.mubr.f32.mxu0 0.0
    %7269 = vmatmul.mubr.f32.gmra.mxu0 %v7099
    %v7270 = vpop.f32.mrf.mxu0
    %v7271 = vadd.f32 0.0, %v7270
    %v7272 = vpop.f32.mrf.mxu0
    %7273 = vmatprep.mubr.f32.mxu0 0.0
    %7274 = vmatmul.mubr.f32.gmra.mxu0 %v7100
    %v7275 = vpop.f32.mrf.mxu0
    %v7276 = vadd.f32 0.0, %v7275
    %v7277 = vpop.f32.mrf.mxu0
    %7278 = vmatprep.mubr.f32.mxu0 0.0
    %7279 = vmatmul.mubr.f32.gmra.mxu0 %v7101
    %v7280 = vpop.f32.mrf.mxu0
    %v7281 = vadd.f32 0.0, %v7280
    %v7282 = vpop.f32.mrf.mxu0
    %7283 = vmatprep.mubr.f32.mxu0 0.0
    %7284 = vmatmul.mubr.f32.gmra.mxu0 %v7102
    %v7285 = vpop.f32.mrf.mxu0
    %v7286 = vadd.f32 0.0, %v7285
    %v7287 = vpop.f32.mrf.mxu0
    %7288 = vmatprep.mubr.f32.mxu0 0.0
    %7289 = vmatmul.mubr.f32.gmra.mxu0 %v7103
    %v7290 = vpop.f32.mrf.mxu0
    %v7291 = vadd.f32 0.0, %v7290
    %v7292 = vpop.f32.mrf.mxu0
    %7293 = vmatprep.mubr.f32.mxu0 0.0
    %7294 = vmatmul.mubr.f32.gmra.mxu0 %v7104
    %v7295 = vpop.f32.mrf.mxu0
    %v7296 = vadd.f32 0.0, %v7295
    %v7297 = vpop.f32.mrf.mxu0
    %7298 = vmatprep.mubr.f32.mxu0 0.0
    %7299 = vmatmul.mubr.f32.gmra.mxu0 %v7105
    %v7300 = vpop.f32.mrf.mxu0
    %v7301 = vadd.f32 0.0, %v7300
    %v7302 = vpop.f32.mrf.mxu0
    %7303 = vmatprep.mubr.f32.mxu0 0.0
    %7304 = vmatmul.mubr.f32.gmra.mxu0 %v7106
    %v7305 = vpop.f32.mrf.mxu0
    %v7306 = vadd.f32 0.0, %v7305
    %v7307 = vpop.f32.mrf.mxu0
    %7308 = vmatprep.mubr.f32.mxu0 0.0
    %7309 = vmatmul.mubr.f32.gmra.mxu0 %v7107
    %v7310 = vpop.f32.mrf.mxu0
    %v7311 = vadd.f32 0.0, %v7310
    %v7312 = vpop.f32.mrf.mxu0
    %7313 = vmatprep.mubr.f32.mxu0 0.0
    %7314 = vmatmul.mubr.f32.gmra.mxu0 %v7108
    %v7315 = vpop.f32.mrf.mxu0
    %v7316 = vadd.f32 0.0, %v7315
    %v7317 = vpop.f32.mrf.mxu0
    %7318 = vmatprep.mubr.f32.mxu0 0.0
    %7319 = vmatmul.mubr.f32.gmra.mxu0 %v7109
    %v7320 = vpop.f32.mrf.mxu0
    %v7321 = vadd.f32 0.0, %v7320
    %v7322 = vpop.f32.mrf.mxu0
    %7323 = vmatprep.mubr.f32.mxu0 0.0
    %7324 = vmatmul.mubr.f32.gmra.mxu0 %v7110
    %v7325 = vpop.f32.mrf.mxu0
    %v7326 = vadd.f32 0.0, %v7325
    %v7327 = vpop.f32.mrf.mxu0
    %7328 = vmatprep.mubr.f32.mxu0 0.0
    %7329 = vmatmul.mubr.f32.gmra.mxu0 %v7111
    %v7330 = vpop.f32.mrf.mxu0
    %v7331 = vadd.f32 0.0, %v7330
    %v7332 = vpop.f32.mrf.mxu0
    %7333 = vmatprep.mubr.f32.mxu0 0.0
    %7334 = vmatmul.mubr.f32.gmra.mxu0 %v7112
    %v7335 = vpop.f32.mrf.mxu0
    %v7336 = vadd.f32 0.0, %v7335
    %v7337 = vpop.f32.mrf.mxu0
    %7338 = vmatprep.mubr.f32.mxu0 0.0
    %7339 = vmatmul.mubr.f32.gmra.mxu0 %v7113
    %v7340 = vpop.f32.mrf.mxu0
    %v7341 = vadd.f32 0.0, %v7340
    %v7342 = vpop.f32.mrf.mxu0
    %7343 = vmatprep.mubr.f32.mxu0 0.0
    %7344 = vmatmul.mubr.f32.gmra.mxu0 %v7114
    %v7345 = vpop.f32.mrf.mxu0
    %v7346 = vadd.f32 0.0, %v7345
    %v7347 = vpop.f32.mrf.mxu0
    %7348 = vmatprep.mubr.f32.mxu0 0.0
    %7349 = vmatmul.mubr.f32.gmra.mxu0 %v7115
    %v7350 = vpop.f32.mrf.mxu0
    %v7351 = vadd.f32 0.0, %v7350
    %v7352 = vpop.f32.mrf.mxu0
    %7353 = vmatprep.mubr.f32.mxu0 0.0
    %7354 = vmatmul.mubr.f32.gmra.mxu0 %v7116
    %v7355 = vpop.f32.mrf.mxu0
    %v7356 = vadd.f32 0.0, %v7355
    %v7357 = vpop.f32.mrf.mxu0
    %7358 = vmatprep.mubr.f32.mxu0 0.0
    %7359 = vmatmul.mubr.f32.gmra.mxu0 %v7117
    %v7360 = vpop.f32.mrf.mxu0
    %v7361 = vadd.f32 0.0, %v7360
    %v7362 = vpop.f32.mrf.mxu0
    %7363 = vmatprep.mubr.f32.mxu0 0.0
    %7364 = vmatmul.mubr.f32.gmra.mxu0 %v7118
    %v7365 = vpop.f32.mrf.mxu0
    %v7366 = vadd.f32 0.0, %v7365
    %v7367 = vpop.f32.mrf.mxu0
    %7368 = vmatprep.mubr.f32.mxu0 0.0
    %7369 = vmatmul.mubr.f32.gmra.mxu0 %v7119
    %v7370 = vpop.f32.mrf.mxu0
    %v7371 = vadd.f32 0.0, %v7370
    %v7372 = vpop.f32.mrf.mxu0
    %7373 = vmatprep.mubr.f32.mxu0 0.0
    %7374 = vmatmul.mubr.f32.gmra.mxu0 %v7120
    %v7375 = vpop.f32.mrf.mxu0
    %v7376 = vadd.f32 0.0, %v7375
    %v7377 = vpop.f32.mrf.mxu0
    %7378 = vmatprep.mubr.f32.mxu0 0.0
    %7379 = vmatmul.mubr.f32.gmra.mxu0 %v7121
    %v7380 = vpop.f32.mrf.mxu0
    %v7381 = vadd.f32 0.0, %v7380
    %v7382 = vpop.f32.mrf.mxu0
    %7383 = vmatprep.mubr.f32.mxu0 0.0
    %7384 = vmatmul.mubr.f32.gmra.mxu0 %v7122
    %v7385 = vpop.f32.mrf.mxu0
    %v7386 = vadd.f32 0.0, %v7385
    %v7387 = vpop.f32.mrf.mxu0
    %7388 = vmatprep.mubr.f32.mxu0 0.0
    %7389 = vmatmul.mubr.f32.gmra.mxu0 %v7123
    %v7390 = vpop.f32.mrf.mxu0
    %v7391 = vadd.f32 0.0, %v7390
    %v7392 = vpop.f32.mrf.mxu0
    %7393 = vmatprep.mubr.f32.mxu0 0.0
    %7394 = vmatmul.mubr.f32.gmra.mxu0 %v7124
    %v7395 = vpop.f32.mrf.mxu0
    %v7396 = vadd.f32 0.0, %v7395
    %v7397 = vpop.f32.mrf.mxu0
    %7398 = vmatprep.mubr.f32.mxu0 0.0
    %7399 = vmatmul.mubr.f32.gmra.mxu0 %v7125
    %v7400 = vpop.f32.mrf.mxu0
    %v7401 = vadd.f32 0.0, %v7400
    %v7402 = vpop.f32.mrf.mxu0
    %7403 = vmatprep.mubr.f32.mxu0 0.0
    %7404 = vmatmul.mubr.f32.gmra.mxu0 %v7126
    %v7405 = vpop.f32.mrf.mxu0
    %v7406 = vadd.f32 0.0, %v7405
    %v7407 = vpop.f32.mrf.mxu0
    %7408 = vmatprep.mubr.f32.mxu0 0.0
    %7409 = vmatmul.mubr.f32.gmra.mxu0 %v7127
    %v7410 = vpop.f32.mrf.mxu0
    %v7411 = vadd.f32 0.0, %v7410
    %v7412 = vpop.f32.mrf.mxu0
    %7413 = vmatprep.mubr.f32.mxu0 0.0
    %7414 = vmatmul.mubr.f32.gmra.mxu0 %v7128
    %v7415 = vpop.f32.mrf.mxu0
    %v7416 = vadd.f32 0.0, %v7415
    %v7417 = vpop.f32.mrf.mxu0
    %7418 = vmatprep.mubr.f32.mxu0 0.0
    %7419 = vmatmul.mubr.f32.gmra.mxu0 %v7129
    %v7420 = vpop.f32.mrf.mxu0
    %v7421 = vadd.f32 0.0, %v7420
    %v7422 = vpop.f32.mrf.mxu0
    %7423 = vmatprep.mubr.f32.mxu0 0.0
    %7424 = vmatmul.mubr.f32.gmra.mxu0 %v7130
    %v7425 = vpop.f32.mrf.mxu0
    %v7426 = vadd.f32 0.0, %v7425
    %v7427 = vpop.f32.mrf.mxu0
    %7428 = vmatprep.mubr.f32.mxu0 0.0
    %7429 = vmatmul.mubr.f32.gmra.mxu0 %v7131
    %v7430 = vpop.f32.mrf.mxu0
    %v7431 = vadd.f32 0.0, %v7430
    %v7432 = vpop.f32.mrf.mxu0
    %7433 = vmatprep.mubr.f32.mxu0 0.0
    %7434 = vmatmul.mubr.f32.gmra.mxu0 %v7132
    %v7435 = vpop.f32.mrf.mxu0
    %v7436 = vadd.f32 0.0, %v7435
    %v7437 = vpop.f32.mrf.mxu0
    %7438 = vmatprep.mubr.f32.mxu0 0.0
    %7439 = vmatmul.mubr.f32.gmra.mxu0 %v7133
    %v7440 = vpop.f32.mrf.mxu0
    %v7441 = vadd.f32 0.0, %v7440
    %v7442 = vpop.f32.mrf.mxu0
    %7443 = vmatprep.mubr.f32.mxu0 0.0
    %7444 = vmatmul.mubr.f32.gmra.mxu0 %v7134
    %v7445 = vpop.f32.mrf.mxu0
    %v7446 = vadd.f32 0.0, %v7445
    %v7447 = vpop.f32.mrf.mxu0
    %7448 = vmatprep.mubr.f32.mxu0 0.0
    %7449 = vmatmul.mubr.f32.gmra.mxu0 %v7135
    %v7450 = vpop.f32.mrf.mxu0
    %v7451 = vadd.f32 0.0, %v7450
    %v7452 = vpop.f32.mrf.mxu0
    %7453 = vmatprep.mubr.f32.mxu0 0.0
    %7454 = vmatmul.mubr.f32.gmra.mxu0 %v7136
    %v7455 = vpop.f32.mrf.mxu0
    %v7456 = vadd.f32 0.0, %v7455
    %v7457 = vpop.f32.mrf.mxu0
    %7458 = vmatprep.mubr.f32.mxu0 0.0
    %7459 = vmatmul.mubr.f32.gmra.mxu0 %v7137
    %v7460 = vpop.f32.mrf.mxu0
    %v7461 = vadd.f32 0.0, %v7460
    %v7462 = vpop.f32.mrf.mxu0
    %7463 = vmatprep.mubr.f32.mxu0 0.0
    %7464 = vmatmul.mubr.f32.gmra.mxu0 %v7138
    %v7465 = vpop.f32.mrf.mxu0
    %v7466 = vadd.f32 0.0, %v7465
    %v7467 = vpop.f32.mrf.mxu0
    %7468 = vmatprep.mubr.f32.mxu0 0.0
    %7469 = vmatmul.mubr.f32.gmra.mxu0 %v7139
    %v7470 = vpop.f32.mrf.mxu0
    %v7471 = vadd.f32 0.0, %v7470
    %v7472 = vpop.f32.mrf.mxu0
    %7473 = vmatprep.mubr.f32.mxu0 0.0
    %7474 = vmatmul.mubr.f32.gmra.mxu0 %v7140
    %v7475 = vpop.f32.mrf.mxu0
    %v7476 = vadd.f32 0.0, %v7475
    %v7477 = vpop.f32.mrf.mxu0
    %7478 = vmatprep.mubr.f32.mxu0 0.0
    %7479 = vmatmul.mubr.f32.gmra.mxu0 %v7141
    %v7480 = vpop.f32.mrf.mxu0
    %v7481 = vadd.f32 0.0, %v7480
    %v7482 = vpop.f32.mrf.mxu0
    %7483 = vmatprep.mubr.f32.mxu0 0.0
    %7484 = vmatmul.mubr.f32.gmra.mxu0 %v7142
    %v7485 = vpop.f32.mrf.mxu0
    %v7486 = vadd.f32 0.0, %v7485
    %v7487 = vpop.f32.mrf.mxu0
    %7488 = vmatprep.mubr.f32.mxu0 0.0
    %7489 = vmatmul.mubr.f32.gmra.mxu0 %v7143
    %v7490 = vpop.f32.mrf.mxu0
    %v7491 = vadd.f32 0.0, %v7490
    %v7492 = vpop.f32.mrf.mxu0
    %7493 = vmatprep.mubr.f32.mxu0 0.0
    %7494 = vmatmul.mubr.f32.gmra.mxu0 %v7144
    %v7495 = vpop.f32.mrf.mxu0
    %v7496 = vadd.f32 0.0, %v7495
    %v7497 = vpop.f32.mrf.mxu0
    %7498 = vmatprep.mubr.f32.mxu0 0.0
    %7499 = vmatmul.mubr.f32.gmra.mxu0 %v7145
    %v7500 = vpop.f32.mrf.mxu0
    %v7501 = vadd.f32 0.0, %v7500
    %v7502 = vpop.f32.mrf.mxu0
    %7503 = vmatprep.mubr.f32.mxu0 0.0
    %7504 = vmatmul.mubr.f32.gmra.mxu0 %v7146
    %v7505 = vpop.f32.mrf.mxu0
    %v7506 = vadd.f32 0.0, %v7505
    %v7507 = vpop.f32.mrf.mxu0
    %7508 = vmatprep.mubr.f32.mxu0 0.0
    %7509 = vmatmul.mubr.f32.gmra.mxu0 %v7147
    %v7510 = vpop.f32.mrf.mxu0
    %v7511 = vadd.f32 0.0, %v7510
    %v7512 = vpop.f32.mrf.mxu0
    %7513 = vmatprep.mubr.f32.mxu0 0.0
    %7514 = vmatmul.mubr.f32.gmra.mxu0 %v7148
    %v7515 = vpop.f32.mrf.mxu0
    %v7516 = vadd.f32 0.0, %v7515
    %v7517 = vpop.f32.mrf.mxu0
    %7518 = vmatprep.mubr.f32.mxu0 0.0
    %7519 = vmatmul.mubr.f32.gmra.mxu0 %v7149
    %v7520 = vpop.f32.mrf.mxu0
    %v7521 = vadd.f32 0.0, %v7520
    %v7522 = vpop.f32.mrf.mxu0
    %7523 = vmatprep.mubr.f32.mxu0 0.0
    %7524 = vmatmul.mubr.f32.gmra.mxu0 %v7150
    %v7525 = vpop.f32.mrf.mxu0
    %v7526 = vadd.f32 0.0, %v7525
    %v7527 = vpop.f32.mrf.mxu0
    %7528 = vmatprep.mubr.f32.mxu0 0.0
    %7529 = vmatmul.mubr.f32.gmra.mxu0 %v7151
    %v7530 = vpop.f32.mrf.mxu0
    %v7531 = vadd.f32 0.0, %v7530
    %v7532 = vpop.f32.mrf.mxu0
    %7533 = vmatprep.mubr.f32.mxu0 0.0
    %7534 = vmatmul.mubr.f32.gmra.mxu0 %v7152
    %v7535 = vpop.f32.mrf.mxu0
    %v7536 = vadd.f32 0.0, %v7535
    %v7537 = vpop.f32.mrf.mxu0
    %7538 = vmatprep.mubr.f32.mxu0 0.0
    %7539 = vmatmul.mubr.f32.gmra.mxu0 %v7153
    %v7540 = vpop.f32.mrf.mxu0
    %v7541 = vadd.f32 0.0, %v7540
    %v7542 = vpop.f32.mrf.mxu0
    %7543 = vmatprep.mubr.f32.mxu0 0.0
    %7544 = vmatmul.mubr.f32.gmra.mxu0 %v7154
    %v7545 = vpop.f32.mrf.mxu0
    %v7546 = vadd.f32 0.0, %v7545
    %v7547 = vpop.f32.mrf.mxu0
    %7548 = vmatprep.mubr.f32.mxu0 0.0
    %7549 = vmatmul.mubr.f32.gmra.mxu0 %v7155
    %v7550 = vpop.f32.mrf.mxu0
    %v7551 = vadd.f32 0.0, %v7550
    %v7552 = vpop.f32.mrf.mxu0
    %7553 = vmatprep.mubr.f32.mxu0 0.0
    %7554 = vmatmul.mubr.f32.gmra.mxu0 %v7156
    %v7555 = vpop.f32.mrf.mxu0
    %v7556 = vadd.f32 0.0, %v7555
    %v7557 = vpop.f32.mrf.mxu0
    %7558 = vmatprep.mubr.f32.mxu0 0.0
    %7559 = vmatmul.mubr.f32.gmra.mxu0 %v7157
    %v7560 = vpop.f32.mrf.mxu0
    %v7561 = vadd.f32 0.0, %v7560
    %v7562 = vpop.f32.mrf.mxu0
    %7563 = vmatprep.mubr.f32.mxu0 0.0
    %7564 = vmatmul.mubr.f32.gmra.mxu0 %v7158
    %v7565 = vpop.f32.mrf.mxu0
    %v7566 = vadd.f32 0.0, %v7565
    %v7567 = vpop.f32.mrf.mxu0
    %7568 = vmatprep.mubr.f32.mxu0 0.0
    %7569 = vmatmul.mubr.f32.gmra.mxu0 %v7159
    %v7570 = vpop.f32.mrf.mxu0
    %v7571 = vadd.f32 0.0, %v7570
    %v7572 = vpop.f32.mrf.mxu0
    %7573 = vmatprep.mubr.f32.mxu0 0.0
    %7574 = vmatmul.mubr.f32.gmra.mxu0 %v7160
    %v7575 = vpop.f32.mrf.mxu0
    %v7576 = vadd.f32 0.0, %v7575
    %v7577 = vpop.f32.mrf.mxu0
    %7578 = vmatprep.mubr.f32.mxu0 0.0
    %7579 = vmatmul.mubr.f32.gmra.mxu0 %v7161
    %v7580 = vpop.f32.mrf.mxu0
    %v7581 = vadd.f32 0.0, %v7580
    %v7582 = vpop.f32.mrf.mxu0
    %7583 = vmatprep.mubr.f32.mxu0 0.0
    %7584 = vmatmul.mubr.f32.gmra.mxu0 %v7162
    %v7585 = vpop.f32.mrf.mxu0
    %v7586 = vadd.f32 0.0, %v7585
    %v7587 = vpop.f32.mrf.mxu0
    %7588 = vmatprep.mubr.f32.mxu0 0.0
    %7589 = vmatmul.mubr.f32.gmra.mxu0 %v7163
    %v7590 = vpop.f32.mrf.mxu0
    %v7591 = vadd.f32 0.0, %v7590
    %v7592 = vpop.f32.mrf.mxu0
    %7593 = vmatprep.mubr.f32.mxu0 0.0
    %7594 = vmatmul.mubr.f32.gmra.mxu0 %v7164
    %v7595 = vpop.f32.mrf.mxu0
    %v7596 = vadd.f32 0.0, %v7595
    %v7597 = vpop.f32.mrf.mxu0
    %7598 = vmatprep.mubr.f32.mxu0 0.0
    %7599 = vmatmul.mubr.f32.gmra.mxu0 %v7165
    %v7600 = vpop.f32.mrf.mxu0
    %v7601 = vadd.f32 0.0, %v7600
    %v7602 = vpop.f32.mrf.mxu0
    %7603 = vmatprep.mubr.f32.mxu0 0.0
    %7604 = vmatmul.mubr.f32.gmra.mxu0 %v7166
    %v7605 = vpop.f32.mrf.mxu0
    %v7606 = vadd.f32 0.0, %v7605
    %v7607 = vpop.f32.mrf.mxu0
    %7608 = vmatprep.mubr.f32.mxu0 0.0
    %7609 = vmatmul.mubr.f32.gmra.mxu0 %v7167
    %v7610 = vpop.f32.mrf.mxu0
    %v7611 = vadd.f32 0.0, %v7610
    %v7612 = vpop.f32.mrf.mxu0
    %7613 = vmatprep.mubr.f32.mxu0 0.0
    %7614 = vmatmul.mubr.f32.gmra.mxu0 %v7168
    %v7615 = vpop.f32.mrf.mxu0
    %v7616 = vadd.f32 0.0, %v7615
    %v7617 = vpop.f32.mrf.mxu0
    %7618 = vmatprep.mubr.f32.mxu0 0.0
    %7619 = vmatmul.mubr.f32.gmra.mxu0 %v7169
    %v7620 = vpop.f32.mrf.mxu0
    %v7621 = vadd.f32 0.0, %v7620
    %v7622 = vpop.f32.mrf.mxu0
    %7623 = vmatprep.mubr.f32.mxu0 0.0
    %7624 = vmatmul.mubr.f32.gmra.mxu0 %v7170
    %v7625 = vpop.f32.mrf.mxu0
    %v7626 = vadd.f32 0.0, %v7625
    %v7627 = vpop.f32.mrf.mxu0
    %7628 = vmatprep.mubr.f32.mxu0 0.0
    %7629 = vmatmul.mubr.f32.gmra.mxu0 %v7171
    %v7630 = vpop.f32.mrf.mxu0
    %v7631 = vadd.f32 0.0, %v7630
    %v7632 = vpop.f32.mrf.mxu0
    %7633 = vmatprep.mubr.f32.mxu0 0.0
    %7634 = vmatmul.mubr.f32.gmra.mxu0 %v7172
    %v7635 = vpop.f32.mrf.mxu0
    %v7636 = vadd.f32 0.0, %v7635
    %v7637 = vpop.f32.mrf.mxu0
    %7638 = vmatprep.mubr.f32.mxu0 0.0
    %7639 = vmatmul.mubr.f32.gmra.mxu0 %v7173
    %v7640 = vpop.f32.mrf.mxu0
    %v7641 = vadd.f32 0.0, %v7640
    %v7642 = vpop.f32.mrf.mxu0
    %7643 = vmatprep.mubr.f32.mxu0 0.0
    %7644 = vmatmul.mubr.f32.gmra.mxu0 %v7174
    %v7645 = vpop.f32.mrf.mxu0
    %v7646 = vadd.f32 0.0, %v7645
    %v7647 = vpop.f32.mrf.mxu0
    %7648 = vmatprep.mubr.f32.mxu0 0.0
    %7649 = vmatmul.mubr.f32.gmra.mxu0 %v7175
    %v7650 = vpop.f32.mrf.mxu0
    %v7651 = vadd.f32 0.0, %v7650
    %v7652 = vpop.f32.mrf.mxu0
    %7653 = vmatprep.mubr.f32.mxu0 0.0
    %7654 = vmatmul.mubr.f32.gmra.mxu0 %v7176
    %v7655 = vpop.f32.mrf.mxu0
    %v7656 = vadd.f32 0.0, %v7655
    %v7657 = vpop.f32.mrf.mxu0
    %7658 = vdwg.mxu0
    %v7659 = vadd.f32 %v7017, %v7261
    %v7660 = vadd.f32 %v7018, %v7266
    %v7661 = vadd.f32 %v7019, %v7271
    %v7662 = vadd.f32 %v7020, %v7276
    %v7663 = vadd.f32 %v7021, %v7281
    %v7664 = vadd.f32 %v7022, %v7286
    %v7665 = vadd.f32 %v7023, %v7291
    %v7666 = vadd.f32 %v7024, %v7296
    %v7667 = vadd.f32 %v7025, %v7301
    %v7668 = vadd.f32 %v7026, %v7306
    %v7669 = vadd.f32 %v7027, %v7311
    %v7670 = vadd.f32 %v7028, %v7316
    %v7671 = vadd.f32 %v7029, %v7321
    %v7672 = vadd.f32 %v7030, %v7326
    %v7673 = vadd.f32 %v7031, %v7331
    %v7674 = vadd.f32 %v7032, %v7336
    %v7675 = vadd.f32 %v7033, %v7341
    %v7676 = vadd.f32 %v7034, %v7346
    %v7677 = vadd.f32 %v7035, %v7351
    %v7678 = vadd.f32 %v7036, %v7356
    %v7679 = vadd.f32 %v7037, %v7361
    %v7680 = vadd.f32 %v7038, %v7366
    %v7681 = vadd.f32 %v7039, %v7371
    %v7682 = vadd.f32 %v7040, %v7376
    %v7683 = vadd.f32 %v7041, %v7381
    %v7684 = vadd.f32 %v7042, %v7386
    %v7685 = vadd.f32 %v7043, %v7391
    %v7686 = vadd.f32 %v7044, %v7396
    %v7687 = vadd.f32 %v7045, %v7401
    %v7688 = vadd.f32 %v7046, %v7406
    %v7689 = vadd.f32 %v7047, %v7411
    %v7690 = vadd.f32 %v7048, %v7416
    %v7691 = vadd.f32 %v7049, %v7421
    %v7692 = vadd.f32 %v7050, %v7426
    %v7693 = vadd.f32 %v7051, %v7431
    %v7694 = vadd.f32 %v7052, %v7436
    %v7695 = vadd.f32 %v7053, %v7441
    %v7696 = vadd.f32 %v7054, %v7446
    %v7697 = vadd.f32 %v7055, %v7451
    %v7698 = vadd.f32 %v7056, %v7456
    %v7699 = vadd.f32 %v7057, %v7461
    %v7700 = vadd.f32 %v7058, %v7466
    %v7701 = vadd.f32 %v7059, %v7471
    %v7702 = vadd.f32 %v7060, %v7476
    %v7703 = vadd.f32 %v7061, %v7481
    %v7704 = vadd.f32 %v7062, %v7486
    %v7705 = vadd.f32 %v7063, %v7491
    %v7706 = vadd.f32 %v7064, %v7496
    %v7707 = vadd.f32 %v7065, %v7501
    %v7708 = vadd.f32 %v7066, %v7506
    %v7709 = vadd.f32 %v7067, %v7511
    %v7710 = vadd.f32 %v7068, %v7516
    %v7711 = vadd.f32 %v7069, %v7521
    %v7712 = vadd.f32 %v7070, %v7526
    %v7713 = vadd.f32 %v7071, %v7531
    %v7714 = vadd.f32 %v7072, %v7536
    %v7715 = vadd.f32 %v7073, %v7541
    %v7716 = vadd.f32 %v7074, %v7546
    %v7717 = vadd.f32 %v7075, %v7551
    %v7718 = vadd.f32 %v7076, %v7556
    %v7719 = vadd.f32 %v7077, %v7561
    %v7720 = vadd.f32 %v7078, %v7566
    %v7721 = vadd.f32 %v7079, %v7571
    %v7722 = vadd.f32 %v7080, %v7576
    %v7723 = vadd.f32 %v7081, %v7581
    %v7724 = vadd.f32 %v7082, %v7586
    %v7725 = vadd.f32 %v7083, %v7591
    %v7726 = vadd.f32 %v7084, %v7596
    %v7727 = vadd.f32 %v7085, %v7601
    %v7728 = vadd.f32 %v7086, %v7606
    %v7729 = vadd.f32 %v7087, %v7611
    %v7730 = vadd.f32 %v7088, %v7616
    %v7731 = vadd.f32 %v7089, %v7621
    %v7732 = vadd.f32 %v7090, %v7626
    %v7733 = vadd.f32 %v7091, %v7631
    %v7734 = vadd.f32 %v7092, %v7636
    %v7735 = vadd.f32 %v7093, %v7641
    %v7736 = vadd.f32 %v7094, %v7646
    %v7737 = vadd.f32 %v7095, %v7651
    %v7738 = vadd.f32 %v7096, %v7656
    %v7739 = vlaneseq
    %v7740 = vshrl.u32 %v7739, 7
    %v7741 = vsub.s32 0, %v7740
    %v7742 = vrot.slane %v231, %v7741
    %v7743 = vadd.f32 %v7659, %v7742
    %v7744 = vadd.f32 %v7660, %v7742
    %v7745 = vadd.f32 %v7661, %v7742
    %v7746 = vadd.f32 %v7662, %v7742
    %v7747 = vadd.f32 %v7663, %v7742
    %v7748 = vadd.f32 %v7664, %v7742
    %v7749 = vadd.f32 %v7665, %v7742
    %v7750 = vadd.f32 %v7666, %v7742
    %v7751 = vadd.f32 %v7667, %v7742
    %v7752 = vadd.f32 %v7668, %v7742
    %v7753 = vadd.f32 %v7669, %v7742
    %v7754 = vadd.f32 %v7670, %v7742
    %v7755 = vadd.f32 %v7671, %v7742
    %v7756 = vadd.f32 %v7672, %v7742
    %v7757 = vadd.f32 %v7673, %v7742
    %v7758 = vadd.f32 %v7674, %v7742
    %v7759 = vadd.f32 %v7675, %v7742
    %v7760 = vadd.f32 %v7676, %v7742
    %v7761 = vadd.f32 %v7677, %v7742
    %v7762 = vadd.f32 %v7678, %v7742
    %v7763 = vadd.f32 %v7679, %v7742
    %v7764 = vadd.f32 %v7680, %v7742
    %v7765 = vadd.f32 %v7681, %v7742
    %v7766 = vadd.f32 %v7682, %v7742
    %v7767 = vadd.f32 %v7683, %v7742
    %v7768 = vadd.f32 %v7684, %v7742
    %v7769 = vadd.f32 %v7685, %v7742
    %v7770 = vadd.f32 %v7686, %v7742
    %v7771 = vadd.f32 %v7687, %v7742
    %v7772 = vadd.f32 %v7688, %v7742
    %v7773 = vadd.f32 %v7689, %v7742
    %v7774 = vadd.f32 %v7690, %v7742
    %v7775 = vadd.f32 %v7691, %v7742
    %v7776 = vadd.f32 %v7692, %v7742
    %v7777 = vadd.f32 %v7693, %v7742
    %v7778 = vadd.f32 %v7694, %v7742
    %v7779 = vadd.f32 %v7695, %v7742
    %v7780 = vadd.f32 %v7696, %v7742
    %v7781 = vadd.f32 %v7697, %v7742
    %v7782 = vadd.f32 %v7698, %v7742
    %v7783 = vadd.f32 %v7699, %v7742
    %v7784 = vadd.f32 %v7700, %v7742
    %v7785 = vadd.f32 %v7701, %v7742
    %v7786 = vadd.f32 %v7702, %v7742
    %v7787 = vadd.f32 %v7703, %v7742
    %v7788 = vadd.f32 %v7704, %v7742
    %v7789 = vadd.f32 %v7705, %v7742
    %v7790 = vadd.f32 %v7706, %v7742
    %v7791 = vadd.f32 %v7707, %v7742
    %v7792 = vadd.f32 %v7708, %v7742
    %v7793 = vadd.f32 %v7709, %v7742
    %v7794 = vadd.f32 %v7710, %v7742
    %v7795 = vadd.f32 %v7711, %v7742
    %v7796 = vadd.f32 %v7712, %v7742
    %v7797 = vadd.f32 %v7713, %v7742
    %v7798 = vadd.f32 %v7714, %v7742
    %v7799 = vadd.f32 %v7715, %v7742
    %v7800 = vadd.f32 %v7716, %v7742
    %v7801 = vadd.f32 %v7717, %v7742
    %v7802 = vadd.f32 %v7718, %v7742
    %v7803 = vadd.f32 %v7719, %v7742
    %v7804 = vadd.f32 %v7720, %v7742
    %v7805 = vadd.f32 %v7721, %v7742
    %v7806 = vadd.f32 %v7722, %v7742
    %v7807 = vadd.f32 %v7723, %v7742
    %v7808 = vadd.f32 %v7724, %v7742
    %v7809 = vadd.f32 %v7725, %v7742
    %v7810 = vadd.f32 %v7726, %v7742
    %v7811 = vadd.f32 %v7727, %v7742
    %v7812 = vadd.f32 %v7728, %v7742
    %v7813 = vadd.f32 %v7729, %v7742
    %v7814 = vadd.f32 %v7730, %v7742
    %v7815 = vadd.f32 %v7731, %v7742
    %v7816 = vadd.f32 %v7732, %v7742
    %v7817 = vadd.f32 %v7733, %v7742
    %v7818 = vadd.f32 %v7734, %v7742
    %v7819 = vadd.f32 %v7735, %v7742
    %v7820 = vadd.f32 %v7736, %v7742
    %v7821 = vadd.f32 %v7737, %v7742
    %v7822 = vadd.f32 %v7738, %v7742
    %7823 = vmatprep.subr.mxu0 0.0
    %7824 = vmatpush1.msra.mxu0 %v7758
    %7825 = vmatprep.subr.mxu0 0.0
    %7826 = vmatpush1.msra.mxu0 %v7757
    %7827 = vmatprep.subr.mxu0 0.0
    %7828 = vmatpush1.msra.mxu0 %v7756
    %7829 = vmatprep.subr.mxu0 0.0
    %7830 = vmatpush1.msra.mxu0 %v7755
    %7831 = vmatprep.subr.mxu0 0.0
    %7832 = vmatpush1.msra.mxu0 %v7754
    %7833 = vmatprep.subr.mxu0 0.0
    %7834 = vmatpush1.msra.mxu0 %v7753
    %7835 = vmatprep.subr.mxu0 0.0
    %7836 = vmatpush1.msra.mxu0 %v7752
    %7837 = vmatprep.subr.mxu0 0.0
    %7838 = vmatpush1.msra.mxu0 %v7751
    %7839 = vmatprep.subr.mxu0 0.0
    %7840 = vmatpush1.msra.mxu0 %v7750
    %7841 = vmatprep.subr.mxu0 0.0
    %7842 = vmatpush1.msra.mxu0 %v7749
    %7843 = vmatprep.subr.mxu0 0.0
    %7844 = vmatpush1.msra.mxu0 %v7748
    %7845 = vmatprep.subr.mxu0 0.0
    %7846 = vmatpush1.msra.mxu0 %v7747
    %7847 = vmatprep.subr.mxu0 0.0
    %7848 = vmatpush1.msra.mxu0 %v7746
    %7849 = vmatprep.subr.mxu0 0.0
    %7850 = vmatpush1.msra.mxu0 %v7745
    %7851 = vmatprep.subr.mxu0 0.0
    %7852 = vmatpush1.msra.mxu0 %v7744
    %7853 = vmatprep.subr.mxu0 0.0
    %7854 = vmatpush1.msra.mxu0 %v7743
    %7855 = vmatprep.subr.mxu0 0.0
    %7856 = vmatpush2.msra.mxu0 %v7774
    %7857 = vmatprep.subr.mxu0 0.0
    %7858 = vmatpush2.msra.mxu0 %v7773
    %7859 = vmatprep.subr.mxu0 0.0
    %7860 = vmatpush2.msra.mxu0 %v7772
    %7861 = vmatprep.subr.mxu0 0.0
    %7862 = vmatpush2.msra.mxu0 %v7771
    %7863 = vmatprep.subr.mxu0 0.0
    %7864 = vmatpush2.msra.mxu0 %v7770
    %7865 = vmatprep.subr.mxu0 0.0
    %7866 = vmatpush2.msra.mxu0 %v7769
    %7867 = vmatprep.subr.mxu0 0.0
    %7868 = vmatpush2.msra.mxu0 %v7768
    %7869 = vmatprep.subr.mxu0 0.0
    %7870 = vmatpush2.msra.mxu0 %v7767
    %7871 = vmatprep.subr.mxu0 0.0
    %7872 = vmatpush2.msra.mxu0 %v7766
    %7873 = vmatprep.subr.mxu0 0.0
    %7874 = vmatpush2.msra.mxu0 %v7765
    %7875 = vmatprep.subr.mxu0 0.0
    %7876 = vmatpush2.msra.mxu0 %v7764
    %7877 = vmatprep.subr.mxu0 0.0
    %7878 = vmatpush2.msra.mxu0 %v7763
    %7879 = vmatprep.subr.mxu0 0.0
    %7880 = vmatpush2.msra.mxu0 %v7762
    %7881 = vmatprep.subr.mxu0 0.0
    %7882 = vmatpush2.msra.mxu0 %v7761
    %7883 = vmatprep.subr.mxu0 0.0
    %7884 = vmatpush2.msra.mxu0 %v7760
    %7885 = vmatprep.subr.mxu0 0.0
    %7886 = vmatpush2.msra.mxu0 %v7759
    %7887 = vmatprep.mubr.f32.mxu0 %v144
    %7888 = vmatmul.mubr.f32.gmra.mxu0 %v143
    %v7889 = vpop.f32.mrf.mxu0
    %v7890 = vadd.f32 0.0, %v7889
    %v7891 = vpop.f32.mrf.mxu0
    %7892 = vdwg.mxu0
    %7893 = vmatprep.subr.mxu0 0.0
    %7894 = vmatpush1.msra.mxu0 %v7790
    %7895 = vmatprep.subr.mxu0 0.0
    %7896 = vmatpush1.msra.mxu0 %v7789
    %7897 = vmatprep.subr.mxu0 0.0
    %7898 = vmatpush1.msra.mxu0 %v7788
    %7899 = vmatprep.subr.mxu0 0.0
    %7900 = vmatpush1.msra.mxu0 %v7787
    %7901 = vmatprep.subr.mxu0 0.0
    %7902 = vmatpush1.msra.mxu0 %v7786
    %7903 = vmatprep.subr.mxu0 0.0
    %7904 = vmatpush1.msra.mxu0 %v7785
    %7905 = vmatprep.subr.mxu0 0.0
    %7906 = vmatpush1.msra.mxu0 %v7784
    %7907 = vmatprep.subr.mxu0 0.0
    %7908 = vmatpush1.msra.mxu0 %v7783
    %7909 = vmatprep.subr.mxu0 0.0
    %7910 = vmatpush1.msra.mxu0 %v7782
    %7911 = vmatprep.subr.mxu0 0.0
    %7912 = vmatpush1.msra.mxu0 %v7781
    %7913 = vmatprep.subr.mxu0 0.0
    %7914 = vmatpush1.msra.mxu0 %v7780
    %7915 = vmatprep.subr.mxu0 0.0
    %7916 = vmatpush1.msra.mxu0 %v7779
    %7917 = vmatprep.subr.mxu0 0.0
    %7918 = vmatpush1.msra.mxu0 %v7778
    %7919 = vmatprep.subr.mxu0 0.0
    %7920 = vmatpush1.msra.mxu0 %v7777
    %7921 = vmatprep.subr.mxu0 0.0
    %7922 = vmatpush1.msra.mxu0 %v7776
    %7923 = vmatprep.subr.mxu0 0.0
    %7924 = vmatpush1.msra.mxu0 %v7775
    %7925 = vmatprep.subr.mxu0 0.0
    %7926 = vmatpush2.msra.mxu0 %v7806
    %7927 = vmatprep.subr.mxu0 0.0
    %7928 = vmatpush2.msra.mxu0 %v7805
    %7929 = vmatprep.subr.mxu0 0.0
    %7930 = vmatpush2.msra.mxu0 %v7804
    %7931 = vmatprep.subr.mxu0 0.0
    %7932 = vmatpush2.msra.mxu0 %v7803
    %7933 = vmatprep.subr.mxu0 0.0
    %7934 = vmatpush2.msra.mxu0 %v7802
    %7935 = vmatprep.subr.mxu0 0.0
    %7936 = vmatpush2.msra.mxu0 %v7801
    %7937 = vmatprep.subr.mxu0 0.0
    %7938 = vmatpush2.msra.mxu0 %v7800
    %7939 = vmatprep.subr.mxu0 0.0
    %7940 = vmatpush2.msra.mxu0 %v7799
    %7941 = vmatprep.subr.mxu0 0.0
    %7942 = vmatpush2.msra.mxu0 %v7798
    %7943 = vmatprep.subr.mxu0 0.0
    %7944 = vmatpush2.msra.mxu0 %v7797
    %7945 = vmatprep.subr.mxu0 0.0
    %7946 = vmatpush2.msra.mxu0 %v7796
    %7947 = vmatprep.subr.mxu0 0.0
    %7948 = vmatpush2.msra.mxu0 %v7795
    %7949 = vmatprep.subr.mxu0 0.0
    %7950 = vmatpush2.msra.mxu0 %v7794
    %7951 = vmatprep.subr.mxu0 0.0
    %7952 = vmatpush2.msra.mxu0 %v7793
    %7953 = vmatprep.subr.mxu0 0.0
    %7954 = vmatpush2.msra.mxu0 %v7792
    %7955 = vmatprep.subr.mxu0 0.0
    %7956 = vmatpush2.msra.mxu0 %v7791
    %7957 = vmatprep.mubr.f32.mxu0 %v146
    %7958 = vmatmul.mubr.f32.gmra.mxu0 %v145
    %v7959 = vpop.f32.mrf.mxu0
    %v7960 = vadd.f32 %v7890, %v7959
    %v7961 = vpop.f32.mrf.mxu0
    %7962 = vdwg.mxu0
    %7963 = vmatprep.subr.mxu0 0.0
    %7964 = vmatpush1.msra.mxu0 %v7822
    %7965 = vmatprep.subr.mxu0 0.0
    %7966 = vmatpush1.msra.mxu0 %v7821
    %7967 = vmatprep.subr.mxu0 0.0
    %7968 = vmatpush1.msra.mxu0 %v7820
    %7969 = vmatprep.subr.mxu0 0.0
    %7970 = vmatpush1.msra.mxu0 %v7819
    %7971 = vmatprep.subr.mxu0 0.0
    %7972 = vmatpush1.msra.mxu0 %v7818
    %7973 = vmatprep.subr.mxu0 0.0
    %7974 = vmatpush1.msra.mxu0 %v7817
    %7975 = vmatprep.subr.mxu0 0.0
    %7976 = vmatpush1.msra.mxu0 %v7816
    %7977 = vmatprep.subr.mxu0 0.0
    %7978 = vmatpush1.msra.mxu0 %v7815
    %7979 = vmatprep.subr.mxu0 0.0
    %7980 = vmatpush1.msra.mxu0 %v7814
    %7981 = vmatprep.subr.mxu0 0.0
    %7982 = vmatpush1.msra.mxu0 %v7813
    %7983 = vmatprep.subr.mxu0 0.0
    %7984 = vmatpush1.msra.mxu0 %v7812
    %7985 = vmatprep.subr.mxu0 0.0
    %7986 = vmatpush1.msra.mxu0 %v7811
    %7987 = vmatprep.subr.mxu0 0.0
    %7988 = vmatpush1.msra.mxu0 %v7810
    %7989 = vmatprep.subr.mxu0 0.0
    %7990 = vmatpush1.msra.mxu0 %v7809
    %7991 = vmatprep.subr.mxu0 0.0
    %7992 = vmatpush1.msra.mxu0 %v7808
    %7993 = vmatprep.subr.mxu0 0.0
    %7994 = vmatpush1.msra.mxu0 %v7807
    %7995 = vmatprep.subr.mxu0 0.0
    %7996 = vmatpush2.msra.mxu0 0.0
    %7997 = vmatprep.subr.mxu0 0.0
    %7998 = vmatpush2.msra.mxu0 0.0
    %7999 = vmatprep.subr.mxu0 0.0
    %8000 = vmatpush2.msra.mxu0 0.0
    %8001 = vmatprep.subr.mxu0 0.0
    %8002 = vmatpush2.msra.mxu0 0.0
    %8003 = vmatprep.subr.mxu0 0.0
    %8004 = vmatpush2.msra.mxu0 0.0
    %8005 = vmatprep.subr.mxu0 0.0
    %8006 = vmatpush2.msra.mxu0 0.0
    %8007 = vmatprep.subr.mxu0 0.0
    %8008 = vmatpush2.msra.mxu0 0.0
    %8009 = vmatprep.subr.mxu0 0.0
    %8010 = vmatpush2.msra.mxu0 0.0
    %8011 = vmatprep.subr.mxu0 0.0
    %8012 = vmatpush2.msra.mxu0 0.0
    %8013 = vmatprep.subr.mxu0 0.0
    %8014 = vmatpush2.msra.mxu0 0.0
    %8015 = vmatprep.subr.mxu0 0.0
    %8016 = vmatpush2.msra.mxu0 0.0
    %8017 = vmatprep.subr.mxu0 0.0
    %8018 = vmatpush2.msra.mxu0 0.0
    %8019 = vmatprep.subr.mxu0 0.0
    %8020 = vmatpush2.msra.mxu0 0.0
    %8021 = vmatprep.subr.mxu0 0.0
    %8022 = vmatpush2.msra.mxu0 0.0
    %8023 = vmatprep.subr.mxu0 0.0
    %8024 = vmatpush2.msra.mxu0 0.0
    %8025 = vmatprep.subr.mxu0 0.0
    %8026 = vmatpush2.msra.mxu0 0.0
    %8027 = vmatprep.mubr.f32.mxu0 0.0
    %8028 = vmatmul.mubr.f32.gmra.mxu0 %v147
    %v8029 = vpop.f32.mrf.mxu0
    %v8030 = vadd.f32 %v7960, %v8029
    %v8031 = vpop.f32.mrf.mxu0
    %8032 = vdwg.mxu0
    %v8033 = vmul.f32 %v8030, 0.001953125
    %v8034 = vlaneseq
    %v8035 = vshrl.u32 %v8034, 7
    %v8036 = vsub.s32 0, %v8035
    %v8037 = vrot.slane %v8033, %v8036
    %v8038 = vsub.f32 %v7743, %v8037
    %v8039 = vsub.f32 %v7744, %v8037
    %v8040 = vsub.f32 %v7745, %v8037
    %v8041 = vsub.f32 %v7746, %v8037
    %v8042 = vsub.f32 %v7747, %v8037
    %v8043 = vsub.f32 %v7748, %v8037
    %v8044 = vsub.f32 %v7749, %v8037
    %v8045 = vsub.f32 %v7750, %v8037
    %v8046 = vsub.f32 %v7751, %v8037
    %v8047 = vsub.f32 %v7752, %v8037
    %v8048 = vsub.f32 %v7753, %v8037
    %v8049 = vsub.f32 %v7754, %v8037
    %v8050 = vsub.f32 %v7755, %v8037
    %v8051 = vsub.f32 %v7756, %v8037
    %v8052 = vsub.f32 %v7757, %v8037
    %v8053 = vsub.f32 %v7758, %v8037
    %v8054 = vsub.f32 %v7759, %v8037
    %v8055 = vsub.f32 %v7760, %v8037
    %v8056 = vsub.f32 %v7761, %v8037
    %v8057 = vsub.f32 %v7762, %v8037
    %v8058 = vsub.f32 %v7763, %v8037
    %v8059 = vsub.f32 %v7764, %v8037
    %v8060 = vsub.f32 %v7765, %v8037
    %v8061 = vsub.f32 %v7766, %v8037
    %v8062 = vsub.f32 %v7767, %v8037
    %v8063 = vsub.f32 %v7768, %v8037
    %v8064 = vsub.f32 %v7769, %v8037
    %v8065 = vsub.f32 %v7770, %v8037
    %v8066 = vsub.f32 %v7771, %v8037
    %v8067 = vsub.f32 %v7772, %v8037
    %v8068 = vsub.f32 %v7773, %v8037
    %v8069 = vsub.f32 %v7774, %v8037
    %v8070 = vsub.f32 %v7775, %v8037
    %v8071 = vsub.f32 %v7776, %v8037
    %v8072 = vsub.f32 %v7777, %v8037
    %v8073 = vsub.f32 %v7778, %v8037
    %v8074 = vsub.f32 %v7779, %v8037
    %v8075 = vsub.f32 %v7780, %v8037
    %v8076 = vsub.f32 %v7781, %v8037
    %v8077 = vsub.f32 %v7782, %v8037
    %v8078 = vsub.f32 %v7783, %v8037
    %v8079 = vsub.f32 %v7784, %v8037
    %v8080 = vsub.f32 %v7785, %v8037
    %v8081 = vsub.f32 %v7786, %v8037
    %v8082 = vsub.f32 %v7787, %v8037
    %v8083 = vsub.f32 %v7788, %v8037
    %v8084 = vsub.f32 %v7789, %v8037
    %v8085 = vsub.f32 %v7790, %v8037
    %v8086 = vsub.f32 %v7791, %v8037
    %v8087 = vsub.f32 %v7792, %v8037
    %v8088 = vsub.f32 %v7793, %v8037
    %v8089 = vsub.f32 %v7794, %v8037
    %v8090 = vsub.f32 %v7795, %v8037
    %v8091 = vsub.f32 %v7796, %v8037
    %v8092 = vsub.f32 %v7797, %v8037
    %v8093 = vsub.f32 %v7798, %v8037
    %v8094 = vsub.f32 %v7799, %v8037
    %v8095 = vsub.f32 %v7800, %v8037
    %v8096 = vsub.f32 %v7801, %v8037
    %v8097 = vsub.f32 %v7802, %v8037
    %v8098 = vsub.f32 %v7803, %v8037
    %v8099 = vsub.f32 %v7804, %v8037
    %v8100 = vsub.f32 %v7805, %v8037
    %v8101 = vsub.f32 %v7806, %v8037
    %v8102 = vsub.f32 %v7807, %v8037
    %v8103 = vsub.f32 %v7808, %v8037
    %v8104 = vsub.f32 %v7809, %v8037
    %v8105 = vsub.f32 %v7810, %v8037
    %v8106 = vsub.f32 %v7811, %v8037
    %v8107 = vsub.f32 %v7812, %v8037
    %v8108 = vsub.f32 %v7813, %v8037
    %v8109 = vsub.f32 %v7814, %v8037
    %v8110 = vsub.f32 %v7815, %v8037
    %v8111 = vsub.f32 %v7816, %v8037
    %v8112 = vsub.f32 %v7817, %v8037
    %v8113 = vsub.f32 %v7818, %v8037
    %v8114 = vsub.f32 %v7819, %v8037
    %v8115 = vsub.f32 %v7820, %v8037
    %v8116 = vsub.f32 %v7821, %v8037
    %v8117 = vsub.f32 %v7822, %v8037
    %v8118 = vmul.f32 %v8038, %v8038
    %v8119 = vmul.f32 %v8039, %v8039
    %v8120 = vmul.f32 %v8040, %v8040
    %v8121 = vmul.f32 %v8041, %v8041
    %v8122 = vmul.f32 %v8042, %v8042
    %v8123 = vmul.f32 %v8043, %v8043
    %v8124 = vmul.f32 %v8044, %v8044
    %v8125 = vmul.f32 %v8045, %v8045
    %v8126 = vmul.f32 %v8046, %v8046
    %v8127 = vmul.f32 %v8047, %v8047
    %v8128 = vmul.f32 %v8048, %v8048
    %v8129 = vmul.f32 %v8049, %v8049
    %v8130 = vmul.f32 %v8050, %v8050
    %v8131 = vmul.f32 %v8051, %v8051
    %v8132 = vmul.f32 %v8052, %v8052
    %v8133 = vmul.f32 %v8053, %v8053
    %v8134 = vmul.f32 %v8054, %v8054
    %v8135 = vmul.f32 %v8055, %v8055
    %v8136 = vmul.f32 %v8056, %v8056
    %v8137 = vmul.f32 %v8057, %v8057
    %v8138 = vmul.f32 %v8058, %v8058
    %v8139 = vmul.f32 %v8059, %v8059
    %v8140 = vmul.f32 %v8060, %v8060
    %v8141 = vmul.f32 %v8061, %v8061
    %v8142 = vmul.f32 %v8062, %v8062
    %v8143 = vmul.f32 %v8063, %v8063
    %v8144 = vmul.f32 %v8064, %v8064
    %v8145 = vmul.f32 %v8065, %v8065
    %v8146 = vmul.f32 %v8066, %v8066
    %v8147 = vmul.f32 %v8067, %v8067
    %v8148 = vmul.f32 %v8068, %v8068
    %v8149 = vmul.f32 %v8069, %v8069
    %v8150 = vmul.f32 %v8070, %v8070
    %v8151 = vmul.f32 %v8071, %v8071
    %v8152 = vmul.f32 %v8072, %v8072
    %v8153 = vmul.f32 %v8073, %v8073
    %v8154 = vmul.f32 %v8074, %v8074
    %v8155 = vmul.f32 %v8075, %v8075
    %v8156 = vmul.f32 %v8076, %v8076
    %v8157 = vmul.f32 %v8077, %v8077
    %v8158 = vmul.f32 %v8078, %v8078
    %v8159 = vmul.f32 %v8079, %v8079
    %v8160 = vmul.f32 %v8080, %v8080
    %v8161 = vmul.f32 %v8081, %v8081
    %v8162 = vmul.f32 %v8082, %v8082
    %v8163 = vmul.f32 %v8083, %v8083
    %v8164 = vmul.f32 %v8084, %v8084
    %v8165 = vmul.f32 %v8085, %v8085
    %v8166 = vmul.f32 %v8086, %v8086
    %v8167 = vmul.f32 %v8087, %v8087
    %v8168 = vmul.f32 %v8088, %v8088
    %v8169 = vmul.f32 %v8089, %v8089
    %v8170 = vmul.f32 %v8090, %v8090
    %v8171 = vmul.f32 %v8091, %v8091
    %v8172 = vmul.f32 %v8092, %v8092
    %v8173 = vmul.f32 %v8093, %v8093
    %v8174 = vmul.f32 %v8094, %v8094
    %v8175 = vmul.f32 %v8095, %v8095
    %v8176 = vmul.f32 %v8096, %v8096
    %v8177 = vmul.f32 %v8097, %v8097
    %v8178 = vmul.f32 %v8098, %v8098
    %v8179 = vmul.f32 %v8099, %v8099
    %v8180 = vmul.f32 %v8100, %v8100
    %v8181 = vmul.f32 %v8101, %v8101
    %v8182 = vmul.f32 %v8102, %v8102
    %v8183 = vmul.f32 %v8103, %v8103
    %v8184 = vmul.f32 %v8104, %v8104
    %v8185 = vmul.f32 %v8105, %v8105
    %v8186 = vmul.f32 %v8106, %v8106
    %v8187 = vmul.f32 %v8107, %v8107
    %v8188 = vmul.f32 %v8108, %v8108
    %v8189 = vmul.f32 %v8109, %v8109
    %v8190 = vmul.f32 %v8110, %v8110
    %v8191 = vmul.f32 %v8111, %v8111
    %v8192 = vmul.f32 %v8112, %v8112
    %v8193 = vmul.f32 %v8113, %v8113
    %v8194 = vmul.f32 %v8114, %v8114
    %v8195 = vmul.f32 %v8115, %v8115
    %v8196 = vmul.f32 %v8116, %v8116
    %v8197 = vmul.f32 %v8117, %v8117
    %8198 = vmatprep.subr.mxu0 0.0
    %8199 = vmatpush1.msra.mxu0 %v8133
    %8200 = vmatprep.subr.mxu0 0.0
    %8201 = vmatpush1.msra.mxu0 %v8132
    %8202 = vmatprep.subr.mxu0 0.0
    %8203 = vmatpush1.msra.mxu0 %v8131
    %8204 = vmatprep.subr.mxu0 0.0
    %8205 = vmatpush1.msra.mxu0 %v8130
    %8206 = vmatprep.subr.mxu0 0.0
    %8207 = vmatpush1.msra.mxu0 %v8129
    %8208 = vmatprep.subr.mxu0 0.0
    %8209 = vmatpush1.msra.mxu0 %v8128
    %8210 = vmatprep.subr.mxu0 0.0
    %8211 = vmatpush1.msra.mxu0 %v8127
    %8212 = vmatprep.subr.mxu0 0.0
    %8213 = vmatpush1.msra.mxu0 %v8126
    %8214 = vmatprep.subr.mxu0 0.0
    %8215 = vmatpush1.msra.mxu0 %v8125
    %8216 = vmatprep.subr.mxu0 0.0
    %8217 = vmatpush1.msra.mxu0 %v8124
    %8218 = vmatprep.subr.mxu0 0.0
    %8219 = vmatpush1.msra.mxu0 %v8123
    %8220 = vmatprep.subr.mxu0 0.0
    %8221 = vmatpush1.msra.mxu0 %v8122
    %8222 = vmatprep.subr.mxu0 0.0
    %8223 = vmatpush1.msra.mxu0 %v8121
    %8224 = vmatprep.subr.mxu0 0.0
    %8225 = vmatpush1.msra.mxu0 %v8120
    %8226 = vmatprep.subr.mxu0 0.0
    %8227 = vmatpush1.msra.mxu0 %v8119
    %8228 = vmatprep.subr.mxu0 0.0
    %8229 = vmatpush1.msra.mxu0 %v8118
    %8230 = vmatprep.subr.mxu0 0.0
    %8231 = vmatpush2.msra.mxu0 %v8149
    %8232 = vmatprep.subr.mxu0 0.0
    %8233 = vmatpush2.msra.mxu0 %v8148
    %8234 = vmatprep.subr.mxu0 0.0
    %8235 = vmatpush2.msra.mxu0 %v8147
    %8236 = vmatprep.subr.mxu0 0.0
    %8237 = vmatpush2.msra.mxu0 %v8146
    %8238 = vmatprep.subr.mxu0 0.0
    %8239 = vmatpush2.msra.mxu0 %v8145
    %8240 = vmatprep.subr.mxu0 0.0
    %8241 = vmatpush2.msra.mxu0 %v8144
    %8242 = vmatprep.subr.mxu0 0.0
    %8243 = vmatpush2.msra.mxu0 %v8143
    %8244 = vmatprep.subr.mxu0 0.0
    %8245 = vmatpush2.msra.mxu0 %v8142
    %8246 = vmatprep.subr.mxu0 0.0
    %8247 = vmatpush2.msra.mxu0 %v8141
    %8248 = vmatprep.subr.mxu0 0.0
    %8249 = vmatpush2.msra.mxu0 %v8140
    %8250 = vmatprep.subr.mxu0 0.0
    %8251 = vmatpush2.msra.mxu0 %v8139
    %8252 = vmatprep.subr.mxu0 0.0
    %8253 = vmatpush2.msra.mxu0 %v8138
    %8254 = vmatprep.subr.mxu0 0.0
    %8255 = vmatpush2.msra.mxu0 %v8137
    %8256 = vmatprep.subr.mxu0 0.0
    %8257 = vmatpush2.msra.mxu0 %v8136
    %8258 = vmatprep.subr.mxu0 0.0
    %8259 = vmatpush2.msra.mxu0 %v8135
    %8260 = vmatprep.subr.mxu0 0.0
    %8261 = vmatpush2.msra.mxu0 %v8134
    %8262 = vmatprep.mubr.f32.mxu0 %v144
    %8263 = vmatmul.mubr.f32.gmra.mxu0 %v143
    %v8264 = vpop.f32.mrf.mxu0
    %v8265 = vadd.f32 0.0, %v8264
    %v8266 = vpop.f32.mrf.mxu0
    %8267 = vdwg.mxu0
    %8268 = vmatprep.subr.mxu0 0.0
    %8269 = vmatpush1.msra.mxu0 %v8165
    %8270 = vmatprep.subr.mxu0 0.0
    %8271 = vmatpush1.msra.mxu0 %v8164
    %8272 = vmatprep.subr.mxu0 0.0
    %8273 = vmatpush1.msra.mxu0 %v8163
    %8274 = vmatprep.subr.mxu0 0.0
    %8275 = vmatpush1.msra.mxu0 %v8162
    %8276 = vmatprep.subr.mxu0 0.0
    %8277 = vmatpush1.msra.mxu0 %v8161
    %8278 = vmatprep.subr.mxu0 0.0
    %8279 = vmatpush1.msra.mxu0 %v8160
    %8280 = vmatprep.subr.mxu0 0.0
    %8281 = vmatpush1.msra.mxu0 %v8159
    %8282 = vmatprep.subr.mxu0 0.0
    %8283 = vmatpush1.msra.mxu0 %v8158
    %8284 = vmatprep.subr.mxu0 0.0
    %8285 = vmatpush1.msra.mxu0 %v8157
    %8286 = vmatprep.subr.mxu0 0.0
    %8287 = vmatpush1.msra.mxu0 %v8156
    %8288 = vmatprep.subr.mxu0 0.0
    %8289 = vmatpush1.msra.mxu0 %v8155
    %8290 = vmatprep.subr.mxu0 0.0
    %8291 = vmatpush1.msra.mxu0 %v8154
    %8292 = vmatprep.subr.mxu0 0.0
    %8293 = vmatpush1.msra.mxu0 %v8153
    %8294 = vmatprep.subr.mxu0 0.0
    %8295 = vmatpush1.msra.mxu0 %v8152
    %8296 = vmatprep.subr.mxu0 0.0
    %8297 = vmatpush1.msra.mxu0 %v8151
    %8298 = vmatprep.subr.mxu0 0.0
    %8299 = vmatpush1.msra.mxu0 %v8150
    %8300 = vmatprep.subr.mxu0 0.0
    %8301 = vmatpush2.msra.mxu0 %v8181
    %8302 = vmatprep.subr.mxu0 0.0
    %8303 = vmatpush2.msra.mxu0 %v8180
    %8304 = vmatprep.subr.mxu0 0.0
    %8305 = vmatpush2.msra.mxu0 %v8179
    %8306 = vmatprep.subr.mxu0 0.0
    %8307 = vmatpush2.msra.mxu0 %v8178
    %8308 = vmatprep.subr.mxu0 0.0
    %8309 = vmatpush2.msra.mxu0 %v8177
    %8310 = vmatprep.subr.mxu0 0.0
    %8311 = vmatpush2.msra.mxu0 %v8176
    %8312 = vmatprep.subr.mxu0 0.0
    %8313 = vmatpush2.msra.mxu0 %v8175
    %8314 = vmatprep.subr.mxu0 0.0
    %8315 = vmatpush2.msra.mxu0 %v8174
    %8316 = vmatprep.subr.mxu0 0.0
    %8317 = vmatpush2.msra.mxu0 %v8173
    %8318 = vmatprep.subr.mxu0 0.0
    %8319 = vmatpush2.msra.mxu0 %v8172
    %8320 = vmatprep.subr.mxu0 0.0
    %8321 = vmatpush2.msra.mxu0 %v8171
    %8322 = vmatprep.subr.mxu0 0.0
    %8323 = vmatpush2.msra.mxu0 %v8170
    %8324 = vmatprep.subr.mxu0 0.0
    %8325 = vmatpush2.msra.mxu0 %v8169
    %8326 = vmatprep.subr.mxu0 0.0
    %8327 = vmatpush2.msra.mxu0 %v8168
    %8328 = vmatprep.subr.mxu0 0.0
    %8329 = vmatpush2.msra.mxu0 %v8167
    %8330 = vmatprep.subr.mxu0 0.0
    %8331 = vmatpush2.msra.mxu0 %v8166
    %8332 = vmatprep.mubr.f32.mxu0 %v146
    %8333 = vmatmul.mubr.f32.gmra.mxu0 %v145
    %v8334 = vpop.f32.mrf.mxu0
    %v8335 = vadd.f32 %v8265, %v8334
    %v8336 = vpop.f32.mrf.mxu0
    %8337 = vdwg.mxu0
    %8338 = vmatprep.subr.mxu0 0.0
    %8339 = vmatpush1.msra.mxu0 %v8197
    %8340 = vmatprep.subr.mxu0 0.0
    %8341 = vmatpush1.msra.mxu0 %v8196
    %8342 = vmatprep.subr.mxu0 0.0
    %8343 = vmatpush1.msra.mxu0 %v8195
    %8344 = vmatprep.subr.mxu0 0.0
    %8345 = vmatpush1.msra.mxu0 %v8194
    %8346 = vmatprep.subr.mxu0 0.0
    %8347 = vmatpush1.msra.mxu0 %v8193
    %8348 = vmatprep.subr.mxu0 0.0
    %8349 = vmatpush1.msra.mxu0 %v8192
    %8350 = vmatprep.subr.mxu0 0.0
    %8351 = vmatpush1.msra.mxu0 %v8191
    %8352 = vmatprep.subr.mxu0 0.0
    %8353 = vmatpush1.msra.mxu0 %v8190
    %8354 = vmatprep.subr.mxu0 0.0
    %8355 = vmatpush1.msra.mxu0 %v8189
    %8356 = vmatprep.subr.mxu0 0.0
    %8357 = vmatpush1.msra.mxu0 %v8188
    %8358 = vmatprep.subr.mxu0 0.0
    %8359 = vmatpush1.msra.mxu0 %v8187
    %8360 = vmatprep.subr.mxu0 0.0
    %8361 = vmatpush1.msra.mxu0 %v8186
    %8362 = vmatprep.subr.mxu0 0.0
    %8363 = vmatpush1.msra.mxu0 %v8185
    %8364 = vmatprep.subr.mxu0 0.0
    %8365 = vmatpush1.msra.mxu0 %v8184
    %8366 = vmatprep.subr.mxu0 0.0
    %8367 = vmatpush1.msra.mxu0 %v8183
    %8368 = vmatprep.subr.mxu0 0.0
    %8369 = vmatpush1.msra.mxu0 %v8182
    %8370 = vmatprep.subr.mxu0 0.0
    %8371 = vmatpush2.msra.mxu0 0.0
    %8372 = vmatprep.subr.mxu0 0.0
    %8373 = vmatpush2.msra.mxu0 0.0
    %8374 = vmatprep.subr.mxu0 0.0
    %8375 = vmatpush2.msra.mxu0 0.0
    %8376 = vmatprep.subr.mxu0 0.0
    %8377 = vmatpush2.msra.mxu0 0.0
    %8378 = vmatprep.subr.mxu0 0.0
    %8379 = vmatpush2.msra.mxu0 0.0
    %8380 = vmatprep.subr.mxu0 0.0
    %8381 = vmatpush2.msra.mxu0 0.0
    %8382 = vmatprep.subr.mxu0 0.0
    %8383 = vmatpush2.msra.mxu0 0.0
    %8384 = vmatprep.subr.mxu0 0.0
    %8385 = vmatpush2.msra.mxu0 0.0
    %8386 = vmatprep.subr.mxu0 0.0
    %8387 = vmatpush2.msra.mxu0 0.0
    %8388 = vmatprep.subr.mxu0 0.0
    %8389 = vmatpush2.msra.mxu0 0.0
    %8390 = vmatprep.subr.mxu0 0.0
    %8391 = vmatpush2.msra.mxu0 0.0
    %8392 = vmatprep.subr.mxu0 0.0
    %8393 = vmatpush2.msra.mxu0 0.0
    %8394 = vmatprep.subr.mxu0 0.0
    %8395 = vmatpush2.msra.mxu0 0.0
    %8396 = vmatprep.subr.mxu0 0.0
    %8397 = vmatpush2.msra.mxu0 0.0
    %8398 = vmatprep.subr.mxu0 0.0
    %8399 = vmatpush2.msra.mxu0 0.0
    %8400 = vmatprep.subr.mxu0 0.0
    %8401 = vmatpush2.msra.mxu0 0.0
    %8402 = vmatprep.mubr.f32.mxu0 0.0
    %8403 = vmatmul.mubr.f32.gmra.mxu0 %v147
    %v8404 = vpop.f32.mrf.mxu0
    %v8405 = vadd.f32 %v8335, %v8404
    %v8406 = vpop.f32.mrf.mxu0
    %8407 = vdwg.mxu0
    %v8408 = vmul.f32 %v8405, 0.001953125
    %v8409 = vadd.f32 %v8408, 1e-05
    %v8410 = vrsqrt.pop %v8409
    %v8411 = vmul.f32 %v8410, %v232
    %v8412 = vlaneseq
    %v8413 = vshrl.u32 %v8412, 7
    %v8414 = vsub.s32 0, %v8413
    %v8415 = vrot.slane %v8411, %v8414
    %v8416 = vmul.f32 %v8038, %v8415
    %v8417 = vmul.f32 %v8039, %v8415
    %v8418 = vmul.f32 %v8040, %v8415
    %v8419 = vmul.f32 %v8041, %v8415
    %v8420 = vmul.f32 %v8042, %v8415
    %v8421 = vmul.f32 %v8043, %v8415
    %v8422 = vmul.f32 %v8044, %v8415
    %v8423 = vmul.f32 %v8045, %v8415
    %v8424 = vmul.f32 %v8046, %v8415
    %v8425 = vmul.f32 %v8047, %v8415
    %v8426 = vmul.f32 %v8048, %v8415
    %v8427 = vmul.f32 %v8049, %v8415
    %v8428 = vmul.f32 %v8050, %v8415
    %v8429 = vmul.f32 %v8051, %v8415
    %v8430 = vmul.f32 %v8052, %v8415
    %v8431 = vmul.f32 %v8053, %v8415
    %v8432 = vmul.f32 %v8054, %v8415
    %v8433 = vmul.f32 %v8055, %v8415
    %v8434 = vmul.f32 %v8056, %v8415
    %v8435 = vmul.f32 %v8057, %v8415
    %v8436 = vmul.f32 %v8058, %v8415
    %v8437 = vmul.f32 %v8059, %v8415
    %v8438 = vmul.f32 %v8060, %v8415
    %v8439 = vmul.f32 %v8061, %v8415
    %v8440 = vmul.f32 %v8062, %v8415
    %v8441 = vmul.f32 %v8063, %v8415
    %v8442 = vmul.f32 %v8064, %v8415
    %v8443 = vmul.f32 %v8065, %v8415
    %v8444 = vmul.f32 %v8066, %v8415
    %v8445 = vmul.f32 %v8067, %v8415
    %v8446 = vmul.f32 %v8068, %v8415
    %v8447 = vmul.f32 %v8069, %v8415
    %v8448 = vmul.f32 %v8070, %v8415
    %v8449 = vmul.f32 %v8071, %v8415
    %v8450 = vmul.f32 %v8072, %v8415
    %v8451 = vmul.f32 %v8073, %v8415
    %v8452 = vmul.f32 %v8074, %v8415
    %v8453 = vmul.f32 %v8075, %v8415
    %v8454 = vmul.f32 %v8076, %v8415
    %v8455 = vmul.f32 %v8077, %v8415
    %v8456 = vmul.f32 %v8078, %v8415
    %v8457 = vmul.f32 %v8079, %v8415
    %v8458 = vmul.f32 %v8080, %v8415
    %v8459 = vmul.f32 %v8081, %v8415
    %v8460 = vmul.f32 %v8082, %v8415
    %v8461 = vmul.f32 %v8083, %v8415
    %v8462 = vmul.f32 %v8084, %v8415
    %v8463 = vmul.f32 %v8085, %v8415
    %v8464 = vmul.f32 %v8086, %v8415
    %v8465 = vmul.f32 %v8087, %v8415
    %v8466 = vmul.f32 %v8088, %v8415
    %v8467 = vmul.f32 %v8089, %v8415
    %v8468 = vmul.f32 %v8090, %v8415
    %v8469 = vmul.f32 %v8091, %v8415
    %v8470 = vmul.f32 %v8092, %v8415
    %v8471 = vmul.f32 %v8093, %v8415
    %v8472 = vmul.f32 %v8094, %v8415
    %v8473 = vmul.f32 %v8095, %v8415
    %v8474 = vmul.f32 %v8096, %v8415
    %v8475 = vmul.f32 %v8097, %v8415
    %v8476 = vmul.f32 %v8098, %v8415
    %v8477 = vmul.f32 %v8099, %v8415
    %v8478 = vmul.f32 %v8100, %v8415
    %v8479 = vmul.f32 %v8101, %v8415
    %v8480 = vmul.f32 %v8102, %v8415
    %v8481 = vmul.f32 %v8103, %v8415
    %v8482 = vmul.f32 %v8104, %v8415
    %v8483 = vmul.f32 %v8105, %v8415
    %v8484 = vmul.f32 %v8106, %v8415
    %v8485 = vmul.f32 %v8107, %v8415
    %v8486 = vmul.f32 %v8108, %v8415
    %v8487 = vmul.f32 %v8109, %v8415
    %v8488 = vmul.f32 %v8110, %v8415
    %v8489 = vmul.f32 %v8111, %v8415
    %v8490 = vmul.f32 %v8112, %v8415
    %v8491 = vmul.f32 %v8113, %v8415
    %v8492 = vmul.f32 %v8114, %v8415
    %v8493 = vmul.f32 %v8115, %v8415
    %v8494 = vmul.f32 %v8116, %v8415
    %v8495 = vmul.f32 %v8117, %v8415
    %v8496 = vlaneseq
    %v8497 = vshrl.u32 %v8496, 7
    %v8498 = vsub.s32 0, %v8497
    %v8499 = vrot.slane %v233, %v8498
    %v8500 = vadd.f32 %v8416, %v8499
    %v8501 = vadd.f32 %v8417, %v8499
    %v8502 = vadd.f32 %v8418, %v8499
    %v8503 = vadd.f32 %v8419, %v8499
    %v8504 = vadd.f32 %v8420, %v8499
    %v8505 = vadd.f32 %v8421, %v8499
    %v8506 = vadd.f32 %v8422, %v8499
    %v8507 = vadd.f32 %v8423, %v8499
    %v8508 = vadd.f32 %v8424, %v8499
    %v8509 = vadd.f32 %v8425, %v8499
    %v8510 = vadd.f32 %v8426, %v8499
    %v8511 = vadd.f32 %v8427, %v8499
    %v8512 = vadd.f32 %v8428, %v8499
    %v8513 = vadd.f32 %v8429, %v8499
    %v8514 = vadd.f32 %v8430, %v8499
    %v8515 = vadd.f32 %v8431, %v8499
    %v8516 = vadd.f32 %v8432, %v8499
    %v8517 = vadd.f32 %v8433, %v8499
    %v8518 = vadd.f32 %v8434, %v8499
    %v8519 = vadd.f32 %v8435, %v8499
    %v8520 = vadd.f32 %v8436, %v8499
    %v8521 = vadd.f32 %v8437, %v8499
    %v8522 = vadd.f32 %v8438, %v8499
    %v8523 = vadd.f32 %v8439, %v8499
    %v8524 = vadd.f32 %v8440, %v8499
    %v8525 = vadd.f32 %v8441, %v8499
    %v8526 = vadd.f32 %v8442, %v8499
    %v8527 = vadd.f32 %v8443, %v8499
    %v8528 = vadd.f32 %v8444, %v8499
    %v8529 = vadd.f32 %v8445, %v8499
    %v8530 = vadd.f32 %v8446, %v8499
    %v8531 = vadd.f32 %v8447, %v8499
    %v8532 = vadd.f32 %v8448, %v8499
    %v8533 = vadd.f32 %v8449, %v8499
    %v8534 = vadd.f32 %v8450, %v8499
    %v8535 = vadd.f32 %v8451, %v8499
    %v8536 = vadd.f32 %v8452, %v8499
    %v8537 = vadd.f32 %v8453, %v8499
    %v8538 = vadd.f32 %v8454, %v8499
    %v8539 = vadd.f32 %v8455, %v8499
    %v8540 = vadd.f32 %v8456, %v8499
    %v8541 = vadd.f32 %v8457, %v8499
    %v8542 = vadd.f32 %v8458, %v8499
    %v8543 = vadd.f32 %v8459, %v8499
    %v8544 = vadd.f32 %v8460, %v8499
    %v8545 = vadd.f32 %v8461, %v8499
    %v8546 = vadd.f32 %v8462, %v8499
    %v8547 = vadd.f32 %v8463, %v8499
    %v8548 = vadd.f32 %v8464, %v8499
    %v8549 = vadd.f32 %v8465, %v8499
    %v8550 = vadd.f32 %v8466, %v8499
    %v8551 = vadd.f32 %v8467, %v8499
    %v8552 = vadd.f32 %v8468, %v8499
    %v8553 = vadd.f32 %v8469, %v8499
    %v8554 = vadd.f32 %v8470, %v8499
    %v8555 = vadd.f32 %v8471, %v8499
    %v8556 = vadd.f32 %v8472, %v8499
    %v8557 = vadd.f32 %v8473, %v8499
    %v8558 = vadd.f32 %v8474, %v8499
    %v8559 = vadd.f32 %v8475, %v8499
    %v8560 = vadd.f32 %v8476, %v8499
    %v8561 = vadd.f32 %v8477, %v8499
    %v8562 = vadd.f32 %v8478, %v8499
    %v8563 = vadd.f32 %v8479, %v8499
    %v8564 = vadd.f32 %v8480, %v8499
    %v8565 = vadd.f32 %v8481, %v8499
    %v8566 = vadd.f32 %v8482, %v8499
    %v8567 = vadd.f32 %v8483, %v8499
    %v8568 = vadd.f32 %v8484, %v8499
    %v8569 = vadd.f32 %v8485, %v8499
    %v8570 = vadd.f32 %v8486, %v8499
    %v8571 = vadd.f32 %v8487, %v8499
    %v8572 = vadd.f32 %v8488, %v8499
    %v8573 = vadd.f32 %v8489, %v8499
    %v8574 = vadd.f32 %v8490, %v8499
    %v8575 = vadd.f32 %v8491, %v8499
    %v8576 = vadd.f32 %v8492, %v8499
    %v8577 = vadd.f32 %v8493, %v8499
    %v8578 = vadd.f32 %v8494, %v8499
    %v8579 = vadd.f32 %v8495, %v8499
    %v8580 = vlaneseq
    %v8581 = vand.u32 %v8580, 127
    %vm8582 = vcmp.lt.s32.totalorder %v8581, 3
    %v8583 = vsel %vm8582, 1, 0
    %vm8584 = vcmp.eq.s32.totalorder %v8583, 1
    %v8585 = vsel %vm8584, %v63, 0.0
    %v8586 = vsel %vm8584, %v64, 0.0
    %v8587 = vsel %vm8584, %v65, 0.0
    %v8588 = vsel %vm8584, %v66, 0.0
    %v8589 = vsel %vm8584, %v67, 0.0
    %v8590 = vsel %vm8584, %v68, 0.0
    %v8591 = vsel %vm8584, %v69, 0.0
    %v8592 = vsel %vm8584, %v70, 0.0
    %v8593 = vsel %vm8584, %v71, 0.0
    %v8594 = vsel %vm8584, %v72, 0.0
    %v8595 = vsel %vm8584, %v73, 0.0
    %v8596 = vsel %vm8584, %v74, 0.0
    %v8597 = vsel %vm8584, %v75, 0.0
    %v8598 = vsel %vm8584, %v76, 0.0
    %v8599 = vsel %vm8584, %v77, 0.0
    %v8600 = vsel %vm8584, %v78, 0.0
    %v8601 = vsel %vm8584, %v79, 0.0
    %v8602 = vsel %vm8584, %v80, 0.0
    %v8603 = vsel %vm8584, %v81, 0.0
    %v8604 = vsel %vm8584, %v82, 0.0
    %v8605 = vsel %vm8584, %v83, 0.0
    %v8606 = vsel %vm8584, %v84, 0.0
    %v8607 = vsel %vm8584, %v85, 0.0
    %v8608 = vsel %vm8584, %v86, 0.0
    %v8609 = vsel %vm8584, %v87, 0.0
    %v8610 = vsel %vm8584, %v88, 0.0
    %v8611 = vsel %vm8584, %v89, 0.0
    %v8612 = vsel %vm8584, %v90, 0.0
    %v8613 = vsel %vm8584, %v91, 0.0
    %v8614 = vsel %vm8584, %v92, 0.0
    %v8615 = vsel %vm8584, %v93, 0.0
    %v8616 = vsel %vm8584, %v94, 0.0
    %v8617 = vsel %vm8584, %v95, 0.0
    %v8618 = vsel %vm8584, %v96, 0.0
    %v8619 = vsel %vm8584, %v97, 0.0
    %v8620 = vsel %vm8584, %v98, 0.0
    %v8621 = vsel %vm8584, %v99, 0.0
    %v8622 = vsel %vm8584, %v100, 0.0
    %v8623 = vsel %vm8584, %v101, 0.0
    %v8624 = vsel %vm8584, %v102, 0.0
    %v8625 = vsel %vm8584, %v103, 0.0
    %v8626 = vsel %vm8584, %v104, 0.0
    %v8627 = vsel %vm8584, %v105, 0.0
    %v8628 = vsel %vm8584, %v106, 0.0
    %v8629 = vsel %vm8584, %v107, 0.0
    %v8630 = vsel %vm8584, %v108, 0.0
    %v8631 = vsel %vm8584, %v109, 0.0
    %v8632 = vsel %vm8584, %v110, 0.0
    %v8633 = vsel %vm8584, %v111, 0.0
    %v8634 = vsel %vm8584, %v112, 0.0
    %v8635 = vsel %vm8584, %v113, 0.0
    %v8636 = vsel %vm8584, %v114, 0.0
    %v8637 = vsel %vm8584, %v115, 0.0
    %v8638 = vsel %vm8584, %v116, 0.0
    %v8639 = vsel %vm8584, %v117, 0.0
    %v8640 = vsel %vm8584, %v118, 0.0
    %v8641 = vsel %vm8584, %v119, 0.0
    %v8642 = vsel %vm8584, %v120, 0.0
    %v8643 = vsel %vm8584, %v121, 0.0
    %v8644 = vsel %vm8584, %v122, 0.0
    %v8645 = vsel %vm8584, %v123, 0.0
    %v8646 = vsel %vm8584, %v124, 0.0
    %v8647 = vsel %vm8584, %v125, 0.0
    %v8648 = vsel %vm8584, %v126, 0.0
    %v8649 = vsel %vm8584, %v127, 0.0
    %v8650 = vsel %vm8584, %v128, 0.0
    %v8651 = vsel %vm8584, %v129, 0.0
    %v8652 = vsel %vm8584, %v130, 0.0
    %v8653 = vsel %vm8584, %v131, 0.0
    %v8654 = vsel %vm8584, %v132, 0.0
    %v8655 = vsel %vm8584, %v133, 0.0
    %v8656 = vsel %vm8584, %v134, 0.0
    %v8657 = vsel %vm8584, %v135, 0.0
    %v8658 = vsel %vm8584, %v136, 0.0
    %v8659 = vsel %vm8584, %v137, 0.0
    %v8660 = vsel %vm8584, %v138, 0.0
    %v8661 = vsel %vm8584, %v139, 0.0
    %v8662 = vsel %vm8584, %v140, 0.0
    %v8663 = vsel %vm8584, %v141, 0.0
    %v8664 = vsel %vm8584, %v142, 0.0
    %v8665 = vadd.f32 %v8500, %v8585
    %v8666 = vadd.f32 %v8501, %v8586
    %v8667 = vadd.f32 %v8502, %v8587
    %v8668 = vadd.f32 %v8503, %v8588
    %v8669 = vadd.f32 %v8504, %v8589
    %v8670 = vadd.f32 %v8505, %v8590
    %v8671 = vadd.f32 %v8506, %v8591
    %v8672 = vadd.f32 %v8507, %v8592
    %v8673 = vadd.f32 %v8508, %v8593
    %v8674 = vadd.f32 %v8509, %v8594
    %v8675 = vadd.f32 %v8510, %v8595
    %v8676 = vadd.f32 %v8511, %v8596
    %v8677 = vadd.f32 %v8512, %v8597
    %v8678 = vadd.f32 %v8513, %v8598
    %v8679 = vadd.f32 %v8514, %v8599
    %v8680 = vadd.f32 %v8515, %v8600
    %v8681 = vadd.f32 %v8516, %v8601
    %v8682 = vadd.f32 %v8517, %v8602
    %v8683 = vadd.f32 %v8518, %v8603
    %v8684 = vadd.f32 %v8519, %v8604
    %v8685 = vadd.f32 %v8520, %v8605
    %v8686 = vadd.f32 %v8521, %v8606
    %v8687 = vadd.f32 %v8522, %v8607
    %v8688 = vadd.f32 %v8523, %v8608
    %v8689 = vadd.f32 %v8524, %v8609
    %v8690 = vadd.f32 %v8525, %v8610
    %v8691 = vadd.f32 %v8526, %v8611
    %v8692 = vadd.f32 %v8527, %v8612
    %v8693 = vadd.f32 %v8528, %v8613
    %v8694 = vadd.f32 %v8529, %v8614
    %v8695 = vadd.f32 %v8530, %v8615
    %v8696 = vadd.f32 %v8531, %v8616
    %v8697 = vadd.f32 %v8532, %v8617
    %v8698 = vadd.f32 %v8533, %v8618
    %v8699 = vadd.f32 %v8534, %v8619
    %v8700 = vadd.f32 %v8535, %v8620
    %v8701 = vadd.f32 %v8536, %v8621
    %v8702 = vadd.f32 %v8537, %v8622
    %v8703 = vadd.f32 %v8538, %v8623
    %v8704 = vadd.f32 %v8539, %v8624
    %v8705 = vadd.f32 %v8540, %v8625
    %v8706 = vadd.f32 %v8541, %v8626
    %v8707 = vadd.f32 %v8542, %v8627
    %v8708 = vadd.f32 %v8543, %v8628
    %v8709 = vadd.f32 %v8544, %v8629
    %v8710 = vadd.f32 %v8545, %v8630
    %v8711 = vadd.f32 %v8546, %v8631
    %v8712 = vadd.f32 %v8547, %v8632
    %v8713 = vadd.f32 %v8548, %v8633
    %v8714 = vadd.f32 %v8549, %v8634
    %v8715 = vadd.f32 %v8550, %v8635
    %v8716 = vadd.f32 %v8551, %v8636
    %v8717 = vadd.f32 %v8552, %v8637
    %v8718 = vadd.f32 %v8553, %v8638
    %v8719 = vadd.f32 %v8554, %v8639
    %v8720 = vadd.f32 %v8555, %v8640
    %v8721 = vadd.f32 %v8556, %v8641
    %v8722 = vadd.f32 %v8557, %v8642
    %v8723 = vadd.f32 %v8558, %v8643
    %v8724 = vadd.f32 %v8559, %v8644
    %v8725 = vadd.f32 %v8560, %v8645
    %v8726 = vadd.f32 %v8561, %v8646
    %v8727 = vadd.f32 %v8562, %v8647
    %v8728 = vadd.f32 %v8563, %v8648
    %v8729 = vadd.f32 %v8564, %v8649
    %v8730 = vadd.f32 %v8565, %v8650
    %v8731 = vadd.f32 %v8566, %v8651
    %v8732 = vadd.f32 %v8567, %v8652
    %v8733 = vadd.f32 %v8568, %v8653
    %v8734 = vadd.f32 %v8569, %v8654
    %v8735 = vadd.f32 %v8570, %v8655
    %v8736 = vadd.f32 %v8571, %v8656
    %v8737 = vadd.f32 %v8572, %v8657
    %v8738 = vadd.f32 %v8573, %v8658
    %v8739 = vadd.f32 %v8574, %v8659
    %v8740 = vadd.f32 %v8575, %v8660
    %v8741 = vadd.f32 %v8576, %v8661
    %v8742 = vadd.f32 %v8577, %v8662
    %v8743 = vadd.f32 %v8578, %v8663
    %v8744 = vadd.f32 %v8579, %v8664
    %8745 = vst [vmem:[#allocation9] sm:$0xff] %v8665
    %8746 = vst [vmem:[#allocation9 + $0x8] sm:$0xff] %v8666
    %8747 = vst [vmem:[#allocation9 + $0x10] sm:$0xff] %v8667
    %8748 = vst [vmem:[#allocation9 + $0x18] sm:$0xff] %v8668
    %8749 = vst [vmem:[#allocation9 + $0x20] sm:$0xff] %v8669
    %8750 = vst [vmem:[#allocation9 + $0x28] sm:$0xff] %v8670
    %8751 = vst [vmem:[#allocation9 + $0x30] sm:$0xff] %v8671
    %8752 = vst [vmem:[#allocation9 + $0x38] sm:$0xff] %v8672
    %8753 = vst [vmem:[#allocation9 + $0x40] sm:$0xff] %v8673
    %8754 = vst [vmem:[#allocation9 + $0x48] sm:$0xff] %v8674
    %8755 = vst [vmem:[#allocation9 + $0x50] sm:$0xff] %v8675
    %8756 = vst [vmem:[#allocation9 + $0x58] sm:$0xff] %v8676
    %8757 = vst [vmem:[#allocation9 + $0x60] sm:$0xff] %v8677
    %8758 = vst [vmem:[#allocation9 + $0x68] sm:$0xff] %v8678
    %8759 = vst [vmem:[#allocation9 + $0x70] sm:$0xff] %v8679
    %8760 = vst [vmem:[#allocation9 + $0x78] sm:$0xff] %v8680
    %8761 = vst [vmem:[#allocation9 + $0x80] sm:$0xff] %v8681
    %8762 = vst [vmem:[#allocation9 + $0x88] sm:$0xff] %v8682
    %8763 = vst [vmem:[#allocation9 + $0x90] sm:$0xff] %v8683
    %8764 = vst [vmem:[#allocation9 + $0x98] sm:$0xff] %v8684
    %8765 = vst [vmem:[#allocation9 + $0xa0] sm:$0xff] %v8685
    %8766 = vst [vmem:[#allocation9 + $0xa8] sm:$0xff] %v8686
    %8767 = vst [vmem:[#allocation9 + $0xb0] sm:$0xff] %v8687
    %8768 = vst [vmem:[#allocation9 + $0xb8] sm:$0xff] %v8688
    %8769 = vst [vmem:[#allocation9 + $0xc0] sm:$0xff] %v8689
    %8770 = vst [vmem:[#allocation9 + $0xc8] sm:$0xff] %v8690
    %8771 = vst [vmem:[#allocation9 + $0xd0] sm:$0xff] %v8691
    %8772 = vst [vmem:[#allocation9 + $0xd8] sm:$0xff] %v8692
    %8773 = vst [vmem:[#allocation9 + $0xe0] sm:$0xff] %v8693
    %8774 = vst [vmem:[#allocation9 + $0xe8] sm:$0xff] %v8694
    %8775 = vst [vmem:[#allocation9 + $0xf0] sm:$0xff] %v8695
    %8776 = vst [vmem:[#allocation9 + $0xf8] sm:$0xff] %v8696
    %8777 = vst [vmem:[#allocation9 + $0x100] sm:$0xff] %v8697
    %8778 = vst [vmem:[#allocation9 + $0x108] sm:$0xff] %v8698
    %8779 = vst [vmem:[#allocation9 + $0x110] sm:$0xff] %v8699
    %8780 = vst [vmem:[#allocation9 + $0x118] sm:$0xff] %v8700
    %8781 = vst [vmem:[#allocation9 + $0x120] sm:$0xff] %v8701
    %8782 = vst [vmem:[#allocation9 + $0x128] sm:$0xff] %v8702
    %8783 = vst [vmem:[#allocation9 + $0x130] sm:$0xff] %v8703
    %8784 = vst [vmem:[#allocation9 + $0x138] sm:$0xff] %v8704
    %8785 = vst [vmem:[#allocation9 + $0x140] sm:$0xff] %v8705
    %8786 = vst [vmem:[#allocation9 + $0x148] sm:$0xff] %v8706
    %8787 = vst [vmem:[#allocation9 + $0x150] sm:$0xff] %v8707
    %8788 = vst [vmem:[#allocation9 + $0x158] sm:$0xff] %v8708
    %8789 = vst [vmem:[#allocation9 + $0x160] sm:$0xff] %v8709
    %8790 = vst [vmem:[#allocation9 + $0x168] sm:$0xff] %v8710
    %8791 = vst [vmem:[#allocation9 + $0x170] sm:$0xff] %v8711
    %8792 = vst [vmem:[#allocation9 + $0x178] sm:$0xff] %v8712
    %8793 = vst [vmem:[#allocation9 + $0x180] sm:$0xff] %v8713
    %8794 = vst [vmem:[#allocation9 + $0x188] sm:$0xff] %v8714
    %8795 = vst [vmem:[#allocation9 + $0x190] sm:$0xff] %v8715
    %8796 = vst [vmem:[#allocation9 + $0x198] sm:$0xff] %v8716
    %8797 = vst [vmem:[#allocation9 + $0x1a0] sm:$0xff] %v8717
    %8798 = vst [vmem:[#allocation9 + $0x1a8] sm:$0xff] %v8718
    %8799 = vst [vmem:[#allocation9 + $0x1b0] sm:$0xff] %v8719
    %8800 = vst [vmem:[#allocation9 + $0x1b8] sm:$0xff] %v8720
    %8801 = vst [vmem:[#allocation9 + $0x1c0] sm:$0xff] %v8721
    %8802 = vst [vmem:[#allocation9 + $0x1c8] sm:$0xff] %v8722
    %8803 = vst [vmem:[#allocation9 + $0x1d0] sm:$0xff] %v8723
    %8804 = vst [vmem:[#allocation9 + $0x1d8] sm:$0xff] %v8724
    %8805 = vst [vmem:[#allocation9 + $0x1e0] sm:$0xff] %v8725
    %8806 = vst [vmem:[#allocation9 + $0x1e8] sm:$0xff] %v8726
    %8807 = vst [vmem:[#allocation9 + $0x1f0] sm:$0xff] %v8727
    %8808 = vst [vmem:[#allocation9 + $0x1f8] sm:$0xff] %v8728
    %8809 = vst [vmem:[#allocation9 + $0x200] sm:$0xff] %v8729
    %8810 = vst [vmem:[#allocation9 + $0x208] sm:$0xff] %v8730
    %8811 = vst [vmem:[#allocation9 + $0x210] sm:$0xff] %v8731
    %8812 = vst [vmem:[#allocation9 + $0x218] sm:$0xff] %v8732
    %8813 = vst [vmem:[#allocation9 + $0x220] sm:$0xff] %v8733
    %8814 = vst [vmem:[#allocation9 + $0x228] sm:$0xff] %v8734
    %8815 = vst [vmem:[#allocation9 + $0x230] sm:$0xff] %v8735
    %8816 = vst [vmem:[#allocation9 + $0x238] sm:$0xff] %v8736
    %8817 = vst [vmem:[#allocation9 + $0x240] sm:$0xff] %v8737
    %8818 = vst [vmem:[#allocation9 + $0x248] sm:$0xff] %v8738
    %8819 = vst [vmem:[#allocation9 + $0x250] sm:$0xff] %v8739
    %8820 = vst [vmem:[#allocation9 + $0x258] sm:$0xff] %v8740
    %8821 = vst [vmem:[#allocation9 + $0x260] sm:$0xff] %v8741
    %8822 = vst [vmem:[#allocation9 + $0x268] sm:$0xff] %v8742
    %8823 = vst [vmem:[#allocation9 + $0x270] sm:$0xff] %v8743
    %8824 = vst [vmem:[#allocation9 + $0x278] sm:$0xff] %v8744
    // Predicated region
    $region38: #{tpu_custom_call.1} parent=1 // pred_check
      _
    $region39: #{tpu_custom_call.1} parent=1 // pred_check_branch
      %8826 = sbr.rel (0) target = $region41
    $region40: #{tpu_custom_call.1} parent=1 // pred_region
      %s8828 = ssub.s32 10240, 10240
      %8829 = vsyncadd [#allocation5], %s8828
      %s8830 = sshll.u32 [#allocation9], 4
      %s8831 = int_to_ptr.vmem [resolvable:$true] %s8830
      %8836 = dma.vmem_to_hbm [thread:$0]  %s8831, 10240, %s6, [#allocation5], 128, 128, 8
    $region41: #{tpu_custom_call.1} parent=1 // pred_fallthru
      _
    // Predicated region
    $region42: #{tpu_custom_call.1} parent=1 // pred_check
      _
    $region43: #{tpu_custom_call.1} parent=1 // pred_check_branch
      %8838 = sbr.rel (0) target = $region45
    $region44: #{tpu_custom_call.1} parent=1 // pred_region
      %8839 = dma.done [#allocation5], 10240
    $region45: #{tpu_custom_call.1} parent=1 // pred_fallthru
      _
    %8840 = vsyncpa [#allocation4], 1
    %8841 = vsyncpa [#allocation7], 1
    %8842 = vsyncpa [#allocation5], 1

</llo_original>
